<compile_context>
chip_gen: v6e
topology: v6e:2x2x1
jax: 0.10.0
libtpu: 0.0.40
codegen_flags: <defaults>
</compile_context>

<pallas_src>
import functools

import jax
import jax.numpy as jnp
from jax import lax
from jax.experimental import pallas as pl
from jax.experimental.pallas import tpu as pltpu


# --------------------------- helpers (wrapper side) --------------------------
def _pick_td(D, H, W, Cin_p, Cout, budget=8 * 1024 * 1024):
    """Largest depth tile (divisor of D, <=16) whose blocks fit the VMEM budget."""
    Hp, Wp = H + 2, W + 2
    WpC = Wp * Cin_p
    best = 1
    for td in range(1, min(D, 16) + 1):
        if D % td:
            continue
        need = (2 * (td + 2) * Hp * WpC * 2        # input slab, double-buffered
                + (td + 2) * Hp * WpC * 2          # activated-slab scratch
                + td * H * 9 * WpC * 2             # im2col scratch
                + 2 * td * H * W * Cout * 2        # output block, double-buffered
                + 2 * td * H * W * Cout * 4)       # f32 matmul result headroom
        if need <= budget:
            best = td
    return best


def _build_slabs(x_ndhwc, Cin_p, td):
    """ReplicationPad3d(1) + channel pad + bf16 + depth-tiled slab view.

    Returns (N, D//td, td+2, Hp, Wp*Cin_p) bf16.
    TODO(synk): replace this materialized pad/stack with an in-kernel
    clamped-index halo DMA to avoid the extra HBM read+write pass.
    """
    N, D, H, W, Cin = x_ndhwc.shape
    xp = jnp.pad(x_ndhwc, ((0, 0), (1, 1), (1, 1), (1, 1), (0, 0)), mode="edge")
    if Cin_p != Cin:
        xp = jnp.pad(xp, ((0, 0), (0, 0), (0, 0), (0, 0), (0, Cin_p - Cin)))
    xp = xp.astype(jnp.bfloat16)
    n_dt = D // td
    slabs = jnp.stack([xp[:, i * td:i * td + td + 2] for i in range(n_dt)],
                      axis=1)
    return slabs.reshape(N, n_dt, td + 2, H + 2, (W + 2) * Cin_p)


def _banded_weights(w, Cin_p, W, Cout):
    """(3,3,3,Cin,Cout) -> (9*Wp*Cin_p, W*Cout) bf16 banded matrix.

    Row index = ((kd*3 + kh)*Wp + w_in)*Cin_p + cin, col index = w_out*Cout + cout,
    value = w[kd, kh, w_in - w_out, cin, cout] (zero outside the 3-wide band).
    One matmul against the (td*H, 9*Wp*Cin_p) im2col LHS performs all 27 taps
    with a lane-dense (w, cout) output.
    """
    Cin = w.shape[3]
    Wp = W + 2
    wf = w.astype(jnp.float32)
    if Cin_p != Cin:
        wf = jnp.pad(wf, ((0, 0), (0, 0), (0, 0), (0, Cin_p - Cin), (0, 0)))
    sel = jnp.stack([jnp.eye(W, Wp, k=kw, dtype=jnp.float32) for kw in range(3)])
    wb = jnp.einsum("dhkio,kwp->dhpiwo", wf, sel)   # (3,3,Wp,Cin_p,W,Cout)
    return wb.reshape(9 * Wp * Cin_p, W * Cout).astype(jnp.bfloat16)


# --------------------- Conv3d (+ fused GN stats) kernel ----------------------
def _conv3d_kernel(act_ref, xs_ref, wb_ref, bias_ref, out_ref, stats_ref,
                   xact_ref, col_ref, *, td, H, W, WpC, slope, fuse_input_act):
    """One grid step = (sample n, depth tile t).

    act_ref:   (1, 2, WpC)           f32 previous-stage GN scale/shift (lane-tiled)
    xs_ref:    (1, 1, td+2, Hp, WpC) bf16 replication-padded input slab
    wb_ref:    (9*WpC, W*Cout)       bf16 banded weights (resident)
    bias_ref:  (1, W*Cout)           f32  bias tiled over w (resident)
    out_ref:   (1, 1, td*H, W*Cout)  bf16 conv output tile
    stats_ref: (1, 1, 2, W*Cout)     f32  per-(w, cout) sum / sum-of-squares
    xact_ref:  (td+2, Hp, WpC)       bf16 activated-slab scratch
    col_ref:   (td*H, 9*WpC)         bf16 im2col scratch (taps folded into K)
    """
    if fuse_input_act:
        # Stage-1 GroupNorm affine + LeakyReLU, applied once per padded plane
        # (exact: replication padding commutes with a per-channel affine+leaky).
        aa = act_ref[0, 0:1, :]
        bb = act_ref[0, 1:2, :]
        for p in range(td + 2):
            v = xs_ref[0, 0, p].astype(jnp.float32) * aa + bb
            xact_ref[p] = jnp.where(v > 0, v, slope * v).astype(xact_ref.dtype)

    def _window(p, kh):                              # (H, WpC) bf16, no reshape
        if fuse_input_act:
            return xact_ref[p, kh:kh + H, :]
        return xs_ref[0, 0, p, kh:kh + H, :]

    # im2col build: the (kd, kh) taps fold into the contraction dim; the kw tap
    # lives inside the banded weight matrix.
    for dd in range(td):
        r0 = dd * H
        for kd in range(3):
            for kh in range(3):
                c0 = (kd * 3 + kh) * WpC
                col_ref[r0:r0 + H, c0:c0 + WpC] = _window(dd + kd, kh)

    # Single accumulating MXU matmul for all 27 taps (f32 accumulation).
    y = jnp.dot(col_ref[...], wb_ref[...], preferred_element_type=jnp.float32)
    y = y + bias_ref[...]
    out_ref[0, 0] = y.astype(out_ref.dtype)

    # Fused GroupNorm statistics (reduced over rows here; over w / tiles later).
    stats_ref[0, 0, 0:1, :] = jnp.sum(y, axis=0, keepdims=True)
    stats_ref[0, 0, 1:2, :] = jnp.sum(y * y, axis=0, keepdims=True)


def _conv3d_stage(x_ndhwc, w, bias, *, act=None, slope=0.01):
    """ReplicationPad3d(1) + Conv3d(k=3) with fused GN stats.

    If act=(a, b) (per (N, Cin) scale/shift) is given, leaky(a*x + b) is applied
    to the padded input inside the kernel, fusing the previous stage's
    GroupNorm + LeakyReLU.
    Returns: out (N, D//td, td*H, W*Cout) bf16, stats (N, D//td, 2, W*Cout) f32.
    """
    N, D, H, W, Cin = x_ndhwc.shape
    Cout = w.shape[-1]
    Cin_p = ((Cin + 7) // 8) * 8
    Hp, Wp = H + 2, W + 2
    WpC = Wp * Cin_p
    td = _pick_td(D, H, W, Cin_p, Cout)
    n_dt = D // td

    slabs = _build_slabs(x_ndhwc, Cin_p, td)
    wb = _banded_weights(w, Cin_p, W, Cout)
    bias_t = jnp.tile(bias.astype(jnp.float32), (W,)).reshape(1, W * Cout)

    fuse = act is not None
    if fuse:
        a, b = act
        if Cin_p != Cin:
            a = jnp.pad(a, ((0, 0), (0, Cin_p - Cin)))
            b = jnp.pad(b, ((0, 0), (0, Cin_p - Cin)))
        a_t = jnp.tile(a[:, None, :], (1, Wp, 1)).reshape(N, WpC)
        b_t = jnp.tile(b[:, None, :], (1, Wp, 1)).reshape(N, WpC)
        act_arr = jnp.stack([a_t, b_t], axis=1).astype(jnp.float32)
    else:
        act_arr = jnp.zeros((N, 2, WpC), jnp.float32)

    kernel = functools.partial(_conv3d_kernel, td=td, H=H, W=W, WpC=WpC,
                               slope=slope, fuse_input_act=fuse)
    out, stats = pl.pallas_call(
        kernel,
        out_shape=(
            jax.ShapeDtypeStruct((N, n_dt, td * H, W * Cout), jnp.bfloat16),
            jax.ShapeDtypeStruct((N, n_dt, 2, W * Cout), jnp.float32),
        ),
        grid_spec=pltpu.PrefetchScalarGridSpec(
            num_scalar_prefetch=0,
            grid=(N, n_dt),
            in_specs=[
                pl.BlockSpec((1, 2, WpC), lambda n, t: (n, 0, 0)),
                pl.BlockSpec((1, 1, td + 2, Hp, WpC),
                             lambda n, t: (n, t, 0, 0, 0)),
                pl.BlockSpec((9 * WpC, W * Cout), lambda n, t: (0, 0)),
                pl.BlockSpec((1, W * Cout), lambda n, t: (0, 0)),
            ],
            out_specs=[
                pl.BlockSpec((1, 1, td * H, W * Cout),
                             lambda n, t: (n, t, 0, 0)),
                pl.BlockSpec((1, 1, 2, W * Cout), lambda n, t: (n, t, 0, 0)),
            ],
            scratch_shapes=[
                pltpu.VMEM((td + 2, Hp, WpC), jnp.bfloat16),
                pltpu.VMEM((td * H, 9 * WpC), jnp.bfloat16),
            ],
        ),
        compiler_params=pltpu.CompilerParams(
            dimension_semantics=("parallel", "parallel"),
            vmem_limit_bytes=48 * 1024 * 1024,
        ),
    )(act_arr, slabs, wb, bias_t)
    return out, stats


# -------------------- GroupNorm finalize (tiny O(N*C) glue) ------------------
def _gn_scale_shift(stats, gamma, beta, *, W, Cout, num_groups, count, eps):
    """Fused per-(n, tile) channel sums -> per-(n, channel) scale/shift."""
    N = stats.shape[0]
    s = stats.reshape(N, -1, 2, W, Cout).sum(axis=(1, 3))     # (N, 2, Cout) f32
    s1, s2 = s[:, 0, :], s[:, 1, :]
    G, cpg = num_groups, Cout // num_groups
    gmean = s1.reshape(N, G, cpg).sum(-1) / count             # (N, G)
    gmsq = s2.reshape(N, G, cpg).sum(-1) / count
    var = jnp.maximum(gmsq - gmean * gmean, 0.0)              # clamp: no NaN
    rstd = lax.rsqrt(var + eps)
    mean_c = jnp.repeat(gmean, cpg, axis=1)                   # (N, Cout)
    rstd_c = jnp.repeat(rstd, cpg, axis=1)
    a = gamma[None, :].astype(jnp.float32) * rstd_c           # y = a*x + b
    b = beta[None, :].astype(jnp.float32) - mean_c * a
    return a, b


# -------------------- GroupNorm apply + LeakyReLU kernel ---------------------
def _gn_lrelu_kernel(x_ref, a_ref, b_ref, o_ref, *, slope):
    y = x_ref[0].astype(jnp.float32) * a_ref[0] + b_ref[0]
    o_ref[0] = jnp.where(y > 0, y, slope * y).astype(o_ref.dtype)


def _gn_lrelu_apply(y, a, b, *, slope, out_dtype):
    """y: (N, S, Cout) conv output; a, b: (N, Cout) scale/shift."""
    N, S, Cout = y.shape
    # Fold spatial positions into the lane dim so every load/store is lane-dense.
    fold = 1
    if Cout < 128:
        for lw in (512, 384, 256, 128):
            if lw % Cout == 0 and S % (lw // Cout) == 0:
                fold = lw // Cout
                break
    LW = fold * Cout
    rows = S // fold

    max_elems = 512 * 1024                       # ~1 MiB bf16 / 2 MiB f32 block
    tr = rows
    if rows * LW > max_elems:
        tr = 8 if rows % 8 == 0 else rows
        for cand in (8192, 4096, 2048, 1024, 512, 256, 128, 64, 32, 16, 8):
            if rows % cand == 0 and cand * LW <= max_elems:
                tr = cand
                break
    T = rows // tr

    x2 = y.reshape(N, rows, LW)                  # contiguous -> free relabeling
    a_t = jnp.tile(a.astype(jnp.float32), (1, fold)).reshape(N, 1, LW)
    b_t = jnp.tile(b.astype(jnp.float32), (1, fold)).reshape(N, 1, LW)

    out = pl.pallas_call(
        functools.partial(_gn_lrelu_kernel, slope=slope),
        out_shape=jax.ShapeDtypeStruct((N, rows, LW), out_dtype),
        grid_spec=pltpu.PrefetchScalarGridSpec(
            num_scalar_prefetch=0,
            grid=(N, T),
            in_specs=[
                pl.BlockSpec((1, tr, LW), lambda n, t: (n, t, 0)),
                pl.BlockSpec((1, 1, LW), lambda n, t: (n, 0, 0)),
                pl.BlockSpec((1, 1, LW), lambda n, t: (n, 0, 0)),
            ],
            out_specs=pl.BlockSpec((1, tr, LW), lambda n, t: (n, t, 0)),
        ),
        compiler_params=pltpu.CompilerParams(
            dimension_semantics=("parallel", "parallel")),
    )(x2, a_t, b_t)
    return out.reshape(N, S, Cout)


# ------------------------------ DoubleConv3D ---------------------------------
def double_conv3d(x_ncdhw, params, *, num_groups, eps=1e-5, slope=0.01):
    x = jnp.transpose(x_ncdhw, (0, 2, 3, 4, 1))               # NCDHW -> NDHWC
    N, D, H, W, _ = x.shape
    Cout = params["w1"].shape[-1]
    assert Cout % num_groups == 0
    count = D * H * W * (Cout // num_groups)

    # Stage 1: replication-pad conv + fused GN statistics.
    y1, s1 = _conv3d_stage(x, params["w1"], params["b1"], slope=slope)
    a1, b1 = _gn_scale_shift(s1, params["g1"], params["beta1"], W=W, Cout=Cout,
                             num_groups=num_groups, count=count, eps=eps)

    # Stage 2: consumes stage 1's *raw* conv output; stage 1's GroupNorm affine
    # + LeakyReLU is applied inside the conv kernel (exact: replication padding
    # commutes with a per-channel affine + LeakyReLU).
    x2 = y1.reshape(N, D, H, W, Cout)
    y2, s2 = _conv3d_stage(x2, params["w2"], params["b2"], act=(a1, b1),
                           slope=slope)
    a2, b2 = _gn_scale_shift(s2, params["g2"], params["beta2"], W=W, Cout=Cout,
                             num_groups=num_groups, count=count, eps=eps)

    out = _gn_lrelu_apply(y2.reshape(N, D * H * W, Cout), a2, b2,
                          slope=slope, out_dtype=jnp.float32)
    out = out.reshape(N, D, H, W, Cout)
    return jnp.transpose(out, (0, 4, 1, 2, 3))                # NDHWC -> NCDHW


# ------------------------------ pure-JAX reference ---------------------------
def _ref_double_conv3d(x_ncdhw, params, *, num_groups, eps=1e-5, slope=0.01):
    def conv(x, w, b):
        xp = jnp.pad(x, ((0, 0), (0, 0), (1, 1), (1, 1), (1, 1)), mode="edge")
        w_oidk = jnp.transpose(w, (4, 3, 0, 1, 2))            # (Cout, Cin, 3,3,3)
        y = lax.conv_general_dilated(
            xp, w_oidk, window_strides=(1, 1, 1), padding="VALID",
            dimension_numbers=("NCDHW", "OIDHW", "NCDHW"))
        return y + b[None, :, None, None, None]

    def gn_lrelu(x, gamma, beta):
        N, C, D, H, W = x.shape
        xr = x.reshape(N, num_groups, C // num_groups, D, H, W)
        mean = xr.mean(axis=(2, 3, 4, 5), keepdims=True)
        var = ((xr - mean) ** 2).mean(axis=(2, 3, 4, 5), keepdims=True)
        xn = ((xr - mean) * lax.rsqrt(var + eps)).reshape(N, C, D, H, W)
        y = xn * gamma[None, :, None, None, None] + beta[None, :, None, None, None]
        return jnp.where(y > 0, y, slope * y)

    y = conv(x_ncdhw, params["w1"], params["b1"])
    y = gn_lrelu(y, params["g1"], params["beta1"])
    y = conv(y, params["w2"], params["b2"])
    y = gn_lrelu(y, params["g2"], params["beta2"])
    return y


# ----------------------------------- main ------------------------------------
if __name__ == "__main__":
    # Defaults in_channel=1/out_channel=1 are incompatible with GroupNorm(8, C);
    # use Cin=4, Cout=16, num_groups=8 at small spatial size.
    N, Cin, Cout, D, H, W = 2, 4, 16, 8, 8, 8
    num_groups = 8

    key = jax.random.PRNGKey(0)
    kx, kw1, kb1, kw2, kb2, kg1, kbt1, kg2, kbt2 = jax.random.split(key, 9)

    x = jax.random.normal(kx, (N, Cin, D, H, W), jnp.float32)   # NCDHW like PyTorch
    params = {
        "w1": 0.1 * jax.random.normal(kw1, (3, 3, 3, Cin, Cout), jnp.float32),
        "b1": 0.1 * jax.random.normal(kb1, (Cout,), jnp.float32),
        "w2": 0.1 * jax.random.normal(kw2, (3, 3, 3, Cout, Cout), jnp.float32),
        "b2": 0.1 * jax.random.normal(kb2, (Cout,), jnp.float32),
        "g1": 1.0 + 0.1 * jax.random.normal(kg1, (Cout,), jnp.float32),
        "beta1": 0.1 * jax.random.normal(kbt1, (Cout,), jnp.float32),
        "g2": 1.0 + 0.1 * jax.random.normal(kg2, (Cout,), jnp.float32),
        "beta2": 0.1 * jax.random.normal(kbt2, (Cout,), jnp.float32),
    }

    fn = jax.jit(functools.partial(double_conv3d, num_groups=num_groups))
    out = jax.block_until_ready(fn(x, params))

    ref = _ref_double_conv3d(x, params, num_groups=num_groups)
    assert out.shape == (N, Cout, D, H, W)
    # bf16 MXU operands / bf16 intermediate activations -> loosened tolerance.
    err = float(jnp.max(jnp.abs(out - ref)))
    assert err < 3e-2, f"max abs err {err}"

    print("KERNEL_OK")
</pallas_src>

<mosaic_0001>
module attributes {stable_mosaic.version = 11 : i64} {
  func.func @_conv3d_kernel(%arg0: i32, %arg1: i32, %arg2: memref<1x2x80xf32, #tpu.memory_space<vmem>>, %arg3: memref<1x1x10x10x80xbf16, #tpu.memory_space<vmem>>, %arg4: memref<720x128xbf16, #tpu.memory_space<vmem>>, %arg5: memref<1x128xf32, #tpu.memory_space<vmem>>, %arg6: memref<1x1x64x128xbf16, #tpu.memory_space<vmem>>, %arg7: memref<1x1x2x128xf32, #tpu.memory_space<vmem>>, %arg8: memref<10x10x80xbf16, #tpu.memory_space<vmem>>, %arg9: memref<64x720xbf16, #tpu.memory_space<vmem>>) attributes {dimension_semantics = [#tpu.dimension_semantics<parallel>, #tpu.dimension_semantics<parallel>], iteration_bounds = array<i64: 2, 1>, scalar_prefetch = 0 : i64, scratch_operands = 2 : i64, tpu.core_type = #tpu.core_type<tc>, window_params = [{transform_indices = @transform_0, window_bounds = array<i64: 1, 2, 80>}, {transform_indices = @transform_1, window_bounds = array<i64: 1, 1, 10, 10, 80>}, {pipeline_mode = #tpu.pipeline_mode<synchronous>, transform_indices = @transform_2, window_bounds = array<i64: 720, 128>}, {pipeline_mode = #tpu.pipeline_mode<synchronous>, transform_indices = @transform_3, window_bounds = array<i64: 1, 128>}, {transform_indices = @transform_4, window_bounds = array<i64: 1, 1, 64, 128>}, {transform_indices = @transform_5, window_bounds = array<i64: 1, 1, 2, 128>}]} {
    %c0 = arith.constant 0 : index
    %c0_0 = arith.constant 0 : index
    %c0_1 = arith.constant 0 : index
    %c0_2 = arith.constant 0 : index
    %c0_3 = arith.constant 0 : index
    %0 = vector.load %arg3[%c0, %c0_0, %c0_1, %c0_2, %c0_3] : memref<1x1x10x10x80xbf16, #tpu.memory_space<vmem>>, vector<1x1x1x8x80xbf16>
    %1 = vector.shape_cast %0 : vector<1x1x1x8x80xbf16> to vector<8x80xbf16>
    %c0_4 = arith.constant 0 : index
    %c0_5 = arith.constant 0 : index
    %2 = vector.load %arg9[%c0_4, %c0_5] : memref<64x720xbf16, #tpu.memory_space<vmem>>, vector<8x80xbf16>
    tpu.vector_store %arg9[%c0_4, %c0_5], %1 {strides = array<i32>} : memref<64x720xbf16, #tpu.memory_space<vmem>>, vector<8x80xbf16>,
    %c0_6 = arith.constant 0 : index
    %c0_7 = arith.constant 0 : index
    %c0_8 = arith.constant 0 : index
    %c1 = arith.constant 1 : index
    %c0_9 = arith.constant 0 : index
    %3 = vector.load %arg3[%c0_6, %c0_7, %c0_8, %c1, %c0_9] : memref<1x1x10x10x80xbf16, #tpu.memory_space<vmem>>, vector<1x1x1x8x80xbf16>
    %4 = vector.shape_cast %3 : vector<1x1x1x8x80xbf16> to vector<8x80xbf16>
    %c0_10 = arith.constant 0 : index
    %c80 = arith.constant 80 : index
    %5 = vector.load %arg9[%c0_10, %c80] : memref<64x720xbf16, #tpu.memory_space<vmem>>, vector<8x80xbf16>
    tpu.vector_store %arg9[%c0_10, %c80], %4 {strides = array<i32>} : memref<64x720xbf16, #tpu.memory_space<vmem>>, vector<8x80xbf16>,
    %c0_11 = arith.constant 0 : index
    %c0_12 = arith.constant 0 : index
    %c0_13 = arith.constant 0 : index
    %c2 = arith.constant 2 : index
    %c0_14 = arith.constant 0 : index
    %6 = vector.load %arg3[%c0_11, %c0_12, %c0_13, %c2, %c0_14] : memref<1x1x10x10x80xbf16, #tpu.memory_space<vmem>>, vector<1x1x1x8x80xbf16>
    %7 = vector.shape_cast %6 : vector<1x1x1x8x80xbf16> to vector<8x80xbf16>
    %c0_15 = arith.constant 0 : index
    %c160 = arith.constant 160 : index
    %8 = vector.load %arg9[%c0_15, %c160] : memref<64x720xbf16, #tpu.memory_space<vmem>>, vector<8x80xbf16>
    tpu.vector_store %arg9[%c0_15, %c160], %7 {strides = array<i32>} : memref<64x720xbf16, #tpu.memory_space<vmem>>, vector<8x80xbf16>,
    %c0_16 = arith.constant 0 : index
    %c0_17 = arith.constant 0 : index
    %c1_18 = arith.constant 1 : index
    %c0_19 = arith.constant 0 : index
    %c0_20 = arith.constant 0 : index
    %9 = vector.load %arg3[%c0_16, %c0_17, %c1_18, %c0_19, %c0_20] : memref<1x1x10x10x80xbf16, #tpu.memory_space<vmem>>, vector<1x1x1x8x80xbf16>
    %10 = vector.shape_cast %9 : vector<1x1x1x8x80xbf16> to vector<8x80xbf16>
    %c0_21 = arith.constant 0 : index
    %c240 = arith.constant 240 : index
    %11 = vector.load %arg9[%c0_21, %c240] : memref<64x720xbf16, #tpu.memory_space<vmem>>, vector<8x80xbf16>
    tpu.vector_store %arg9[%c0_21, %c240], %10 {strides = array<i32>} : memref<64x720xbf16, #tpu.memory_space<vmem>>, vector<8x80xbf16>,
    %c0_22 = arith.constant 0 : index
    %c0_23 = arith.constant 0 : index
    %c1_24 = arith.constant 1 : index
    %c1_25 = arith.constant 1 : index
    %c0_26 = arith.constant 0 : index
    %12 = vector.load %arg3[%c0_22, %c0_23, %c1_24, %c1_25, %c0_26] : memref<1x1x10x10x80xbf16, #tpu.memory_space<vmem>>, vector<1x1x1x8x80xbf16>
    %13 = vector.shape_cast %12 : vector<1x1x1x8x80xbf16> to vector<8x80xbf16>
    %c0_27 = arith.constant 0 : index
    %c320 = arith.constant 320 : index
    %14 = vector.load %arg9[%c0_27, %c320] : memref<64x720xbf16, #tpu.memory_space<vmem>>, vector<8x80xbf16>
    tpu.vector_store %arg9[%c0_27, %c320], %13 {strides = array<i32>} : memref<64x720xbf16, #tpu.memory_space<vmem>>, vector<8x80xbf16>,
    %c0_28 = arith.constant 0 : index
    %c0_29 = arith.constant 0 : index
    %c1_30 = arith.constant 1 : index
    %c2_31 = arith.constant 2 : index
    %c0_32 = arith.constant 0 : index
    %15 = vector.load %arg3[%c0_28, %c0_29, %c1_30, %c2_31, %c0_32] : memref<1x1x10x10x80xbf16, #tpu.memory_space<vmem>>, vector<1x1x1x8x80xbf16>
    %16 = vector.shape_cast %15 : vector<1x1x1x8x80xbf16> to vector<8x80xbf16>
    %c0_33 = arith.constant 0 : index
    %c400 = arith.constant 400 : index
    %17 = vector.load %arg9[%c0_33, %c400] : memref<64x720xbf16, #tpu.memory_space<vmem>>, vector<8x80xbf16>
    tpu.vector_store %arg9[%c0_33, %c400], %16 {strides = array<i32>} : memref<64x720xbf16, #tpu.memory_space<vmem>>, vector<8x80xbf16>,
    %c0_34 = arith.constant 0 : index
    %c0_35 = arith.constant 0 : index
    %c2_36 = arith.constant 2 : index
    %c0_37 = arith.constant 0 : index
    %c0_38 = arith.constant 0 : index
    %18 = vector.load %arg3[%c0_34, %c0_35, %c2_36, %c0_37, %c0_38] : memref<1x1x10x10x80xbf16, #tpu.memory_space<vmem>>, vector<1x1x1x8x80xbf16>
    %19 = vector.shape_cast %18 : vector<1x1x1x8x80xbf16> to vector<8x80xbf16>
    %c0_39 = arith.constant 0 : index
    %c480 = arith.constant 480 : index
    %20 = vector.load %arg9[%c0_39, %c480] : memref<64x720xbf16, #tpu.memory_space<vmem>>, vector<8x80xbf16>
    tpu.vector_store %arg9[%c0_39, %c480], %19 {strides = array<i32>} : memref<64x720xbf16, #tpu.memory_space<vmem>>, vector<8x80xbf16>,
    %c0_40 = arith.constant 0 : index
    %c0_41 = arith.constant 0 : index
    %c2_42 = arith.constant 2 : index
    %c1_43 = arith.constant 1 : index
    %c0_44 = arith.constant 0 : index
    %21 = vector.load %arg3[%c0_40, %c0_41, %c2_42, %c1_43, %c0_44] : memref<1x1x10x10x80xbf16, #tpu.memory_space<vmem>>, vector<1x1x1x8x80xbf16>
    %22 = vector.shape_cast %21 : vector<1x1x1x8x80xbf16> to vector<8x80xbf16>
    %c0_45 = arith.constant 0 : index
    %c560 = arith.constant 560 : index
    %23 = vector.load %arg9[%c0_45, %c560] : memref<64x720xbf16, #tpu.memory_space<vmem>>, vector<8x80xbf16>
    tpu.vector_store %arg9[%c0_45, %c560], %22 {strides = array<i32>} : memref<64x720xbf16, #tpu.memory_space<vmem>>, vector<8x80xbf16>,
    %c0_46 = arith.constant 0 : index
    %c0_47 = arith.constant 0 : index
    %c2_48 = arith.constant 2 : index
    %c2_49 = arith.constant 2 : index
    %c0_50 = arith.constant 0 : index
    %24 = vector.load %arg3[%c0_46, %c0_47, %c2_48, %c2_49, %c0_50] : memref<1x1x10x10x80xbf16, #tpu.memory_space<vmem>>, vector<1x1x1x8x80xbf16>
    %25 = vector.shape_cast %24 : vector<1x1x1x8x80xbf16> to vector<8x80xbf16>
    %c0_51 = arith.constant 0 : index
    %c640 = arith.constant 640 : index
    %26 = vector.load %arg9[%c0_51, %c640] : memref<64x720xbf16, #tpu.memory_space<vmem>>, vector<8x80xbf16>
    tpu.vector_store %arg9[%c0_51, %c640], %25 {strides = array<i32>} : memref<64x720xbf16, #tpu.memory_space<vmem>>, vector<8x80xbf16>,
    %c0_52 = arith.constant 0 : index
    %c0_53 = arith.constant 0 : index
    %c1_54 = arith.constant 1 : index
    %c0_55 = arith.constant 0 : index
    %c0_56 = arith.constant 0 : index
    %27 = vector.load %arg3[%c0_52, %c0_53, %c1_54, %c0_55, %c0_56] : memref<1x1x10x10x80xbf16, #tpu.memory_space<vmem>>, vector<1x1x1x8x80xbf16>
    %28 = vector.shape_cast %27 : vector<1x1x1x8x80xbf16> to vector<8x80xbf16>
    %c8 = arith.constant 8 : index
    %c0_57 = arith.constant 0 : index
    %29 = vector.load %arg9[%c8, %c0_57] : memref<64x720xbf16, #tpu.memory_space<vmem>>, vector<8x80xbf16>
    tpu.vector_store %arg9[%c8, %c0_57], %28 {strides = array<i32>} : memref<64x720xbf16, #tpu.memory_space<vmem>>, vector<8x80xbf16>,
    %c0_58 = arith.constant 0 : index
    %c0_59 = arith.constant 0 : index
    %c1_60 = arith.constant 1 : index
    %c1_61 = arith.constant 1 : index
    %c0_62 = arith.constant 0 : index
    %30 = vector.load %arg3[%c0_58, %c0_59, %c1_60, %c1_61, %c0_62] : memref<1x1x10x10x80xbf16, #tpu.memory_space<vmem>>, vector<1x1x1x8x80xbf16>
    %31 = vector.shape_cast %30 : vector<1x1x1x8x80xbf16> to vector<8x80xbf16>
    %c8_63 = arith.constant 8 : index
    %c80_64 = arith.constant 80 : index
    %32 = vector.load %arg9[%c8_63, %c80_64] : memref<64x720xbf16, #tpu.memory_space<vmem>>, vector<8x80xbf16>
    tpu.vector_store %arg9[%c8_63, %c80_64], %31 {strides = array<i32>} : memref<64x720xbf16, #tpu.memory_space<vmem>>, vector<8x80xbf16>,
    %c0_65 = arith.constant 0 : index
    %c0_66 = arith.constant 0 : index
    %c1_67 = arith.constant 1 : index
    %c2_68 = arith.constant 2 : index
    %c0_69 = arith.constant 0 : index
    %33 = vector.load %arg3[%c0_65, %c0_66, %c1_67, %c2_68, %c0_69] : memref<1x1x10x10x80xbf16, #tpu.memory_space<vmem>>, vector<1x1x1x8x80xbf16>
    %34 = vector.shape_cast %33 : vector<1x1x1x8x80xbf16> to vector<8x80xbf16>
    %c8_70 = arith.constant 8 : index
    %c160_71 = arith.constant 160 : index
    %35 = vector.load %arg9[%c8_70, %c160_71] : memref<64x720xbf16, #tpu.memory_space<vmem>>, vector<8x80xbf16>
    tpu.vector_store %arg9[%c8_70, %c160_71], %34 {strides = array<i32>} : memref<64x720xbf16, #tpu.memory_space<vmem>>, vector<8x80xbf16>,
    %c0_72 = arith.constant 0 : index
    %c0_73 = arith.constant 0 : index
    %c2_74 = arith.constant 2 : index
    %c0_75 = arith.constant 0 : index
    %c0_76 = arith.constant 0 : index
    %36 = vector.load %arg3[%c0_72, %c0_73, %c2_74, %c0_75, %c0_76] : memref<1x1x10x10x80xbf16, #tpu.memory_space<vmem>>, vector<1x1x1x8x80xbf16>
    %37 = vector.shape_cast %36 : vector<1x1x1x8x80xbf16> to vector<8x80xbf16>
    %c8_77 = arith.constant 8 : index
    %c240_78 = arith.constant 240 : index
    %38 = vector.load %arg9[%c8_77, %c240_78] : memref<64x720xbf16, #tpu.memory_space<vmem>>, vector<8x80xbf16>
    tpu.vector_store %arg9[%c8_77, %c240_78], %37 {strides = array<i32>} : memref<64x720xbf16, #tpu.memory_space<vmem>>, vector<8x80xbf16>,
    %c0_79 = arith.constant 0 : index
    %c0_80 = arith.constant 0 : index
    %c2_81 = arith.constant 2 : index
    %c1_82 = arith.constant 1 : index
    %c0_83 = arith.constant 0 : index
    %39 = vector.load %arg3[%c0_79, %c0_80, %c2_81, %c1_82, %c0_83] : memref<1x1x10x10x80xbf16, #tpu.memory_space<vmem>>, vector<1x1x1x8x80xbf16>
    %40 = vector.shape_cast %39 : vector<1x1x1x8x80xbf16> to vector<8x80xbf16>
    %c8_84 = arith.constant 8 : index
    %c320_85 = arith.constant 320 : index
    %41 = vector.load %arg9[%c8_84, %c320_85] : memref<64x720xbf16, #tpu.memory_space<vmem>>, vector<8x80xbf16>
    tpu.vector_store %arg9[%c8_84, %c320_85], %40 {strides = array<i32>} : memref<64x720xbf16, #tpu.memory_space<vmem>>, vector<8x80xbf16>,
    %c0_86 = arith.constant 0 : index
    %c0_87 = arith.constant 0 : index
    %c2_88 = arith.constant 2 : index
    %c2_89 = arith.constant 2 : index
    %c0_90 = arith.constant 0 : index
    %42 = vector.load %arg3[%c0_86, %c0_87, %c2_88, %c2_89, %c0_90] : memref<1x1x10x10x80xbf16, #tpu.memory_space<vmem>>, vector<1x1x1x8x80xbf16>
    %43 = vector.shape_cast %42 : vector<1x1x1x8x80xbf16> to vector<8x80xbf16>
    %c8_91 = arith.constant 8 : index
    %c400_92 = arith.constant 400 : index
    %44 = vector.load %arg9[%c8_91, %c400_92] : memref<64x720xbf16, #tpu.memory_space<vmem>>, vector<8x80xbf16>
    tpu.vector_store %arg9[%c8_91, %c400_92], %43 {strides = array<i32>} : memref<64x720xbf16, #tpu.memory_space<vmem>>, vector<8x80xbf16>,
    %c0_93 = arith.constant 0 : index
    %c0_94 = arith.constant 0 : index
    %c3 = arith.constant 3 : index
    %c0_95 = arith.constant 0 : index
    %c0_96 = arith.constant 0 : index
    %45 = vector.load %arg3[%c0_93, %c0_94, %c3, %c0_95, %c0_96] : memref<1x1x10x10x80xbf16, #tpu.memory_space<vmem>>, vector<1x1x1x8x80xbf16>
    %46 = vector.shape_cast %45 : vector<1x1x1x8x80xbf16> to vector<8x80xbf16>
    %c8_97 = arith.constant 8 : index
    %c480_98 = arith.constant 480 : index
    %47 = vector.load %arg9[%c8_97, %c480_98] : memref<64x720xbf16, #tpu.memory_space<vmem>>, vector<8x80xbf16>
    tpu.vector_store %arg9[%c8_97, %c480_98], %46 {strides = array<i32>} : memref<64x720xbf16, #tpu.memory_space<vmem>>, vector<8x80xbf16>,
    %c0_99 = arith.constant 0 : index
    %c0_100 = arith.constant 0 : index
    %c3_101 = arith.constant 3 : index
    %c1_102 = arith.constant 1 : index
    %c0_103 = arith.constant 0 : index
    %48 = vector.load %arg3[%c0_99, %c0_100, %c3_101, %c1_102, %c0_103] : memref<1x1x10x10x80xbf16, #tpu.memory_space<vmem>>, vector<1x1x1x8x80xbf16>
    %49 = vector.shape_cast %48 : vector<1x1x1x8x80xbf16> to vector<8x80xbf16>
    %c8_104 = arith.constant 8 : index
    %c560_105 = arith.constant 560 : index
    %50 = vector.load %arg9[%c8_104, %c560_105] : memref<64x720xbf16, #tpu.memory_space<vmem>>, vector<8x80xbf16>
    tpu.vector_store %arg9[%c8_104, %c560_105], %49 {strides = array<i32>} : memref<64x720xbf16, #tpu.memory_space<vmem>>, vector<8x80xbf16>,
    %c0_106 = arith.constant 0 : index
    %c0_107 = arith.constant 0 : index
    %c3_108 = arith.constant 3 : index
    %c2_109 = arith.constant 2 : index
    %c0_110 = arith.constant 0 : index
    %51 = vector.load %arg3[%c0_106, %c0_107, %c3_108, %c2_109, %c0_110] : memref<1x1x10x10x80xbf16, #tpu.memory_space<vmem>>, vector<1x1x1x8x80xbf16>
    %52 = vector.shape_cast %51 : vector<1x1x1x8x80xbf16> to vector<8x80xbf16>
    %c8_111 = arith.constant 8 : index
    %c640_112 = arith.constant 640 : index
    %53 = vector.load %arg9[%c8_111, %c640_112] : memref<64x720xbf16, #tpu.memory_space<vmem>>, vector<8x80xbf16>
    tpu.vector_store %arg9[%c8_111, %c640_112], %52 {strides = array<i32>} : memref<64x720xbf16, #tpu.memory_space<vmem>>, vector<8x80xbf16>,
    %c0_113 = arith.constant 0 : index
    %c0_114 = arith.constant 0 : index
    %c2_115 = arith.constant 2 : index
    %c0_116 = arith.constant 0 : index
    %c0_117 = arith.constant 0 : index
    %54 = vector.load %arg3[%c0_113, %c0_114, %c2_115, %c0_116, %c0_117] : memref<1x1x10x10x80xbf16, #tpu.memory_space<vmem>>, vector<1x1x1x8x80xbf16>
    %55 = vector.shape_cast %54 : vector<1x1x1x8x80xbf16> to vector<8x80xbf16>
    %c16 = arith.constant 16 : index
    %c0_118 = arith.constant 0 : index
    %56 = vector.load %arg9[%c16, %c0_118] : memref<64x720xbf16, #tpu.memory_space<vmem>>, vector<8x80xbf16>
    tpu.vector_store %arg9[%c16, %c0_118], %55 {strides = array<i32>} : memref<64x720xbf16, #tpu.memory_space<vmem>>, vector<8x80xbf16>,
    %c0_119 = arith.constant 0 : index
    %c0_120 = arith.constant 0 : index
    %c2_121 = arith.constant 2 : index
    %c1_122 = arith.constant 1 : index
    %c0_123 = arith.constant 0 : index
    %57 = vector.load %arg3[%c0_119, %c0_120, %c2_121, %c1_122, %c0_123] : memref<1x1x10x10x80xbf16, #tpu.memory_space<vmem>>, vector<1x1x1x8x80xbf16>
    %58 = vector.shape_cast %57 : vector<1x1x1x8x80xbf16> to vector<8x80xbf16>
    %c16_124 = arith.constant 16 : index
    %c80_125 = arith.constant 80 : index
    %59 = vector.load %arg9[%c16_124, %c80_125] : memref<64x720xbf16, #tpu.memory_space<vmem>>, vector<8x80xbf16>
    tpu.vector_store %arg9[%c16_124, %c80_125], %58 {strides = array<i32>} : memref<64x720xbf16, #tpu.memory_space<vmem>>, vector<8x80xbf16>,
    %c0_126 = arith.constant 0 : index
    %c0_127 = arith.constant 0 : index
    %c2_128 = arith.constant 2 : index
    %c2_129 = arith.constant 2 : index
    %c0_130 = arith.constant 0 : index
    %60 = vector.load %arg3[%c0_126, %c0_127, %c2_128, %c2_129, %c0_130] : memref<1x1x10x10x80xbf16, #tpu.memory_space<vmem>>, vector<1x1x1x8x80xbf16>
    %61 = vector.shape_cast %60 : vector<1x1x1x8x80xbf16> to vector<8x80xbf16>
    %c16_131 = arith.constant 16 : index
    %c160_132 = arith.constant 160 : index
    %62 = vector.load %arg9[%c16_131, %c160_132] : memref<64x720xbf16, #tpu.memory_space<vmem>>, vector<8x80xbf16>
    tpu.vector_store %arg9[%c16_131, %c160_132], %61 {strides = array<i32>} : memref<64x720xbf16, #tpu.memory_space<vmem>>, vector<8x80xbf16>,
    %c0_133 = arith.constant 0 : index
    %c0_134 = arith.constant 0 : index
    %c3_135 = arith.constant 3 : index
    %c0_136 = arith.constant 0 : index
    %c0_137 = arith.constant 0 : index
    %63 = vector.load %arg3[%c0_133, %c0_134, %c3_135, %c0_136, %c0_137] : memref<1x1x10x10x80xbf16, #tpu.memory_space<vmem>>, vector<1x1x1x8x80xbf16>
    %64 = vector.shape_cast %63 : vector<1x1x1x8x80xbf16> to vector<8x80xbf16>
    %c16_138 = arith.constant 16 : index
    %c240_139 = arith.constant 240 : index
    %65 = vector.load %arg9[%c16_138, %c240_139] : memref<64x720xbf16, #tpu.memory_space<vmem>>, vector<8x80xbf16>
    tpu.vector_store %arg9[%c16_138, %c240_139], %64 {strides = array<i32>} : memref<64x720xbf16, #tpu.memory_space<vmem>>, vector<8x80xbf16>,
    %c0_140 = arith.constant 0 : index
    %c0_141 = arith.constant 0 : index
    %c3_142 = arith.constant 3 : index
    %c1_143 = arith.constant 1 : index
    %c0_144 = arith.constant 0 : index
    %66 = vector.load %arg3[%c0_140, %c0_141, %c3_142, %c1_143, %c0_144] : memref<1x1x10x10x80xbf16, #tpu.memory_space<vmem>>, vector<1x1x1x8x80xbf16>
    %67 = vector.shape_cast %66 : vector<1x1x1x8x80xbf16> to vector<8x80xbf16>
    %c16_145 = arith.constant 16 : index
    %c320_146 = arith.constant 320 : index
    %68 = vector.load %arg9[%c16_145, %c320_146] : memref<64x720xbf16, #tpu.memory_space<vmem>>, vector<8x80xbf16>
    tpu.vector_store %arg9[%c16_145, %c320_146], %67 {strides = array<i32>} : memref<64x720xbf16, #tpu.memory_space<vmem>>, vector<8x80xbf16>,
    %c0_147 = arith.constant 0 : index
    %c0_148 = arith.constant 0 : index
    %c3_149 = arith.constant 3 : index
    %c2_150 = arith.constant 2 : index
    %c0_151 = arith.constant 0 : index
    %69 = vector.load %arg3[%c0_147, %c0_148, %c3_149, %c2_150, %c0_151] : memref<1x1x10x10x80xbf16, #tpu.memory_space<vmem>>, vector<1x1x1x8x80xbf16>
    %70 = vector.shape_cast %69 : vector<1x1x1x8x80xbf16> to vector<8x80xbf16>
    %c16_152 = arith.constant 16 : index
    %c400_153 = arith.constant 400 : index
    %71 = vector.load %arg9[%c16_152, %c400_153] : memref<64x720xbf16, #tpu.memory_space<vmem>>, vector<8x80xbf16>
    tpu.vector_store %arg9[%c16_152, %c400_153], %70 {strides = array<i32>} : memref<64x720xbf16, #tpu.memory_space<vmem>>, vector<8x80xbf16>,
    %c0_154 = arith.constant 0 : index
    %c0_155 = arith.constant 0 : index
    %c4 = arith.constant 4 : index
    %c0_156 = arith.constant 0 : index
    %c0_157 = arith.constant 0 : index
    %72 = vector.load %arg3[%c0_154, %c0_155, %c4, %c0_156, %c0_157] : memref<1x1x10x10x80xbf16, #tpu.memory_space<vmem>>, vector<1x1x1x8x80xbf16>
    %73 = vector.shape_cast %72 : vector<1x1x1x8x80xbf16> to vector<8x80xbf16>
    %c16_158 = arith.constant 16 : index
    %c480_159 = arith.constant 480 : index
    %74 = vector.load %arg9[%c16_158, %c480_159] : memref<64x720xbf16, #tpu.memory_space<vmem>>, vector<8x80xbf16>
    tpu.vector_store %arg9[%c16_158, %c480_159], %73 {strides = array<i32>} : memref<64x720xbf16, #tpu.memory_space<vmem>>, vector<8x80xbf16>,
    %c0_160 = arith.constant 0 : index
    %c0_161 = arith.constant 0 : index
    %c4_162 = arith.constant 4 : index
    %c1_163 = arith.constant 1 : index
    %c0_164 = arith.constant 0 : index
    %75 = vector.load %arg3[%c0_160, %c0_161, %c4_162, %c1_163, %c0_164] : memref<1x1x10x10x80xbf16, #tpu.memory_space<vmem>>, vector<1x1x1x8x80xbf16>
    %76 = vector.shape_cast %75 : vector<1x1x1x8x80xbf16> to vector<8x80xbf16>
    %c16_165 = arith.constant 16 : index
    %c560_166 = arith.constant 560 : index
    %77 = vector.load %arg9[%c16_165, %c560_166] : memref<64x720xbf16, #tpu.memory_space<vmem>>, vector<8x80xbf16>
    tpu.vector_store %arg9[%c16_165, %c560_166], %76 {strides = array<i32>} : memref<64x720xbf16, #tpu.memory_space<vmem>>, vector<8x80xbf16>,
    %c0_167 = arith.constant 0 : index
    %c0_168 = arith.constant 0 : index
    %c4_169 = arith.constant 4 : index
    %c2_170 = arith.constant 2 : index
    %c0_171 = arith.constant 0 : index
    %78 = vector.load %arg3[%c0_167, %c0_168, %c4_169, %c2_170, %c0_171] : memref<1x1x10x10x80xbf16, #tpu.memory_space<vmem>>, vector<1x1x1x8x80xbf16>
    %79 = vector.shape_cast %78 : vector<1x1x1x8x80xbf16> to vector<8x80xbf16>
    %c16_172 = arith.constant 16 : index
    %c640_173 = arith.constant 640 : index
    %80 = vector.load %arg9[%c16_172, %c640_173] : memref<64x720xbf16, #tpu.memory_space<vmem>>, vector<8x80xbf16>
    tpu.vector_store %arg9[%c16_172, %c640_173], %79 {strides = array<i32>} : memref<64x720xbf16, #tpu.memory_space<vmem>>, vector<8x80xbf16>,
    %c0_174 = arith.constant 0 : index
    %c0_175 = arith.constant 0 : index
    %c3_176 = arith.constant 3 : index
    %c0_177 = arith.constant 0 : index
    %c0_178 = arith.constant 0 : index
    %81 = vector.load %arg3[%c0_174, %c0_175, %c3_176, %c0_177, %c0_178] : memref<1x1x10x10x80xbf16, #tpu.memory_space<vmem>>, vector<1x1x1x8x80xbf16>
    %82 = vector.shape_cast %81 : vector<1x1x1x8x80xbf16> to vector<8x80xbf16>
    %c24 = arith.constant 24 : index
    %c0_179 = arith.constant 0 : index
    %83 = vector.load %arg9[%c24, %c0_179] : memref<64x720xbf16, #tpu.memory_space<vmem>>, vector<8x80xbf16>
    tpu.vector_store %arg9[%c24, %c0_179], %82 {strides = array<i32>} : memref<64x720xbf16, #tpu.memory_space<vmem>>, vector<8x80xbf16>,
    %c0_180 = arith.constant 0 : index
    %c0_181 = arith.constant 0 : index
    %c3_182 = arith.constant 3 : index
    %c1_183 = arith.constant 1 : index
    %c0_184 = arith.constant 0 : index
    %84 = vector.load %arg3[%c0_180, %c0_181, %c3_182, %c1_183, %c0_184] : memref<1x1x10x10x80xbf16, #tpu.memory_space<vmem>>, vector<1x1x1x8x80xbf16>
    %85 = vector.shape_cast %84 : vector<1x1x1x8x80xbf16> to vector<8x80xbf16>
    %c24_185 = arith.constant 24 : index
    %c80_186 = arith.constant 80 : index
    %86 = vector.load %arg9[%c24_185, %c80_186] : memref<64x720xbf16, #tpu.memory_space<vmem>>, vector<8x80xbf16>
    tpu.vector_store %arg9[%c24_185, %c80_186], %85 {strides = array<i32>} : memref<64x720xbf16, #tpu.memory_space<vmem>>, vector<8x80xbf16>,
    %c0_187 = arith.constant 0 : index
    %c0_188 = arith.constant 0 : index
    %c3_189 = arith.constant 3 : index
    %c2_190 = arith.constant 2 : index
    %c0_191 = arith.constant 0 : index
    %87 = vector.load %arg3[%c0_187, %c0_188, %c3_189, %c2_190, %c0_191] : memref<1x1x10x10x80xbf16, #tpu.memory_space<vmem>>, vector<1x1x1x8x80xbf16>
    %88 = vector.shape_cast %87 : vector<1x1x1x8x80xbf16> to vector<8x80xbf16>
    %c24_192 = arith.constant 24 : index
    %c160_193 = arith.constant 160 : index
    %89 = vector.load %arg9[%c24_192, %c160_193] : memref<64x720xbf16, #tpu.memory_space<vmem>>, vector<8x80xbf16>
    tpu.vector_store %arg9[%c24_192, %c160_193], %88 {strides = array<i32>} : memref<64x720xbf16, #tpu.memory_space<vmem>>, vector<8x80xbf16>,
    %c0_194 = arith.constant 0 : index
    %c0_195 = arith.constant 0 : index
    %c4_196 = arith.constant 4 : index
    %c0_197 = arith.constant 0 : index
    %c0_198 = arith.constant 0 : index
    %90 = vector.load %arg3[%c0_194, %c0_195, %c4_196, %c0_197, %c0_198] : memref<1x1x10x10x80xbf16, #tpu.memory_space<vmem>>, vector<1x1x1x8x80xbf16>
    %91 = vector.shape_cast %90 : vector<1x1x1x8x80xbf16> to vector<8x80xbf16>
    %c24_199 = arith.constant 24 : index
    %c240_200 = arith.constant 240 : index
    %92 = vector.load %arg9[%c24_199, %c240_200] : memref<64x720xbf16, #tpu.memory_space<vmem>>, vector<8x80xbf16>
    tpu.vector_store %arg9[%c24_199, %c240_200], %91 {strides = array<i32>} : memref<64x720xbf16, #tpu.memory_space<vmem>>, vector<8x80xbf16>,
    %c0_201 = arith.constant 0 : index
    %c0_202 = arith.constant 0 : index
    %c4_203 = arith.constant 4 : index
    %c1_204 = arith.constant 1 : index
    %c0_205 = arith.constant 0 : index
    %93 = vector.load %arg3[%c0_201, %c0_202, %c4_203, %c1_204, %c0_205] : memref<1x1x10x10x80xbf16, #tpu.memory_space<vmem>>, vector<1x1x1x8x80xbf16>
    %94 = vector.shape_cast %93 : vector<1x1x1x8x80xbf16> to vector<8x80xbf16>
    %c24_206 = arith.constant 24 : index
    %c320_207 = arith.constant 320 : index
    %95 = vector.load %arg9[%c24_206, %c320_207] : memref<64x720xbf16, #tpu.memory_space<vmem>>, vector<8x80xbf16>
    tpu.vector_store %arg9[%c24_206, %c320_207], %94 {strides = array<i32>} : memref<64x720xbf16, #tpu.memory_space<vmem>>, vector<8x80xbf16>,
    %c0_208 = arith.constant 0 : index
    %c0_209 = arith.constant 0 : index
    %c4_210 = arith.constant 4 : index
    %c2_211 = arith.constant 2 : index
    %c0_212 = arith.constant 0 : index
    %96 = vector.load %arg3[%c0_208, %c0_209, %c4_210, %c2_211, %c0_212] : memref<1x1x10x10x80xbf16, #tpu.memory_space<vmem>>, vector<1x1x1x8x80xbf16>
    %97 = vector.shape_cast %96 : vector<1x1x1x8x80xbf16> to vector<8x80xbf16>
    %c24_213 = arith.constant 24 : index
    %c400_214 = arith.constant 400 : index
    %98 = vector.load %arg9[%c24_213, %c400_214] : memref<64x720xbf16, #tpu.memory_space<vmem>>, vector<8x80xbf16>
    tpu.vector_store %arg9[%c24_213, %c400_214], %97 {strides = array<i32>} : memref<64x720xbf16, #tpu.memory_space<vmem>>, vector<8x80xbf16>,
    %c0_215 = arith.constant 0 : index
    %c0_216 = arith.constant 0 : index
    %c5 = arith.constant 5 : index
    %c0_217 = arith.constant 0 : index
    %c0_218 = arith.constant 0 : index
    %99 = vector.load %arg3[%c0_215, %c0_216, %c5, %c0_217, %c0_218] : memref<1x1x10x10x80xbf16, #tpu.memory_space<vmem>>, vector<1x1x1x8x80xbf16>
    %100 = vector.shape_cast %99 : vector<1x1x1x8x80xbf16> to vector<8x80xbf16>
    %c24_219 = arith.constant 24 : index
    %c480_220 = arith.constant 480 : index
    %101 = vector.load %arg9[%c24_219, %c480_220] : memref<64x720xbf16, #tpu.memory_space<vmem>>, vector<8x80xbf16>
    tpu.vector_store %arg9[%c24_219, %c480_220], %100 {strides = array<i32>} : memref<64x720xbf16, #tpu.memory_space<vmem>>, vector<8x80xbf16>,
    %c0_221 = arith.constant 0 : index
    %c0_222 = arith.constant 0 : index
    %c5_223 = arith.constant 5 : index
    %c1_224 = arith.constant 1 : index
    %c0_225 = arith.constant 0 : index
    %102 = vector.load %arg3[%c0_221, %c0_222, %c5_223, %c1_224, %c0_225] : memref<1x1x10x10x80xbf16, #tpu.memory_space<vmem>>, vector<1x1x1x8x80xbf16>
    %103 = vector.shape_cast %102 : vector<1x1x1x8x80xbf16> to vector<8x80xbf16>
    %c24_226 = arith.constant 24 : index
    %c560_227 = arith.constant 560 : index
    %104 = vector.load %arg9[%c24_226, %c560_227] : memref<64x720xbf16, #tpu.memory_space<vmem>>, vector<8x80xbf16>
    tpu.vector_store %arg9[%c24_226, %c560_227], %103 {strides = array<i32>} : memref<64x720xbf16, #tpu.memory_space<vmem>>, vector<8x80xbf16>,
    %c0_228 = arith.constant 0 : index
    %c0_229 = arith.constant 0 : index
    %c5_230 = arith.constant 5 : index
    %c2_231 = arith.constant 2 : index
    %c0_232 = arith.constant 0 : index
    %105 = vector.load %arg3[%c0_228, %c0_229, %c5_230, %c2_231, %c0_232] : memref<1x1x10x10x80xbf16, #tpu.memory_space<vmem>>, vector<1x1x1x8x80xbf16>
    %106 = vector.shape_cast %105 : vector<1x1x1x8x80xbf16> to vector<8x80xbf16>
    %c24_233 = arith.constant 24 : index
    %c640_234 = arith.constant 640 : index
    %107 = vector.load %arg9[%c24_233, %c640_234] : memref<64x720xbf16, #tpu.memory_space<vmem>>, vector<8x80xbf16>
    tpu.vector_store %arg9[%c24_233, %c640_234], %106 {strides = array<i32>} : memref<64x720xbf16, #tpu.memory_space<vmem>>, vector<8x80xbf16>,
    %c0_235 = arith.constant 0 : index
    %c0_236 = arith.constant 0 : index
    %c4_237 = arith.constant 4 : index
    %c0_238 = arith.constant 0 : index
    %c0_239 = arith.constant 0 : index
    %108 = vector.load %arg3[%c0_235, %c0_236, %c4_237, %c0_238, %c0_239] : memref<1x1x10x10x80xbf16, #tpu.memory_space<vmem>>, vector<1x1x1x8x80xbf16>
    %109 = vector.shape_cast %108 : vector<1x1x1x8x80xbf16> to vector<8x80xbf16>
    %c32 = arith.constant 32 : index
    %c0_240 = arith.constant 0 : index
    %110 = vector.load %arg9[%c32, %c0_240] : memref<64x720xbf16, #tpu.memory_space<vmem>>, vector<8x80xbf16>
    tpu.vector_store %arg9[%c32, %c0_240], %109 {strides = array<i32>} : memref<64x720xbf16, #tpu.memory_space<vmem>>, vector<8x80xbf16>,
    %c0_241 = arith.constant 0 : index
    %c0_242 = arith.constant 0 : index
    %c4_243 = arith.constant 4 : index
    %c1_244 = arith.constant 1 : index
    %c0_245 = arith.constant 0 : index
    %111 = vector.load %arg3[%c0_241, %c0_242, %c4_243, %c1_244, %c0_245] : memref<1x1x10x10x80xbf16, #tpu.memory_space<vmem>>, vector<1x1x1x8x80xbf16>
    %112 = vector.shape_cast %111 : vector<1x1x1x8x80xbf16> to vector<8x80xbf16>
    %c32_246 = arith.constant 32 : index
    %c80_247 = arith.constant 80 : index
    %113 = vector.load %arg9[%c32_246, %c80_247] : memref<64x720xbf16, #tpu.memory_space<vmem>>, vector<8x80xbf16>
    tpu.vector_store %arg9[%c32_246, %c80_247], %112 {strides = array<i32>} : memref<64x720xbf16, #tpu.memory_space<vmem>>, vector<8x80xbf16>,
    %c0_248 = arith.constant 0 : index
    %c0_249 = arith.constant 0 : index
    %c4_250 = arith.constant 4 : index
    %c2_251 = arith.constant 2 : index
    %c0_252 = arith.constant 0 : index
    %114 = vector.load %arg3[%c0_248, %c0_249, %c4_250, %c2_251, %c0_252] : memref<1x1x10x10x80xbf16, #tpu.memory_space<vmem>>, vector<1x1x1x8x80xbf16>
    %115 = vector.shape_cast %114 : vector<1x1x1x8x80xbf16> to vector<8x80xbf16>
    %c32_253 = arith.constant 32 : index
    %c160_254 = arith.constant 160 : index
    %116 = vector.load %arg9[%c32_253, %c160_254] : memref<64x720xbf16, #tpu.memory_space<vmem>>, vector<8x80xbf16>
    tpu.vector_store %arg9[%c32_253, %c160_254], %115 {strides = array<i32>} : memref<64x720xbf16, #tpu.memory_space<vmem>>, vector<8x80xbf16>,
    %c0_255 = arith.constant 0 : index
    %c0_256 = arith.constant 0 : index
    %c5_257 = arith.constant 5 : index
    %c0_258 = arith.constant 0 : index
    %c0_259 = arith.constant 0 : index
    %117 = vector.load %arg3[%c0_255, %c0_256, %c5_257, %c0_258, %c0_259] : memref<1x1x10x10x80xbf16, #tpu.memory_space<vmem>>, vector<1x1x1x8x80xbf16>
    %118 = vector.shape_cast %117 : vector<1x1x1x8x80xbf16> to vector<8x80xbf16>
    %c32_260 = arith.constant 32 : index
    %c240_261 = arith.constant 240 : index
    %119 = vector.load %arg9[%c32_260, %c240_261] : memref<64x720xbf16, #tpu.memory_space<vmem>>, vector<8x80xbf16>
    tpu.vector_store %arg9[%c32_260, %c240_261], %118 {strides = array<i32>} : memref<64x720xbf16, #tpu.memory_space<vmem>>, vector<8x80xbf16>,
    %c0_262 = arith.constant 0 : index
    %c0_263 = arith.constant 0 : index
    %c5_264 = arith.constant 5 : index
    %c1_265 = arith.constant 1 : index
    %c0_266 = arith.constant 0 : index
    %120 = vector.load %arg3[%c0_262, %c0_263, %c5_264, %c1_265, %c0_266] : memref<1x1x10x10x80xbf16, #tpu.memory_space<vmem>>, vector<1x1x1x8x80xbf16>
    %121 = vector.shape_cast %120 : vector<1x1x1x8x80xbf16> to vector<8x80xbf16>
    %c32_267 = arith.constant 32 : index
    %c320_268 = arith.constant 320 : index
    %122 = vector.load %arg9[%c32_267, %c320_268] : memref<64x720xbf16, #tpu.memory_space<vmem>>, vector<8x80xbf16>
    tpu.vector_store %arg9[%c32_267, %c320_268], %121 {strides = array<i32>} : memref<64x720xbf16, #tpu.memory_space<vmem>>, vector<8x80xbf16>,
    %c0_269 = arith.constant 0 : index
    %c0_270 = arith.constant 0 : index
    %c5_271 = arith.constant 5 : index
    %c2_272 = arith.constant 2 : index
    %c0_273 = arith.constant 0 : index
    %123 = vector.load %arg3[%c0_269, %c0_270, %c5_271, %c2_272, %c0_273] : memref<1x1x10x10x80xbf16, #tpu.memory_space<vmem>>, vector<1x1x1x8x80xbf16>
    %124 = vector.shape_cast %123 : vector<1x1x1x8x80xbf16> to vector<8x80xbf16>
    %c32_274 = arith.constant 32 : index
    %c400_275 = arith.constant 400 : index
    %125 = vector.load %arg9[%c32_274, %c400_275] : memref<64x720xbf16, #tpu.memory_space<vmem>>, vector<8x80xbf16>
    tpu.vector_store %arg9[%c32_274, %c400_275], %124 {strides = array<i32>} : memref<64x720xbf16, #tpu.memory_space<vmem>>, vector<8x80xbf16>,
    %c0_276 = arith.constant 0 : index
    %c0_277 = arith.constant 0 : index
    %c6 = arith.constant 6 : index
    %c0_278 = arith.constant 0 : index
    %c0_279 = arith.constant 0 : index
    %126 = vector.load %arg3[%c0_276, %c0_277, %c6, %c0_278, %c0_279] : memref<1x1x10x10x80xbf16, #tpu.memory_space<vmem>>, vector<1x1x1x8x80xbf16>
    %127 = vector.shape_cast %126 : vector<1x1x1x8x80xbf16> to vector<8x80xbf16>
    %c32_280 = arith.constant 32 : index
    %c480_281 = arith.constant 480 : index
    %128 = vector.load %arg9[%c32_280, %c480_281] : memref<64x720xbf16, #tpu.memory_space<vmem>>, vector<8x80xbf16>
    tpu.vector_store %arg9[%c32_280, %c480_281], %127 {strides = array<i32>} : memref<64x720xbf16, #tpu.memory_space<vmem>>, vector<8x80xbf16>,
    %c0_282 = arith.constant 0 : index
    %c0_283 = arith.constant 0 : index
    %c6_284 = arith.constant 6 : index
    %c1_285 = arith.constant 1 : index
    %c0_286 = arith.constant 0 : index
    %129 = vector.load %arg3[%c0_282, %c0_283, %c6_284, %c1_285, %c0_286] : memref<1x1x10x10x80xbf16, #tpu.memory_space<vmem>>, vector<1x1x1x8x80xbf16>
    %130 = vector.shape_cast %129 : vector<1x1x1x8x80xbf16> to vector<8x80xbf16>
    %c32_287 = arith.constant 32 : index
    %c560_288 = arith.constant 560 : index
    %131 = vector.load %arg9[%c32_287, %c560_288] : memref<64x720xbf16, #tpu.memory_space<vmem>>, vector<8x80xbf16>
    tpu.vector_store %arg9[%c32_287, %c560_288], %130 {strides = array<i32>} : memref<64x720xbf16, #tpu.memory_space<vmem>>, vector<8x80xbf16>,
    %c0_289 = arith.constant 0 : index
    %c0_290 = arith.constant 0 : index
    %c6_291 = arith.constant 6 : index
    %c2_292 = arith.constant 2 : index
    %c0_293 = arith.constant 0 : index
    %132 = vector.load %arg3[%c0_289, %c0_290, %c6_291, %c2_292, %c0_293] : memref<1x1x10x10x80xbf16, #tpu.memory_space<vmem>>, vector<1x1x1x8x80xbf16>
    %133 = vector.shape_cast %132 : vector<1x1x1x8x80xbf16> to vector<8x80xbf16>
    %c32_294 = arith.constant 32 : index
    %c640_295 = arith.constant 640 : index
    %134 = vector.load %arg9[%c32_294, %c640_295] : memref<64x720xbf16, #tpu.memory_space<vmem>>, vector<8x80xbf16>
    tpu.vector_store %arg9[%c32_294, %c640_295], %133 {strides = array<i32>} : memref<64x720xbf16, #tpu.memory_space<vmem>>, vector<8x80xbf16>,
    %c0_296 = arith.constant 0 : index
    %c0_297 = arith.constant 0 : index
    %c5_298 = arith.constant 5 : index
    %c0_299 = arith.constant 0 : index
    %c0_300 = arith.constant 0 : index
    %135 = vector.load %arg3[%c0_296, %c0_297, %c5_298, %c0_299, %c0_300] : memref<1x1x10x10x80xbf16, #tpu.memory_space<vmem>>, vector<1x1x1x8x80xbf16>
    %136 = vector.shape_cast %135 : vector<1x1x1x8x80xbf16> to vector<8x80xbf16>
    %c40 = arith.constant 40 : index
    %c0_301 = arith.constant 0 : index
    %137 = vector.load %arg9[%c40, %c0_301] : memref<64x720xbf16, #tpu.memory_space<vmem>>, vector<8x80xbf16>
    tpu.vector_store %arg9[%c40, %c0_301], %136 {strides = array<i32>} : memref<64x720xbf16, #tpu.memory_space<vmem>>, vector<8x80xbf16>,
    %c0_302 = arith.constant 0 : index
    %c0_303 = arith.constant 0 : index
    %c5_304 = arith.constant 5 : index
    %c1_305 = arith.constant 1 : index
    %c0_306 = arith.constant 0 : index
    %138 = vector.load %arg3[%c0_302, %c0_303, %c5_304, %c1_305, %c0_306] : memref<1x1x10x10x80xbf16, #tpu.memory_space<vmem>>, vector<1x1x1x8x80xbf16>
    %139 = vector.shape_cast %138 : vector<1x1x1x8x80xbf16> to vector<8x80xbf16>
    %c40_307 = arith.constant 40 : index
    %c80_308 = arith.constant 80 : index
    %140 = vector.load %arg9[%c40_307, %c80_308] : memref<64x720xbf16, #tpu.memory_space<vmem>>, vector<8x80xbf16>
    tpu.vector_store %arg9[%c40_307, %c80_308], %139 {strides = array<i32>} : memref<64x720xbf16, #tpu.memory_space<vmem>>, vector<8x80xbf16>,
    %c0_309 = arith.constant 0 : index
    %c0_310 = arith.constant 0 : index
    %c5_311 = arith.constant 5 : index
    %c2_312 = arith.constant 2 : index
    %c0_313 = arith.constant 0 : index
    %141 = vector.load %arg3[%c0_309, %c0_310, %c5_311, %c2_312, %c0_313] : memref<1x1x10x10x80xbf16, #tpu.memory_space<vmem>>, vector<1x1x1x8x80xbf16>
    %142 = vector.shape_cast %141 : vector<1x1x1x8x80xbf16> to vector<8x80xbf16>
    %c40_314 = arith.constant 40 : index
    %c160_315 = arith.constant 160 : index
    %143 = vector.load %arg9[%c40_314, %c160_315] : memref<64x720xbf16, #tpu.memory_space<vmem>>, vector<8x80xbf16>
    tpu.vector_store %arg9[%c40_314, %c160_315], %142 {strides = array<i32>} : memref<64x720xbf16, #tpu.memory_space<vmem>>, vector<8x80xbf16>,
    %c0_316 = arith.constant 0 : index
    %c0_317 = arith.constant 0 : index
    %c6_318 = arith.constant 6 : index
    %c0_319 = arith.constant 0 : index
    %c0_320 = arith.constant 0 : index
    %144 = vector.load %arg3[%c0_316, %c0_317, %c6_318, %c0_319, %c0_320] : memref<1x1x10x10x80xbf16, #tpu.memory_space<vmem>>, vector<1x1x1x8x80xbf16>
    %145 = vector.shape_cast %144 : vector<1x1x1x8x80xbf16> to vector<8x80xbf16>
    %c40_321 = arith.constant 40 : index
    %c240_322 = arith.constant 240 : index
    %146 = vector.load %arg9[%c40_321, %c240_322] : memref<64x720xbf16, #tpu.memory_space<vmem>>, vector<8x80xbf16>
    tpu.vector_store %arg9[%c40_321, %c240_322], %145 {strides = array<i32>} : memref<64x720xbf16, #tpu.memory_space<vmem>>, vector<8x80xbf16>,
    %c0_323 = arith.constant 0 : index
    %c0_324 = arith.constant 0 : index
    %c6_325 = arith.constant 6 : index
    %c1_326 = arith.constant 1 : index
    %c0_327 = arith.constant 0 : index
    %147 = vector.load %arg3[%c0_323, %c0_324, %c6_325, %c1_326, %c0_327] : memref<1x1x10x10x80xbf16, #tpu.memory_space<vmem>>, vector<1x1x1x8x80xbf16>
    %148 = vector.shape_cast %147 : vector<1x1x1x8x80xbf16> to vector<8x80xbf16>
    %c40_328 = arith.constant 40 : index
    %c320_329 = arith.constant 320 : index
    %149 = vector.load %arg9[%c40_328, %c320_329] : memref<64x720xbf16, #tpu.memory_space<vmem>>, vector<8x80xbf16>
    tpu.vector_store %arg9[%c40_328, %c320_329], %148 {strides = array<i32>} : memref<64x720xbf16, #tpu.memory_space<vmem>>, vector<8x80xbf16>,
    %c0_330 = arith.constant 0 : index
    %c0_331 = arith.constant 0 : index
    %c6_332 = arith.constant 6 : index
    %c2_333 = arith.constant 2 : index
    %c0_334 = arith.constant 0 : index
    %150 = vector.load %arg3[%c0_330, %c0_331, %c6_332, %c2_333, %c0_334] : memref<1x1x10x10x80xbf16, #tpu.memory_space<vmem>>, vector<1x1x1x8x80xbf16>
    %151 = vector.shape_cast %150 : vector<1x1x1x8x80xbf16> to vector<8x80xbf16>
    %c40_335 = arith.constant 40 : index
    %c400_336 = arith.constant 400 : index
    %152 = vector.load %arg9[%c40_335, %c400_336] : memref<64x720xbf16, #tpu.memory_space<vmem>>, vector<8x80xbf16>
    tpu.vector_store %arg9[%c40_335, %c400_336], %151 {strides = array<i32>} : memref<64x720xbf16, #tpu.memory_space<vmem>>, vector<8x80xbf16>,
    %c0_337 = arith.constant 0 : index
    %c0_338 = arith.constant 0 : index
    %c7 = arith.constant 7 : index
    %c0_339 = arith.constant 0 : index
    %c0_340 = arith.constant 0 : index
    %153 = vector.load %arg3[%c0_337, %c0_338, %c7, %c0_339, %c0_340] : memref<1x1x10x10x80xbf16, #tpu.memory_space<vmem>>, vector<1x1x1x8x80xbf16>
    %154 = vector.shape_cast %153 : vector<1x1x1x8x80xbf16> to vector<8x80xbf16>
    %c40_341 = arith.constant 40 : index
    %c480_342 = arith.constant 480 : index
    %155 = vector.load %arg9[%c40_341, %c480_342] : memref<64x720xbf16, #tpu.memory_space<vmem>>, vector<8x80xbf16>
    tpu.vector_store %arg9[%c40_341, %c480_342], %154 {strides = array<i32>} : memref<64x720xbf16, #tpu.memory_space<vmem>>, vector<8x80xbf16>,
    %c0_343 = arith.constant 0 : index
    %c0_344 = arith.constant 0 : index
    %c7_345 = arith.constant 7 : index
    %c1_346 = arith.constant 1 : index
    %c0_347 = arith.constant 0 : index
    %156 = vector.load %arg3[%c0_343, %c0_344, %c7_345, %c1_346, %c0_347] : memref<1x1x10x10x80xbf16, #tpu.memory_space<vmem>>, vector<1x1x1x8x80xbf16>
    %157 = vector.shape_cast %156 : vector<1x1x1x8x80xbf16> to vector<8x80xbf16>
    %c40_348 = arith.constant 40 : index
    %c560_349 = arith.constant 560 : index
    %158 = vector.load %arg9[%c40_348, %c560_349] : memref<64x720xbf16, #tpu.memory_space<vmem>>, vector<8x80xbf16>
    tpu.vector_store %arg9[%c40_348, %c560_349], %157 {strides = array<i32>} : memref<64x720xbf16, #tpu.memory_space<vmem>>, vector<8x80xbf16>,
    %c0_350 = arith.constant 0 : index
    %c0_351 = arith.constant 0 : index
    %c7_352 = arith.constant 7 : index
    %c2_353 = arith.constant 2 : index
    %c0_354 = arith.constant 0 : index
    %159 = vector.load %arg3[%c0_350, %c0_351, %c7_352, %c2_353, %c0_354] : memref<1x1x10x10x80xbf16, #tpu.memory_space<vmem>>, vector<1x1x1x8x80xbf16>
    %160 = vector.shape_cast %159 : vector<1x1x1x8x80xbf16> to vector<8x80xbf16>
    %c40_355 = arith.constant 40 : index
    %c640_356 = arith.constant 640 : index
    %161 = vector.load %arg9[%c40_355, %c640_356] : memref<64x720xbf16, #tpu.memory_space<vmem>>, vector<8x80xbf16>
    tpu.vector_store %arg9[%c40_355, %c640_356], %160 {strides = array<i32>} : memref<64x720xbf16, #tpu.memory_space<vmem>>, vector<8x80xbf16>,
    %c0_357 = arith.constant 0 : index
    %c0_358 = arith.constant 0 : index
    %c6_359 = arith.constant 6 : index
    %c0_360 = arith.constant 0 : index
    %c0_361 = arith.constant 0 : index
    %162 = vector.load %arg3[%c0_357, %c0_358, %c6_359, %c0_360, %c0_361] : memref<1x1x10x10x80xbf16, #tpu.memory_space<vmem>>, vector<1x1x1x8x80xbf16>
    %163 = vector.shape_cast %162 : vector<1x1x1x8x80xbf16> to vector<8x80xbf16>
    %c48 = arith.constant 48 : index
    %c0_362 = arith.constant 0 : index
    %164 = vector.load %arg9[%c48, %c0_362] : memref<64x720xbf16, #tpu.memory_space<vmem>>, vector<8x80xbf16>
    tpu.vector_store %arg9[%c48, %c0_362], %163 {strides = array<i32>} : memref<64x720xbf16, #tpu.memory_space<vmem>>, vector<8x80xbf16>,
    %c0_363 = arith.constant 0 : index
    %c0_364 = arith.constant 0 : index
    %c6_365 = arith.constant 6 : index
    %c1_366 = arith.constant 1 : index
    %c0_367 = arith.constant 0 : index
    %165 = vector.load %arg3[%c0_363, %c0_364, %c6_365, %c1_366, %c0_367] : memref<1x1x10x10x80xbf16, #tpu.memory_space<vmem>>, vector<1x1x1x8x80xbf16>
    %166 = vector.shape_cast %165 : vector<1x1x1x8x80xbf16> to vector<8x80xbf16>
    %c48_368 = arith.constant 48 : index
    %c80_369 = arith.constant 80 : index
    %167 = vector.load %arg9[%c48_368, %c80_369] : memref<64x720xbf16, #tpu.memory_space<vmem>>, vector<8x80xbf16>
    tpu.vector_store %arg9[%c48_368, %c80_369], %166 {strides = array<i32>} : memref<64x720xbf16, #tpu.memory_space<vmem>>, vector<8x80xbf16>,
    %c0_370 = arith.constant 0 : index
    %c0_371 = arith.constant 0 : index
    %c6_372 = arith.constant 6 : index
    %c2_373 = arith.constant 2 : index
    %c0_374 = arith.constant 0 : index
    %168 = vector.load %arg3[%c0_370, %c0_371, %c6_372, %c2_373, %c0_374] : memref<1x1x10x10x80xbf16, #tpu.memory_space<vmem>>, vector<1x1x1x8x80xbf16>
    %169 = vector.shape_cast %168 : vector<1x1x1x8x80xbf16> to vector<8x80xbf16>
    %c48_375 = arith.constant 48 : index
    %c160_376 = arith.constant 160 : index
    %170 = vector.load %arg9[%c48_375, %c160_376] : memref<64x720xbf16, #tpu.memory_space<vmem>>, vector<8x80xbf16>
    tpu.vector_store %arg9[%c48_375, %c160_376], %169 {strides = array<i32>} : memref<64x720xbf16, #tpu.memory_space<vmem>>, vector<8x80xbf16>,
    %c0_377 = arith.constant 0 : index
    %c0_378 = arith.constant 0 : index
    %c7_379 = arith.constant 7 : index
    %c0_380 = arith.constant 0 : index
    %c0_381 = arith.constant 0 : index
    %171 = vector.load %arg3[%c0_377, %c0_378, %c7_379, %c0_380, %c0_381] : memref<1x1x10x10x80xbf16, #tpu.memory_space<vmem>>, vector<1x1x1x8x80xbf16>
    %172 = vector.shape_cast %171 : vector<1x1x1x8x80xbf16> to vector<8x80xbf16>
    %c48_382 = arith.constant 48 : index
    %c240_383 = arith.constant 240 : index
    %173 = vector.load %arg9[%c48_382, %c240_383] : memref<64x720xbf16, #tpu.memory_space<vmem>>, vector<8x80xbf16>
    tpu.vector_store %arg9[%c48_382, %c240_383], %172 {strides = array<i32>} : memref<64x720xbf16, #tpu.memory_space<vmem>>, vector<8x80xbf16>,
    %c0_384 = arith.constant 0 : index
    %c0_385 = arith.constant 0 : index
    %c7_386 = arith.constant 7 : index
    %c1_387 = arith.constant 1 : index
    %c0_388 = arith.constant 0 : index
    %174 = vector.load %arg3[%c0_384, %c0_385, %c7_386, %c1_387, %c0_388] : memref<1x1x10x10x80xbf16, #tpu.memory_space<vmem>>, vector<1x1x1x8x80xbf16>
    %175 = vector.shape_cast %174 : vector<1x1x1x8x80xbf16> to vector<8x80xbf16>
    %c48_389 = arith.constant 48 : index
    %c320_390 = arith.constant 320 : index
    %176 = vector.load %arg9[%c48_389, %c320_390] : memref<64x720xbf16, #tpu.memory_space<vmem>>, vector<8x80xbf16>
    tpu.vector_store %arg9[%c48_389, %c320_390], %175 {strides = array<i32>} : memref<64x720xbf16, #tpu.memory_space<vmem>>, vector<8x80xbf16>,
    %c0_391 = arith.constant 0 : index
    %c0_392 = arith.constant 0 : index
    %c7_393 = arith.constant 7 : index
    %c2_394 = arith.constant 2 : index
    %c0_395 = arith.constant 0 : index
    %177 = vector.load %arg3[%c0_391, %c0_392, %c7_393, %c2_394, %c0_395] : memref<1x1x10x10x80xbf16, #tpu.memory_space<vmem>>, vector<1x1x1x8x80xbf16>
    %178 = vector.shape_cast %177 : vector<1x1x1x8x80xbf16> to vector<8x80xbf16>
    %c48_396 = arith.constant 48 : index
    %c400_397 = arith.constant 400 : index
    %179 = vector.load %arg9[%c48_396, %c400_397] : memref<64x720xbf16, #tpu.memory_space<vmem>>, vector<8x80xbf16>
    tpu.vector_store %arg9[%c48_396, %c400_397], %178 {strides = array<i32>} : memref<64x720xbf16, #tpu.memory_space<vmem>>, vector<8x80xbf16>,
    %c0_398 = arith.constant 0 : index
    %c0_399 = arith.constant 0 : index
    %c8_400 = arith.constant 8 : index
    %c0_401 = arith.constant 0 : index
    %c0_402 = arith.constant 0 : index
    %180 = vector.load %arg3[%c0_398, %c0_399, %c8_400, %c0_401, %c0_402] : memref<1x1x10x10x80xbf16, #tpu.memory_space<vmem>>, vector<1x1x1x8x80xbf16>
    %181 = vector.shape_cast %180 : vector<1x1x1x8x80xbf16> to vector<8x80xbf16>
    %c48_403 = arith.constant 48 : index
    %c480_404 = arith.constant 480 : index
    %182 = vector.load %arg9[%c48_403, %c480_404] : memref<64x720xbf16, #tpu.memory_space<vmem>>, vector<8x80xbf16>
    tpu.vector_store %arg9[%c48_403, %c480_404], %181 {strides = array<i32>} : memref<64x720xbf16, #tpu.memory_space<vmem>>, vector<8x80xbf16>,
    %c0_405 = arith.constant 0 : index
    %c0_406 = arith.constant 0 : index
    %c8_407 = arith.constant 8 : index
    %c1_408 = arith.constant 1 : index
    %c0_409 = arith.constant 0 : index
    %183 = vector.load %arg3[%c0_405, %c0_406, %c8_407, %c1_408, %c0_409] : memref<1x1x10x10x80xbf16, #tpu.memory_space<vmem>>, vector<1x1x1x8x80xbf16>
    %184 = vector.shape_cast %183 : vector<1x1x1x8x80xbf16> to vector<8x80xbf16>
    %c48_410 = arith.constant 48 : index
    %c560_411 = arith.constant 560 : index
    %185 = vector.load %arg9[%c48_410, %c560_411] : memref<64x720xbf16, #tpu.memory_space<vmem>>, vector<8x80xbf16>
    tpu.vector_store %arg9[%c48_410, %c560_411], %184 {strides = array<i32>} : memref<64x720xbf16, #tpu.memory_space<vmem>>, vector<8x80xbf16>,
    %c0_412 = arith.constant 0 : index
    %c0_413 = arith.constant 0 : index
    %c8_414 = arith.constant 8 : index
    %c2_415 = arith.constant 2 : index
    %c0_416 = arith.constant 0 : index
    %186 = vector.load %arg3[%c0_412, %c0_413, %c8_414, %c2_415, %c0_416] : memref<1x1x10x10x80xbf16, #tpu.memory_space<vmem>>, vector<1x1x1x8x80xbf16>
    %187 = vector.shape_cast %186 : vector<1x1x1x8x80xbf16> to vector<8x80xbf16>
    %c48_417 = arith.constant 48 : index
    %c640_418 = arith.constant 640 : index
    %188 = vector.load %arg9[%c48_417, %c640_418] : memref<64x720xbf16, #tpu.memory_space<vmem>>, vector<8x80xbf16>
    tpu.vector_store %arg9[%c48_417, %c640_418], %187 {strides = array<i32>} : memref<64x720xbf16, #tpu.memory_space<vmem>>, vector<8x80xbf16>,
    %c0_419 = arith.constant 0 : index
    %c0_420 = arith.constant 0 : index
    %c7_421 = arith.constant 7 : index
    %c0_422 = arith.constant 0 : index
    %c0_423 = arith.constant 0 : index
    %189 = vector.load %arg3[%c0_419, %c0_420, %c7_421, %c0_422, %c0_423] : memref<1x1x10x10x80xbf16, #tpu.memory_space<vmem>>, vector<1x1x1x8x80xbf16>
    %190 = vector.shape_cast %189 : vector<1x1x1x8x80xbf16> to vector<8x80xbf16>
    %c56 = arith.constant 56 : index
    %c0_424 = arith.constant 0 : index
    %191 = vector.load %arg9[%c56, %c0_424] : memref<64x720xbf16, #tpu.memory_space<vmem>>, vector<8x80xbf16>
    tpu.vector_store %arg9[%c56, %c0_424], %190 {strides = array<i32>} : memref<64x720xbf16, #tpu.memory_space<vmem>>, vector<8x80xbf16>,
    %c0_425 = arith.constant 0 : index
    %c0_426 = arith.constant 0 : index
    %c7_427 = arith.constant 7 : index
    %c1_428 = arith.constant 1 : index
    %c0_429 = arith.constant 0 : index
    %192 = vector.load %arg3[%c0_425, %c0_426, %c7_427, %c1_428, %c0_429] : memref<1x1x10x10x80xbf16, #tpu.memory_space<vmem>>, vector<1x1x1x8x80xbf16>
    %193 = vector.shape_cast %192 : vector<1x1x1x8x80xbf16> to vector<8x80xbf16>
    %c56_430 = arith.constant 56 : index
    %c80_431 = arith.constant 80 : index
    %194 = vector.load %arg9[%c56_430, %c80_431] : memref<64x720xbf16, #tpu.memory_space<vmem>>, vector<8x80xbf16>
    tpu.vector_store %arg9[%c56_430, %c80_431], %193 {strides = array<i32>} : memref<64x720xbf16, #tpu.memory_space<vmem>>, vector<8x80xbf16>,
    %c0_432 = arith.constant 0 : index
    %c0_433 = arith.constant 0 : index
    %c7_434 = arith.constant 7 : index
    %c2_435 = arith.constant 2 : index
    %c0_436 = arith.constant 0 : index
    %195 = vector.load %arg3[%c0_432, %c0_433, %c7_434, %c2_435, %c0_436] : memref<1x1x10x10x80xbf16, #tpu.memory_space<vmem>>, vector<1x1x1x8x80xbf16>
    %196 = vector.shape_cast %195 : vector<1x1x1x8x80xbf16> to vector<8x80xbf16>
    %c56_437 = arith.constant 56 : index
    %c160_438 = arith.constant 160 : index
    %197 = vector.load %arg9[%c56_437, %c160_438] : memref<64x720xbf16, #tpu.memory_space<vmem>>, vector<8x80xbf16>
    tpu.vector_store %arg9[%c56_437, %c160_438], %196 {strides = array<i32>} : memref<64x720xbf16, #tpu.memory_space<vmem>>, vector<8x80xbf16>,
    %c0_439 = arith.constant 0 : index
    %c0_440 = arith.constant 0 : index
    %c8_441 = arith.constant 8 : index
    %c0_442 = arith.constant 0 : index
    %c0_443 = arith.constant 0 : index
    %198 = vector.load %arg3[%c0_439, %c0_440, %c8_441, %c0_442, %c0_443] : memref<1x1x10x10x80xbf16, #tpu.memory_space<vmem>>, vector<1x1x1x8x80xbf16>
    %199 = vector.shape_cast %198 : vector<1x1x1x8x80xbf16> to vector<8x80xbf16>
    %c56_444 = arith.constant 56 : index
    %c240_445 = arith.constant 240 : index
    %200 = vector.load %arg9[%c56_444, %c240_445] : memref<64x720xbf16, #tpu.memory_space<vmem>>, vector<8x80xbf16>
    tpu.vector_store %arg9[%c56_444, %c240_445], %199 {strides = array<i32>} : memref<64x720xbf16, #tpu.memory_space<vmem>>, vector<8x80xbf16>,
    %c0_446 = arith.constant 0 : index
    %c0_447 = arith.constant 0 : index
    %c8_448 = arith.constant 8 : index
    %c1_449 = arith.constant 1 : index
    %c0_450 = arith.constant 0 : index
    %201 = vector.load %arg3[%c0_446, %c0_447, %c8_448, %c1_449, %c0_450] : memref<1x1x10x10x80xbf16, #tpu.memory_space<vmem>>, vector<1x1x1x8x80xbf16>
    %202 = vector.shape_cast %201 : vector<1x1x1x8x80xbf16> to vector<8x80xbf16>
    %c56_451 = arith.constant 56 : index
    %c320_452 = arith.constant 320 : index
    %203 = vector.load %arg9[%c56_451, %c320_452] : memref<64x720xbf16, #tpu.memory_space<vmem>>, vector<8x80xbf16>
    tpu.vector_store %arg9[%c56_451, %c320_452], %202 {strides = array<i32>} : memref<64x720xbf16, #tpu.memory_space<vmem>>, vector<8x80xbf16>,
    %c0_453 = arith.constant 0 : index
    %c0_454 = arith.constant 0 : index
    %c8_455 = arith.constant 8 : index
    %c2_456 = arith.constant 2 : index
    %c0_457 = arith.constant 0 : index
    %204 = vector.load %arg3[%c0_453, %c0_454, %c8_455, %c2_456, %c0_457] : memref<1x1x10x10x80xbf16, #tpu.memory_space<vmem>>, vector<1x1x1x8x80xbf16>
    %205 = vector.shape_cast %204 : vector<1x1x1x8x80xbf16> to vector<8x80xbf16>
    %c56_458 = arith.constant 56 : index
    %c400_459 = arith.constant 400 : index
    %206 = vector.load %arg9[%c56_458, %c400_459] : memref<64x720xbf16, #tpu.memory_space<vmem>>, vector<8x80xbf16>
    tpu.vector_store %arg9[%c56_458, %c400_459], %205 {strides = array<i32>} : memref<64x720xbf16, #tpu.memory_space<vmem>>, vector<8x80xbf16>,
    %c0_460 = arith.constant 0 : index
    %c0_461 = arith.constant 0 : index
    %c9 = arith.constant 9 : index
    %c0_462 = arith.constant 0 : index
    %c0_463 = arith.constant 0 : index
    %207 = vector.load %arg3[%c0_460, %c0_461, %c9, %c0_462, %c0_463] : memref<1x1x10x10x80xbf16, #tpu.memory_space<vmem>>, vector<1x1x1x8x80xbf16>
    %208 = vector.shape_cast %207 : vector<1x1x1x8x80xbf16> to vector<8x80xbf16>
    %c56_464 = arith.constant 56 : index
    %c480_465 = arith.constant 480 : index
    %209 = vector.load %arg9[%c56_464, %c480_465] : memref<64x720xbf16, #tpu.memory_space<vmem>>, vector<8x80xbf16>
    tpu.vector_store %arg9[%c56_464, %c480_465], %208 {strides = array<i32>} : memref<64x720xbf16, #tpu.memory_space<vmem>>, vector<8x80xbf16>,
    %c0_466 = arith.constant 0 : index
    %c0_467 = arith.constant 0 : index
    %c9_468 = arith.constant 9 : index
    %c1_469 = arith.constant 1 : index
    %c0_470 = arith.constant 0 : index
    %210 = vector.load %arg3[%c0_466, %c0_467, %c9_468, %c1_469, %c0_470] : memref<1x1x10x10x80xbf16, #tpu.memory_space<vmem>>, vector<1x1x1x8x80xbf16>
    %211 = vector.shape_cast %210 : vector<1x1x1x8x80xbf16> to vector<8x80xbf16>
    %c56_471 = arith.constant 56 : index
    %c560_472 = arith.constant 560 : index
    %212 = vector.load %arg9[%c56_471, %c560_472] : memref<64x720xbf16, #tpu.memory_space<vmem>>, vector<8x80xbf16>
    tpu.vector_store %arg9[%c56_471, %c560_472], %211 {strides = array<i32>} : memref<64x720xbf16, #tpu.memory_space<vmem>>, vector<8x80xbf16>,
    %c0_473 = arith.constant 0 : index
    %c0_474 = arith.constant 0 : index
    %c9_475 = arith.constant 9 : index
    %c2_476 = arith.constant 2 : index
    %c0_477 = arith.constant 0 : index
    %213 = vector.load %arg3[%c0_473, %c0_474, %c9_475, %c2_476, %c0_477] : memref<1x1x10x10x80xbf16, #tpu.memory_space<vmem>>, vector<1x1x1x8x80xbf16>
    %214 = vector.shape_cast %213 : vector<1x1x1x8x80xbf16> to vector<8x80xbf16>
    %c56_478 = arith.constant 56 : index
    %c640_479 = arith.constant 640 : index
    %215 = vector.load %arg9[%c56_478, %c640_479] : memref<64x720xbf16, #tpu.memory_space<vmem>>, vector<8x80xbf16>
    tpu.vector_store %arg9[%c56_478, %c640_479], %214 {strides = array<i32>} : memref<64x720xbf16, #tpu.memory_space<vmem>>, vector<8x80xbf16>,
    %c0_480 = arith.constant 0 : index
    %c0_481 = arith.constant 0 : index
    %216 = vector.load %arg9[%c0_480, %c0_481] : memref<64x720xbf16, #tpu.memory_space<vmem>>, vector<64x720xbf16>
    %c0_482 = arith.constant 0 : index
    %c0_483 = arith.constant 0 : index
    %217 = vector.load %arg4[%c0_482, %c0_483] : memref<720x128xbf16, #tpu.memory_space<vmem>>, vector<720x128xbf16>
    %cst = arith.constant dense<0.000000e+00> : vector<64x128xf32>
    %218 = tpu.matmul %216, %217, %cst {dimension_numbers = #tpu.dot_dimension_numbers<[1], [0], [0], [1], [0, 0, 1, 1], [], []>} : vector<64x720xbf16>, vector<720x128xbf16>, vector<64x128xf32> -> vector<64x128xf32>
    %c0_484 = arith.constant 0 : index
    %c0_485 = arith.constant 0 : index
    %219 = vector.load %arg5[%c0_484, %c0_485] : memref<1x128xf32, #tpu.memory_space<vmem>>, vector<1x128xf32>
    %220 = vector.broadcast %219 : vector<1x128xf32> to vector<64x128xf32>
    %221 = arith.addf %218, %220 : vector<64x128xf32>
    %222 = arith.truncf %221 : vector<64x128xf32> to vector<64x128xbf16>
    %c0_486 = arith.constant 0 : index
    %c0_487 = arith.constant 0 : index
    %c0_488 = arith.constant 0 : index
    %c0_489 = arith.constant 0 : index
    %223 = vector.load %arg6[%c0_486, %c0_487, %c0_488, %c0_489] : memref<1x1x64x128xbf16, #tpu.memory_space<vmem>>, vector<1x1x64x128xbf16>
    %224 = vector.shape_cast %223 : vector<1x1x64x128xbf16> to vector<64x128xbf16>
    %225 = vector.shape_cast %222 : vector<64x128xbf16> to vector<1x1x64x128xbf16>
    tpu.vector_store %arg6[%c0_486, %c0_487, %c0_488, %c0_489], %225 {strides = array<i32>} : memref<1x1x64x128xbf16, #tpu.memory_space<vmem>>, vector<1x1x64x128xbf16>,
    %cst_490 = arith.constant dense<0.000000e+00> : vector<128xf32>
    %226 = vector.multi_reduction <add>, %221, %cst_490 [0] : vector<64x128xf32> to vector<128xf32>
    %227 = vector.shape_cast %226 : vector<128xf32> to vector<1x128xf32>
    %c0_491 = arith.constant 0 : index
    %c0_492 = arith.constant 0 : index
    %c0_493 = arith.constant 0 : index
    %c0_494 = arith.constant 0 : index
    %228 = vector.load %arg7[%c0_491, %c0_492, %c0_493, %c0_494] : memref<1x1x2x128xf32, #tpu.memory_space<vmem>>, vector<1x1x1x128xf32>
    %229 = vector.shape_cast %228 : vector<1x1x1x128xf32> to vector<1x128xf32>
    %230 = vector.shape_cast %227 : vector<1x128xf32> to vector<1x1x1x128xf32>
    tpu.vector_store %arg7[%c0_491, %c0_492, %c0_493, %c0_494], %230 {strides = array<i32>} : memref<1x1x2x128xf32, #tpu.memory_space<vmem>>, vector<1x1x1x128xf32>,
    %231 = arith.mulf %221, %221 : vector<64x128xf32>
    %cst_495 = arith.constant dense<0.000000e+00> : vector<128xf32>
    %232 = vector.multi_reduction <add>, %231, %cst_495 [0] : vector<64x128xf32> to vector<128xf32>
    %233 = vector.shape_cast %232 : vector<128xf32> to vector<1x128xf32>
    %c0_496 = arith.constant 0 : index
    %c0_497 = arith.constant 0 : index
    %c1_498 = arith.constant 1 : index
    %c0_499 = arith.constant 0 : index
    %234 = vector.load %arg7[%c0_496, %c0_497, %c1_498, %c0_499] : memref<1x1x2x128xf32, #tpu.memory_space<vmem>>, vector<1x1x1x128xf32>
    %235 = vector.shape_cast %234 : vector<1x1x1x128xf32> to vector<1x128xf32>
    %236 = vector.shape_cast %233 : vector<1x128xf32> to vector<1x1x1x128xf32>
    tpu.vector_store %arg7[%c0_496, %c0_497, %c1_498, %c0_499], %236 {strides = array<i32>} : memref<1x1x2x128xf32, #tpu.memory_space<vmem>>, vector<1x1x1x128xf32>,
    return
  }
  func.func @transform_0(%arg0: i32, %arg1: i32) -> (i32, i32, i32) {
    %c0_i32 = arith.constant 0 : i32
    %c0_i32_0 = arith.constant 0 : i32
    %c0_i32_1 = arith.constant 0 : i32
    return %arg0, %c0_i32, %c0_i32_0 : i32, i32, i32
  }
  func.func @transform_1(%arg0: i32, %arg1: i32) -> (i32, i32, i32, i32, i32) {
    %c0_i32 = arith.constant 0 : i32
    %c0_i32_0 = arith.constant 0 : i32
    %c0_i32_1 = arith.constant 0 : i32
    %c0_i32_2 = arith.constant 0 : i32
    return %arg0, %arg1, %c0_i32, %c0_i32_0, %c0_i32_1 : i32, i32, i32, i32, i32
  }
  func.func @transform_2(%arg0: i32, %arg1: i32) -> (i32, i32) {
    %c0_i32 = arith.constant 0 : i32
    %c0_i32_0 = arith.constant 0 : i32
    %c0_i32_1 = arith.constant 0 : i32
    return %c0_i32, %c0_i32_0 : i32, i32
  }
  func.func @transform_3(%arg0: i32, %arg1: i32) -> (i32, i32) {
    %c0_i32 = arith.constant 0 : i32
    %c0_i32_0 = arith.constant 0 : i32
    %c0_i32_1 = arith.constant 0 : i32
    return %c0_i32, %c0_i32_0 : i32, i32
  }
  func.func @transform_4(%arg0: i32, %arg1: i32) -> (i32, i32, i32, i32) {
    %c0_i32 = arith.constant 0 : i32
    %c0_i32_0 = arith.constant 0 : i32
    %c0_i32_1 = arith.constant 0 : i32
    return %arg0, %arg1, %c0_i32, %c0_i32_0 : i32, i32, i32, i32
  }
  func.func @transform_5(%arg0: i32, %arg1: i32) -> (i32, i32, i32, i32) {
    %c0_i32 = arith.constant 0 : i32
    %c0_i32_0 = arith.constant 0 : i32
    %c0_i32_1 = arith.constant 0 : i32
    return %arg0, %arg1, %c0_i32, %c0_i32_0 : i32, i32, i32, i32
  }
}

module attributes {stable_mosaic.version = 11 : i64} {
  func.func @_conv3d_kernel(%arg0: i32, %arg1: i32, %arg2: memref<1x2x160xf32, #tpu.memory_space<vmem>>, %arg3: memref<1x1x10x10x160xbf16, #tpu.memory_space<vmem>>, %arg4: memref<1440x128xbf16, #tpu.memory_space<vmem>>, %arg5: memref<1x128xf32, #tpu.memory_space<vmem>>, %arg6: memref<1x1x64x128xbf16, #tpu.memory_space<vmem>>, %arg7: memref<1x1x2x128xf32, #tpu.memory_space<vmem>>, %arg8: memref<10x10x160xbf16, #tpu.memory_space<vmem>>, %arg9: memref<64x1440xbf16, #tpu.memory_space<vmem>>) attributes {dimension_semantics = [#tpu.dimension_semantics<parallel>, #tpu.dimension_semantics<parallel>], iteration_bounds = array<i64: 2, 1>, scalar_prefetch = 0 : i64, scratch_operands = 2 : i64, tpu.core_type = #tpu.core_type<tc>, window_params = [{transform_indices = @transform_0, window_bounds = array<i64: 1, 2, 160>}, {transform_indices = @transform_1, window_bounds = array<i64: 1, 1, 10, 10, 160>}, {pipeline_mode = #tpu.pipeline_mode<synchronous>, transform_indices = @transform_2, window_bounds = array<i64: 1440, 128>}, {pipeline_mode = #tpu.pipeline_mode<synchronous>, transform_indices = @transform_3, window_bounds = array<i64: 1, 128>}, {transform_indices = @transform_4, window_bounds = array<i64: 1, 1, 64, 128>}, {transform_indices = @transform_5, window_bounds = array<i64: 1, 1, 2, 128>}]} {
    %c0 = arith.constant 0 : index
    %c0_0 = arith.constant 0 : index
    %c0_1 = arith.constant 0 : index
    %0 = vector.load %arg2[%c0, %c0_0, %c0_1] : memref<1x2x160xf32, #tpu.memory_space<vmem>>, vector<1x1x160xf32>
    %1 = vector.shape_cast %0 : vector<1x1x160xf32> to vector<1x160xf32>
    %c0_2 = arith.constant 0 : index
    %c1 = arith.constant 1 : index
    %c0_3 = arith.constant 0 : index
    %2 = vector.load %arg2[%c0_2, %c1, %c0_3] : memref<1x2x160xf32, #tpu.memory_space<vmem>>, vector<1x1x160xf32>
    %3 = vector.shape_cast %2 : vector<1x1x160xf32> to vector<1x160xf32>
    %c0_4 = arith.constant 0 : index
    %c0_5 = arith.constant 0 : index
    %c0_6 = arith.constant 0 : index
    %c0_7 = arith.constant 0 : index
    %c0_8 = arith.constant 0 : index
    %4 = vector.load %arg3[%c0_4, %c0_5, %c0_6, %c0_7, %c0_8] : memref<1x1x10x10x160xbf16, #tpu.memory_space<vmem>>, vector<1x1x1x10x160xbf16>
    %5 = vector.shape_cast %4 : vector<1x1x1x10x160xbf16> to vector<10x160xbf16>
    %6 = arith.extf %5 : vector<10x160xbf16> to vector<10x160xf32>
    %7 = vector.broadcast %1 : vector<1x160xf32> to vector<10x160xf32>
    %8 = arith.mulf %6, %7 : vector<10x160xf32>
    %9 = vector.broadcast %3 : vector<1x160xf32> to vector<10x160xf32>
    %10 = arith.addf %8, %9 : vector<10x160xf32>
    %cst = arith.constant 0.000000e+00 : f32
    %11 = vector.broadcast %cst : f32 to vector<10x160xf32>
    %12 = arith.cmpf ogt, %10, %11 : vector<10x160xf32>
    %cst_9 = arith.constant 0.00999999977 : f32
    %13 = vector.broadcast %cst_9 : f32 to vector<10x160xf32>
    %14 = arith.mulf %13, %10 : vector<10x160xf32>
    %15 = arith.select %12, %10, %14 : vector<10x160xi1>, vector<10x160xf32>
    %16 = arith.truncf %15 : vector<10x160xf32> to vector<10x160xbf16>
    %c0_10 = arith.constant 0 : index
    %c0_11 = arith.constant 0 : index
    %c0_12 = arith.constant 0 : index
    %17 = vector.load %arg8[%c0_10, %c0_11, %c0_12] : memref<10x10x160xbf16, #tpu.memory_space<vmem>>, vector<1x10x160xbf16>
    %18 = vector.shape_cast %17 : vector<1x10x160xbf16> to vector<10x160xbf16>
    %19 = vector.shape_cast %16 : vector<10x160xbf16> to vector<1x10x160xbf16>
    tpu.vector_store %arg8[%c0_10, %c0_11, %c0_12], %19 {strides = array<i32>} : memref<10x10x160xbf16, #tpu.memory_space<vmem>>, vector<1x10x160xbf16>,
    %c0_13 = arith.constant 0 : index
    %c0_14 = arith.constant 0 : index
    %c1_15 = arith.constant 1 : index
    %c0_16 = arith.constant 0 : index
    %c0_17 = arith.constant 0 : index
    %20 = vector.load %arg3[%c0_13, %c0_14, %c1_15, %c0_16, %c0_17] : memref<1x1x10x10x160xbf16, #tpu.memory_space<vmem>>, vector<1x1x1x10x160xbf16>
    %21 = vector.shape_cast %20 : vector<1x1x1x10x160xbf16> to vector<10x160xbf16>
    %22 = arith.extf %21 : vector<10x160xbf16> to vector<10x160xf32>
    %23 = vector.broadcast %1 : vector<1x160xf32> to vector<10x160xf32>
    %24 = arith.mulf %22, %23 : vector<10x160xf32>
    %25 = vector.broadcast %3 : vector<1x160xf32> to vector<10x160xf32>
    %26 = arith.addf %24, %25 : vector<10x160xf32>
    %cst_18 = arith.constant 0.000000e+00 : f32
    %27 = vector.broadcast %cst_18 : f32 to vector<10x160xf32>
    %28 = arith.cmpf ogt, %26, %27 : vector<10x160xf32>
    %cst_19 = arith.constant 0.00999999977 : f32
    %29 = vector.broadcast %cst_19 : f32 to vector<10x160xf32>
    %30 = arith.mulf %29, %26 : vector<10x160xf32>
    %31 = arith.select %28, %26, %30 : vector<10x160xi1>, vector<10x160xf32>
    %32 = arith.truncf %31 : vector<10x160xf32> to vector<10x160xbf16>
    %c1_20 = arith.constant 1 : index
    %c0_21 = arith.constant 0 : index
    %c0_22 = arith.constant 0 : index
    %33 = vector.load %arg8[%c1_20, %c0_21, %c0_22] : memref<10x10x160xbf16, #tpu.memory_space<vmem>>, vector<1x10x160xbf16>
    %34 = vector.shape_cast %33 : vector<1x10x160xbf16> to vector<10x160xbf16>
    %35 = vector.shape_cast %32 : vector<10x160xbf16> to vector<1x10x160xbf16>
    tpu.vector_store %arg8[%c1_20, %c0_21, %c0_22], %35 {strides = array<i32>} : memref<10x10x160xbf16, #tpu.memory_space<vmem>>, vector<1x10x160xbf16>,
    %c0_23 = arith.constant 0 : index
    %c0_24 = arith.constant 0 : index
    %c2 = arith.constant 2 : index
    %c0_25 = arith.constant 0 : index
    %c0_26 = arith.constant 0 : index
    %36 = vector.load %arg3[%c0_23, %c0_24, %c2, %c0_25, %c0_26] : memref<1x1x10x10x160xbf16, #tpu.memory_space<vmem>>, vector<1x1x1x10x160xbf16>
    %37 = vector.shape_cast %36 : vector<1x1x1x10x160xbf16> to vector<10x160xbf16>
    %38 = arith.extf %37 : vector<10x160xbf16> to vector<10x160xf32>
    %39 = vector.broadcast %1 : vector<1x160xf32> to vector<10x160xf32>
    %40 = arith.mulf %38, %39 : vector<10x160xf32>
    %41 = vector.broadcast %3 : vector<1x160xf32> to vector<10x160xf32>
    %42 = arith.addf %40, %41 : vector<10x160xf32>
    %cst_27 = arith.constant 0.000000e+00 : f32
    %43 = vector.broadcast %cst_27 : f32 to vector<10x160xf32>
    %44 = arith.cmpf ogt, %42, %43 : vector<10x160xf32>
    %cst_28 = arith.constant 0.00999999977 : f32
    %45 = vector.broadcast %cst_28 : f32 to vector<10x160xf32>
    %46 = arith.mulf %45, %42 : vector<10x160xf32>
    %47 = arith.select %44, %42, %46 : vector<10x160xi1>, vector<10x160xf32>
    %48 = arith.truncf %47 : vector<10x160xf32> to vector<10x160xbf16>
    %c2_29 = arith.constant 2 : index
    %c0_30 = arith.constant 0 : index
    %c0_31 = arith.constant 0 : index
    %49 = vector.load %arg8[%c2_29, %c0_30, %c0_31] : memref<10x10x160xbf16, #tpu.memory_space<vmem>>, vector<1x10x160xbf16>
    %50 = vector.shape_cast %49 : vector<1x10x160xbf16> to vector<10x160xbf16>
    %51 = vector.shape_cast %48 : vector<10x160xbf16> to vector<1x10x160xbf16>
    tpu.vector_store %arg8[%c2_29, %c0_30, %c0_31], %51 {strides = array<i32>} : memref<10x10x160xbf16, #tpu.memory_space<vmem>>, vector<1x10x160xbf16>,
    %c0_32 = arith.constant 0 : index
    %c0_33 = arith.constant 0 : index
    %c3 = arith.constant 3 : index
    %c0_34 = arith.constant 0 : index
    %c0_35 = arith.constant 0 : index
    %52 = vector.load %arg3[%c0_32, %c0_33, %c3, %c0_34, %c0_35] : memref<1x1x10x10x160xbf16, #tpu.memory_space<vmem>>, vector<1x1x1x10x160xbf16>
    %53 = vector.shape_cast %52 : vector<1x1x1x10x160xbf16> to vector<10x160xbf16>
    %54 = arith.extf %53 : vector<10x160xbf16> to vector<10x160xf32>
    %55 = vector.broadcast %1 : vector<1x160xf32> to vector<10x160xf32>
    %56 = arith.mulf %54, %55 : vector<10x160xf32>
    %57 = vector.broadcast %3 : vector<1x160xf32> to vector<10x160xf32>
    %58 = arith.addf %56, %57 : vector<10x160xf32>
    %cst_36 = arith.constant 0.000000e+00 : f32
    %59 = vector.broadcast %cst_36 : f32 to vector<10x160xf32>
    %60 = arith.cmpf ogt, %58, %59 : vector<10x160xf32>
    %cst_37 = arith.constant 0.00999999977 : f32
    %61 = vector.broadcast %cst_37 : f32 to vector<10x160xf32>
    %62 = arith.mulf %61, %58 : vector<10x160xf32>
    %63 = arith.select %60, %58, %62 : vector<10x160xi1>, vector<10x160xf32>
    %64 = arith.truncf %63 : vector<10x160xf32> to vector<10x160xbf16>
    %c3_38 = arith.constant 3 : index
    %c0_39 = arith.constant 0 : index
    %c0_40 = arith.constant 0 : index
    %65 = vector.load %arg8[%c3_38, %c0_39, %c0_40] : memref<10x10x160xbf16, #tpu.memory_space<vmem>>, vector<1x10x160xbf16>
    %66 = vector.shape_cast %65 : vector<1x10x160xbf16> to vector<10x160xbf16>
    %67 = vector.shape_cast %64 : vector<10x160xbf16> to vector<1x10x160xbf16>
    tpu.vector_store %arg8[%c3_38, %c0_39, %c0_40], %67 {strides = array<i32>} : memref<10x10x160xbf16, #tpu.memory_space<vmem>>, vector<1x10x160xbf16>,
    %c0_41 = arith.constant 0 : index
    %c0_42 = arith.constant 0 : index
    %c4 = arith.constant 4 : index
    %c0_43 = arith.constant 0 : index
    %c0_44 = arith.constant 0 : index
    %68 = vector.load %arg3[%c0_41, %c0_42, %c4, %c0_43, %c0_44] : memref<1x1x10x10x160xbf16, #tpu.memory_space<vmem>>, vector<1x1x1x10x160xbf16>
    %69 = vector.shape_cast %68 : vector<1x1x1x10x160xbf16> to vector<10x160xbf16>
    %70 = arith.extf %69 : vector<10x160xbf16> to vector<10x160xf32>
    %71 = vector.broadcast %1 : vector<1x160xf32> to vector<10x160xf32>
    %72 = arith.mulf %70, %71 : vector<10x160xf32>
    %73 = vector.broadcast %3 : vector<1x160xf32> to vector<10x160xf32>
    %74 = arith.addf %72, %73 : vector<10x160xf32>
    %cst_45 = arith.constant 0.000000e+00 : f32
    %75 = vector.broadcast %cst_45 : f32 to vector<10x160xf32>
    %76 = arith.cmpf ogt, %74, %75 : vector<10x160xf32>
    %cst_46 = arith.constant 0.00999999977 : f32
    %77 = vector.broadcast %cst_46 : f32 to vector<10x160xf32>
    %78 = arith.mulf %77, %74 : vector<10x160xf32>
    %79 = arith.select %76, %74, %78 : vector<10x160xi1>, vector<10x160xf32>
    %80 = arith.truncf %79 : vector<10x160xf32> to vector<10x160xbf16>
    %c4_47 = arith.constant 4 : index
    %c0_48 = arith.constant 0 : index
    %c0_49 = arith.constant 0 : index
    %81 = vector.load %arg8[%c4_47, %c0_48, %c0_49] : memref<10x10x160xbf16, #tpu.memory_space<vmem>>, vector<1x10x160xbf16>
    %82 = vector.shape_cast %81 : vector<1x10x160xbf16> to vector<10x160xbf16>
    %83 = vector.shape_cast %80 : vector<10x160xbf16> to vector<1x10x160xbf16>
    tpu.vector_store %arg8[%c4_47, %c0_48, %c0_49], %83 {strides = array<i32>} : memref<10x10x160xbf16, #tpu.memory_space<vmem>>, vector<1x10x160xbf16>,
    %c0_50 = arith.constant 0 : index
    %c0_51 = arith.constant 0 : index
    %c5 = arith.constant 5 : index
    %c0_52 = arith.constant 0 : index
    %c0_53 = arith.constant 0 : index
    %84 = vector.load %arg3[%c0_50, %c0_51, %c5, %c0_52, %c0_53] : memref<1x1x10x10x160xbf16, #tpu.memory_space<vmem>>, vector<1x1x1x10x160xbf16>
    %85 = vector.shape_cast %84 : vector<1x1x1x10x160xbf16> to vector<10x160xbf16>
    %86 = arith.extf %85 : vector<10x160xbf16> to vector<10x160xf32>
    %87 = vector.broadcast %1 : vector<1x160xf32> to vector<10x160xf32>
    %88 = arith.mulf %86, %87 : vector<10x160xf32>
    %89 = vector.broadcast %3 : vector<1x160xf32> to vector<10x160xf32>
    %90 = arith.addf %88, %89 : vector<10x160xf32>
    %cst_54 = arith.constant 0.000000e+00 : f32
    %91 = vector.broadcast %cst_54 : f32 to vector<10x160xf32>
    %92 = arith.cmpf ogt, %90, %91 : vector<10x160xf32>
    %cst_55 = arith.constant 0.00999999977 : f32
    %93 = vector.broadcast %cst_55 : f32 to vector<10x160xf32>
    %94 = arith.mulf %93, %90 : vector<10x160xf32>
    %95 = arith.select %92, %90, %94 : vector<10x160xi1>, vector<10x160xf32>
    %96 = arith.truncf %95 : vector<10x160xf32> to vector<10x160xbf16>
    %c5_56 = arith.constant 5 : index
    %c0_57 = arith.constant 0 : index
    %c0_58 = arith.constant 0 : index
    %97 = vector.load %arg8[%c5_56, %c0_57, %c0_58] : memref<10x10x160xbf16, #tpu.memory_space<vmem>>, vector<1x10x160xbf16>
    %98 = vector.shape_cast %97 : vector<1x10x160xbf16> to vector<10x160xbf16>
    %99 = vector.shape_cast %96 : vector<10x160xbf16> to vector<1x10x160xbf16>
    tpu.vector_store %arg8[%c5_56, %c0_57, %c0_58], %99 {strides = array<i32>} : memref<10x10x160xbf16, #tpu.memory_space<vmem>>, vector<1x10x160xbf16>,
    %c0_59 = arith.constant 0 : index
    %c0_60 = arith.constant 0 : index
    %c6 = arith.constant 6 : index
    %c0_61 = arith.constant 0 : index
    %c0_62 = arith.constant 0 : index
    %100 = vector.load %arg3[%c0_59, %c0_60, %c6, %c0_61, %c0_62] : memref<1x1x10x10x160xbf16, #tpu.memory_space<vmem>>, vector<1x1x1x10x160xbf16>
    %101 = vector.shape_cast %100 : vector<1x1x1x10x160xbf16> to vector<10x160xbf16>
    %102 = arith.extf %101 : vector<10x160xbf16> to vector<10x160xf32>
    %103 = vector.broadcast %1 : vector<1x160xf32> to vector<10x160xf32>
    %104 = arith.mulf %102, %103 : vector<10x160xf32>
    %105 = vector.broadcast %3 : vector<1x160xf32> to vector<10x160xf32>
    %106 = arith.addf %104, %105 : vector<10x160xf32>
    %cst_63 = arith.constant 0.000000e+00 : f32
    %107 = vector.broadcast %cst_63 : f32 to vector<10x160xf32>
    %108 = arith.cmpf ogt, %106, %107 : vector<10x160xf32>
    %cst_64 = arith.constant 0.00999999977 : f32
    %109 = vector.broadcast %cst_64 : f32 to vector<10x160xf32>
    %110 = arith.mulf %109, %106 : vector<10x160xf32>
    %111 = arith.select %108, %106, %110 : vector<10x160xi1>, vector<10x160xf32>
    %112 = arith.truncf %111 : vector<10x160xf32> to vector<10x160xbf16>
    %c6_65 = arith.constant 6 : index
    %c0_66 = arith.constant 0 : index
    %c0_67 = arith.constant 0 : index
    %113 = vector.load %arg8[%c6_65, %c0_66, %c0_67] : memref<10x10x160xbf16, #tpu.memory_space<vmem>>, vector<1x10x160xbf16>
    %114 = vector.shape_cast %113 : vector<1x10x160xbf16> to vector<10x160xbf16>
    %115 = vector.shape_cast %112 : vector<10x160xbf16> to vector<1x10x160xbf16>
    tpu.vector_store %arg8[%c6_65, %c0_66, %c0_67], %115 {strides = array<i32>} : memref<10x10x160xbf16, #tpu.memory_space<vmem>>, vector<1x10x160xbf16>,
    %c0_68 = arith.constant 0 : index
    %c0_69 = arith.constant 0 : index
    %c7 = arith.constant 7 : index
    %c0_70 = arith.constant 0 : index
    %c0_71 = arith.constant 0 : index
    %116 = vector.load %arg3[%c0_68, %c0_69, %c7, %c0_70, %c0_71] : memref<1x1x10x10x160xbf16, #tpu.memory_space<vmem>>, vector<1x1x1x10x160xbf16>
    %117 = vector.shape_cast %116 : vector<1x1x1x10x160xbf16> to vector<10x160xbf16>
    %118 = arith.extf %117 : vector<10x160xbf16> to vector<10x160xf32>
    %119 = vector.broadcast %1 : vector<1x160xf32> to vector<10x160xf32>
    %120 = arith.mulf %118, %119 : vector<10x160xf32>
    %121 = vector.broadcast %3 : vector<1x160xf32> to vector<10x160xf32>
    %122 = arith.addf %120, %121 : vector<10x160xf32>
    %cst_72 = arith.constant 0.000000e+00 : f32
    %123 = vector.broadcast %cst_72 : f32 to vector<10x160xf32>
    %124 = arith.cmpf ogt, %122, %123 : vector<10x160xf32>
    %cst_73 = arith.constant 0.00999999977 : f32
    %125 = vector.broadcast %cst_73 : f32 to vector<10x160xf32>
    %126 = arith.mulf %125, %122 : vector<10x160xf32>
    %127 = arith.select %124, %122, %126 : vector<10x160xi1>, vector<10x160xf32>
    %128 = arith.truncf %127 : vector<10x160xf32> to vector<10x160xbf16>
    %c7_74 = arith.constant 7 : index
    %c0_75 = arith.constant 0 : index
    %c0_76 = arith.constant 0 : index
    %129 = vector.load %arg8[%c7_74, %c0_75, %c0_76] : memref<10x10x160xbf16, #tpu.memory_space<vmem>>, vector<1x10x160xbf16>
    %130 = vector.shape_cast %129 : vector<1x10x160xbf16> to vector<10x160xbf16>
    %131 = vector.shape_cast %128 : vector<10x160xbf16> to vector<1x10x160xbf16>
    tpu.vector_store %arg8[%c7_74, %c0_75, %c0_76], %131 {strides = array<i32>} : memref<10x10x160xbf16, #tpu.memory_space<vmem>>, vector<1x10x160xbf16>,
    %c0_77 = arith.constant 0 : index
    %c0_78 = arith.constant 0 : index
    %c8 = arith.constant 8 : index
    %c0_79 = arith.constant 0 : index
    %c0_80 = arith.constant 0 : index
    %132 = vector.load %arg3[%c0_77, %c0_78, %c8, %c0_79, %c0_80] : memref<1x1x10x10x160xbf16, #tpu.memory_space<vmem>>, vector<1x1x1x10x160xbf16>
    %133 = vector.shape_cast %132 : vector<1x1x1x10x160xbf16> to vector<10x160xbf16>
    %134 = arith.extf %133 : vector<10x160xbf16> to vector<10x160xf32>
    %135 = vector.broadcast %1 : vector<1x160xf32> to vector<10x160xf32>
    %136 = arith.mulf %134, %135 : vector<10x160xf32>
    %137 = vector.broadcast %3 : vector<1x160xf32> to vector<10x160xf32>
    %138 = arith.addf %136, %137 : vector<10x160xf32>
    %cst_81 = arith.constant 0.000000e+00 : f32
    %139 = vector.broadcast %cst_81 : f32 to vector<10x160xf32>
    %140 = arith.cmpf ogt, %138, %139 : vector<10x160xf32>
    %cst_82 = arith.constant 0.00999999977 : f32
    %141 = vector.broadcast %cst_82 : f32 to vector<10x160xf32>
    %142 = arith.mulf %141, %138 : vector<10x160xf32>
    %143 = arith.select %140, %138, %142 : vector<10x160xi1>, vector<10x160xf32>
    %144 = arith.truncf %143 : vector<10x160xf32> to vector<10x160xbf16>
    %c8_83 = arith.constant 8 : index
    %c0_84 = arith.constant 0 : index
    %c0_85 = arith.constant 0 : index
    %145 = vector.load %arg8[%c8_83, %c0_84, %c0_85] : memref<10x10x160xbf16, #tpu.memory_space<vmem>>, vector<1x10x160xbf16>
    %146 = vector.shape_cast %145 : vector<1x10x160xbf16> to vector<10x160xbf16>
    %147 = vector.shape_cast %144 : vector<10x160xbf16> to vector<1x10x160xbf16>
    tpu.vector_store %arg8[%c8_83, %c0_84, %c0_85], %147 {strides = array<i32>} : memref<10x10x160xbf16, #tpu.memory_space<vmem>>, vector<1x10x160xbf16>,
    %c0_86 = arith.constant 0 : index
    %c0_87 = arith.constant 0 : index
    %c9 = arith.constant 9 : index
    %c0_88 = arith.constant 0 : index
    %c0_89 = arith.constant 0 : index
    %148 = vector.load %arg3[%c0_86, %c0_87, %c9, %c0_88, %c0_89] : memref<1x1x10x10x160xbf16, #tpu.memory_space<vmem>>, vector<1x1x1x10x160xbf16>
    %149 = vector.shape_cast %148 : vector<1x1x1x10x160xbf16> to vector<10x160xbf16>
    %150 = arith.extf %149 : vector<10x160xbf16> to vector<10x160xf32>
    %151 = vector.broadcast %1 : vector<1x160xf32> to vector<10x160xf32>
    %152 = arith.mulf %150, %151 : vector<10x160xf32>
    %153 = vector.broadcast %3 : vector<1x160xf32> to vector<10x160xf32>
    %154 = arith.addf %152, %153 : vector<10x160xf32>
    %cst_90 = arith.constant 0.000000e+00 : f32
    %155 = vector.broadcast %cst_90 : f32 to vector<10x160xf32>
    %156 = arith.cmpf ogt, %154, %155 : vector<10x160xf32>
    %cst_91 = arith.constant 0.00999999977 : f32
    %157 = vector.broadcast %cst_91 : f32 to vector<10x160xf32>
    %158 = arith.mulf %157, %154 : vector<10x160xf32>
    %159 = arith.select %156, %154, %158 : vector<10x160xi1>, vector<10x160xf32>
    %160 = arith.truncf %159 : vector<10x160xf32> to vector<10x160xbf16>
    %c9_92 = arith.constant 9 : index
    %c0_93 = arith.constant 0 : index
    %c0_94 = arith.constant 0 : index
    %161 = vector.load %arg8[%c9_92, %c0_93, %c0_94] : memref<10x10x160xbf16, #tpu.memory_space<vmem>>, vector<1x10x160xbf16>
    %162 = vector.shape_cast %161 : vector<1x10x160xbf16> to vector<10x160xbf16>
    %163 = vector.shape_cast %160 : vector<10x160xbf16> to vector<1x10x160xbf16>
    tpu.vector_store %arg8[%c9_92, %c0_93, %c0_94], %163 {strides = array<i32>} : memref<10x10x160xbf16, #tpu.memory_space<vmem>>, vector<1x10x160xbf16>,
    %c0_95 = arith.constant 0 : index
    %c0_96 = arith.constant 0 : index
    %c0_97 = arith.constant 0 : index
    %164 = vector.load %arg8[%c0_95, %c0_96, %c0_97] : memref<10x10x160xbf16, #tpu.memory_space<vmem>>, vector<1x8x160xbf16>
    %165 = vector.shape_cast %164 : vector<1x8x160xbf16> to vector<8x160xbf16>
    %c0_98 = arith.constant 0 : index
    %c0_99 = arith.constant 0 : index
    %166 = vector.load %arg9[%c0_98, %c0_99] : memref<64x1440xbf16, #tpu.memory_space<vmem>>, vector<8x160xbf16>
    tpu.vector_store %arg9[%c0_98, %c0_99], %165 {strides = array<i32>} : memref<64x1440xbf16, #tpu.memory_space<vmem>>, vector<8x160xbf16>,
    %c0_100 = arith.constant 0 : index
    %c1_101 = arith.constant 1 : index
    %c0_102 = arith.constant 0 : index
    %167 = vector.load %arg8[%c0_100, %c1_101, %c0_102] : memref<10x10x160xbf16, #tpu.memory_space<vmem>>, vector<1x8x160xbf16>
    %168 = vector.shape_cast %167 : vector<1x8x160xbf16> to vector<8x160xbf16>
    %c0_103 = arith.constant 0 : index
    %c160 = arith.constant 160 : index
    %169 = vector.load %arg9[%c0_103, %c160] : memref<64x1440xbf16, #tpu.memory_space<vmem>>, vector<8x160xbf16>
    tpu.vector_store %arg9[%c0_103, %c160], %168 {strides = array<i32>} : memref<64x1440xbf16, #tpu.memory_space<vmem>>, vector<8x160xbf16>,
    %c0_104 = arith.constant 0 : index
    %c2_105 = arith.constant 2 : index
    %c0_106 = arith.constant 0 : index
    %170 = vector.load %arg8[%c0_104, %c2_105, %c0_106] : memref<10x10x160xbf16, #tpu.memory_space<vmem>>, vector<1x8x160xbf16>
    %171 = vector.shape_cast %170 : vector<1x8x160xbf16> to vector<8x160xbf16>
    %c0_107 = arith.constant 0 : index
    %c320 = arith.constant 320 : index
    %172 = vector.load %arg9[%c0_107, %c320] : memref<64x1440xbf16, #tpu.memory_space<vmem>>, vector<8x160xbf16>
    tpu.vector_store %arg9[%c0_107, %c320], %171 {strides = array<i32>} : memref<64x1440xbf16, #tpu.memory_space<vmem>>, vector<8x160xbf16>,
    %c1_108 = arith.constant 1 : index
    %c0_109 = arith.constant 0 : index
    %c0_110 = arith.constant 0 : index
    %173 = vector.load %arg8[%c1_108, %c0_109, %c0_110] : memref<10x10x160xbf16, #tpu.memory_space<vmem>>, vector<1x8x160xbf16>
    %174 = vector.shape_cast %173 : vector<1x8x160xbf16> to vector<8x160xbf16>
    %c0_111 = arith.constant 0 : index
    %c480 = arith.constant 480 : index
    %175 = vector.load %arg9[%c0_111, %c480] : memref<64x1440xbf16, #tpu.memory_space<vmem>>, vector<8x160xbf16>
    tpu.vector_store %arg9[%c0_111, %c480], %174 {strides = array<i32>} : memref<64x1440xbf16, #tpu.memory_space<vmem>>, vector<8x160xbf16>,
    %c1_112 = arith.constant 1 : index
    %c1_113 = arith.constant 1 : index
    %c0_114 = arith.constant 0 : index
    %176 = vector.load %arg8[%c1_112, %c1_113, %c0_114] : memref<10x10x160xbf16, #tpu.memory_space<vmem>>, vector<1x8x160xbf16>
    %177 = vector.shape_cast %176 : vector<1x8x160xbf16> to vector<8x160xbf16>
    %c0_115 = arith.constant 0 : index
    %c640 = arith.constant 640 : index
    %178 = vector.load %arg9[%c0_115, %c640] : memref<64x1440xbf16, #tpu.memory_space<vmem>>, vector<8x160xbf16>
    tpu.vector_store %arg9[%c0_115, %c640], %177 {strides = array<i32>} : memref<64x1440xbf16, #tpu.memory_space<vmem>>, vector<8x160xbf16>,
    %c1_116 = arith.constant 1 : index
    %c2_117 = arith.constant 2 : index
    %c0_118 = arith.constant 0 : index
    %179 = vector.load %arg8[%c1_116, %c2_117, %c0_118] : memref<10x10x160xbf16, #tpu.memory_space<vmem>>, vector<1x8x160xbf16>
    %180 = vector.shape_cast %179 : vector<1x8x160xbf16> to vector<8x160xbf16>
    %c0_119 = arith.constant 0 : index
    %c800 = arith.constant 800 : index
    %181 = vector.load %arg9[%c0_119, %c800] : memref<64x1440xbf16, #tpu.memory_space<vmem>>, vector<8x160xbf16>
    tpu.vector_store %arg9[%c0_119, %c800], %180 {strides = array<i32>} : memref<64x1440xbf16, #tpu.memory_space<vmem>>, vector<8x160xbf16>,
    %c2_120 = arith.constant 2 : index
    %c0_121 = arith.constant 0 : index
    %c0_122 = arith.constant 0 : index
    %182 = vector.load %arg8[%c2_120, %c0_121, %c0_122] : memref<10x10x160xbf16, #tpu.memory_space<vmem>>, vector<1x8x160xbf16>
    %183 = vector.shape_cast %182 : vector<1x8x160xbf16> to vector<8x160xbf16>
    %c0_123 = arith.constant 0 : index
    %c960 = arith.constant 960 : index
    %184 = vector.load %arg9[%c0_123, %c960] : memref<64x1440xbf16, #tpu.memory_space<vmem>>, vector<8x160xbf16>
    tpu.vector_store %arg9[%c0_123, %c960], %183 {strides = array<i32>} : memref<64x1440xbf16, #tpu.memory_space<vmem>>, vector<8x160xbf16>,
    %c2_124 = arith.constant 2 : index
    %c1_125 = arith.constant 1 : index
    %c0_126 = arith.constant 0 : index
    %185 = vector.load %arg8[%c2_124, %c1_125, %c0_126] : memref<10x10x160xbf16, #tpu.memory_space<vmem>>, vector<1x8x160xbf16>
    %186 = vector.shape_cast %185 : vector<1x8x160xbf16> to vector<8x160xbf16>
    %c0_127 = arith.constant 0 : index
    %c1120 = arith.constant 1120 : index
    %187 = vector.load %arg9[%c0_127, %c1120] : memref<64x1440xbf16, #tpu.memory_space<vmem>>, vector<8x160xbf16>
    tpu.vector_store %arg9[%c0_127, %c1120], %186 {strides = array<i32>} : memref<64x1440xbf16, #tpu.memory_space<vmem>>, vector<8x160xbf16>,
    %c2_128 = arith.constant 2 : index
    %c2_129 = arith.constant 2 : index
    %c0_130 = arith.constant 0 : index
    %188 = vector.load %arg8[%c2_128, %c2_129, %c0_130] : memref<10x10x160xbf16, #tpu.memory_space<vmem>>, vector<1x8x160xbf16>
    %189 = vector.shape_cast %188 : vector<1x8x160xbf16> to vector<8x160xbf16>
    %c0_131 = arith.constant 0 : index
    %c1280 = arith.constant 1280 : index
    %190 = vector.load %arg9[%c0_131, %c1280] : memref<64x1440xbf16, #tpu.memory_space<vmem>>, vector<8x160xbf16>
    tpu.vector_store %arg9[%c0_131, %c1280], %189 {strides = array<i32>} : memref<64x1440xbf16, #tpu.memory_space<vmem>>, vector<8x160xbf16>,
    %c1_132 = arith.constant 1 : index
    %c0_133 = arith.constant 0 : index
    %c0_134 = arith.constant 0 : index
    %191 = vector.load %arg8[%c1_132, %c0_133, %c0_134] : memref<10x10x160xbf16, #tpu.memory_space<vmem>>, vector<1x8x160xbf16>
    %192 = vector.shape_cast %191 : vector<1x8x160xbf16> to vector<8x160xbf16>
    %c8_135 = arith.constant 8 : index
    %c0_136 = arith.constant 0 : index
    %193 = vector.load %arg9[%c8_135, %c0_136] : memref<64x1440xbf16, #tpu.memory_space<vmem>>, vector<8x160xbf16>
    tpu.vector_store %arg9[%c8_135, %c0_136], %192 {strides = array<i32>} : memref<64x1440xbf16, #tpu.memory_space<vmem>>, vector<8x160xbf16>,
    %c1_137 = arith.constant 1 : index
    %c1_138 = arith.constant 1 : index
    %c0_139 = arith.constant 0 : index
    %194 = vector.load %arg8[%c1_137, %c1_138, %c0_139] : memref<10x10x160xbf16, #tpu.memory_space<vmem>>, vector<1x8x160xbf16>
    %195 = vector.shape_cast %194 : vector<1x8x160xbf16> to vector<8x160xbf16>
    %c8_140 = arith.constant 8 : index
    %c160_141 = arith.constant 160 : index
    %196 = vector.load %arg9[%c8_140, %c160_141] : memref<64x1440xbf16, #tpu.memory_space<vmem>>, vector<8x160xbf16>
    tpu.vector_store %arg9[%c8_140, %c160_141], %195 {strides = array<i32>} : memref<64x1440xbf16, #tpu.memory_space<vmem>>, vector<8x160xbf16>,
    %c1_142 = arith.constant 1 : index
    %c2_143 = arith.constant 2 : index
    %c0_144 = arith.constant 0 : index
    %197 = vector.load %arg8[%c1_142, %c2_143, %c0_144] : memref<10x10x160xbf16, #tpu.memory_space<vmem>>, vector<1x8x160xbf16>
    %198 = vector.shape_cast %197 : vector<1x8x160xbf16> to vector<8x160xbf16>
    %c8_145 = arith.constant 8 : index
    %c320_146 = arith.constant 320 : index
    %199 = vector.load %arg9[%c8_145, %c320_146] : memref<64x1440xbf16, #tpu.memory_space<vmem>>, vector<8x160xbf16>
    tpu.vector_store %arg9[%c8_145, %c320_146], %198 {strides = array<i32>} : memref<64x1440xbf16, #tpu.memory_space<vmem>>, vector<8x160xbf16>,
    %c2_147 = arith.constant 2 : index
    %c0_148 = arith.constant 0 : index
    %c0_149 = arith.constant 0 : index
    %200 = vector.load %arg8[%c2_147, %c0_148, %c0_149] : memref<10x10x160xbf16, #tpu.memory_space<vmem>>, vector<1x8x160xbf16>
    %201 = vector.shape_cast %200 : vector<1x8x160xbf16> to vector<8x160xbf16>
    %c8_150 = arith.constant 8 : index
    %c480_151 = arith.constant 480 : index
    %202 = vector.load %arg9[%c8_150, %c480_151] : memref<64x1440xbf16, #tpu.memory_space<vmem>>, vector<8x160xbf16>
    tpu.vector_store %arg9[%c8_150, %c480_151], %201 {strides = array<i32>} : memref<64x1440xbf16, #tpu.memory_space<vmem>>, vector<8x160xbf16>,
    %c2_152 = arith.constant 2 : index
    %c1_153 = arith.constant 1 : index
    %c0_154 = arith.constant 0 : index
    %203 = vector.load %arg8[%c2_152, %c1_153, %c0_154] : memref<10x10x160xbf16, #tpu.memory_space<vmem>>, vector<1x8x160xbf16>
    %204 = vector.shape_cast %203 : vector<1x8x160xbf16> to vector<8x160xbf16>
    %c8_155 = arith.constant 8 : index
    %c640_156 = arith.constant 640 : index
    %205 = vector.load %arg9[%c8_155, %c640_156] : memref<64x1440xbf16, #tpu.memory_space<vmem>>, vector<8x160xbf16>
    tpu.vector_store %arg9[%c8_155, %c640_156], %204 {strides = array<i32>} : memref<64x1440xbf16, #tpu.memory_space<vmem>>, vector<8x160xbf16>,
    %c2_157 = arith.constant 2 : index
    %c2_158 = arith.constant 2 : index
    %c0_159 = arith.constant 0 : index
    %206 = vector.load %arg8[%c2_157, %c2_158, %c0_159] : memref<10x10x160xbf16, #tpu.memory_space<vmem>>, vector<1x8x160xbf16>
    %207 = vector.shape_cast %206 : vector<1x8x160xbf16> to vector<8x160xbf16>
    %c8_160 = arith.constant 8 : index
    %c800_161 = arith.constant 800 : index
    %208 = vector.load %arg9[%c8_160, %c800_161] : memref<64x1440xbf16, #tpu.memory_space<vmem>>, vector<8x160xbf16>
    tpu.vector_store %arg9[%c8_160, %c800_161], %207 {strides = array<i32>} : memref<64x1440xbf16, #tpu.memory_space<vmem>>, vector<8x160xbf16>,
    %c3_162 = arith.constant 3 : index
    %c0_163 = arith.constant 0 : index
    %c0_164 = arith.constant 0 : index
    %209 = vector.load %arg8[%c3_162, %c0_163, %c0_164] : memref<10x10x160xbf16, #tpu.memory_space<vmem>>, vector<1x8x160xbf16>
    %210 = vector.shape_cast %209 : vector<1x8x160xbf16> to vector<8x160xbf16>
    %c8_165 = arith.constant 8 : index
    %c960_166 = arith.constant 960 : index
    %211 = vector.load %arg9[%c8_165, %c960_166] : memref<64x1440xbf16, #tpu.memory_space<vmem>>, vector<8x160xbf16>
    tpu.vector_store %arg9[%c8_165, %c960_166], %210 {strides = array<i32>} : memref<64x1440xbf16, #tpu.memory_space<vmem>>, vector<8x160xbf16>,
    %c3_167 = arith.constant 3 : index
    %c1_168 = arith.constant 1 : index
    %c0_169 = arith.constant 0 : index
    %212 = vector.load %arg8[%c3_167, %c1_168, %c0_169] : memref<10x10x160xbf16, #tpu.memory_space<vmem>>, vector<1x8x160xbf16>
    %213 = vector.shape_cast %212 : vector<1x8x160xbf16> to vector<8x160xbf16>
    %c8_170 = arith.constant 8 : index
    %c1120_171 = arith.constant 1120 : index
    %214 = vector.load %arg9[%c8_170, %c1120_171] : memref<64x1440xbf16, #tpu.memory_space<vmem>>, vector<8x160xbf16>
    tpu.vector_store %arg9[%c8_170, %c1120_171], %213 {strides = array<i32>} : memref<64x1440xbf16, #tpu.memory_space<vmem>>, vector<8x160xbf16>,
    %c3_172 = arith.constant 3 : index
    %c2_173 = arith.constant 2 : index
    %c0_174 = arith.constant 0 : index
    %215 = vector.load %arg8[%c3_172, %c2_173, %c0_174] : memref<10x10x160xbf16, #tpu.memory_space<vmem>>, vector<1x8x160xbf16>
    %216 = vector.shape_cast %215 : vector<1x8x160xbf16> to vector<8x160xbf16>
    %c8_175 = arith.constant 8 : index
    %c1280_176 = arith.constant 1280 : index
    %217 = vector.load %arg9[%c8_175, %c1280_176] : memref<64x1440xbf16, #tpu.memory_space<vmem>>, vector<8x160xbf16>
    tpu.vector_store %arg9[%c8_175, %c1280_176], %216 {strides = array<i32>} : memref<64x1440xbf16, #tpu.memory_space<vmem>>, vector<8x160xbf16>,
    %c2_177 = arith.constant 2 : index
    %c0_178 = arith.constant 0 : index
    %c0_179 = arith.constant 0 : index
    %218 = vector.load %arg8[%c2_177, %c0_178, %c0_179] : memref<10x10x160xbf16, #tpu.memory_space<vmem>>, vector<1x8x160xbf16>
    %219 = vector.shape_cast %218 : vector<1x8x160xbf16> to vector<8x160xbf16>
    %c16 = arith.constant 16 : index
    %c0_180 = arith.constant 0 : index
    %220 = vector.load %arg9[%c16, %c0_180] : memref<64x1440xbf16, #tpu.memory_space<vmem>>, vector<8x160xbf16>
    tpu.vector_store %arg9[%c16, %c0_180], %219 {strides = array<i32>} : memref<64x1440xbf16, #tpu.memory_space<vmem>>, vector<8x160xbf16>,
    %c2_181 = arith.constant 2 : index
    %c1_182 = arith.constant 1 : index
    %c0_183 = arith.constant 0 : index
    %221 = vector.load %arg8[%c2_181, %c1_182, %c0_183] : memref<10x10x160xbf16, #tpu.memory_space<vmem>>, vector<1x8x160xbf16>
    %222 = vector.shape_cast %221 : vector<1x8x160xbf16> to vector<8x160xbf16>
    %c16_184 = arith.constant 16 : index
    %c160_185 = arith.constant 160 : index
    %223 = vector.load %arg9[%c16_184, %c160_185] : memref<64x1440xbf16, #tpu.memory_space<vmem>>, vector<8x160xbf16>
    tpu.vector_store %arg9[%c16_184, %c160_185], %222 {strides = array<i32>} : memref<64x1440xbf16, #tpu.memory_space<vmem>>, vector<8x160xbf16>,
    %c2_186 = arith.constant 2 : index
    %c2_187 = arith.constant 2 : index
    %c0_188 = arith.constant 0 : index
    %224 = vector.load %arg8[%c2_186, %c2_187, %c0_188] : memref<10x10x160xbf16, #tpu.memory_space<vmem>>, vector<1x8x160xbf16>
    %225 = vector.shape_cast %224 : vector<1x8x160xbf16> to vector<8x160xbf16>
    %c16_189 = arith.constant 16 : index
    %c320_190 = arith.constant 320 : index
    %226 = vector.load %arg9[%c16_189, %c320_190] : memref<64x1440xbf16, #tpu.memory_space<vmem>>, vector<8x160xbf16>
    tpu.vector_store %arg9[%c16_189, %c320_190], %225 {strides = array<i32>} : memref<64x1440xbf16, #tpu.memory_space<vmem>>, vector<8x160xbf16>,
    %c3_191 = arith.constant 3 : index
    %c0_192 = arith.constant 0 : index
    %c0_193 = arith.constant 0 : index
    %227 = vector.load %arg8[%c3_191, %c0_192, %c0_193] : memref<10x10x160xbf16, #tpu.memory_space<vmem>>, vector<1x8x160xbf16>
    %228 = vector.shape_cast %227 : vector<1x8x160xbf16> to vector<8x160xbf16>
    %c16_194 = arith.constant 16 : index
    %c480_195 = arith.constant 480 : index
    %229 = vector.load %arg9[%c16_194, %c480_195] : memref<64x1440xbf16, #tpu.memory_space<vmem>>, vector<8x160xbf16>
    tpu.vector_store %arg9[%c16_194, %c480_195], %228 {strides = array<i32>} : memref<64x1440xbf16, #tpu.memory_space<vmem>>, vector<8x160xbf16>,
    %c3_196 = arith.constant 3 : index
    %c1_197 = arith.constant 1 : index
    %c0_198 = arith.constant 0 : index
    %230 = vector.load %arg8[%c3_196, %c1_197, %c0_198] : memref<10x10x160xbf16, #tpu.memory_space<vmem>>, vector<1x8x160xbf16>
    %231 = vector.shape_cast %230 : vector<1x8x160xbf16> to vector<8x160xbf16>
    %c16_199 = arith.constant 16 : index
    %c640_200 = arith.constant 640 : index
    %232 = vector.load %arg9[%c16_199, %c640_200] : memref<64x1440xbf16, #tpu.memory_space<vmem>>, vector<8x160xbf16>
    tpu.vector_store %arg9[%c16_199, %c640_200], %231 {strides = array<i32>} : memref<64x1440xbf16, #tpu.memory_space<vmem>>, vector<8x160xbf16>,
    %c3_201 = arith.constant 3 : index
    %c2_202 = arith.constant 2 : index
    %c0_203 = arith.constant 0 : index
    %233 = vector.load %arg8[%c3_201, %c2_202, %c0_203] : memref<10x10x160xbf16, #tpu.memory_space<vmem>>, vector<1x8x160xbf16>
    %234 = vector.shape_cast %233 : vector<1x8x160xbf16> to vector<8x160xbf16>
    %c16_204 = arith.constant 16 : index
    %c800_205 = arith.constant 800 : index
    %235 = vector.load %arg9[%c16_204, %c800_205] : memref<64x1440xbf16, #tpu.memory_space<vmem>>, vector<8x160xbf16>
    tpu.vector_store %arg9[%c16_204, %c800_205], %234 {strides = array<i32>} : memref<64x1440xbf16, #tpu.memory_space<vmem>>, vector<8x160xbf16>,
    %c4_206 = arith.constant 4 : index
    %c0_207 = arith.constant 0 : index
    %c0_208 = arith.constant 0 : index
    %236 = vector.load %arg8[%c4_206, %c0_207, %c0_208] : memref<10x10x160xbf16, #tpu.memory_space<vmem>>, vector<1x8x160xbf16>
    %237 = vector.shape_cast %236 : vector<1x8x160xbf16> to vector<8x160xbf16>
    %c16_209 = arith.constant 16 : index
    %c960_210 = arith.constant 960 : index
    %238 = vector.load %arg9[%c16_209, %c960_210] : memref<64x1440xbf16, #tpu.memory_space<vmem>>, vector<8x160xbf16>
    tpu.vector_store %arg9[%c16_209, %c960_210], %237 {strides = array<i32>} : memref<64x1440xbf16, #tpu.memory_space<vmem>>, vector<8x160xbf16>,
    %c4_211 = arith.constant 4 : index
    %c1_212 = arith.constant 1 : index
    %c0_213 = arith.constant 0 : index
    %239 = vector.load %arg8[%c4_211, %c1_212, %c0_213] : memref<10x10x160xbf16, #tpu.memory_space<vmem>>, vector<1x8x160xbf16>
    %240 = vector.shape_cast %239 : vector<1x8x160xbf16> to vector<8x160xbf16>
    %c16_214 = arith.constant 16 : index
    %c1120_215 = arith.constant 1120 : index
    %241 = vector.load %arg9[%c16_214, %c1120_215] : memref<64x1440xbf16, #tpu.memory_space<vmem>>, vector<8x160xbf16>
    tpu.vector_store %arg9[%c16_214, %c1120_215], %240 {strides = array<i32>} : memref<64x1440xbf16, #tpu.memory_space<vmem>>, vector<8x160xbf16>,
    %c4_216 = arith.constant 4 : index
    %c2_217 = arith.constant 2 : index
    %c0_218 = arith.constant 0 : index
    %242 = vector.load %arg8[%c4_216, %c2_217, %c0_218] : memref<10x10x160xbf16, #tpu.memory_space<vmem>>, vector<1x8x160xbf16>
    %243 = vector.shape_cast %242 : vector<1x8x160xbf16> to vector<8x160xbf16>
    %c16_219 = arith.constant 16 : index
    %c1280_220 = arith.constant 1280 : index
    %244 = vector.load %arg9[%c16_219, %c1280_220] : memref<64x1440xbf16, #tpu.memory_space<vmem>>, vector<8x160xbf16>
    tpu.vector_store %arg9[%c16_219, %c1280_220], %243 {strides = array<i32>} : memref<64x1440xbf16, #tpu.memory_space<vmem>>, vector<8x160xbf16>,
    %c3_221 = arith.constant 3 : index
    %c0_222 = arith.constant 0 : index
    %c0_223 = arith.constant 0 : index
    %245 = vector.load %arg8[%c3_221, %c0_222, %c0_223] : memref<10x10x160xbf16, #tpu.memory_space<vmem>>, vector<1x8x160xbf16>
    %246 = vector.shape_cast %245 : vector<1x8x160xbf16> to vector<8x160xbf16>
    %c24 = arith.constant 24 : index
    %c0_224 = arith.constant 0 : index
    %247 = vector.load %arg9[%c24, %c0_224] : memref<64x1440xbf16, #tpu.memory_space<vmem>>, vector<8x160xbf16>
    tpu.vector_store %arg9[%c24, %c0_224], %246 {strides = array<i32>} : memref<64x1440xbf16, #tpu.memory_space<vmem>>, vector<8x160xbf16>,
    %c3_225 = arith.constant 3 : index
    %c1_226 = arith.constant 1 : index
    %c0_227 = arith.constant 0 : index
    %248 = vector.load %arg8[%c3_225, %c1_226, %c0_227] : memref<10x10x160xbf16, #tpu.memory_space<vmem>>, vector<1x8x160xbf16>
    %249 = vector.shape_cast %248 : vector<1x8x160xbf16> to vector<8x160xbf16>
    %c24_228 = arith.constant 24 : index
    %c160_229 = arith.constant 160 : index
    %250 = vector.load %arg9[%c24_228, %c160_229] : memref<64x1440xbf16, #tpu.memory_space<vmem>>, vector<8x160xbf16>
    tpu.vector_store %arg9[%c24_228, %c160_229], %249 {strides = array<i32>} : memref<64x1440xbf16, #tpu.memory_space<vmem>>, vector<8x160xbf16>,
    %c3_230 = arith.constant 3 : index
    %c2_231 = arith.constant 2 : index
    %c0_232 = arith.constant 0 : index
    %251 = vector.load %arg8[%c3_230, %c2_231, %c0_232] : memref<10x10x160xbf16, #tpu.memory_space<vmem>>, vector<1x8x160xbf16>
    %252 = vector.shape_cast %251 : vector<1x8x160xbf16> to vector<8x160xbf16>
    %c24_233 = arith.constant 24 : index
    %c320_234 = arith.constant 320 : index
    %253 = vector.load %arg9[%c24_233, %c320_234] : memref<64x1440xbf16, #tpu.memory_space<vmem>>, vector<8x160xbf16>
    tpu.vector_store %arg9[%c24_233, %c320_234], %252 {strides = array<i32>} : memref<64x1440xbf16, #tpu.memory_space<vmem>>, vector<8x160xbf16>,
    %c4_235 = arith.constant 4 : index
    %c0_236 = arith.constant 0 : index
    %c0_237 = arith.constant 0 : index
    %254 = vector.load %arg8[%c4_235, %c0_236, %c0_237] : memref<10x10x160xbf16, #tpu.memory_space<vmem>>, vector<1x8x160xbf16>
    %255 = vector.shape_cast %254 : vector<1x8x160xbf16> to vector<8x160xbf16>
    %c24_238 = arith.constant 24 : index
    %c480_239 = arith.constant 480 : index
    %256 = vector.load %arg9[%c24_238, %c480_239] : memref<64x1440xbf16, #tpu.memory_space<vmem>>, vector<8x160xbf16>
    tpu.vector_store %arg9[%c24_238, %c480_239], %255 {strides = array<i32>} : memref<64x1440xbf16, #tpu.memory_space<vmem>>, vector<8x160xbf16>,
    %c4_240 = arith.constant 4 : index
    %c1_241 = arith.constant 1 : index
    %c0_242 = arith.constant 0 : index
    %257 = vector.load %arg8[%c4_240, %c1_241, %c0_242] : memref<10x10x160xbf16, #tpu.memory_space<vmem>>, vector<1x8x160xbf16>
    %258 = vector.shape_cast %257 : vector<1x8x160xbf16> to vector<8x160xbf16>
    %c24_243 = arith.constant 24 : index
    %c640_244 = arith.constant 640 : index
    %259 = vector.load %arg9[%c24_243, %c640_244] : memref<64x1440xbf16, #tpu.memory_space<vmem>>, vector<8x160xbf16>
    tpu.vector_store %arg9[%c24_243, %c640_244], %258 {strides = array<i32>} : memref<64x1440xbf16, #tpu.memory_space<vmem>>, vector<8x160xbf16>,
    %c4_245 = arith.constant 4 : index
    %c2_246 = arith.constant 2 : index
    %c0_247 = arith.constant 0 : index
    %260 = vector.load %arg8[%c4_245, %c2_246, %c0_247] : memref<10x10x160xbf16, #tpu.memory_space<vmem>>, vector<1x8x160xbf16>
    %261 = vector.shape_cast %260 : vector<1x8x160xbf16> to vector<8x160xbf16>
    %c24_248 = arith.constant 24 : index
    %c800_249 = arith.constant 800 : index
    %262 = vector.load %arg9[%c24_248, %c800_249] : memref<64x1440xbf16, #tpu.memory_space<vmem>>, vector<8x160xbf16>
    tpu.vector_store %arg9[%c24_248, %c800_249], %261 {strides = array<i32>} : memref<64x1440xbf16, #tpu.memory_space<vmem>>, vector<8x160xbf16>,
    %c5_250 = arith.constant 5 : index
    %c0_251 = arith.constant 0 : index
    %c0_252 = arith.constant 0 : index
    %263 = vector.load %arg8[%c5_250, %c0_251, %c0_252] : memref<10x10x160xbf16, #tpu.memory_space<vmem>>, vector<1x8x160xbf16>
    %264 = vector.shape_cast %263 : vector<1x8x160xbf16> to vector<8x160xbf16>
    %c24_253 = arith.constant 24 : index
    %c960_254 = arith.constant 960 : index
    %265 = vector.load %arg9[%c24_253, %c960_254] : memref<64x1440xbf16, #tpu.memory_space<vmem>>, vector<8x160xbf16>
    tpu.vector_store %arg9[%c24_253, %c960_254], %264 {strides = array<i32>} : memref<64x1440xbf16, #tpu.memory_space<vmem>>, vector<8x160xbf16>,
    %c5_255 = arith.constant 5 : index
    %c1_256 = arith.constant 1 : index
    %c0_257 = arith.constant 0 : index
    %266 = vector.load %arg8[%c5_255, %c1_256, %c0_257] : memref<10x10x160xbf16, #tpu.memory_space<vmem>>, vector<1x8x160xbf16>
    %267 = vector.shape_cast %266 : vector<1x8x160xbf16> to vector<8x160xbf16>
    %c24_258 = arith.constant 24 : index
    %c1120_259 = arith.constant 1120 : index
    %268 = vector.load %arg9[%c24_258, %c1120_259] : memref<64x1440xbf16, #tpu.memory_space<vmem>>, vector<8x160xbf16>
    tpu.vector_store %arg9[%c24_258, %c1120_259], %267 {strides = array<i32>} : memref<64x1440xbf16, #tpu.memory_space<vmem>>, vector<8x160xbf16>,
    %c5_260 = arith.constant 5 : index
    %c2_261 = arith.constant 2 : index
    %c0_262 = arith.constant 0 : index
    %269 = vector.load %arg8[%c5_260, %c2_261, %c0_262] : memref<10x10x160xbf16, #tpu.memory_space<vmem>>, vector<1x8x160xbf16>
    %270 = vector.shape_cast %269 : vector<1x8x160xbf16> to vector<8x160xbf16>
    %c24_263 = arith.constant 24 : index
    %c1280_264 = arith.constant 1280 : index
    %271 = vector.load %arg9[%c24_263, %c1280_264] : memref<64x1440xbf16, #tpu.memory_space<vmem>>, vector<8x160xbf16>
    tpu.vector_store %arg9[%c24_263, %c1280_264], %270 {strides = array<i32>} : memref<64x1440xbf16, #tpu.memory_space<vmem>>, vector<8x160xbf16>,
    %c4_265 = arith.constant 4 : index
    %c0_266 = arith.constant 0 : index
    %c0_267 = arith.constant 0 : index
    %272 = vector.load %arg8[%c4_265, %c0_266, %c0_267] : memref<10x10x160xbf16, #tpu.memory_space<vmem>>, vector<1x8x160xbf16>
    %273 = vector.shape_cast %272 : vector<1x8x160xbf16> to vector<8x160xbf16>
    %c32 = arith.constant 32 : index
    %c0_268 = arith.constant 0 : index
    %274 = vector.load %arg9[%c32, %c0_268] : memref<64x1440xbf16, #tpu.memory_space<vmem>>, vector<8x160xbf16>
    tpu.vector_store %arg9[%c32, %c0_268], %273 {strides = array<i32>} : memref<64x1440xbf16, #tpu.memory_space<vmem>>, vector<8x160xbf16>,
    %c4_269 = arith.constant 4 : index
    %c1_270 = arith.constant 1 : index
    %c0_271 = arith.constant 0 : index
    %275 = vector.load %arg8[%c4_269, %c1_270, %c0_271] : memref<10x10x160xbf16, #tpu.memory_space<vmem>>, vector<1x8x160xbf16>
    %276 = vector.shape_cast %275 : vector<1x8x160xbf16> to vector<8x160xbf16>
    %c32_272 = arith.constant 32 : index
    %c160_273 = arith.constant 160 : index
    %277 = vector.load %arg9[%c32_272, %c160_273] : memref<64x1440xbf16, #tpu.memory_space<vmem>>, vector<8x160xbf16>
    tpu.vector_store %arg9[%c32_272, %c160_273], %276 {strides = array<i32>} : memref<64x1440xbf16, #tpu.memory_space<vmem>>, vector<8x160xbf16>,
    %c4_274 = arith.constant 4 : index
    %c2_275 = arith.constant 2 : index
    %c0_276 = arith.constant 0 : index
    %278 = vector.load %arg8[%c4_274, %c2_275, %c0_276] : memref<10x10x160xbf16, #tpu.memory_space<vmem>>, vector<1x8x160xbf16>
    %279 = vector.shape_cast %278 : vector<1x8x160xbf16> to vector<8x160xbf16>
    %c32_277 = arith.constant 32 : index
    %c320_278 = arith.constant 320 : index
    %280 = vector.load %arg9[%c32_277, %c320_278] : memref<64x1440xbf16, #tpu.memory_space<vmem>>, vector<8x160xbf16>
    tpu.vector_store %arg9[%c32_277, %c320_278], %279 {strides = array<i32>} : memref<64x1440xbf16, #tpu.memory_space<vmem>>, vector<8x160xbf16>,
    %c5_279 = arith.constant 5 : index
    %c0_280 = arith.constant 0 : index
    %c0_281 = arith.constant 0 : index
    %281 = vector.load %arg8[%c5_279, %c0_280, %c0_281] : memref<10x10x160xbf16, #tpu.memory_space<vmem>>, vector<1x8x160xbf16>
    %282 = vector.shape_cast %281 : vector<1x8x160xbf16> to vector<8x160xbf16>
    %c32_282 = arith.constant 32 : index
    %c480_283 = arith.constant 480 : index
    %283 = vector.load %arg9[%c32_282, %c480_283] : memref<64x1440xbf16, #tpu.memory_space<vmem>>, vector<8x160xbf16>
    tpu.vector_store %arg9[%c32_282, %c480_283], %282 {strides = array<i32>} : memref<64x1440xbf16, #tpu.memory_space<vmem>>, vector<8x160xbf16>,
    %c5_284 = arith.constant 5 : index
    %c1_285 = arith.constant 1 : index
    %c0_286 = arith.constant 0 : index
    %284 = vector.load %arg8[%c5_284, %c1_285, %c0_286] : memref<10x10x160xbf16, #tpu.memory_space<vmem>>, vector<1x8x160xbf16>
    %285 = vector.shape_cast %284 : vector<1x8x160xbf16> to vector<8x160xbf16>
    %c32_287 = arith.constant 32 : index
    %c640_288 = arith.constant 640 : index
    %286 = vector.load %arg9[%c32_287, %c640_288] : memref<64x1440xbf16, #tpu.memory_space<vmem>>, vector<8x160xbf16>
    tpu.vector_store %arg9[%c32_287, %c640_288], %285 {strides = array<i32>} : memref<64x1440xbf16, #tpu.memory_space<vmem>>, vector<8x160xbf16>,
    %c5_289 = arith.constant 5 : index
    %c2_290 = arith.constant 2 : index
    %c0_291 = arith.constant 0 : index
    %287 = vector.load %arg8[%c5_289, %c2_290, %c0_291] : memref<10x10x160xbf16, #tpu.memory_space<vmem>>, vector<1x8x160xbf16>
    %288 = vector.shape_cast %287 : vector<1x8x160xbf16> to vector<8x160xbf16>
    %c32_292 = arith.constant 32 : index
    %c800_293 = arith.constant 800 : index
    %289 = vector.load %arg9[%c32_292, %c800_293] : memref<64x1440xbf16, #tpu.memory_space<vmem>>, vector<8x160xbf16>
    tpu.vector_store %arg9[%c32_292, %c800_293], %288 {strides = array<i32>} : memref<64x1440xbf16, #tpu.memory_space<vmem>>, vector<8x160xbf16>,
    %c6_294 = arith.constant 6 : index
    %c0_295 = arith.constant 0 : index
    %c0_296 = arith.constant 0 : index
    %290 = vector.load %arg8[%c6_294, %c0_295, %c0_296] : memref<10x10x160xbf16, #tpu.memory_space<vmem>>, vector<1x8x160xbf16>
    %291 = vector.shape_cast %290 : vector<1x8x160xbf16> to vector<8x160xbf16>
    %c32_297 = arith.constant 32 : index
    %c960_298 = arith.constant 960 : index
    %292 = vector.load %arg9[%c32_297, %c960_298] : memref<64x1440xbf16, #tpu.memory_space<vmem>>, vector<8x160xbf16>
    tpu.vector_store %arg9[%c32_297, %c960_298], %291 {strides = array<i32>} : memref<64x1440xbf16, #tpu.memory_space<vmem>>, vector<8x160xbf16>,
    %c6_299 = arith.constant 6 : index
    %c1_300 = arith.constant 1 : index
    %c0_301 = arith.constant 0 : index
    %293 = vector.load %arg8[%c6_299, %c1_300, %c0_301] : memref<10x10x160xbf16, #tpu.memory_space<vmem>>, vector<1x8x160xbf16>
    %294 = vector.shape_cast %293 : vector<1x8x160xbf16> to vector<8x160xbf16>
    %c32_302 = arith.constant 32 : index
    %c1120_303 = arith.constant 1120 : index
    %295 = vector.load %arg9[%c32_302, %c1120_303] : memref<64x1440xbf16, #tpu.memory_space<vmem>>, vector<8x160xbf16>
    tpu.vector_store %arg9[%c32_302, %c1120_303], %294 {strides = array<i32>} : memref<64x1440xbf16, #tpu.memory_space<vmem>>, vector<8x160xbf16>,
    %c6_304 = arith.constant 6 : index
    %c2_305 = arith.constant 2 : index
    %c0_306 = arith.constant 0 : index
    %296 = vector.load %arg8[%c6_304, %c2_305, %c0_306] : memref<10x10x160xbf16, #tpu.memory_space<vmem>>, vector<1x8x160xbf16>
    %297 = vector.shape_cast %296 : vector<1x8x160xbf16> to vector<8x160xbf16>
    %c32_307 = arith.constant 32 : index
    %c1280_308 = arith.constant 1280 : index
    %298 = vector.load %arg9[%c32_307, %c1280_308] : memref<64x1440xbf16, #tpu.memory_space<vmem>>, vector<8x160xbf16>
    tpu.vector_store %arg9[%c32_307, %c1280_308], %297 {strides = array<i32>} : memref<64x1440xbf16, #tpu.memory_space<vmem>>, vector<8x160xbf16>,
    %c5_309 = arith.constant 5 : index
    %c0_310 = arith.constant 0 : index
    %c0_311 = arith.constant 0 : index
    %299 = vector.load %arg8[%c5_309, %c0_310, %c0_311] : memref<10x10x160xbf16, #tpu.memory_space<vmem>>, vector<1x8x160xbf16>
    %300 = vector.shape_cast %299 : vector<1x8x160xbf16> to vector<8x160xbf16>
    %c40 = arith.constant 40 : index
    %c0_312 = arith.constant 0 : index
    %301 = vector.load %arg9[%c40, %c0_312] : memref<64x1440xbf16, #tpu.memory_space<vmem>>, vector<8x160xbf16>
    tpu.vector_store %arg9[%c40, %c0_312], %300 {strides = array<i32>} : memref<64x1440xbf16, #tpu.memory_space<vmem>>, vector<8x160xbf16>,
    %c5_313 = arith.constant 5 : index
    %c1_314 = arith.constant 1 : index
    %c0_315 = arith.constant 0 : index
    %302 = vector.load %arg8[%c5_313, %c1_314, %c0_315] : memref<10x10x160xbf16, #tpu.memory_space<vmem>>, vector<1x8x160xbf16>
    %303 = vector.shape_cast %302 : vector<1x8x160xbf16> to vector<8x160xbf16>
    %c40_316 = arith.constant 40 : index
    %c160_317 = arith.constant 160 : index
    %304 = vector.load %arg9[%c40_316, %c160_317] : memref<64x1440xbf16, #tpu.memory_space<vmem>>, vector<8x160xbf16>
    tpu.vector_store %arg9[%c40_316, %c160_317], %303 {strides = array<i32>} : memref<64x1440xbf16, #tpu.memory_space<vmem>>, vector<8x160xbf16>,
    %c5_318 = arith.constant 5 : index
    %c2_319 = arith.constant 2 : index
    %c0_320 = arith.constant 0 : index
    %305 = vector.load %arg8[%c5_318, %c2_319, %c0_320] : memref<10x10x160xbf16, #tpu.memory_space<vmem>>, vector<1x8x160xbf16>
    %306 = vector.shape_cast %305 : vector<1x8x160xbf16> to vector<8x160xbf16>
    %c40_321 = arith.constant 40 : index
    %c320_322 = arith.constant 320 : index
    %307 = vector.load %arg9[%c40_321, %c320_322] : memref<64x1440xbf16, #tpu.memory_space<vmem>>, vector<8x160xbf16>
    tpu.vector_store %arg9[%c40_321, %c320_322], %306 {strides = array<i32>} : memref<64x1440xbf16, #tpu.memory_space<vmem>>, vector<8x160xbf16>,
    %c6_323 = arith.constant 6 : index
    %c0_324 = arith.constant 0 : index
    %c0_325 = arith.constant 0 : index
    %308 = vector.load %arg8[%c6_323, %c0_324, %c0_325] : memref<10x10x160xbf16, #tpu.memory_space<vmem>>, vector<1x8x160xbf16>
    %309 = vector.shape_cast %308 : vector<1x8x160xbf16> to vector<8x160xbf16>
    %c40_326 = arith.constant 40 : index
    %c480_327 = arith.constant 480 : index
    %310 = vector.load %arg9[%c40_326, %c480_327] : memref<64x1440xbf16, #tpu.memory_space<vmem>>, vector<8x160xbf16>
    tpu.vector_store %arg9[%c40_326, %c480_327], %309 {strides = array<i32>} : memref<64x1440xbf16, #tpu.memory_space<vmem>>, vector<8x160xbf16>,
    %c6_328 = arith.constant 6 : index
    %c1_329 = arith.constant 1 : index
    %c0_330 = arith.constant 0 : index
    %311 = vector.load %arg8[%c6_328, %c1_329, %c0_330] : memref<10x10x160xbf16, #tpu.memory_space<vmem>>, vector<1x8x160xbf16>
    %312 = vector.shape_cast %311 : vector<1x8x160xbf16> to vector<8x160xbf16>
    %c40_331 = arith.constant 40 : index
    %c640_332 = arith.constant 640 : index
    %313 = vector.load %arg9[%c40_331, %c640_332] : memref<64x1440xbf16, #tpu.memory_space<vmem>>, vector<8x160xbf16>
    tpu.vector_store %arg9[%c40_331, %c640_332], %312 {strides = array<i32>} : memref<64x1440xbf16, #tpu.memory_space<vmem>>, vector<8x160xbf16>,
    %c6_333 = arith.constant 6 : index
    %c2_334 = arith.constant 2 : index
    %c0_335 = arith.constant 0 : index
    %314 = vector.load %arg8[%c6_333, %c2_334, %c0_335] : memref<10x10x160xbf16, #tpu.memory_space<vmem>>, vector<1x8x160xbf16>
    %315 = vector.shape_cast %314 : vector<1x8x160xbf16> to vector<8x160xbf16>
    %c40_336 = arith.constant 40 : index
    %c800_337 = arith.constant 800 : index
    %316 = vector.load %arg9[%c40_336, %c800_337] : memref<64x1440xbf16, #tpu.memory_space<vmem>>, vector<8x160xbf16>
    tpu.vector_store %arg9[%c40_336, %c800_337], %315 {strides = array<i32>} : memref<64x1440xbf16, #tpu.memory_space<vmem>>, vector<8x160xbf16>,
    %c7_338 = arith.constant 7 : index
    %c0_339 = arith.constant 0 : index
    %c0_340 = arith.constant 0 : index
    %317 = vector.load %arg8[%c7_338, %c0_339, %c0_340] : memref<10x10x160xbf16, #tpu.memory_space<vmem>>, vector<1x8x160xbf16>
    %318 = vector.shape_cast %317 : vector<1x8x160xbf16> to vector<8x160xbf16>
    %c40_341 = arith.constant 40 : index
    %c960_342 = arith.constant 960 : index
    %319 = vector.load %arg9[%c40_341, %c960_342] : memref<64x1440xbf16, #tpu.memory_space<vmem>>, vector<8x160xbf16>
    tpu.vector_store %arg9[%c40_341, %c960_342], %318 {strides = array<i32>} : memref<64x1440xbf16, #tpu.memory_space<vmem>>, vector<8x160xbf16>,
    %c7_343 = arith.constant 7 : index
    %c1_344 = arith.constant 1 : index
    %c0_345 = arith.constant 0 : index
    %320 = vector.load %arg8[%c7_343, %c1_344, %c0_345] : memref<10x10x160xbf16, #tpu.memory_space<vmem>>, vector<1x8x160xbf16>
    %321 = vector.shape_cast %320 : vector<1x8x160xbf16> to vector<8x160xbf16>
    %c40_346 = arith.constant 40 : index
    %c1120_347 = arith.constant 1120 : index
    %322 = vector.load %arg9[%c40_346, %c1120_347] : memref<64x1440xbf16, #tpu.memory_space<vmem>>, vector<8x160xbf16>
    tpu.vector_store %arg9[%c40_346, %c1120_347], %321 {strides = array<i32>} : memref<64x1440xbf16, #tpu.memory_space<vmem>>, vector<8x160xbf16>,
    %c7_348 = arith.constant 7 : index
    %c2_349 = arith.constant 2 : index
    %c0_350 = arith.constant 0 : index
    %323 = vector.load %arg8[%c7_348, %c2_349, %c0_350] : memref<10x10x160xbf16, #tpu.memory_space<vmem>>, vector<1x8x160xbf16>
    %324 = vector.shape_cast %323 : vector<1x8x160xbf16> to vector<8x160xbf16>
    %c40_351 = arith.constant 40 : index
    %c1280_352 = arith.constant 1280 : index
    %325 = vector.load %arg9[%c40_351, %c1280_352] : memref<64x1440xbf16, #tpu.memory_space<vmem>>, vector<8x160xbf16>
    tpu.vector_store %arg9[%c40_351, %c1280_352], %324 {strides = array<i32>} : memref<64x1440xbf16, #tpu.memory_space<vmem>>, vector<8x160xbf16>,
    %c6_353 = arith.constant 6 : index
    %c0_354 = arith.constant 0 : index
    %c0_355 = arith.constant 0 : index
    %326 = vector.load %arg8[%c6_353, %c0_354, %c0_355] : memref<10x10x160xbf16, #tpu.memory_space<vmem>>, vector<1x8x160xbf16>
    %327 = vector.shape_cast %326 : vector<1x8x160xbf16> to vector<8x160xbf16>
    %c48 = arith.constant 48 : index
    %c0_356 = arith.constant 0 : index
    %328 = vector.load %arg9[%c48, %c0_356] : memref<64x1440xbf16, #tpu.memory_space<vmem>>, vector<8x160xbf16>
    tpu.vector_store %arg9[%c48, %c0_356], %327 {strides = array<i32>} : memref<64x1440xbf16, #tpu.memory_space<vmem>>, vector<8x160xbf16>,
    %c6_357 = arith.constant 6 : index
    %c1_358 = arith.constant 1 : index
    %c0_359 = arith.constant 0 : index
    %329 = vector.load %arg8[%c6_357, %c1_358, %c0_359] : memref<10x10x160xbf16, #tpu.memory_space<vmem>>, vector<1x8x160xbf16>
    %330 = vector.shape_cast %329 : vector<1x8x160xbf16> to vector<8x160xbf16>
    %c48_360 = arith.constant 48 : index
    %c160_361 = arith.constant 160 : index
    %331 = vector.load %arg9[%c48_360, %c160_361] : memref<64x1440xbf16, #tpu.memory_space<vmem>>, vector<8x160xbf16>
    tpu.vector_store %arg9[%c48_360, %c160_361], %330 {strides = array<i32>} : memref<64x1440xbf16, #tpu.memory_space<vmem>>, vector<8x160xbf16>,
    %c6_362 = arith.constant 6 : index
    %c2_363 = arith.constant 2 : index
    %c0_364 = arith.constant 0 : index
    %332 = vector.load %arg8[%c6_362, %c2_363, %c0_364] : memref<10x10x160xbf16, #tpu.memory_space<vmem>>, vector<1x8x160xbf16>
    %333 = vector.shape_cast %332 : vector<1x8x160xbf16> to vector<8x160xbf16>
    %c48_365 = arith.constant 48 : index
    %c320_366 = arith.constant 320 : index
    %334 = vector.load %arg9[%c48_365, %c320_366] : memref<64x1440xbf16, #tpu.memory_space<vmem>>, vector<8x160xbf16>
    tpu.vector_store %arg9[%c48_365, %c320_366], %333 {strides = array<i32>} : memref<64x1440xbf16, #tpu.memory_space<vmem>>, vector<8x160xbf16>,
    %c7_367 = arith.constant 7 : index
    %c0_368 = arith.constant 0 : index
    %c0_369 = arith.constant 0 : index
    %335 = vector.load %arg8[%c7_367, %c0_368, %c0_369] : memref<10x10x160xbf16, #tpu.memory_space<vmem>>, vector<1x8x160xbf16>
    %336 = vector.shape_cast %335 : vector<1x8x160xbf16> to vector<8x160xbf16>
    %c48_370 = arith.constant 48 : index
    %c480_371 = arith.constant 480 : index
    %337 = vector.load %arg9[%c48_370, %c480_371] : memref<64x1440xbf16, #tpu.memory_space<vmem>>, vector<8x160xbf16>
    tpu.vector_store %arg9[%c48_370, %c480_371], %336 {strides = array<i32>} : memref<64x1440xbf16, #tpu.memory_space<vmem>>, vector<8x160xbf16>,
    %c7_372 = arith.constant 7 : index
    %c1_373 = arith.constant 1 : index
    %c0_374 = arith.constant 0 : index
    %338 = vector.load %arg8[%c7_372, %c1_373, %c0_374] : memref<10x10x160xbf16, #tpu.memory_space<vmem>>, vector<1x8x160xbf16>
    %339 = vector.shape_cast %338 : vector<1x8x160xbf16> to vector<8x160xbf16>
    %c48_375 = arith.constant 48 : index
    %c640_376 = arith.constant 640 : index
    %340 = vector.load %arg9[%c48_375, %c640_376] : memref<64x1440xbf16, #tpu.memory_space<vmem>>, vector<8x160xbf16>
    tpu.vector_store %arg9[%c48_375, %c640_376], %339 {strides = array<i32>} : memref<64x1440xbf16, #tpu.memory_space<vmem>>, vector<8x160xbf16>,
    %c7_377 = arith.constant 7 : index
    %c2_378 = arith.constant 2 : index
    %c0_379 = arith.constant 0 : index
    %341 = vector.load %arg8[%c7_377, %c2_378, %c0_379] : memref<10x10x160xbf16, #tpu.memory_space<vmem>>, vector<1x8x160xbf16>
    %342 = vector.shape_cast %341 : vector<1x8x160xbf16> to vector<8x160xbf16>
    %c48_380 = arith.constant 48 : index
    %c800_381 = arith.constant 800 : index
    %343 = vector.load %arg9[%c48_380, %c800_381] : memref<64x1440xbf16, #tpu.memory_space<vmem>>, vector<8x160xbf16>
    tpu.vector_store %arg9[%c48_380, %c800_381], %342 {strides = array<i32>} : memref<64x1440xbf16, #tpu.memory_space<vmem>>, vector<8x160xbf16>,
    %c8_382 = arith.constant 8 : index
    %c0_383 = arith.constant 0 : index
    %c0_384 = arith.constant 0 : index
    %344 = vector.load %arg8[%c8_382, %c0_383, %c0_384] : memref<10x10x160xbf16, #tpu.memory_space<vmem>>, vector<1x8x160xbf16>
    %345 = vector.shape_cast %344 : vector<1x8x160xbf16> to vector<8x160xbf16>
    %c48_385 = arith.constant 48 : index
    %c960_386 = arith.constant 960 : index
    %346 = vector.load %arg9[%c48_385, %c960_386] : memref<64x1440xbf16, #tpu.memory_space<vmem>>, vector<8x160xbf16>
    tpu.vector_store %arg9[%c48_385, %c960_386], %345 {strides = array<i32>} : memref<64x1440xbf16, #tpu.memory_space<vmem>>, vector<8x160xbf16>,
    %c8_387 = arith.constant 8 : index
    %c1_388 = arith.constant 1 : index
    %c0_389 = arith.constant 0 : index
    %347 = vector.load %arg8[%c8_387, %c1_388, %c0_389] : memref<10x10x160xbf16, #tpu.memory_space<vmem>>, vector<1x8x160xbf16>
    %348 = vector.shape_cast %347 : vector<1x8x160xbf16> to vector<8x160xbf16>
    %c48_390 = arith.constant 48 : index
    %c1120_391 = arith.constant 1120 : index
    %349 = vector.load %arg9[%c48_390, %c1120_391] : memref<64x1440xbf16, #tpu.memory_space<vmem>>, vector<8x160xbf16>
    tpu.vector_store %arg9[%c48_390, %c1120_391], %348 {strides = array<i32>} : memref<64x1440xbf16, #tpu.memory_space<vmem>>, vector<8x160xbf16>,
    %c8_392 = arith.constant 8 : index
    %c2_393 = arith.constant 2 : index
    %c0_394 = arith.constant 0 : index
    %350 = vector.load %arg8[%c8_392, %c2_393, %c0_394] : memref<10x10x160xbf16, #tpu.memory_space<vmem>>, vector<1x8x160xbf16>
    %351 = vector.shape_cast %350 : vector<1x8x160xbf16> to vector<8x160xbf16>
    %c48_395 = arith.constant 48 : index
    %c1280_396 = arith.constant 1280 : index
    %352 = vector.load %arg9[%c48_395, %c1280_396] : memref<64x1440xbf16, #tpu.memory_space<vmem>>, vector<8x160xbf16>
    tpu.vector_store %arg9[%c48_395, %c1280_396], %351 {strides = array<i32>} : memref<64x1440xbf16, #tpu.memory_space<vmem>>, vector<8x160xbf16>,
    %c7_397 = arith.constant 7 : index
    %c0_398 = arith.constant 0 : index
    %c0_399 = arith.constant 0 : index
    %353 = vector.load %arg8[%c7_397, %c0_398, %c0_399] : memref<10x10x160xbf16, #tpu.memory_space<vmem>>, vector<1x8x160xbf16>
    %354 = vector.shape_cast %353 : vector<1x8x160xbf16> to vector<8x160xbf16>
    %c56 = arith.constant 56 : index
    %c0_400 = arith.constant 0 : index
    %355 = vector.load %arg9[%c56, %c0_400] : memref<64x1440xbf16, #tpu.memory_space<vmem>>, vector<8x160xbf16>
    tpu.vector_store %arg9[%c56, %c0_400], %354 {strides = array<i32>} : memref<64x1440xbf16, #tpu.memory_space<vmem>>, vector<8x160xbf16>,
    %c7_401 = arith.constant 7 : index
    %c1_402 = arith.constant 1 : index
    %c0_403 = arith.constant 0 : index
    %356 = vector.load %arg8[%c7_401, %c1_402, %c0_403] : memref<10x10x160xbf16, #tpu.memory_space<vmem>>, vector<1x8x160xbf16>
    %357 = vector.shape_cast %356 : vector<1x8x160xbf16> to vector<8x160xbf16>
    %c56_404 = arith.constant 56 : index
    %c160_405 = arith.constant 160 : index
    %358 = vector.load %arg9[%c56_404, %c160_405] : memref<64x1440xbf16, #tpu.memory_space<vmem>>, vector<8x160xbf16>
    tpu.vector_store %arg9[%c56_404, %c160_405], %357 {strides = array<i32>} : memref<64x1440xbf16, #tpu.memory_space<vmem>>, vector<8x160xbf16>,
    %c7_406 = arith.constant 7 : index
    %c2_407 = arith.constant 2 : index
    %c0_408 = arith.constant 0 : index
    %359 = vector.load %arg8[%c7_406, %c2_407, %c0_408] : memref<10x10x160xbf16, #tpu.memory_space<vmem>>, vector<1x8x160xbf16>
    %360 = vector.shape_cast %359 : vector<1x8x160xbf16> to vector<8x160xbf16>
    %c56_409 = arith.constant 56 : index
    %c320_410 = arith.constant 320 : index
    %361 = vector.load %arg9[%c56_409, %c320_410] : memref<64x1440xbf16, #tpu.memory_space<vmem>>, vector<8x160xbf16>
    tpu.vector_store %arg9[%c56_409, %c320_410], %360 {strides = array<i32>} : memref<64x1440xbf16, #tpu.memory_space<vmem>>, vector<8x160xbf16>,
    %c8_411 = arith.constant 8 : index
    %c0_412 = arith.constant 0 : index
    %c0_413 = arith.constant 0 : index
    %362 = vector.load %arg8[%c8_411, %c0_412, %c0_413] : memref<10x10x160xbf16, #tpu.memory_space<vmem>>, vector<1x8x160xbf16>
    %363 = vector.shape_cast %362 : vector<1x8x160xbf16> to vector<8x160xbf16>
    %c56_414 = arith.constant 56 : index
    %c480_415 = arith.constant 480 : index
    %364 = vector.load %arg9[%c56_414, %c480_415] : memref<64x1440xbf16, #tpu.memory_space<vmem>>, vector<8x160xbf16>
    tpu.vector_store %arg9[%c56_414, %c480_415], %363 {strides = array<i32>} : memref<64x1440xbf16, #tpu.memory_space<vmem>>, vector<8x160xbf16>,
    %c8_416 = arith.constant 8 : index
    %c1_417 = arith.constant 1 : index
    %c0_418 = arith.constant 0 : index
    %365 = vector.load %arg8[%c8_416, %c1_417, %c0_418] : memref<10x10x160xbf16, #tpu.memory_space<vmem>>, vector<1x8x160xbf16>
    %366 = vector.shape_cast %365 : vector<1x8x160xbf16> to vector<8x160xbf16>
    %c56_419 = arith.constant 56 : index
    %c640_420 = arith.constant 640 : index
    %367 = vector.load %arg9[%c56_419, %c640_420] : memref<64x1440xbf16, #tpu.memory_space<vmem>>, vector<8x160xbf16>
    tpu.vector_store %arg9[%c56_419, %c640_420], %366 {strides = array<i32>} : memref<64x1440xbf16, #tpu.memory_space<vmem>>, vector<8x160xbf16>,
    %c8_421 = arith.constant 8 : index
    %c2_422 = arith.constant 2 : index
    %c0_423 = arith.constant 0 : index
    %368 = vector.load %arg8[%c8_421, %c2_422, %c0_423] : memref<10x10x160xbf16, #tpu.memory_space<vmem>>, vector<1x8x160xbf16>
    %369 = vector.shape_cast %368 : vector<1x8x160xbf16> to vector<8x160xbf16>
    %c56_424 = arith.constant 56 : index
    %c800_425 = arith.constant 800 : index
    %370 = vector.load %arg9[%c56_424, %c800_425] : memref<64x1440xbf16, #tpu.memory_space<vmem>>, vector<8x160xbf16>
    tpu.vector_store %arg9[%c56_424, %c800_425], %369 {strides = array<i32>} : memref<64x1440xbf16, #tpu.memory_space<vmem>>, vector<8x160xbf16>,
    %c9_426 = arith.constant 9 : index
    %c0_427 = arith.constant 0 : index
    %c0_428 = arith.constant 0 : index
    %371 = vector.load %arg8[%c9_426, %c0_427, %c0_428] : memref<10x10x160xbf16, #tpu.memory_space<vmem>>, vector<1x8x160xbf16>
    %372 = vector.shape_cast %371 : vector<1x8x160xbf16> to vector<8x160xbf16>
    %c56_429 = arith.constant 56 : index
    %c960_430 = arith.constant 960 : index
    %373 = vector.load %arg9[%c56_429, %c960_430] : memref<64x1440xbf16, #tpu.memory_space<vmem>>, vector<8x160xbf16>
    tpu.vector_store %arg9[%c56_429, %c960_430], %372 {strides = array<i32>} : memref<64x1440xbf16, #tpu.memory_space<vmem>>, vector<8x160xbf16>,
    %c9_431 = arith.constant 9 : index
    %c1_432 = arith.constant 1 : index
    %c0_433 = arith.constant 0 : index
    %374 = vector.load %arg8[%c9_431, %c1_432, %c0_433] : memref<10x10x160xbf16, #tpu.memory_space<vmem>>, vector<1x8x160xbf16>
    %375 = vector.shape_cast %374 : vector<1x8x160xbf16> to vector<8x160xbf16>
    %c56_434 = arith.constant 56 : index
    %c1120_435 = arith.constant 1120 : index
    %376 = vector.load %arg9[%c56_434, %c1120_435] : memref<64x1440xbf16, #tpu.memory_space<vmem>>, vector<8x160xbf16>
    tpu.vector_store %arg9[%c56_434, %c1120_435], %375 {strides = array<i32>} : memref<64x1440xbf16, #tpu.memory_space<vmem>>, vector<8x160xbf16>,
    %c9_436 = arith.constant 9 : index
    %c2_437 = arith.constant 2 : index
    %c0_438 = arith.constant 0 : index
    %377 = vector.load %arg8[%c9_436, %c2_437, %c0_438] : memref<10x10x160xbf16, #tpu.memory_space<vmem>>, vector<1x8x160xbf16>
    %378 = vector.shape_cast %377 : vector<1x8x160xbf16> to vector<8x160xbf16>
    %c56_439 = arith.constant 56 : index
    %c1280_440 = arith.constant 1280 : index
    %379 = vector.load %arg9[%c56_439, %c1280_440] : memref<64x1440xbf16, #tpu.memory_space<vmem>>, vector<8x160xbf16>
    tpu.vector_store %arg9[%c56_439, %c1280_440], %378 {strides = array<i32>} : memref<64x1440xbf16, #tpu.memory_space<vmem>>, vector<8x160xbf16>,
    %c0_441 = arith.constant 0 : index
    %c0_442 = arith.constant 0 : index
    %380 = vector.load %arg9[%c0_441, %c0_442] : memref<64x1440xbf16, #tpu.memory_space<vmem>>, vector<64x1440xbf16>
    %c0_443 = arith.constant 0 : index
    %c0_444 = arith.constant 0 : index
    %381 = vector.load %arg4[%c0_443, %c0_444] : memref<1440x128xbf16, #tpu.memory_space<vmem>>, vector<1440x128xbf16>
    %cst_445 = arith.constant dense<0.000000e+00> : vector<64x128xf32>
    %382 = tpu.matmul %380, %381, %cst_445 {dimension_numbers = #tpu.dot_dimension_numbers<[1], [0], [0], [1], [0, 0, 1, 1], [], []>} : vector<64x1440xbf16>, vector<1440x128xbf16>, vector<64x128xf32> -> vector<64x128xf32>
    %c0_446 = arith.constant 0 : index
    %c0_447 = arith.constant 0 : index
    %383 = vector.load %arg5[%c0_446, %c0_447] : memref<1x128xf32, #tpu.memory_space<vmem>>, vector<1x128xf32>
    %384 = vector.broadcast %383 : vector<1x128xf32> to vector<64x128xf32>
    %385 = arith.addf %382, %384 : vector<64x128xf32>
    %386 = arith.truncf %385 : vector<64x128xf32> to vector<64x128xbf16>
    %c0_448 = arith.constant 0 : index
    %c0_449 = arith.constant 0 : index
    %c0_450 = arith.constant 0 : index
    %c0_451 = arith.constant 0 : index
    %387 = vector.load %arg6[%c0_448, %c0_449, %c0_450, %c0_451] : memref<1x1x64x128xbf16, #tpu.memory_space<vmem>>, vector<1x1x64x128xbf16>
    %388 = vector.shape_cast %387 : vector<1x1x64x128xbf16> to vector<64x128xbf16>
    %389 = vector.shape_cast %386 : vector<64x128xbf16> to vector<1x1x64x128xbf16>
    tpu.vector_store %arg6[%c0_448, %c0_449, %c0_450, %c0_451], %389 {strides = array<i32>} : memref<1x1x64x128xbf16, #tpu.memory_space<vmem>>, vector<1x1x64x128xbf16>,
    %cst_452 = arith.constant dense<0.000000e+00> : vector<128xf32>
    %390 = vector.multi_reduction <add>, %385, %cst_452 [0] : vector<64x128xf32> to vector<128xf32>
    %391 = vector.shape_cast %390 : vector<128xf32> to vector<1x128xf32>
    %c0_453 = arith.constant 0 : index
    %c0_454 = arith.constant 0 : index
    %c0_455 = arith.constant 0 : index
    %c0_456 = arith.constant 0 : index
    %392 = vector.load %arg7[%c0_453, %c0_454, %c0_455, %c0_456] : memref<1x1x2x128xf32, #tpu.memory_space<vmem>>, vector<1x1x1x128xf32>
    %393 = vector.shape_cast %392 : vector<1x1x1x128xf32> to vector<1x128xf32>
    %394 = vector.shape_cast %391 : vector<1x128xf32> to vector<1x1x1x128xf32>
    tpu.vector_store %arg7[%c0_453, %c0_454, %c0_455, %c0_456], %394 {strides = array<i32>} : memref<1x1x2x128xf32, #tpu.memory_space<vmem>>, vector<1x1x1x128xf32>,
    %395 = arith.mulf %385, %385 : vector<64x128xf32>
    %cst_457 = arith.constant dense<0.000000e+00> : vector<128xf32>
    %396 = vector.multi_reduction <add>, %395, %cst_457 [0] : vector<64x128xf32> to vector<128xf32>
    %397 = vector.shape_cast %396 : vector<128xf32> to vector<1x128xf32>
    %c0_458 = arith.constant 0 : index
    %c0_459 = arith.constant 0 : index
    %c1_460 = arith.constant 1 : index
    %c0_461 = arith.constant 0 : index
    %398 = vector.load %arg7[%c0_458, %c0_459, %c1_460, %c0_461] : memref<1x1x2x128xf32, #tpu.memory_space<vmem>>, vector<1x1x1x128xf32>
    %399 = vector.shape_cast %398 : vector<1x1x1x128xf32> to vector<1x128xf32>
    %400 = vector.shape_cast %397 : vector<1x128xf32> to vector<1x1x1x128xf32>
    tpu.vector_store %arg7[%c0_458, %c0_459, %c1_460, %c0_461], %400 {strides = array<i32>} : memref<1x1x2x128xf32, #tpu.memory_space<vmem>>, vector<1x1x1x128xf32>,
    return
  }
  func.func @transform_0(%arg0: i32, %arg1: i32) -> (i32, i32, i32) {
    %c0_i32 = arith.constant 0 : i32
    %c0_i32_0 = arith.constant 0 : i32
    %c0_i32_1 = arith.constant 0 : i32
    return %arg0, %c0_i32, %c0_i32_0 : i32, i32, i32
  }
  func.func @transform_1(%arg0: i32, %arg1: i32) -> (i32, i32, i32, i32, i32) {
    %c0_i32 = arith.constant 0 : i32
    %c0_i32_0 = arith.constant 0 : i32
    %c0_i32_1 = arith.constant 0 : i32
    %c0_i32_2 = arith.constant 0 : i32
    return %arg0, %arg1, %c0_i32, %c0_i32_0, %c0_i32_1 : i32, i32, i32, i32, i32
  }
  func.func @transform_2(%arg0: i32, %arg1: i32) -> (i32, i32) {
    %c0_i32 = arith.constant 0 : i32
    %c0_i32_0 = arith.constant 0 : i32
    %c0_i32_1 = arith.constant 0 : i32
    return %c0_i32, %c0_i32_0 : i32, i32
  }
  func.func @transform_3(%arg0: i32, %arg1: i32) -> (i32, i32) {
    %c0_i32 = arith.constant 0 : i32
    %c0_i32_0 = arith.constant 0 : i32
    %c0_i32_1 = arith.constant 0 : i32
    return %c0_i32, %c0_i32_0 : i32, i32
  }
  func.func @transform_4(%arg0: i32, %arg1: i32) -> (i32, i32, i32, i32) {
    %c0_i32 = arith.constant 0 : i32
    %c0_i32_0 = arith.constant 0 : i32
    %c0_i32_1 = arith.constant 0 : i32
    return %arg0, %arg1, %c0_i32, %c0_i32_0 : i32, i32, i32, i32
  }
  func.func @transform_5(%arg0: i32, %arg1: i32) -> (i32, i32, i32, i32) {
    %c0_i32 = arith.constant 0 : i32
    %c0_i32_0 = arith.constant 0 : i32
    %c0_i32_1 = arith.constant 0 : i32
    return %arg0, %arg1, %c0_i32, %c0_i32_0 : i32, i32, i32, i32
  }
}

module attributes {stable_mosaic.version = 11 : i64} {
  func.func @_gn_lrelu_kernel(%arg0: i32, %arg1: i32, %arg2: memref<1x16x512xbf16, #tpu.memory_space<vmem>>, %arg3: memref<1x1x512xf32, #tpu.memory_space<vmem>>, %arg4: memref<1x1x512xf32, #tpu.memory_space<vmem>>, %arg5: memref<1x16x512xf32, #tpu.memory_space<vmem>>) attributes {dimension_semantics = [#tpu.dimension_semantics<parallel>, #tpu.dimension_semantics<parallel>], iteration_bounds = array<i64: 2, 1>, scalar_prefetch = 0 : i64, scratch_operands = 0 : i64, tpu.core_type = #tpu.core_type<tc>, window_params = [{transform_indices = @transform_0, window_bounds = array<i64: 1, 16, 512>}, {transform_indices = @transform_1, window_bounds = array<i64: 1, 1, 512>}, {transform_indices = @transform_2, window_bounds = array<i64: 1, 1, 512>}, {transform_indices = @transform_3, window_bounds = array<i64: 1, 16, 512>}]} {
    %c0 = arith.constant 0 : index
    %c0_0 = arith.constant 0 : index
    %c0_1 = arith.constant 0 : index
    %0 = vector.load %arg2[%c0, %c0_0, %c0_1] : memref<1x16x512xbf16, #tpu.memory_space<vmem>>, vector<1x16x512xbf16>
    %1 = vector.shape_cast %0 : vector<1x16x512xbf16> to vector<16x512xbf16>
    %2 = arith.extf %1 : vector<16x512xbf16> to vector<16x512xf32>
    %c0_2 = arith.constant 0 : index
    %c0_3 = arith.constant 0 : index
    %c0_4 = arith.constant 0 : index
    %3 = vector.load %arg3[%c0_2, %c0_3, %c0_4] : memref<1x1x512xf32, #tpu.memory_space<vmem>>, vector<1x1x512xf32>
    %4 = vector.shape_cast %3 : vector<1x1x512xf32> to vector<1x512xf32>
    %5 = vector.broadcast %4 : vector<1x512xf32> to vector<16x512xf32>
    %6 = arith.mulf %2, %5 : vector<16x512xf32>
    %c0_5 = arith.constant 0 : index
    %c0_6 = arith.constant 0 : index
    %c0_7 = arith.constant 0 : index
    %7 = vector.load %arg4[%c0_5, %c0_6, %c0_7] : memref<1x1x512xf32, #tpu.memory_space<vmem>>, vector<1x1x512xf32>
    %8 = vector.shape_cast %7 : vector<1x1x512xf32> to vector<1x512xf32>
    %9 = vector.broadcast %8 : vector<1x512xf32> to vector<16x512xf32>
    %10 = arith.addf %6, %9 : vector<16x512xf32>
    %cst = arith.constant 0.000000e+00 : f32
    %11 = vector.broadcast %cst : f32 to vector<16x512xf32>
    %12 = arith.cmpf ogt, %10, %11 : vector<16x512xf32>
    %cst_8 = arith.constant 0.00999999977 : f32
    %13 = vector.broadcast %cst_8 : f32 to vector<16x512xf32>
    %14 = arith.mulf %13, %10 : vector<16x512xf32>
    %15 = arith.select %12, %10, %14 : vector<16x512xi1>, vector<16x512xf32>
    %c0_9 = arith.constant 0 : index
    %c0_10 = arith.constant 0 : index
    %c0_11 = arith.constant 0 : index
    %16 = vector.load %arg5[%c0_9, %c0_10, %c0_11] : memref<1x16x512xf32, #tpu.memory_space<vmem>>, vector<1x16x512xf32>
    %17 = vector.shape_cast %16 : vector<1x16x512xf32> to vector<16x512xf32>
    %18 = vector.shape_cast %15 : vector<16x512xf32> to vector<1x16x512xf32>
    tpu.vector_store %arg5[%c0_9, %c0_10, %c0_11], %18 {strides = array<i32>} : memref<1x16x512xf32, #tpu.memory_space<vmem>>, vector<1x16x512xf32>,
    return
  }
  func.func @transform_0(%arg0: i32, %arg1: i32) -> (i32, i32, i32) {
    %c0_i32 = arith.constant 0 : i32
    %c0_i32_0 = arith.constant 0 : i32
    return %arg0, %arg1, %c0_i32 : i32, i32, i32
  }
  func.func @transform_1(%arg0: i32, %arg1: i32) -> (i32, i32, i32) {
    %c0_i32 = arith.constant 0 : i32
    %c0_i32_0 = arith.constant 0 : i32
    %c0_i32_1 = arith.constant 0 : i32
    return %arg0, %c0_i32, %c0_i32_0 : i32, i32, i32
  }
  func.func @transform_2(%arg0: i32, %arg1: i32) -> (i32, i32, i32) {
    %c0_i32 = arith.constant 0 : i32
    %c0_i32_0 = arith.constant 0 : i32
    %c0_i32_1 = arith.constant 0 : i32
    return %arg0, %c0_i32, %c0_i32_0 : i32, i32, i32
  }
  func.func @transform_3(%arg0: i32, %arg1: i32) -> (i32, i32, i32) {
    %c0_i32 = arith.constant 0 : i32
    %c0_i32_0 = arith.constant 0 : i32
    return %arg0, %arg1, %c0_i32 : i32, i32, i32
  }
}

</mosaic_0001>

<llo_original>
// kernel: tile.31
$region0: #{tile.31}
  #allocation0 [shape = 's32[1]{0}', space=sflag, size = 0x4, scoped, tag = 'scoped memory for tile.31']
  %s0 = inlined_call_operand.vmem [shape: f32[16], index: 0, kind: input, shape index: {}]
  %s1 = inlined_call_operand.vmem [shape: f32[8,16], index: 1, kind: output, shape index: {}]
  // Predicated region
  $region2: #{tile.31} parent=0 // pred_check
    _
  $region3: #{tile.31} parent=0 // pred_check_branch
    %3 = sbr.rel (0) target = $region5
  $region4: #{tile.31} parent=0 // pred_region
    _
  $region5: #{tile.31} parent=0 // pred_fallthru
    _
  %v4 = vld [vmem:[%s0] ss:$0 sm:$0xff]
  %5 = vst [vmem:[%s1] sm:$0xff] %v4

// kernel: tile.32
$region0: #{tile.32}
  %s0 = inlined_call_operand.vmem [shape: f32[8,16], index: 0, kind: input, shape index: {}]
  %s1 = inlined_call_operand.vmem [shape: f32[1,128], index: 1, kind: output, shape index: {}]
  $region1: #{tile.32} parent=0
    #allocation0 [shape = 'u8[4096]{0}', space=vmem, size = 0x1000, scoped, tag = 'scoped mem for output reshape']
    %v2 = vld [vmem:[%s0] sm:$0x1]
    %vm3 = vcmask 130048
    %4 = vst.msk [vmem:[#allocation0] sm:$0x1] %vm3, %v2
    %s5 = scalar_lea.vmem %s0, 7
    %v6 = vld [vmem:[%s5] sm:$0x1]
    %7 = vrot.lane.b32.xlu0 %v6, 112
    %v8 = vpop.permute.xlu0 %7
    %vm9 = vcmask 1048448
    %10 = vst.msk [vmem:[#allocation0] sm:$0x1] %vm9, %v8
    %s11 = scalar_lea.vmem %s0, 6
    %v12 = vld [vmem:[%s11] sm:$0x1]
    %13 = vrot.lane.b32.xlu0 %v12, 96
    %v14 = vpop.permute.xlu0 %13
    %vm15 = vcmask 917248
    %16 = vst.msk [vmem:[#allocation0] sm:$0x1] %vm15, %v14
    %s17 = scalar_lea.vmem %s0, 5
    %v18 = vld [vmem:[%s17] sm:$0x1]
    %19 = vrot.lane.b32.xlu0 %v18, 80
    %v20 = vpop.permute.xlu0 %19
    %vm21 = vcmask 786048
    %22 = vst.msk [vmem:[#allocation0] sm:$0x1] %vm21, %v20
    %s23 = scalar_lea.vmem %s0, 4
    %v24 = vld [vmem:[%s23] sm:$0x1]
    %25 = vrot.lane.b32.xlu0 %v24, 64
    %v26 = vpop.permute.xlu0 %25
    %vm27 = vcmask 654848
    %28 = vst.msk [vmem:[#allocation0] sm:$0x1] %vm27, %v26
    %s29 = scalar_lea.vmem %s0, 3
    %v30 = vld [vmem:[%s29] sm:$0x1]
    %31 = vrot.lane.b32.xlu0 %v30, 48
    %v32 = vpop.permute.xlu0 %31
    %vm33 = vcmask 523648
    %34 = vst.msk [vmem:[#allocation0] sm:$0x1] %vm33, %v32
    %s35 = scalar_lea.vmem %s0, 2
    %v36 = vld [vmem:[%s35] sm:$0x1]
    %37 = vrot.lane.b32.xlu0 %v36, 32
    %v38 = vpop.permute.xlu0 %37
    %vm39 = vcmask 392448
    %40 = vst.msk [vmem:[#allocation0] sm:$0x1] %vm39, %v38
    %s41 = scalar_lea.vmem %s0, 1
    %v42 = vld [vmem:[%s41] sm:$0x1]
    %43 = vrot.lane.b32.xlu0 %v42, 16
    %v44 = vpop.permute.xlu0 %43
    %vm45 = vcmask 261248
    %46 = vst.msk [vmem:[#allocation0] sm:$0x1] %vm45, %v44
    %s48 = sshll.u32 1, 1
    %s49 = ssub.s32 %s48, 1
    %v51 = vld [vmem:[#allocation0] sm:%s49]
    %s52 = sshll.u32 1, 1
    %s53 = ssub.s32 %s52, 1
    %54 = vst [vmem:[%s1] sm:%s53] %v51

// kernel: double_conv3d.3
$region0: #{double_conv3d.3}
  #allocation0 [shape = 'u32[]', space=smem, size = 0x4, offset = 0x4, fixed_abs, tag = 'smem constant byte address 0x4 - core index']
  #allocation1 [shape = 'u32[144,128]{1,0:T(1,128)}', space=vmem, size = 0x12000, scoped, tag = 'internal scratch']
  #allocation2 [shape = 'bf16[10,10,80]{2,1,0:T(8,128)(2,1)}', space=vmem, size = 0xa000, scoped, tag = 'scratch operand']
  #allocation3 [shape = 'bf16[64,720]{1,0:T(8,128)(2,1)}', space=vmem, size = 0x18000, scoped, tag = 'scratch operand']
  %s0 = inlined_call_operand.vmem [shape: f32[2,2,80], index: 0, kind: input, shape index: {}]
  %s1 = inlined_call_operand.vmem [shape: bf16[2,1,10,10,80], index: 1, kind: input, shape index: {}]
  %s2 = inlined_call_operand.vmem [shape: bf16[720,128], index: 2, kind: input, shape index: {}]
  %s3 = inlined_call_operand.vmem [shape: f32[1,128], index: 3, kind: input, shape index: {}]
  %s4 = inlined_call_operand.vmem [shape: bf16[2,1,64,128], index: 4, kind: output, shape index: {0}]
  %s5 = inlined_call_operand.vmem [shape: f32[2,1,2,128], index: 5, kind: output, shape index: {1}]
  %6 = xla_tuple %s4, %s5
  %s7 = sld [smem:[#allocation0]]
  $region57: #{double_conv3d.3} parent=0
    _
  %s9 = ssub.s32 1, %s7
  %s10 = scalar_select 0, %s9, %s7
  loop: start=0, step=1, limit=4
  $region2: #{double_conv3d.3} parent=0 // loop_pre_header
    _
  $region3: #{double_conv3d.3} parent=0 // loop_header
    %s12 = sphi 0, %s16
    %p13 = scmp.ge.s32.totalorder %s12, 4
    %s19 = sphi 0, %s31
    %s20 = sphi 0, %s27
    %s21 = sphi 0, %s19
    %s22 = sphi 0, %s20
    %s23 = sphi 0, %s21
    %s24 = sphi 0, %s22
    %s34 = sphi 0, %s36
    %s37 = sphi 0, %s34
    %s38 = sphi 0, %s37
    %s54 = sphi 0, %s38
    %s62 = sphi 0, %s64
    %s65 = sphi 0, %s62
    %s66 = sphi 0, %s65
    %s82 = sphi 0, %s66
    %s86 = sphi 0, %s86
    %s88 = sphi 0, %s86
    %s89 = sphi 0, %s88
    %s103 = sphi 0, %s89
    %s107 = sphi 0, %s107
    %s109 = sphi 0, %s107
    %s110 = sphi 0, %s109
    %s124 = sphi 0, %s110
    %s132 = sphi 0, %s134
    %s135 = sphi 0, %s132
    %s136 = sphi 0, %s135
    %s152 = sphi 0, %s136
    %s160 = sphi 0, %s162
    %s163 = sphi 0, %s160
    %s164 = sphi 0, %s163
    %s180 = sphi 0, %s164
  $region4: #{double_conv3d.3} parent=0 // loop_header_branch
    %15 = sbr.rel (%p13) target = $region8
  $region5: #{double_conv3d.3} parent=0 // loop_body
    %s17 = ssub.s32 %s12, 1
    %s18 = ssub.s32 %s12, 2
    %s25 = sadd.s32 1, %s20
    %p26 = scmp.ge.s32.totalorder %s25, 1
    %s27 = scalar_select %p26, 0, %s25
    %s28 = sadd.s32 1, %s19
    %s29 = scalar_select %p26, %s28, %s19
    %p30 = scmp.ge.s32.totalorder %s29, 2
    %s31 = scalar_select %p30, 0, %s29
    %s32 = ssub.s32 %s19, %s31
    %p33 = scmp.eq.s32.totalorder %s32, 0
    %s35 = sadd.s32 %s34, 1
    %s36 = scalar_select %p33, %s34, %s35
    %p39 = pneg %p33
    %p40 = scmp.eq.s32.totalorder %s12, 1
    %p41 = por %p39, %p40
    %p42 = scmp.ne.s32.totalorder %s34, %s37
    %p43 = scmp.eq.s32.totalorder %s12, 0
    %p44 = por %p42, %p43
    %p45 = scmp.ne.s32.totalorder %s34, %s37
    %p46 = scmp.eq.s32.totalorder %s17, 1
    %p47 = por %p45, %p46
    %p48 = scmp.ne.s32.totalorder %s37, %s38
    %p49 = scmp.eq.s32.totalorder %s17, 0
    %p50 = por %p48, %p49
    %p51 = scmp.ne.s32.totalorder %s37, %s38
    %p52 = scmp.eq.s32.totalorder %s18, 1
    %p53 = por %p51, %p52
    %p55 = scmp.ne.s32.totalorder %s38, %s54
    %p56 = scmp.eq.s32.totalorder %s18, 0
    %p57 = por %p55, %p56
    %s58 = ssub.s32 %s19, %s31
    %s59 = ssub.s32 %s20, %s27
    %s60 = sor.u32 %s58, %s59
    %p61 = scmp.eq.s32.totalorder %s60, 0
    %s63 = sadd.s32 %s62, 1
    %s64 = scalar_select %p61, %s62, %s63
    %p67 = pneg %p61
    %p68 = scmp.eq.s32.totalorder %s12, 1
    %p69 = por %p67, %p68
    %p70 = scmp.ne.s32.totalorder %s62, %s65
    %p71 = scmp.eq.s32.totalorder %s12, 0
    %p72 = por %p70, %p71
    %p73 = scmp.ne.s32.totalorder %s62, %s65
    %p74 = scmp.eq.s32.totalorder %s17, 1
    %p75 = por %p73, %p74
    %p76 = scmp.ne.s32.totalorder %s65, %s66
    %p77 = scmp.eq.s32.totalorder %s17, 0
    %p78 = por %p76, %p77
    %p79 = scmp.ne.s32.totalorder %s65, %s66
    %p80 = scmp.eq.s32.totalorder %s18, 1
    %p81 = por %p79, %p80
    %p83 = scmp.ne.s32.totalorder %s66, %s82
    %p84 = scmp.eq.s32.totalorder %s18, 0
    %p85 = por %p83, %p84
    %s87 = sadd.s32 %s86, 1
    %p90 = scmp.eq.s32.totalorder %s12, 1
    %p91 = scmp.ne.s32.totalorder %s86, %s88
    %p92 = scmp.eq.s32.totalorder %s12, 0
    %p93 = por %p91, %p92
    %p94 = scmp.ne.s32.totalorder %s86, %s88
    %p95 = scmp.eq.s32.totalorder %s17, 1
    %p96 = por %p94, %p95
    %p97 = scmp.ne.s32.totalorder %s88, %s89
    %p98 = scmp.eq.s32.totalorder %s17, 0
    %p99 = por %p97, %p98
    %p100 = scmp.ne.s32.totalorder %s88, %s89
    %p101 = scmp.eq.s32.totalorder %s18, 1
    %p102 = por %p100, %p101
    %p104 = scmp.ne.s32.totalorder %s89, %s103
    %p105 = scmp.eq.s32.totalorder %s18, 0
    %p106 = por %p104, %p105
    %s108 = sadd.s32 %s107, 1
    %p111 = scmp.eq.s32.totalorder %s12, 1
    %p112 = scmp.ne.s32.totalorder %s107, %s109
    %p113 = scmp.eq.s32.totalorder %s12, 0
    %p114 = por %p112, %p113
    %p115 = scmp.ne.s32.totalorder %s107, %s109
    %p116 = scmp.eq.s32.totalorder %s17, 1
    %p117 = por %p115, %p116
    %p118 = scmp.ne.s32.totalorder %s109, %s110
    %p119 = scmp.eq.s32.totalorder %s17, 0
    %p120 = por %p118, %p119
    %p121 = scmp.ne.s32.totalorder %s109, %s110
    %p122 = scmp.eq.s32.totalorder %s18, 1
    %p123 = por %p121, %p122
    %p125 = scmp.ne.s32.totalorder %s110, %s124
    %p126 = scmp.eq.s32.totalorder %s18, 0
    %p127 = por %p125, %p126
    %s128 = ssub.s32 %s19, %s31
    %s129 = ssub.s32 %s20, %s27
    %s130 = sor.u32 %s128, %s129
    %p131 = scmp.eq.s32.totalorder %s130, 0
    %s133 = sadd.s32 %s132, 1
    %s134 = scalar_select %p131, %s132, %s133
    %p137 = pneg %p131
    %p138 = scmp.eq.s32.totalorder %s12, 1
    %p139 = por %p137, %p138
    %p140 = scmp.ne.s32.totalorder %s132, %s135
    %p141 = scmp.eq.s32.totalorder %s12, 0
    %p142 = por %p140, %p141
    %p143 = scmp.ne.s32.totalorder %s132, %s135
    %p144 = scmp.eq.s32.totalorder %s17, 1
    %p145 = por %p143, %p144
    %p146 = scmp.ne.s32.totalorder %s135, %s136
    %p147 = scmp.eq.s32.totalorder %s17, 0
    %p148 = por %p146, %p147
    %p149 = scmp.ne.s32.totalorder %s135, %s136
    %p150 = scmp.eq.s32.totalorder %s18, 1
    %p151 = por %p149, %p150
    %p153 = scmp.ne.s32.totalorder %s136, %s152
    %p154 = scmp.eq.s32.totalorder %s18, 0
    %p155 = por %p153, %p154
    %s156 = ssub.s32 %s19, %s31
    %s157 = ssub.s32 %s20, %s27
    %s158 = sor.u32 %s156, %s157
    %p159 = scmp.eq.s32.totalorder %s158, 0
    %s161 = sadd.s32 %s160, 1
    %s162 = scalar_select %p159, %s160, %s161
    %p165 = pneg %p159
    %p166 = scmp.eq.s32.totalorder %s12, 1
    %p167 = por %p165, %p166
    %p168 = scmp.ne.s32.totalorder %s160, %s163
    %p169 = scmp.eq.s32.totalorder %s12, 0
    %p170 = por %p168, %p169
    %p171 = scmp.ne.s32.totalorder %s160, %s163
    %p172 = scmp.eq.s32.totalorder %s17, 1
    %p173 = por %p171, %p172
    %p174 = scmp.ne.s32.totalorder %s163, %s164
    %p175 = scmp.eq.s32.totalorder %s17, 0
    %p176 = por %p174, %p175
    %p177 = scmp.ne.s32.totalorder %s163, %s164
    %p178 = scmp.eq.s32.totalorder %s18, 1
    %p179 = por %p177, %p178
    %p181 = scmp.ne.s32.totalorder %s164, %s180
    %p182 = scmp.eq.s32.totalorder %s18, 0
    %p183 = por %p181, %p182
    %p184 = scmp.le.s32.totalorder 1, %s12
    %p185 = scmp.lt.s32.totalorder %s12, 3
    %p186 = pnand %p184, %p185
    %p187 = pneg %p186
    // Predicated region
    $region9: #{double_conv3d.3} parent=5 // pred_check
      _
    $region10: #{double_conv3d.3} parent=5 // pred_check_branch
      %189 = sbr.rel (%p186) target = $region12
    $region11: #{double_conv3d.3} parent=5 // pred_region
      %s190 = ssub.s32 %s12, 1
      // Predicated region
      $region13: #{double_conv3d.3} parent=11 // pred_check
        %p191 = pneg %p99
      $region14: #{double_conv3d.3} parent=11 // pred_check_branch
        %193 = sbr.rel (%p191) target = $region16
      $region15: #{double_conv3d.3} parent=11 // pred_region
        _
      $region16: #{double_conv3d.3} parent=11 // pred_fallthru
        _
      // Predicated region
      $region17: #{double_conv3d.3} parent=11 // pred_check
        %p194 = pneg %p120
      $region18: #{double_conv3d.3} parent=11 // pred_check_branch
        %196 = sbr.rel (%p194) target = $region20
      $region19: #{double_conv3d.3} parent=11 // pred_region
        _
      $region20: #{double_conv3d.3} parent=11 // pred_fallthru
        _
    $region12: #{double_conv3d.3} parent=5 // pred_fallthru
      _
    %p197 = scmp.lt.s32.totalorder %s12, 2
    // Predicated region
    $region21: #{double_conv3d.3} parent=5 // pred_check
      %p198 = pneg %p197
    $region22: #{double_conv3d.3} parent=5 // pred_check_branch
      %200 = sbr.rel (%p198) target = $region24
    $region23: #{double_conv3d.3} parent=5 // pred_region
      // Predicated region
      $region25: #{double_conv3d.3} parent=23 // pred_check
        %p201 = pneg %p44
      $region26: #{double_conv3d.3} parent=23 // pred_check_branch
        %203 = sbr.rel (%p201) target = $region28
      $region27: #{double_conv3d.3} parent=23 // pred_region
        %p204 = scmp.lt.s32.totalorder %s19, 1
        %s205 = scalar_select %p204, %s19, 1
        %s206 = smul.addr %s205, 2
        %s207 = scalar_lea.vmem %s0, %s206
      $region28: #{double_conv3d.3} parent=23 // pred_fallthru
        _
      // Predicated region
      $region29: #{double_conv3d.3} parent=23 // pred_check
        %p208 = pneg %p72
      $region30: #{double_conv3d.3} parent=23 // pred_check_branch
        %210 = sbr.rel (%p208) target = $region32
      $region31: #{double_conv3d.3} parent=23 // pred_region
        %p211 = scmp.lt.s32.totalorder %s19, 1
        %s212 = scalar_select %p211, %s19, 1
        %p213 = scmp.lt.s32.totalorder %s20, 0
        %s214 = scalar_select %p213, %s20, 0
        %s215 = smul.addr %s214, 20
        %s216 = smul.addr %s212, 20
        %s217 = sadd.s32 %s215, %s216
        %s218 = smul.addr %s217, 4
        %s219 = scalar_lea.vmem %s1, %s218
      $region32: #{double_conv3d.3} parent=23 // pred_fallthru
        _
    $region24: #{double_conv3d.3} parent=5 // pred_fallthru
      _
    %p220 = scmp.le.s32.totalorder 1, %s12
    %p221 = scmp.lt.s32.totalorder %s12, 3
    %p222 = pnand %p220, %p221
    %p223 = pneg %p222
    // Predicated region
    $region33: #{double_conv3d.3} parent=5 // pred_check
      _
    $region34: #{double_conv3d.3} parent=5 // pred_check_branch
      %225 = sbr.rel (%p222) target = $region36
    $region35: #{double_conv3d.3} parent=5 // pred_region
      %s226 = ssub.s32 %s12, 1
      %p227 = scmp.lt.s32.totalorder %s21, 1
      %s228 = scalar_select %p227, %s21, 1
      %s229 = smul.addr %s228, 2
      %s230 = scalar_lea.vmem %s0, %s229
      %p231 = pneg %p50
      %p232 = pneg %p47
      %p233 = scmp.lt.s32.totalorder %s21, 1
      %s234 = scalar_select %p233, %s21, 1
      %p235 = scmp.lt.s32.totalorder %s22, 0
      %s236 = scalar_select %p235, %s22, 0
      %s237 = smul.addr %s236, 20
      %s238 = smul.addr %s234, 20
      %s239 = sadd.s32 %s237, %s238
      %s240 = smul.addr %s239, 4
      %s241 = scalar_lea.vmem %s1, %s240
      %p242 = pneg %p78
      %p243 = pneg %p75
      %p244 = pneg %p99
      %p245 = pneg %p96
      %p246 = pneg %p120
      %p247 = pneg %p117
      %p248 = pneg %p148
      %p249 = pneg %p145
      %p250 = scmp.lt.s32.totalorder %s21, 1
      %s251 = scalar_select %p250, %s21, 1
      %p252 = scmp.lt.s32.totalorder %s22, 0
      %s253 = scalar_select %p252, %s22, 0
      %s254 = smul.addr %s253, 8
      %s255 = smul.addr %s251, 8
      %s256 = sadd.s32 %s254, %s255
      %s257 = smul.addr %s256, 4
      %s258 = scalar_lea.vmem %s4, %s257
      %p259 = pneg %p176
      %p260 = pneg %p173
      %p261 = scmp.lt.s32.totalorder %s21, 1
      %s262 = scalar_select %p261, %s21, 1
      %p263 = scmp.lt.s32.totalorder %s22, 0
      %s264 = scalar_select %p263, %s22, 0
      %s265 = sadd.s32 %s264, %s262
      %s266 = smul.addr %s265, 2
      %s267 = scalar_lea.vmem %s5, %s266
      %p268 = scmp.lt.s32.totalorder %s21, 1
      %s269 = scalar_select %p268, %s21, 1
      %s270 = smul.addr %s269, 2
      %s271 = scalar_lea.vmem %s0, %s270
      %p272 = scmp.lt.s32.totalorder %s21, 1
      %s273 = scalar_select %p272, %s21, 1
      %p274 = scmp.lt.s32.totalorder %s22, 0
      %s275 = scalar_select %p274, %s22, 0
      %s276 = smul.addr %s275, 20
      %s277 = smul.addr %s273, 20
      %s278 = sadd.s32 %s276, %s277
      %s279 = smul.addr %s278, 4
      %s280 = scalar_lea.vmem %s1, %s279
      %p281 = scmp.lt.s32.totalorder %s21, 1
      %s282 = scalar_select %p281, %s21, 1
      %p283 = scmp.lt.s32.totalorder %s22, 0
      %s284 = scalar_select %p283, %s22, 0
      %s285 = smul.addr %s284, 8
      %s286 = smul.addr %s282, 8
      %s287 = sadd.s32 %s285, %s286
      %s288 = smul.addr %s287, 4
      %s289 = scalar_lea.vmem %s4, %s288
      %p290 = scmp.lt.s32.totalorder %s21, 1
      %s291 = scalar_select %p290, %s21, 1
      %p292 = scmp.lt.s32.totalorder %s22, 0
      %s293 = scalar_select %p292, %s22, 0
      %s294 = sadd.s32 %s293, %s291
      %s295 = smul.addr %s294, 2
      %s296 = scalar_lea.vmem %s5, %s295
      %v298 = vld [vmem:[%s280] sm:$0xf]
      %vm299 = vcmask 650240
      %300 = vst.msk [vmem:[#allocation3] sm:$0xf] %vm299, %v298
      %v301 = vld [vmem:[%s280] sm:$0xf]
      %v302 = vld [vmem:[%s280 + $0x4] sm:$0x1]
      %vm303 = vsmask.f32 3328
      %vm304 = vsmask.f32 7440
      %vm305 = vmor %vm303, %vm304
      %v307 = vshrl.u32 %v301, 16
      %v309 = vrot.slane %v307, 4
      %v310 = vshll.u32 %v301, 16
      %v312 = vrot.slane %v310, 5
      %v313 = vor.u32 %v309, %v312
      %v314 = vrot.slane %v313, 4
      %v316 = vshll.u32 %v302, 16
      %v318 = vrot.slane %v316, 5
      %v319 = vsel %vm305, %v314, %v318
      %320 = vrot.lane.b32.xlu0 %v319, 80
      %v321 = vpop.permute.xlu0 %320
      %v322 = vrot.slane %v321, 4
      %vm323 = vcmask 654336
      %v324 = vsel %vm323, %v322, %v321
      %vm326 = vcmask 1044096
      %vm327 = vcmask 261124
      %vm328 = vmor %vm327, %vm326
      %329 = vst.msk [vmem:[#allocation3] sm:$0xff] %vm328, %v324
      %v330 = vld [vmem:[%s280] sm:$0xe]
      %v331 = vld [vmem:[%s280 + $0x4] sm:$0x1]
      %vm334 = vcmask 1042432
      %vm335 = vcmask 1046532
      %vm336 = vmor %vm334, %vm335
      %v337 = vrot.slane %v330, 5
      %v338 = vrot.slane %v337, 4
      %v339 = vrot.slane %v331, 5
      %v340 = vsel %vm336, %v338, %v339
      %341 = vrot.lane.b32.xlu0 %v340, 32
      %v342 = vpop.permute.xlu0 %341
      %vm344 = vcmask 912640
      %345 = vst.msk [vmem:[#allocation3 + $0x4] sm:$0xf] %vm344, %v342
      %s346 = scalar_lea.vmem %s280, 8
      %v347 = vld [vmem:[%s346] sm:$0xf]
      %349 = vrot.lane.b32.xlu0 %v347, 112
      %v350 = vpop.permute.xlu0 %349
      %v351 = vrot.slane %v350, 4
      %vm352 = vcmask 916480
      %v353 = vsel %vm352, %v351, %v350
      %vm355 = vcmask 1044352
      %vm356 = vcmask 523268
      %vm357 = vmor %vm356, %vm355
      %358 = vst.msk [vmem:[#allocation3 + $0x4] sm:$0xff] %vm357, %v353
      %v359 = vld [vmem:[%s346] sm:$0xf]
      %v360 = vld [vmem:[%s346 + $0x4] sm:$0x1]
      %v362 = vshrl.u32 %v359, 16
      %v364 = vrot.slane %v362, 4
      %v365 = vshll.u32 %v359, 16
      %v367 = vrot.slane %v365, 5
      %v368 = vor.u32 %v364, %v367
      %v369 = vrot.slane %v368, 4
      %v371 = vshll.u32 %v360, 16
      %v373 = vrot.slane %v371, 5
      %v374 = vsel %vm305, %v369, %v373
      %375 = vrot.lane.b32.xlu0 %v374, 64
      %v376 = vpop.permute.xlu0 %375
      %v377 = vrot.slane %v376, 4
      %vm378 = vcmask 523264
      %v379 = vsel %vm378, %v377, %v376
      %vm381 = vcmask 1043968
      %vm382 = vcmask 130052
      %vm383 = vmor %vm382, %vm381
      %384 = vst.msk [vmem:[#allocation3 + $0x8] sm:$0xff] %vm383, %v379
      %v385 = vld [vmem:[%s346] sm:$0xe]
      %v386 = vld [vmem:[%s346 + $0x4] sm:$0x1]
      %v389 = vrot.slane %v385, 5
      %v390 = vrot.slane %v389, 4
      %v391 = vrot.slane %v386, 5
      %v392 = vsel %vm336, %v390, %v391
      %393 = vrot.lane.b32.xlu0 %v392, 16
      %v394 = vpop.permute.xlu0 %393
      %vm396 = vcmask 781440
      %397 = vst.msk [vmem:[#allocation3 + $0xc] sm:$0xf] %vm396, %v394
      %s398 = scalar_lea.vmem %s280, 16
      %v399 = vld [vmem:[%s398] sm:$0xf]
      %401 = vrot.lane.b32.xlu0 %v399, 96
      %v402 = vpop.permute.xlu0 %401
      %v403 = vrot.slane %v402, 4
      %vm404 = vcmask 785408
      %v405 = vsel %vm404, %v403, %v402
      %vm407 = vcmask 1044224
      %vm408 = vcmask 392196
      %vm409 = vmor %vm408, %vm407
      %410 = vst.msk [vmem:[#allocation3 + $0xc] sm:$0xff] %vm409, %v405
      %v411 = vld [vmem:[%s398] sm:$0xf]
      %v412 = vld [vmem:[%s398 + $0x4] sm:$0x1]
      %v414 = vshrl.u32 %v411, 16
      %v416 = vrot.slane %v414, 4
      %v417 = vshll.u32 %v411, 16
      %v419 = vrot.slane %v417, 5
      %v420 = vor.u32 %v416, %v419
      %v421 = vrot.slane %v420, 4
      %v423 = vshll.u32 %v412, 16
      %v425 = vrot.slane %v423, 5
      %v426 = vsel %vm305, %v421, %v425
      %427 = vrot.lane.b32.xlu0 %v426, 48
      %v428 = vpop.permute.xlu0 %427
      %vm430 = vcmask 1043840
      %431 = vst.msk [vmem:[#allocation3 + $0x10] sm:$0xf] %vm430, %v428
      %v432 = vld [vmem:[%s398] sm:$0xe]
      %v433 = vld [vmem:[%s398 + $0x4] sm:$0x1]
      %v436 = vrot.slane %v432, 5
      %v437 = vrot.slane %v436, 4
      %v438 = vrot.slane %v433, 5
      %v439 = vsel %vm336, %v437, %v438
      %441 = vst.msk [vmem:[#allocation3 + $0x14] sm:$0xf] %vm299, %v439
      %v442 = vld [vmem:[%s346] sm:$0xf]
      %443 = vst.msk [vmem:[#allocation3 + $0x18] sm:$0xf] %vm299, %v442
      %v444 = vld [vmem:[%s346] sm:$0xf]
      %v445 = vld [vmem:[%s346 + $0x4] sm:$0x1]
      %v447 = vshrl.u32 %v444, 16
      %v449 = vrot.slane %v447, 4
      %v450 = vshll.u32 %v444, 16
      %v452 = vrot.slane %v450, 5
      %v453 = vor.u32 %v449, %v452
      %v454 = vrot.slane %v453, 4
      %v456 = vshll.u32 %v445, 16
      %v458 = vrot.slane %v456, 5
      %v459 = vsel %vm305, %v454, %v458
      %460 = vrot.lane.b32.xlu0 %v459, 80
      %v461 = vpop.permute.xlu0 %460
      %v462 = vrot.slane %v461, 4
      %v463 = vsel %vm323, %v462, %v461
      %465 = vst.msk [vmem:[#allocation3 + $0x18] sm:$0xff] %vm328, %v463
      %v466 = vld [vmem:[%s346] sm:$0xe]
      %v467 = vld [vmem:[%s346 + $0x4] sm:$0x1]
      %v470 = vrot.slane %v466, 5
      %v471 = vrot.slane %v470, 4
      %v472 = vrot.slane %v467, 5
      %v473 = vsel %vm336, %v471, %v472
      %474 = vrot.lane.b32.xlu0 %v473, 32
      %v475 = vpop.permute.xlu0 %474
      %477 = vst.msk [vmem:[#allocation3 + $0x1c] sm:$0xf] %vm344, %v475
      %v478 = vld [vmem:[%s398] sm:$0xf]
      %480 = vrot.lane.b32.xlu0 %v478, 112
      %v481 = vpop.permute.xlu0 %480
      %v482 = vrot.slane %v481, 4
      %v483 = vsel %vm352, %v482, %v481
      %485 = vst.msk [vmem:[#allocation3 + $0x1c] sm:$0xff] %vm357, %v483
      %v486 = vld [vmem:[%s398] sm:$0xf]
      %v487 = vld [vmem:[%s398 + $0x4] sm:$0x1]
      %v489 = vshrl.u32 %v486, 16
      %v491 = vrot.slane %v489, 4
      %v492 = vshll.u32 %v486, 16
      %v494 = vrot.slane %v492, 5
      %v495 = vor.u32 %v491, %v494
      %v496 = vrot.slane %v495, 4
      %v498 = vshll.u32 %v487, 16
      %v500 = vrot.slane %v498, 5
      %v501 = vsel %vm305, %v496, %v500
      %502 = vrot.lane.b32.xlu0 %v501, 64
      %v503 = vpop.permute.xlu0 %502
      %v504 = vrot.slane %v503, 4
      %v505 = vsel %vm378, %v504, %v503
      %507 = vst.msk [vmem:[#allocation3 + $0x20] sm:$0xff] %vm383, %v505
      %v508 = vld [vmem:[%s398] sm:$0xe]
      %v509 = vld [vmem:[%s398 + $0x4] sm:$0x1]
      %v512 = vrot.slane %v508, 5
      %v513 = vrot.slane %v512, 4
      %v514 = vrot.slane %v509, 5
      %v515 = vsel %vm336, %v513, %v514
      %516 = vrot.lane.b32.xlu0 %v515, 16
      %v517 = vpop.permute.xlu0 %516
      %519 = vst.msk [vmem:[#allocation3 + $0x24] sm:$0xf] %vm396, %v517
      %s520 = scalar_lea.vmem %s280, 24
      %v521 = vld [vmem:[%s520] sm:$0xf]
      %523 = vrot.lane.b32.xlu0 %v521, 96
      %v524 = vpop.permute.xlu0 %523
      %v525 = vrot.slane %v524, 4
      %v526 = vsel %vm404, %v525, %v524
      %528 = vst.msk [vmem:[#allocation3 + $0x24] sm:$0xff] %vm409, %v526
      %v529 = vld [vmem:[%s520] sm:$0xf]
      %v530 = vld [vmem:[%s520 + $0x4] sm:$0x1]
      %v532 = vshrl.u32 %v529, 16
      %v534 = vrot.slane %v532, 4
      %v535 = vshll.u32 %v529, 16
      %v537 = vrot.slane %v535, 5
      %v538 = vor.u32 %v534, %v537
      %v539 = vrot.slane %v538, 4
      %v541 = vshll.u32 %v530, 16
      %v543 = vrot.slane %v541, 5
      %v544 = vsel %vm305, %v539, %v543
      %545 = vrot.lane.b32.xlu0 %v544, 48
      %v546 = vpop.permute.xlu0 %545
      %548 = vst.msk [vmem:[#allocation3 + $0x28] sm:$0xf] %vm430, %v546
      %v549 = vld [vmem:[%s520] sm:$0xe]
      %v550 = vld [vmem:[%s520 + $0x4] sm:$0x1]
      %v553 = vrot.slane %v549, 5
      %v554 = vrot.slane %v553, 4
      %v555 = vrot.slane %v550, 5
      %v556 = vsel %vm336, %v554, %v555
      %558 = vst.msk [vmem:[#allocation3 + $0x2c] sm:$0xf] %vm299, %v556
      %v559 = vld [vmem:[%s398] sm:$0xf]
      %560 = vst.msk [vmem:[#allocation3 + $0x30] sm:$0xf] %vm299, %v559
      %v561 = vld [vmem:[%s398] sm:$0xf]
      %v562 = vld [vmem:[%s398 + $0x4] sm:$0x1]
      %v564 = vshrl.u32 %v561, 16
      %v566 = vrot.slane %v564, 4
      %v567 = vshll.u32 %v561, 16
      %v569 = vrot.slane %v567, 5
      %v570 = vor.u32 %v566, %v569
      %v571 = vrot.slane %v570, 4
      %v573 = vshll.u32 %v562, 16
      %v575 = vrot.slane %v573, 5
      %v576 = vsel %vm305, %v571, %v575
      %577 = vrot.lane.b32.xlu0 %v576, 80
      %v578 = vpop.permute.xlu0 %577
      %v579 = vrot.slane %v578, 4
      %v580 = vsel %vm323, %v579, %v578
      %582 = vst.msk [vmem:[#allocation3 + $0x30] sm:$0xff] %vm328, %v580
      %v583 = vld [vmem:[%s398] sm:$0xe]
      %v584 = vld [vmem:[%s398 + $0x4] sm:$0x1]
      %v587 = vrot.slane %v583, 5
      %v588 = vrot.slane %v587, 4
      %v589 = vrot.slane %v584, 5
      %v590 = vsel %vm336, %v588, %v589
      %591 = vrot.lane.b32.xlu0 %v590, 32
      %v592 = vpop.permute.xlu0 %591
      %594 = vst.msk [vmem:[#allocation3 + $0x34] sm:$0xf] %vm344, %v592
      %v595 = vld [vmem:[%s520] sm:$0xf]
      %597 = vrot.lane.b32.xlu0 %v595, 112
      %v598 = vpop.permute.xlu0 %597
      %v599 = vrot.slane %v598, 4
      %v600 = vsel %vm352, %v599, %v598
      %602 = vst.msk [vmem:[#allocation3 + $0x34] sm:$0xff] %vm357, %v600
      %v603 = vld [vmem:[%s520] sm:$0xf]
      %v604 = vld [vmem:[%s520 + $0x4] sm:$0x1]
      %v606 = vshrl.u32 %v603, 16
      %v608 = vrot.slane %v606, 4
      %v609 = vshll.u32 %v603, 16
      %v611 = vrot.slane %v609, 5
      %v612 = vor.u32 %v608, %v611
      %v613 = vrot.slane %v612, 4
      %v615 = vshll.u32 %v604, 16
      %v617 = vrot.slane %v615, 5
      %v618 = vsel %vm305, %v613, %v617
      %619 = vrot.lane.b32.xlu0 %v618, 64
      %v620 = vpop.permute.xlu0 %619
      %v621 = vrot.slane %v620, 4
      %v622 = vsel %vm378, %v621, %v620
      %624 = vst.msk [vmem:[#allocation3 + $0x38] sm:$0xff] %vm383, %v622
      %v625 = vld [vmem:[%s520] sm:$0xe]
      %v626 = vld [vmem:[%s520 + $0x4] sm:$0x1]
      %v629 = vrot.slane %v625, 5
      %v630 = vrot.slane %v629, 4
      %v631 = vrot.slane %v626, 5
      %v632 = vsel %vm336, %v630, %v631
      %633 = vrot.lane.b32.xlu0 %v632, 16
      %v634 = vpop.permute.xlu0 %633
      %636 = vst.msk [vmem:[#allocation3 + $0x3c] sm:$0xf] %vm396, %v634
      %s637 = scalar_lea.vmem %s280, 32
      %v638 = vld [vmem:[%s637] sm:$0xf]
      %640 = vrot.lane.b32.xlu0 %v638, 96
      %v641 = vpop.permute.xlu0 %640
      %v642 = vrot.slane %v641, 4
      %v643 = vsel %vm404, %v642, %v641
      %645 = vst.msk [vmem:[#allocation3 + $0x3c] sm:$0xff] %vm409, %v643
      %v646 = vld [vmem:[%s637] sm:$0xf]
      %v647 = vld [vmem:[%s637 + $0x4] sm:$0x1]
      %v649 = vshrl.u32 %v646, 16
      %v651 = vrot.slane %v649, 4
      %v652 = vshll.u32 %v646, 16
      %v654 = vrot.slane %v652, 5
      %v655 = vor.u32 %v651, %v654
      %v656 = vrot.slane %v655, 4
      %v658 = vshll.u32 %v647, 16
      %v660 = vrot.slane %v658, 5
      %v661 = vsel %vm305, %v656, %v660
      %662 = vrot.lane.b32.xlu0 %v661, 48
      %v663 = vpop.permute.xlu0 %662
      %665 = vst.msk [vmem:[#allocation3 + $0x40] sm:$0xf] %vm430, %v663
      %v666 = vld [vmem:[%s637] sm:$0xe]
      %v667 = vld [vmem:[%s637 + $0x4] sm:$0x1]
      %v670 = vrot.slane %v666, 5
      %v671 = vrot.slane %v670, 4
      %v672 = vrot.slane %v667, 5
      %v673 = vsel %vm336, %v671, %v672
      %675 = vst.msk [vmem:[#allocation3 + $0x44] sm:$0xf] %vm299, %v673
      %v676 = vld [vmem:[%s520] sm:$0xf]
      %677 = vst.msk [vmem:[#allocation3 + $0x48] sm:$0xf] %vm299, %v676
      %v678 = vld [vmem:[%s520] sm:$0xf]
      %v679 = vld [vmem:[%s520 + $0x4] sm:$0x1]
      %v681 = vshrl.u32 %v678, 16
      %v683 = vrot.slane %v681, 4
      %v684 = vshll.u32 %v678, 16
      %v686 = vrot.slane %v684, 5
      %v687 = vor.u32 %v683, %v686
      %v688 = vrot.slane %v687, 4
      %v690 = vshll.u32 %v679, 16
      %v692 = vrot.slane %v690, 5
      %v693 = vsel %vm305, %v688, %v692
      %694 = vrot.lane.b32.xlu0 %v693, 80
      %v695 = vpop.permute.xlu0 %694
      %v696 = vrot.slane %v695, 4
      %v697 = vsel %vm323, %v696, %v695
      %699 = vst.msk [vmem:[#allocation3 + $0x48] sm:$0xff] %vm328, %v697
      %v700 = vld [vmem:[%s520] sm:$0xe]
      %v701 = vld [vmem:[%s520 + $0x4] sm:$0x1]
      %v704 = vrot.slane %v700, 5
      %v705 = vrot.slane %v704, 4
      %v706 = vrot.slane %v701, 5
      %v707 = vsel %vm336, %v705, %v706
      %708 = vrot.lane.b32.xlu0 %v707, 32
      %v709 = vpop.permute.xlu0 %708
      %711 = vst.msk [vmem:[#allocation3 + $0x4c] sm:$0xf] %vm344, %v709
      %v712 = vld [vmem:[%s637] sm:$0xf]
      %714 = vrot.lane.b32.xlu0 %v712, 112
      %v715 = vpop.permute.xlu0 %714
      %v716 = vrot.slane %v715, 4
      %v717 = vsel %vm352, %v716, %v715
      %719 = vst.msk [vmem:[#allocation3 + $0x4c] sm:$0xff] %vm357, %v717
      %v720 = vld [vmem:[%s637] sm:$0xf]
      %v721 = vld [vmem:[%s637 + $0x4] sm:$0x1]
      %v723 = vshrl.u32 %v720, 16
      %v725 = vrot.slane %v723, 4
      %v726 = vshll.u32 %v720, 16
      %v728 = vrot.slane %v726, 5
      %v729 = vor.u32 %v725, %v728
      %v730 = vrot.slane %v729, 4
      %v732 = vshll.u32 %v721, 16
      %v734 = vrot.slane %v732, 5
      %v735 = vsel %vm305, %v730, %v734
      %736 = vrot.lane.b32.xlu0 %v735, 64
      %v737 = vpop.permute.xlu0 %736
      %v738 = vrot.slane %v737, 4
      %v739 = vsel %vm378, %v738, %v737
      %741 = vst.msk [vmem:[#allocation3 + $0x50] sm:$0xff] %vm383, %v739
      %v742 = vld [vmem:[%s637] sm:$0xe]
      %v743 = vld [vmem:[%s637 + $0x4] sm:$0x1]
      %v746 = vrot.slane %v742, 5
      %v747 = vrot.slane %v746, 4
      %v748 = vrot.slane %v743, 5
      %v749 = vsel %vm336, %v747, %v748
      %750 = vrot.lane.b32.xlu0 %v749, 16
      %v751 = vpop.permute.xlu0 %750
      %753 = vst.msk [vmem:[#allocation3 + $0x54] sm:$0xf] %vm396, %v751
      %s754 = scalar_lea.vmem %s280, 40
      %v755 = vld [vmem:[%s754] sm:$0xf]
      %757 = vrot.lane.b32.xlu0 %v755, 96
      %v758 = vpop.permute.xlu0 %757
      %v759 = vrot.slane %v758, 4
      %v760 = vsel %vm404, %v759, %v758
      %762 = vst.msk [vmem:[#allocation3 + $0x54] sm:$0xff] %vm409, %v760
      %v763 = vld [vmem:[%s754] sm:$0xf]
      %v764 = vld [vmem:[%s754 + $0x4] sm:$0x1]
      %v766 = vshrl.u32 %v763, 16
      %v768 = vrot.slane %v766, 4
      %v769 = vshll.u32 %v763, 16
      %v771 = vrot.slane %v769, 5
      %v772 = vor.u32 %v768, %v771
      %v773 = vrot.slane %v772, 4
      %v775 = vshll.u32 %v764, 16
      %v777 = vrot.slane %v775, 5
      %v778 = vsel %vm305, %v773, %v777
      %779 = vrot.lane.b32.xlu0 %v778, 48
      %v780 = vpop.permute.xlu0 %779
      %782 = vst.msk [vmem:[#allocation3 + $0x58] sm:$0xf] %vm430, %v780
      %v783 = vld [vmem:[%s754] sm:$0xe]
      %v784 = vld [vmem:[%s754 + $0x4] sm:$0x1]
      %v787 = vrot.slane %v783, 5
      %v788 = vrot.slane %v787, 4
      %v789 = vrot.slane %v784, 5
      %v790 = vsel %vm336, %v788, %v789
      %792 = vst.msk [vmem:[#allocation3 + $0x5c] sm:$0xf] %vm299, %v790
      %v793 = vld [vmem:[%s637] sm:$0xf]
      %794 = vst.msk [vmem:[#allocation3 + $0x60] sm:$0xf] %vm299, %v793
      %v795 = vld [vmem:[%s637] sm:$0xf]
      %v796 = vld [vmem:[%s637 + $0x4] sm:$0x1]
      %v798 = vshrl.u32 %v795, 16
      %v800 = vrot.slane %v798, 4
      %v801 = vshll.u32 %v795, 16
      %v803 = vrot.slane %v801, 5
      %v804 = vor.u32 %v800, %v803
      %v805 = vrot.slane %v804, 4
      %v807 = vshll.u32 %v796, 16
      %v809 = vrot.slane %v807, 5
      %v810 = vsel %vm305, %v805, %v809
      %811 = vrot.lane.b32.xlu0 %v810, 80
      %v812 = vpop.permute.xlu0 %811
      %v813 = vrot.slane %v812, 4
      %v814 = vsel %vm323, %v813, %v812
      %816 = vst.msk [vmem:[#allocation3 + $0x60] sm:$0xff] %vm328, %v814
      %v817 = vld [vmem:[%s637] sm:$0xe]
      %v818 = vld [vmem:[%s637 + $0x4] sm:$0x1]
      %v821 = vrot.slane %v817, 5
      %v822 = vrot.slane %v821, 4
      %v823 = vrot.slane %v818, 5
      %v824 = vsel %vm336, %v822, %v823
      %825 = vrot.lane.b32.xlu0 %v824, 32
      %v826 = vpop.permute.xlu0 %825
      %828 = vst.msk [vmem:[#allocation3 + $0x64] sm:$0xf] %vm344, %v826
      %v829 = vld [vmem:[%s754] sm:$0xf]
      %831 = vrot.lane.b32.xlu0 %v829, 112
      %v832 = vpop.permute.xlu0 %831
      %v833 = vrot.slane %v832, 4
      %v834 = vsel %vm352, %v833, %v832
      %836 = vst.msk [vmem:[#allocation3 + $0x64] sm:$0xff] %vm357, %v834
      %v837 = vld [vmem:[%s754] sm:$0xf]
      %v838 = vld [vmem:[%s754 + $0x4] sm:$0x1]
      %v840 = vshrl.u32 %v837, 16
      %v842 = vrot.slane %v840, 4
      %v843 = vshll.u32 %v837, 16
      %v845 = vrot.slane %v843, 5
      %v846 = vor.u32 %v842, %v845
      %v847 = vrot.slane %v846, 4
      %v849 = vshll.u32 %v838, 16
      %v851 = vrot.slane %v849, 5
      %v852 = vsel %vm305, %v847, %v851
      %853 = vrot.lane.b32.xlu0 %v852, 64
      %v854 = vpop.permute.xlu0 %853
      %v855 = vrot.slane %v854, 4
      %v856 = vsel %vm378, %v855, %v854
      %858 = vst.msk [vmem:[#allocation3 + $0x68] sm:$0xff] %vm383, %v856
      %v859 = vld [vmem:[%s754] sm:$0xe]
      %v860 = vld [vmem:[%s754 + $0x4] sm:$0x1]
      %v863 = vrot.slane %v859, 5
      %v864 = vrot.slane %v863, 4
      %v865 = vrot.slane %v860, 5
      %v866 = vsel %vm336, %v864, %v865
      %867 = vrot.lane.b32.xlu0 %v866, 16
      %v868 = vpop.permute.xlu0 %867
      %870 = vst.msk [vmem:[#allocation3 + $0x6c] sm:$0xf] %vm396, %v868
      %s871 = scalar_lea.vmem %s280, 48
      %v872 = vld [vmem:[%s871] sm:$0xf]
      %874 = vrot.lane.b32.xlu0 %v872, 96
      %v875 = vpop.permute.xlu0 %874
      %v876 = vrot.slane %v875, 4
      %v877 = vsel %vm404, %v876, %v875
      %879 = vst.msk [vmem:[#allocation3 + $0x6c] sm:$0xff] %vm409, %v877
      %v880 = vld [vmem:[%s871] sm:$0xf]
      %v881 = vld [vmem:[%s871 + $0x4] sm:$0x1]
      %v883 = vshrl.u32 %v880, 16
      %v885 = vrot.slane %v883, 4
      %v886 = vshll.u32 %v880, 16
      %v888 = vrot.slane %v886, 5
      %v889 = vor.u32 %v885, %v888
      %v890 = vrot.slane %v889, 4
      %v892 = vshll.u32 %v881, 16
      %v894 = vrot.slane %v892, 5
      %v895 = vsel %vm305, %v890, %v894
      %896 = vrot.lane.b32.xlu0 %v895, 48
      %v897 = vpop.permute.xlu0 %896
      %899 = vst.msk [vmem:[#allocation3 + $0x70] sm:$0xf] %vm430, %v897
      %v900 = vld [vmem:[%s871] sm:$0xe]
      %v901 = vld [vmem:[%s871 + $0x4] sm:$0x1]
      %v904 = vrot.slane %v900, 5
      %v905 = vrot.slane %v904, 4
      %v906 = vrot.slane %v901, 5
      %v907 = vsel %vm336, %v905, %v906
      %909 = vst.msk [vmem:[#allocation3 + $0x74] sm:$0xf] %vm299, %v907
      %v910 = vld [vmem:[%s754] sm:$0xf]
      %911 = vst.msk [vmem:[#allocation3 + $0x78] sm:$0xf] %vm299, %v910
      %v912 = vld [vmem:[%s754] sm:$0xf]
      %v913 = vld [vmem:[%s754 + $0x4] sm:$0x1]
      %v915 = vshrl.u32 %v912, 16
      %v917 = vrot.slane %v915, 4
      %v918 = vshll.u32 %v912, 16
      %v920 = vrot.slane %v918, 5
      %v921 = vor.u32 %v917, %v920
      %v922 = vrot.slane %v921, 4
      %v924 = vshll.u32 %v913, 16
      %v926 = vrot.slane %v924, 5
      %v927 = vsel %vm305, %v922, %v926
      %928 = vrot.lane.b32.xlu0 %v927, 80
      %v929 = vpop.permute.xlu0 %928
      %v930 = vrot.slane %v929, 4
      %v931 = vsel %vm323, %v930, %v929
      %933 = vst.msk [vmem:[#allocation3 + $0x78] sm:$0xff] %vm328, %v931
      %v934 = vld [vmem:[%s754] sm:$0xe]
      %v935 = vld [vmem:[%s754 + $0x4] sm:$0x1]
      %v938 = vrot.slane %v934, 5
      %v939 = vrot.slane %v938, 4
      %v940 = vrot.slane %v935, 5
      %v941 = vsel %vm336, %v939, %v940
      %942 = vrot.lane.b32.xlu0 %v941, 32
      %v943 = vpop.permute.xlu0 %942
      %945 = vst.msk [vmem:[#allocation3 + $0x7c] sm:$0xf] %vm344, %v943
      %v946 = vld [vmem:[%s871] sm:$0xf]
      %948 = vrot.lane.b32.xlu0 %v946, 112
      %v949 = vpop.permute.xlu0 %948
      %v950 = vrot.slane %v949, 4
      %v951 = vsel %vm352, %v950, %v949
      %953 = vst.msk [vmem:[#allocation3 + $0x7c] sm:$0xff] %vm357, %v951
      %v954 = vld [vmem:[%s871] sm:$0xf]
      %v955 = vld [vmem:[%s871 + $0x4] sm:$0x1]
      %v957 = vshrl.u32 %v954, 16
      %v959 = vrot.slane %v957, 4
      %v960 = vshll.u32 %v954, 16
      %v962 = vrot.slane %v960, 5
      %v963 = vor.u32 %v959, %v962
      %v964 = vrot.slane %v963, 4
      %v966 = vshll.u32 %v955, 16
      %v968 = vrot.slane %v966, 5
      %v969 = vsel %vm305, %v964, %v968
      %970 = vrot.lane.b32.xlu0 %v969, 64
      %v971 = vpop.permute.xlu0 %970
      %v972 = vrot.slane %v971, 4
      %v973 = vsel %vm378, %v972, %v971
      %975 = vst.msk [vmem:[#allocation3 + $0x80] sm:$0xff] %vm383, %v973
      %v976 = vld [vmem:[%s871] sm:$0xe]
      %v977 = vld [vmem:[%s871 + $0x4] sm:$0x1]
      %v980 = vrot.slane %v976, 5
      %v981 = vrot.slane %v980, 4
      %v982 = vrot.slane %v977, 5
      %v983 = vsel %vm336, %v981, %v982
      %984 = vrot.lane.b32.xlu0 %v983, 16
      %v985 = vpop.permute.xlu0 %984
      %987 = vst.msk [vmem:[#allocation3 + $0x84] sm:$0xf] %vm396, %v985
      %s988 = scalar_lea.vmem %s280, 56
      %v989 = vld [vmem:[%s988] sm:$0xf]
      %991 = vrot.lane.b32.xlu0 %v989, 96
      %v992 = vpop.permute.xlu0 %991
      %v993 = vrot.slane %v992, 4
      %v994 = vsel %vm404, %v993, %v992
      %996 = vst.msk [vmem:[#allocation3 + $0x84] sm:$0xff] %vm409, %v994
      %v997 = vld [vmem:[%s988] sm:$0xf]
      %v998 = vld [vmem:[%s988 + $0x4] sm:$0x1]
      %v1000 = vshrl.u32 %v997, 16
      %v1002 = vrot.slane %v1000, 4
      %v1003 = vshll.u32 %v997, 16
      %v1005 = vrot.slane %v1003, 5
      %v1006 = vor.u32 %v1002, %v1005
      %v1007 = vrot.slane %v1006, 4
      %v1009 = vshll.u32 %v998, 16
      %v1011 = vrot.slane %v1009, 5
      %v1012 = vsel %vm305, %v1007, %v1011
      %1013 = vrot.lane.b32.xlu0 %v1012, 48
      %v1014 = vpop.permute.xlu0 %1013
      %1016 = vst.msk [vmem:[#allocation3 + $0x88] sm:$0xf] %vm430, %v1014
      %v1017 = vld [vmem:[%s988] sm:$0xe]
      %v1018 = vld [vmem:[%s988 + $0x4] sm:$0x1]
      %v1021 = vrot.slane %v1017, 5
      %v1022 = vrot.slane %v1021, 4
      %v1023 = vrot.slane %v1018, 5
      %v1024 = vsel %vm336, %v1022, %v1023
      %1026 = vst.msk [vmem:[#allocation3 + $0x8c] sm:$0xf] %vm299, %v1024
      %v1027 = vld [vmem:[%s871] sm:$0xf]
      %1028 = vst.msk [vmem:[#allocation3 + $0x90] sm:$0xf] %vm299, %v1027
      %v1029 = vld [vmem:[%s871] sm:$0xf]
      %v1030 = vld [vmem:[%s871 + $0x4] sm:$0x1]
      %v1032 = vshrl.u32 %v1029, 16
      %v1034 = vrot.slane %v1032, 4
      %v1035 = vshll.u32 %v1029, 16
      %v1037 = vrot.slane %v1035, 5
      %v1038 = vor.u32 %v1034, %v1037
      %v1039 = vrot.slane %v1038, 4
      %v1041 = vshll.u32 %v1030, 16
      %v1043 = vrot.slane %v1041, 5
      %v1044 = vsel %vm305, %v1039, %v1043
      %1045 = vrot.lane.b32.xlu0 %v1044, 80
      %v1046 = vpop.permute.xlu0 %1045
      %v1047 = vrot.slane %v1046, 4
      %v1048 = vsel %vm323, %v1047, %v1046
      %1050 = vst.msk [vmem:[#allocation3 + $0x90] sm:$0xff] %vm328, %v1048
      %v1051 = vld [vmem:[%s871] sm:$0xe]
      %v1052 = vld [vmem:[%s871 + $0x4] sm:$0x1]
      %v1055 = vrot.slane %v1051, 5
      %v1056 = vrot.slane %v1055, 4
      %v1057 = vrot.slane %v1052, 5
      %v1058 = vsel %vm336, %v1056, %v1057
      %1059 = vrot.lane.b32.xlu0 %v1058, 32
      %v1060 = vpop.permute.xlu0 %1059
      %1062 = vst.msk [vmem:[#allocation3 + $0x94] sm:$0xf] %vm344, %v1060
      %v1063 = vld [vmem:[%s988] sm:$0xf]
      %1065 = vrot.lane.b32.xlu0 %v1063, 112
      %v1066 = vpop.permute.xlu0 %1065
      %v1067 = vrot.slane %v1066, 4
      %v1068 = vsel %vm352, %v1067, %v1066
      %1070 = vst.msk [vmem:[#allocation3 + $0x94] sm:$0xff] %vm357, %v1068
      %v1071 = vld [vmem:[%s988] sm:$0xf]
      %v1072 = vld [vmem:[%s988 + $0x4] sm:$0x1]
      %v1074 = vshrl.u32 %v1071, 16
      %v1076 = vrot.slane %v1074, 4
      %v1077 = vshll.u32 %v1071, 16
      %v1079 = vrot.slane %v1077, 5
      %v1080 = vor.u32 %v1076, %v1079
      %v1081 = vrot.slane %v1080, 4
      %v1083 = vshll.u32 %v1072, 16
      %v1085 = vrot.slane %v1083, 5
      %v1086 = vsel %vm305, %v1081, %v1085
      %1087 = vrot.lane.b32.xlu0 %v1086, 64
      %v1088 = vpop.permute.xlu0 %1087
      %v1089 = vrot.slane %v1088, 4
      %v1090 = vsel %vm378, %v1089, %v1088
      %1092 = vst.msk [vmem:[#allocation3 + $0x98] sm:$0xff] %vm383, %v1090
      %v1093 = vld [vmem:[%s988] sm:$0xe]
      %v1094 = vld [vmem:[%s988 + $0x4] sm:$0x1]
      %v1097 = vrot.slane %v1093, 5
      %v1098 = vrot.slane %v1097, 4
      %v1099 = vrot.slane %v1094, 5
      %v1100 = vsel %vm336, %v1098, %v1099
      %1101 = vrot.lane.b32.xlu0 %v1100, 16
      %v1102 = vpop.permute.xlu0 %1101
      %1104 = vst.msk [vmem:[#allocation3 + $0x9c] sm:$0xf] %vm396, %v1102
      %s1105 = scalar_lea.vmem %s280, 64
      %v1106 = vld [vmem:[%s1105] sm:$0xf]
      %1108 = vrot.lane.b32.xlu0 %v1106, 96
      %v1109 = vpop.permute.xlu0 %1108
      %v1110 = vrot.slane %v1109, 4
      %v1111 = vsel %vm404, %v1110, %v1109
      %1113 = vst.msk [vmem:[#allocation3 + $0x9c] sm:$0xff] %vm409, %v1111
      %v1114 = vld [vmem:[%s1105] sm:$0xf]
      %v1115 = vld [vmem:[%s1105 + $0x4] sm:$0x1]
      %v1117 = vshrl.u32 %v1114, 16
      %v1119 = vrot.slane %v1117, 4
      %v1120 = vshll.u32 %v1114, 16
      %v1122 = vrot.slane %v1120, 5
      %v1123 = vor.u32 %v1119, %v1122
      %v1124 = vrot.slane %v1123, 4
      %v1126 = vshll.u32 %v1115, 16
      %v1128 = vrot.slane %v1126, 5
      %v1129 = vsel %vm305, %v1124, %v1128
      %1130 = vrot.lane.b32.xlu0 %v1129, 48
      %v1131 = vpop.permute.xlu0 %1130
      %1133 = vst.msk [vmem:[#allocation3 + $0xa0] sm:$0xf] %vm430, %v1131
      %v1134 = vld [vmem:[%s1105] sm:$0xe]
      %v1135 = vld [vmem:[%s1105 + $0x4] sm:$0x1]
      %v1138 = vrot.slane %v1134, 5
      %v1139 = vrot.slane %v1138, 4
      %v1140 = vrot.slane %v1135, 5
      %v1141 = vsel %vm336, %v1139, %v1140
      %1143 = vst.msk [vmem:[#allocation3 + $0xa4] sm:$0xf] %vm299, %v1141
      %v1144 = vld [vmem:[%s988] sm:$0xf]
      %1145 = vst.msk [vmem:[#allocation3 + $0xa8] sm:$0xf] %vm299, %v1144
      %v1146 = vld [vmem:[%s988] sm:$0xf]
      %v1147 = vld [vmem:[%s988 + $0x4] sm:$0x1]
      %v1149 = vshrl.u32 %v1146, 16
      %v1151 = vrot.slane %v1149, 4
      %v1152 = vshll.u32 %v1146, 16
      %v1154 = vrot.slane %v1152, 5
      %v1155 = vor.u32 %v1151, %v1154
      %v1156 = vrot.slane %v1155, 4
      %v1158 = vshll.u32 %v1147, 16
      %v1160 = vrot.slane %v1158, 5
      %v1161 = vsel %vm305, %v1156, %v1160
      %1162 = vrot.lane.b32.xlu0 %v1161, 80
      %v1163 = vpop.permute.xlu0 %1162
      %v1164 = vrot.slane %v1163, 4
      %v1165 = vsel %vm323, %v1164, %v1163
      %1167 = vst.msk [vmem:[#allocation3 + $0xa8] sm:$0xff] %vm328, %v1165
      %v1168 = vld [vmem:[%s988] sm:$0xe]
      %v1169 = vld [vmem:[%s988 + $0x4] sm:$0x1]
      %v1172 = vrot.slane %v1168, 5
      %v1173 = vrot.slane %v1172, 4
      %v1174 = vrot.slane %v1169, 5
      %v1175 = vsel %vm336, %v1173, %v1174
      %1176 = vrot.lane.b32.xlu0 %v1175, 32
      %v1177 = vpop.permute.xlu0 %1176
      %1179 = vst.msk [vmem:[#allocation3 + $0xac] sm:$0xf] %vm344, %v1177
      %v1180 = vld [vmem:[%s1105] sm:$0xf]
      %1182 = vrot.lane.b32.xlu0 %v1180, 112
      %v1183 = vpop.permute.xlu0 %1182
      %v1184 = vrot.slane %v1183, 4
      %v1185 = vsel %vm352, %v1184, %v1183
      %1187 = vst.msk [vmem:[#allocation3 + $0xac] sm:$0xff] %vm357, %v1185
      %v1188 = vld [vmem:[%s1105] sm:$0xf]
      %v1189 = vld [vmem:[%s1105 + $0x4] sm:$0x1]
      %v1191 = vshrl.u32 %v1188, 16
      %v1193 = vrot.slane %v1191, 4
      %v1194 = vshll.u32 %v1188, 16
      %v1196 = vrot.slane %v1194, 5
      %v1197 = vor.u32 %v1193, %v1196
      %v1198 = vrot.slane %v1197, 4
      %v1200 = vshll.u32 %v1189, 16
      %v1202 = vrot.slane %v1200, 5
      %v1203 = vsel %vm305, %v1198, %v1202
      %1204 = vrot.lane.b32.xlu0 %v1203, 64
      %v1205 = vpop.permute.xlu0 %1204
      %v1206 = vrot.slane %v1205, 4
      %v1207 = vsel %vm378, %v1206, %v1205
      %1209 = vst.msk [vmem:[#allocation3 + $0xb0] sm:$0xff] %vm383, %v1207
      %v1210 = vld [vmem:[%s1105] sm:$0xe]
      %v1211 = vld [vmem:[%s1105 + $0x4] sm:$0x1]
      %v1214 = vrot.slane %v1210, 5
      %v1215 = vrot.slane %v1214, 4
      %v1216 = vrot.slane %v1211, 5
      %v1217 = vsel %vm336, %v1215, %v1216
      %1218 = vrot.lane.b32.xlu0 %v1217, 16
      %v1219 = vpop.permute.xlu0 %1218
      %1221 = vst.msk [vmem:[#allocation3 + $0xb4] sm:$0xf] %vm396, %v1219
      %s1222 = scalar_lea.vmem %s280, 72
      %v1223 = vld [vmem:[%s1222] sm:$0xf]
      %1225 = vrot.lane.b32.xlu0 %v1223, 96
      %v1226 = vpop.permute.xlu0 %1225
      %v1227 = vrot.slane %v1226, 4
      %v1228 = vsel %vm404, %v1227, %v1226
      %1230 = vst.msk [vmem:[#allocation3 + $0xb4] sm:$0xff] %vm409, %v1228
      %v1231 = vld [vmem:[%s1222] sm:$0xf]
      %v1232 = vld [vmem:[%s1222 + $0x4] sm:$0x1]
      %v1234 = vshrl.u32 %v1231, 16
      %v1236 = vrot.slane %v1234, 4
      %v1237 = vshll.u32 %v1231, 16
      %v1239 = vrot.slane %v1237, 5
      %v1240 = vor.u32 %v1236, %v1239
      %v1241 = vrot.slane %v1240, 4
      %v1243 = vshll.u32 %v1232, 16
      %v1245 = vrot.slane %v1243, 5
      %v1246 = vsel %vm305, %v1241, %v1245
      %1247 = vrot.lane.b32.xlu0 %v1246, 48
      %v1248 = vpop.permute.xlu0 %1247
      %1250 = vst.msk [vmem:[#allocation3 + $0xb8] sm:$0xf] %vm430, %v1248
      %v1251 = vld [vmem:[%s1222] sm:$0xe]
      %v1252 = vld [vmem:[%s1222 + $0x4] sm:$0x1]
      %v1255 = vrot.slane %v1251, 5
      %v1256 = vrot.slane %v1255, 4
      %v1257 = vrot.slane %v1252, 5
      %v1258 = vsel %vm336, %v1256, %v1257
      %1260 = vst.msk [vmem:[#allocation3 + $0xbc] sm:$0xf] %vm299, %v1258
      %v1261 = vld [vmem:[#allocation3] sm:$0xff]
      %v1262 = vld [vmem:[#allocation3 + $0x8] sm:$0xff]
      %v1263 = vld [vmem:[#allocation3 + $0x10] sm:$0xff]
      %v1264 = vld [vmem:[#allocation3 + $0x18] sm:$0xff]
      %v1265 = vld [vmem:[#allocation3 + $0x20] sm:$0xff]
      %v1266 = vld [vmem:[#allocation3 + $0x28] sm:$0xff]
      %v1267 = vld [vmem:[#allocation3 + $0x30] sm:$0xff]
      %v1268 = vld [vmem:[#allocation3 + $0x38] sm:$0xff]
      %v1269 = vld [vmem:[#allocation3 + $0x40] sm:$0xff]
      %v1270 = vld [vmem:[#allocation3 + $0x48] sm:$0xff]
      %v1271 = vld [vmem:[#allocation3 + $0x50] sm:$0xff]
      %v1272 = vld [vmem:[#allocation3 + $0x58] sm:$0xff]
      %v1273 = vld [vmem:[#allocation3 + $0x60] sm:$0xff]
      %v1274 = vld [vmem:[#allocation3 + $0x68] sm:$0xff]
      %v1275 = vld [vmem:[#allocation3 + $0x70] sm:$0xff]
      %v1276 = vld [vmem:[#allocation3 + $0x78] sm:$0xff]
      %v1277 = vld [vmem:[#allocation3 + $0x80] sm:$0xff]
      %v1278 = vld [vmem:[#allocation3 + $0x88] sm:$0xff]
      %v1279 = vld [vmem:[#allocation3 + $0x90] sm:$0xff]
      %v1280 = vld [vmem:[#allocation3 + $0x98] sm:$0xff]
      %v1281 = vld [vmem:[#allocation3 + $0xa0] sm:$0xff]
      %v1282 = vld [vmem:[#allocation3 + $0xa8] sm:$0xff]
      %v1283 = vld [vmem:[#allocation3 + $0xb0] sm:$0xff]
      %v1284 = vld [vmem:[#allocation3 + $0xb8] sm:$0xff]
      %v1285 = vld [vmem:[%s2] sm:$0xf]
      %v1286 = vld [vmem:[%s2 + $0x4] sm:$0xf]
      %v1287 = vld [vmem:[%s2 + $0x8] sm:$0xf]
      %v1288 = vld [vmem:[%s2 + $0xc] sm:$0xf]
      %v1289 = vld [vmem:[%s2 + $0x10] sm:$0xf]
      %v1290 = vld [vmem:[%s2 + $0x14] sm:$0xf]
      %v1291 = vld [vmem:[%s2 + $0x18] sm:$0xf]
      %v1292 = vld [vmem:[%s2 + $0x1c] sm:$0xf]
      %v1293 = vld [vmem:[%s2 + $0x20] sm:$0xf]
      %v1294 = vld [vmem:[%s2 + $0x24] sm:$0xf]
      %v1295 = vld [vmem:[%s2 + $0x28] sm:$0xf]
      %v1296 = vld [vmem:[%s2 + $0x2c] sm:$0xf]
      %v1297 = vld [vmem:[%s2 + $0x30] sm:$0xf]
      %v1298 = vld [vmem:[%s2 + $0x34] sm:$0xf]
      %v1299 = vld [vmem:[%s2 + $0x38] sm:$0xf]
      %v1300 = vld [vmem:[%s2 + $0x3c] sm:$0xf]
      %v1301 = vld [vmem:[%s2 + $0x40] sm:$0xf]
      %v1302 = vld [vmem:[%s2 + $0x44] sm:$0xf]
      %v1303 = vld [vmem:[%s2 + $0x48] sm:$0xf]
      %v1304 = vld [vmem:[%s2 + $0x4c] sm:$0xf]
      %v1305 = vld [vmem:[%s2 + $0x50] sm:$0xf]
      %v1306 = vld [vmem:[%s2 + $0x54] sm:$0xf]
      %v1307 = vld [vmem:[%s2 + $0x58] sm:$0xf]
      %v1308 = vld [vmem:[%s2 + $0x5c] sm:$0xf]
      %v1309 = vld [vmem:[%s2 + $0x60] sm:$0xf]
      %v1310 = vld [vmem:[%s2 + $0x64] sm:$0xf]
      %v1311 = vld [vmem:[%s2 + $0x68] sm:$0xf]
      %v1312 = vld [vmem:[%s2 + $0x6c] sm:$0xf]
      %v1313 = vld [vmem:[%s2 + $0x70] sm:$0xf]
      %v1314 = vld [vmem:[%s2 + $0x74] sm:$0xf]
      %v1315 = vld [vmem:[%s2 + $0x78] sm:$0xf]
      %v1316 = vld [vmem:[%s2 + $0x7c] sm:$0xf]
      %v1317 = vld [vmem:[%s2 + $0x80] sm:$0xf]
      %v1318 = vld [vmem:[%s2 + $0x84] sm:$0xf]
      %v1319 = vld [vmem:[%s2 + $0x88] sm:$0xf]
      %v1320 = vld [vmem:[%s2 + $0x8c] sm:$0xf]
      %v1321 = vld [vmem:[%s2 + $0x90] sm:$0xf]
      %v1322 = vld [vmem:[%s2 + $0x94] sm:$0xf]
      %v1323 = vld [vmem:[%s2 + $0x98] sm:$0xf]
      %v1324 = vld [vmem:[%s2 + $0x9c] sm:$0xf]
      %v1325 = vld [vmem:[%s2 + $0xa0] sm:$0xf]
      %v1326 = vld [vmem:[%s2 + $0xa4] sm:$0xf]
      %v1327 = vld [vmem:[%s2 + $0xa8] sm:$0xf]
      %v1328 = vld [vmem:[%s2 + $0xac] sm:$0xf]
      %v1329 = vld [vmem:[%s2 + $0xb0] sm:$0xf]
      %v1330 = vld [vmem:[%s2 + $0xb4] sm:$0xf]
      %v1331 = vld [vmem:[%s2 + $0xb8] sm:$0xf]
      %v1332 = vld [vmem:[%s2 + $0xbc] sm:$0xf]
      %v1333 = vld [vmem:[%s2 + $0xc0] sm:$0xf]
      %v1334 = vld [vmem:[%s2 + $0xc4] sm:$0xf]
      %v1335 = vld [vmem:[%s2 + $0xc8] sm:$0xf]
      %v1336 = vld [vmem:[%s2 + $0xcc] sm:$0xf]
      %v1337 = vld [vmem:[%s2 + $0xd0] sm:$0xf]
      %v1338 = vld [vmem:[%s2 + $0xd4] sm:$0xf]
      %v1339 = vld [vmem:[%s2 + $0xd8] sm:$0xf]
      %v1340 = vld [vmem:[%s2 + $0xdc] sm:$0xf]
      %v1341 = vld [vmem:[%s2 + $0xe0] sm:$0xf]
      %v1342 = vld [vmem:[%s2 + $0xe4] sm:$0xf]
      %v1343 = vld [vmem:[%s2 + $0xe8] sm:$0xf]
      %v1344 = vld [vmem:[%s2 + $0xec] sm:$0xf]
      %v1345 = vld [vmem:[%s2 + $0xf0] sm:$0xf]
      %v1346 = vld [vmem:[%s2 + $0xf4] sm:$0xf]
      %v1347 = vld [vmem:[%s2 + $0xf8] sm:$0xf]
      %v1348 = vld [vmem:[%s2 + $0xfc] sm:$0xf]
      %v1349 = vld [vmem:[%s2 + $0x100] sm:$0xf]
      %v1350 = vld [vmem:[%s2 + $0x104] sm:$0xf]
      %v1351 = vld [vmem:[%s2 + $0x108] sm:$0xf]
      %v1352 = vld [vmem:[%s2 + $0x10c] sm:$0xf]
      %v1353 = vld [vmem:[%s2 + $0x110] sm:$0xf]
      %v1354 = vld [vmem:[%s2 + $0x114] sm:$0xf]
      %v1355 = vld [vmem:[%s2 + $0x118] sm:$0xf]
      %v1356 = vld [vmem:[%s2 + $0x11c] sm:$0xf]
      %v1357 = vld [vmem:[%s2 + $0x120] sm:$0xf]
      %v1358 = vld [vmem:[%s2 + $0x124] sm:$0xf]
      %v1359 = vld [vmem:[%s2 + $0x128] sm:$0xf]
      %v1360 = vld [vmem:[%s2 + $0x12c] sm:$0xf]
      %v1361 = vld [vmem:[%s2 + $0x130] sm:$0xf]
      %v1362 = vld [vmem:[%s2 + $0x134] sm:$0xf]
      %v1363 = vld [vmem:[%s2 + $0x138] sm:$0xf]
      %v1364 = vld [vmem:[%s2 + $0x13c] sm:$0xf]
      %v1365 = vld [vmem:[%s2 + $0x140] sm:$0xf]
      %v1366 = vld [vmem:[%s2 + $0x144] sm:$0xf]
      %v1367 = vld [vmem:[%s2 + $0x148] sm:$0xf]
      %v1368 = vld [vmem:[%s2 + $0x14c] sm:$0xf]
      %v1369 = vld [vmem:[%s2 + $0x150] sm:$0xf]
      %v1370 = vld [vmem:[%s2 + $0x154] sm:$0xf]
      %v1371 = vld [vmem:[%s2 + $0x158] sm:$0xf]
      %v1372 = vld [vmem:[%s2 + $0x15c] sm:$0xf]
      %v1373 = vld [vmem:[%s2 + $0x160] sm:$0xf]
      %v1374 = vld [vmem:[%s2 + $0x164] sm:$0xf]
      %v1375 = vld [vmem:[%s3] sm:$0x1]
      %v1377 = vlaneseq
      %v1378 = vshrl.u32 %v1377, 7
      %v1379 = vsub.s32 0, %v1378
      %v1380 = vrot.slane %v1375, %v1379
      %v1406 = vunpack.c.l.b16 %v1261
      %v1407 = vunpack.c.h.b16 %v1261
      %v1408 = vunpack.c.l.b16 %v1262
      %v1409 = vunpack.c.h.b16 %v1262
      %v1410 = vunpack.c.l.b16 %v1263
      %v1411 = vunpack.c.h.b16 %v1263
      %v1412 = vunpack.c.l.b16 %v1264
      %v1413 = vunpack.c.h.b16 %v1264
      %v1414 = vunpack.c.l.b16 %v1265
      %v1415 = vunpack.c.h.b16 %v1265
      %v1416 = vunpack.c.l.b16 %v1266
      %v1417 = vunpack.c.h.b16 %v1266
      %v1418 = vunpack.c.l.b16 %v1267
      %v1419 = vunpack.c.h.b16 %v1267
      %v1420 = vunpack.c.l.b16 %v1268
      %v1421 = vunpack.c.h.b16 %v1268
      %v1422 = vunpack.c.l.b16 %v1269
      %v1423 = vunpack.c.h.b16 %v1269
      %v1424 = vunpack.c.l.b16 %v1270
      %v1425 = vunpack.c.h.b16 %v1270
      %v1426 = vunpack.c.l.b16 %v1271
      %v1427 = vunpack.c.h.b16 %v1271
      %v1428 = vunpack.c.l.b16 %v1272
      %v1429 = vunpack.c.h.b16 %v1272
      %v1430 = vunpack.c.l.b16 %v1273
      %v1431 = vunpack.c.h.b16 %v1273
      %v1432 = vunpack.c.l.b16 %v1274
      %v1433 = vunpack.c.h.b16 %v1274
      %v1434 = vunpack.c.l.b16 %v1275
      %v1435 = vunpack.c.h.b16 %v1275
      %v1436 = vunpack.c.l.b16 %v1276
      %v1437 = vunpack.c.h.b16 %v1276
      %v1438 = vunpack.c.l.b16 %v1277
      %v1439 = vunpack.c.h.b16 %v1277
      %v1440 = vunpack.c.l.b16 %v1278
      %v1441 = vunpack.c.h.b16 %v1278
      %v1442 = vunpack.c.l.b16 %v1279
      %v1443 = vunpack.c.h.b16 %v1279
      %v1444 = vunpack.c.l.b16 %v1280
      %v1445 = vunpack.c.h.b16 %v1280
      %v1446 = vunpack.c.l.b16 %v1281
      %v1447 = vunpack.c.h.b16 %v1281
      %v1448 = vunpack.c.l.b16 %v1282
      %v1449 = vunpack.c.h.b16 %v1282
      %v1450 = vunpack.c.l.b16 %v1283
      %v1451 = vunpack.c.h.b16 %v1283
      %v1452 = vunpack.c.l.b16 %v1284
      %v1453 = vunpack.c.h.b16 %v1284
      %v1454 = vpack.c.b16 %v1412, %v1406
      %v1455 = vpack.c.b16 %v1413, %v1407
      %v1456 = vpack.c.b16 %v1414, %v1408
      %v1457 = vpack.c.b16 %v1415, %v1409
      %v1458 = vpack.c.b16 %v1416, %v1410
      %v1459 = vpack.c.b16 %v1417, %v1411
      %v1460 = vpack.c.b16 %v1424, %v1418
      %v1461 = vpack.c.b16 %v1425, %v1419
      %v1462 = vpack.c.b16 %v1426, %v1420
      %v1463 = vpack.c.b16 %v1427, %v1421
      %v1464 = vpack.c.b16 %v1428, %v1422
      %v1465 = vpack.c.b16 %v1429, %v1423
      %v1466 = vpack.c.b16 %v1436, %v1430
      %v1467 = vpack.c.b16 %v1437, %v1431
      %v1468 = vpack.c.b16 %v1438, %v1432
      %v1469 = vpack.c.b16 %v1439, %v1433
      %v1470 = vpack.c.b16 %v1440, %v1434
      %v1471 = vpack.c.b16 %v1441, %v1435
      %v1472 = vpack.c.b16 %v1448, %v1442
      %v1473 = vpack.c.b16 %v1449, %v1443
      %v1474 = vpack.c.b16 %v1450, %v1444
      %v1475 = vpack.c.b16 %v1451, %v1445
      %v1476 = vpack.c.b16 %v1452, %v1446
      %v1477 = vpack.c.b16 %v1453, %v1447
      %v1588 = vunpack.c.l.b16 %v1285
      %v1589 = vunpack.c.l.b16 %v1286
      %v1590 = vunpack.c.l.b16 %v1287
      %v1591 = vunpack.c.l.b16 %v1288
      %v1592 = vunpack.c.l.b16 %v1289
      %v1593 = vunpack.c.l.b16 %v1290
      %v1594 = vunpack.c.l.b16 %v1291
      %v1595 = vunpack.c.l.b16 %v1292
      %v1596 = vunpack.c.l.b16 %v1293
      %v1597 = vunpack.c.l.b16 %v1294
      %v1598 = vunpack.c.l.b16 %v1295
      %v1599 = vunpack.c.l.b16 %v1296
      %v1600 = vunpack.c.l.b16 %v1297
      %v1601 = vunpack.c.l.b16 %v1298
      %v1602 = vunpack.c.l.b16 %v1299
      %v1603 = vunpack.c.l.b16 %v1300
      %v1604 = vunpack.c.l.b16 %v1301
      %v1605 = vunpack.c.l.b16 %v1302
      %v1606 = vunpack.c.l.b16 %v1303
      %v1607 = vunpack.c.l.b16 %v1304
      %v1608 = vunpack.c.l.b16 %v1305
      %v1609 = vunpack.c.l.b16 %v1306
      %v1610 = vunpack.c.l.b16 %v1307
      %v1611 = vunpack.c.l.b16 %v1308
      %v1612 = vunpack.c.l.b16 %v1309
      %v1613 = vunpack.c.l.b16 %v1310
      %v1614 = vunpack.c.l.b16 %v1311
      %v1615 = vunpack.c.l.b16 %v1312
      %v1616 = vunpack.c.l.b16 %v1313
      %v1617 = vunpack.c.l.b16 %v1314
      %v1618 = vunpack.c.l.b16 %v1315
      %v1619 = vunpack.c.l.b16 %v1316
      %v1620 = vunpack.c.l.b16 %v1317
      %v1621 = vunpack.c.l.b16 %v1318
      %v1622 = vunpack.c.l.b16 %v1319
      %v1623 = vunpack.c.l.b16 %v1320
      %v1624 = vunpack.c.l.b16 %v1321
      %v1625 = vunpack.c.l.b16 %v1322
      %v1626 = vunpack.c.l.b16 %v1323
      %v1627 = vunpack.c.l.b16 %v1324
      %v1628 = vunpack.c.l.b16 %v1325
      %v1629 = vunpack.c.l.b16 %v1326
      %v1630 = vunpack.c.l.b16 %v1327
      %v1631 = vunpack.c.l.b16 %v1328
      %v1632 = vunpack.c.l.b16 %v1329
      %v1633 = vunpack.c.l.b16 %v1330
      %v1634 = vunpack.c.l.b16 %v1331
      %v1635 = vunpack.c.l.b16 %v1332
      %v1636 = vunpack.c.l.b16 %v1333
      %v1637 = vunpack.c.l.b16 %v1334
      %v1638 = vunpack.c.l.b16 %v1335
      %v1639 = vunpack.c.l.b16 %v1336
      %v1640 = vunpack.c.l.b16 %v1337
      %v1641 = vunpack.c.l.b16 %v1338
      %v1642 = vunpack.c.l.b16 %v1339
      %v1643 = vunpack.c.l.b16 %v1340
      %v1644 = vunpack.c.l.b16 %v1341
      %v1645 = vunpack.c.l.b16 %v1342
      %v1646 = vunpack.c.l.b16 %v1343
      %v1647 = vunpack.c.l.b16 %v1344
      %v1648 = vunpack.c.l.b16 %v1345
      %v1649 = vunpack.c.l.b16 %v1346
      %v1650 = vunpack.c.l.b16 %v1347
      %v1651 = vunpack.c.l.b16 %v1348
      %v1652 = vunpack.c.l.b16 %v1349
      %v1653 = vunpack.c.l.b16 %v1350
      %v1654 = vunpack.c.l.b16 %v1351
      %v1655 = vunpack.c.l.b16 %v1352
      %v1656 = vunpack.c.l.b16 %v1353
      %v1657 = vunpack.c.l.b16 %v1354
      %v1658 = vunpack.c.l.b16 %v1355
      %v1659 = vunpack.c.l.b16 %v1356
      %v1660 = vunpack.c.l.b16 %v1357
      %v1661 = vunpack.c.l.b16 %v1358
      %v1662 = vunpack.c.l.b16 %v1359
      %v1663 = vunpack.c.l.b16 %v1360
      %v1664 = vunpack.c.l.b16 %v1361
      %v1665 = vunpack.c.l.b16 %v1362
      %v1666 = vunpack.c.l.b16 %v1363
      %v1667 = vunpack.c.l.b16 %v1364
      %v1668 = vunpack.c.l.b16 %v1365
      %v1669 = vunpack.c.l.b16 %v1366
      %v1670 = vunpack.c.l.b16 %v1367
      %v1671 = vunpack.c.l.b16 %v1368
      %v1672 = vunpack.c.l.b16 %v1369
      %v1673 = vunpack.c.l.b16 %v1370
      %v1674 = vunpack.c.l.b16 %v1371
      %v1675 = vunpack.c.l.b16 %v1372
      %v1676 = vunpack.c.l.b16 %v1373
      %v1677 = vunpack.c.l.b16 %v1374
      %v1678 = vpack.c.b16 %v1589, %v1588
      %v1679 = vpack.c.b16 %v1591, %v1590
      %v1680 = vpack.c.b16 %v1593, %v1592
      %v1681 = vpack.c.b16 %v1595, %v1594
      %v1682 = vpack.c.b16 %v1597, %v1596
      %v1683 = vpack.c.b16 %v1599, %v1598
      %v1684 = vpack.c.b16 %v1601, %v1600
      %v1685 = vpack.c.b16 %v1603, %v1602
      %v1686 = vpack.c.b16 %v1605, %v1604
      %v1687 = vpack.c.b16 %v1607, %v1606
      %v1688 = vpack.c.b16 %v1609, %v1608
      %v1689 = vpack.c.b16 %v1611, %v1610
      %v1690 = vpack.c.b16 %v1613, %v1612
      %v1691 = vpack.c.b16 %v1615, %v1614
      %v1692 = vpack.c.b16 %v1617, %v1616
      %v1693 = vpack.c.b16 %v1619, %v1618
      %v1694 = vpack.c.b16 %v1621, %v1620
      %v1695 = vpack.c.b16 %v1623, %v1622
      %v1696 = vpack.c.b16 %v1625, %v1624
      %v1697 = vpack.c.b16 %v1627, %v1626
      %v1698 = vpack.c.b16 %v1629, %v1628
      %v1699 = vpack.c.b16 %v1631, %v1630
      %v1700 = vpack.c.b16 %v1633, %v1632
      %v1701 = vpack.c.b16 %v1635, %v1634
      %v1702 = vpack.c.b16 %v1637, %v1636
      %v1703 = vpack.c.b16 %v1639, %v1638
      %v1704 = vpack.c.b16 %v1641, %v1640
      %v1705 = vpack.c.b16 %v1643, %v1642
      %v1706 = vpack.c.b16 %v1645, %v1644
      %v1707 = vpack.c.b16 %v1647, %v1646
      %v1708 = vpack.c.b16 %v1649, %v1648
      %v1709 = vpack.c.b16 %v1651, %v1650
      %v1710 = vpack.c.b16 %v1653, %v1652
      %v1711 = vpack.c.b16 %v1655, %v1654
      %v1712 = vpack.c.b16 %v1657, %v1656
      %v1713 = vpack.c.b16 %v1659, %v1658
      %v1714 = vpack.c.b16 %v1661, %v1660
      %v1715 = vpack.c.b16 %v1663, %v1662
      %v1716 = vpack.c.b16 %v1665, %v1664
      %v1717 = vpack.c.b16 %v1667, %v1666
      %v1718 = vpack.c.b16 %v1669, %v1668
      %v1719 = vpack.c.b16 %v1671, %v1670
      %v1720 = vpack.c.b16 %v1673, %v1672
      %v1721 = vpack.c.b16 %v1675, %v1674
      %v1722 = vpack.c.b16 %v1677, %v1676
      %vm1768 = vcmask 654336
      %v1770 = vsel %vm1768, %v1459, 0
      %v1773 = vsel %vm1768, %v1465, 0
      %v1776 = vsel %vm1768, %v1471, 0
      %v1779 = vsel %vm1768, %v1477, 0
      %1781 = vmatprep.subr.bf16.mxu0 0
      %1782 = vmatpush1.bf16.msra.mxu0 %v1685
      %1783 = vmatprep.subr.bf16.mxu0 0
      %1784 = vmatpush1.bf16.msra.mxu0 %v1684
      %1785 = vmatprep.subr.bf16.mxu0 0
      %1786 = vmatpush1.bf16.msra.mxu0 %v1683
      %1787 = vmatprep.subr.bf16.mxu0 0
      %1788 = vmatpush1.bf16.msra.mxu0 %v1682
      %1789 = vmatprep.subr.bf16.mxu0 0
      %1790 = vmatpush1.bf16.msra.mxu0 %v1681
      %1791 = vmatprep.subr.bf16.mxu0 0
      %1792 = vmatpush1.bf16.msra.mxu0 %v1680
      %1793 = vmatprep.subr.bf16.mxu0 0
      %1794 = vmatpush1.bf16.msra.mxu0 %v1679
      %1795 = vmatprep.subr.bf16.mxu0 0
      %1796 = vmatpush1.bf16.msra.mxu0 %v1678
      %1797 = vmatprep.subr.bf16.mxu0 0
      %1798 = vmatpush2.bf16.msra.mxu0 %v1693
      %1799 = vmatprep.subr.bf16.mxu0 0
      %1800 = vmatpush2.bf16.msra.mxu0 %v1692
      %1801 = vmatprep.subr.bf16.mxu0 0
      %1802 = vmatpush2.bf16.msra.mxu0 %v1691
      %1803 = vmatprep.subr.bf16.mxu0 0
      %1804 = vmatpush2.bf16.msra.mxu0 %v1690
      %1805 = vmatprep.subr.bf16.mxu0 0
      %1806 = vmatpush2.bf16.msra.mxu0 %v1689
      %1807 = vmatprep.subr.bf16.mxu0 0
      %1808 = vmatpush2.bf16.msra.mxu0 %v1688
      %1809 = vmatprep.subr.bf16.mxu0 0
      %1810 = vmatpush2.bf16.msra.mxu0 %v1687
      %1811 = vmatprep.subr.bf16.mxu0 0
      %1812 = vmatpush2.bf16.msra.mxu0 %v1686
      %1813 = vmatprep.mubr.bf16.mxu0 %v1455
      %1814 = vmatmul.mubr.bf16.gmra.mxu0 %v1454
      %v1815 = vpop.f32.mrf.mxu0
      %v1816 = vadd.f32 %v1380, %v1815
      %v1817 = vpop.f32.mrf.mxu0
      %v1818 = vpop.f32.mrf.mxu0
      %v1819 = vadd.f32 %v1380, %v1818
      %v1820 = vpop.f32.mrf.mxu0
      %1821 = vmatprep.mubr.bf16.mxu0 %v1461
      %1822 = vmatmul.mubr.bf16.gmra.mxu0 %v1460
      %v1823 = vpop.f32.mrf.mxu0
      %v1824 = vadd.f32 %v1380, %v1823
      %v1825 = vpop.f32.mrf.mxu0
      %v1826 = vpop.f32.mrf.mxu0
      %v1827 = vadd.f32 %v1380, %v1826
      %v1828 = vpop.f32.mrf.mxu0
      %1829 = vmatprep.mubr.bf16.mxu0 %v1467
      %1830 = vmatmul.mubr.bf16.gmra.mxu0 %v1466
      %v1831 = vpop.f32.mrf.mxu0
      %v1832 = vadd.f32 %v1380, %v1831
      %v1833 = vpop.f32.mrf.mxu0
      %v1834 = vpop.f32.mrf.mxu0
      %v1835 = vadd.f32 %v1380, %v1834
      %v1836 = vpop.f32.mrf.mxu0
      %1837 = vmatprep.mubr.bf16.mxu0 %v1473
      %1838 = vmatmul.mubr.bf16.gmra.mxu0 %v1472
      %v1839 = vpop.f32.mrf.mxu0
      %v1840 = vadd.f32 %v1380, %v1839
      %v1841 = vpop.f32.mrf.mxu0
      %v1842 = vpop.f32.mrf.mxu0
      %v1843 = vadd.f32 %v1380, %v1842
      %v1844 = vpop.f32.mrf.mxu0
      %1845 = vdwg.mxu0
      %1846 = vmatprep.subr.bf16.mxu0 0
      %1847 = vmatpush1.bf16.msra.mxu0 %v1701
      %1848 = vmatprep.subr.bf16.mxu0 0
      %1849 = vmatpush1.bf16.msra.mxu0 %v1700
      %1850 = vmatprep.subr.bf16.mxu0 0
      %1851 = vmatpush1.bf16.msra.mxu0 %v1699
      %1852 = vmatprep.subr.bf16.mxu0 0
      %1853 = vmatpush1.bf16.msra.mxu0 %v1698
      %1854 = vmatprep.subr.bf16.mxu0 0
      %1855 = vmatpush1.bf16.msra.mxu0 %v1697
      %1856 = vmatprep.subr.bf16.mxu0 0
      %1857 = vmatpush1.bf16.msra.mxu0 %v1696
      %1858 = vmatprep.subr.bf16.mxu0 0
      %1859 = vmatpush1.bf16.msra.mxu0 %v1695
      %1860 = vmatprep.subr.bf16.mxu0 0
      %1861 = vmatpush1.bf16.msra.mxu0 %v1694
      %1862 = vmatprep.subr.bf16.mxu0 0
      %1863 = vmatpush2.bf16.msra.mxu0 %v1709
      %1864 = vmatprep.subr.bf16.mxu0 0
      %1865 = vmatpush2.bf16.msra.mxu0 %v1708
      %1866 = vmatprep.subr.bf16.mxu0 0
      %1867 = vmatpush2.bf16.msra.mxu0 %v1707
      %1868 = vmatprep.subr.bf16.mxu0 0
      %1869 = vmatpush2.bf16.msra.mxu0 %v1706
      %1870 = vmatprep.subr.bf16.mxu0 0
      %1871 = vmatpush2.bf16.msra.mxu0 %v1705
      %1872 = vmatprep.subr.bf16.mxu0 0
      %1873 = vmatpush2.bf16.msra.mxu0 %v1704
      %1874 = vmatprep.subr.bf16.mxu0 0
      %1875 = vmatpush2.bf16.msra.mxu0 %v1703
      %1876 = vmatprep.subr.bf16.mxu0 0
      %1877 = vmatpush2.bf16.msra.mxu0 %v1702
      %1878 = vmatprep.mubr.bf16.mxu0 %v1457
      %1879 = vmatmul.mubr.bf16.gmra.mxu0 %v1456
      %v1880 = vpop.f32.mrf.mxu0
      %v1881 = vadd.f32 %v1816, %v1880
      %v1882 = vpop.f32.mrf.mxu0
      %v1883 = vpop.f32.mrf.mxu0
      %v1884 = vadd.f32 %v1819, %v1883
      %v1885 = vpop.f32.mrf.mxu0
      %1886 = vmatprep.mubr.bf16.mxu0 %v1463
      %1887 = vmatmul.mubr.bf16.gmra.mxu0 %v1462
      %v1888 = vpop.f32.mrf.mxu0
      %v1889 = vadd.f32 %v1824, %v1888
      %v1890 = vpop.f32.mrf.mxu0
      %v1891 = vpop.f32.mrf.mxu0
      %v1892 = vadd.f32 %v1827, %v1891
      %v1893 = vpop.f32.mrf.mxu0
      %1894 = vmatprep.mubr.bf16.mxu0 %v1469
      %1895 = vmatmul.mubr.bf16.gmra.mxu0 %v1468
      %v1896 = vpop.f32.mrf.mxu0
      %v1897 = vadd.f32 %v1832, %v1896
      %v1898 = vpop.f32.mrf.mxu0
      %v1899 = vpop.f32.mrf.mxu0
      %v1900 = vadd.f32 %v1835, %v1899
      %v1901 = vpop.f32.mrf.mxu0
      %1902 = vmatprep.mubr.bf16.mxu0 %v1475
      %1903 = vmatmul.mubr.bf16.gmra.mxu0 %v1474
      %v1904 = vpop.f32.mrf.mxu0
      %v1905 = vadd.f32 %v1840, %v1904
      %v1906 = vpop.f32.mrf.mxu0
      %v1907 = vpop.f32.mrf.mxu0
      %v1908 = vadd.f32 %v1843, %v1907
      %v1909 = vpop.f32.mrf.mxu0
      %1910 = vdwg.mxu0
      %1911 = vmatprep.subr.bf16.mxu0 0
      %1912 = vmatpush1.bf16.msra.mxu0 %v1717
      %1913 = vmatprep.subr.bf16.mxu0 0
      %1914 = vmatpush1.bf16.msra.mxu0 %v1716
      %1915 = vmatprep.subr.bf16.mxu0 0
      %1916 = vmatpush1.bf16.msra.mxu0 %v1715
      %1917 = vmatprep.subr.bf16.mxu0 0
      %1918 = vmatpush1.bf16.msra.mxu0 %v1714
      %1919 = vmatprep.subr.bf16.mxu0 0
      %1920 = vmatpush1.bf16.msra.mxu0 %v1713
      %1921 = vmatprep.subr.bf16.mxu0 0
      %1922 = vmatpush1.bf16.msra.mxu0 %v1712
      %1923 = vmatprep.subr.bf16.mxu0 0
      %1924 = vmatpush1.bf16.msra.mxu0 %v1711
      %1925 = vmatprep.subr.bf16.mxu0 0
      %1926 = vmatpush1.bf16.msra.mxu0 %v1710
      %1927 = vmatprep.subr.bf16.mxu0 0
      %1928 = vmatpush2.bf16.msra.mxu0 0
      %1929 = vmatprep.subr.bf16.mxu0 0
      %1930 = vmatpush2.bf16.msra.mxu0 0
      %1931 = vmatprep.subr.bf16.mxu0 0
      %1932 = vmatpush2.bf16.msra.mxu0 0
      %1933 = vmatprep.subr.bf16.mxu0 0
      %1934 = vmatpush2.bf16.msra.mxu0 %v1722
      %1935 = vmatprep.subr.bf16.mxu0 0
      %1936 = vmatpush2.bf16.msra.mxu0 %v1721
      %1937 = vmatprep.subr.bf16.mxu0 0
      %1938 = vmatpush2.bf16.msra.mxu0 %v1720
      %1939 = vmatprep.subr.bf16.mxu0 0
      %1940 = vmatpush2.bf16.msra.mxu0 %v1719
      %1941 = vmatprep.subr.bf16.mxu0 0
      %1942 = vmatpush2.bf16.msra.mxu0 %v1718
      %1943 = vmatprep.mubr.bf16.mxu0 %v1770
      %1944 = vmatmul.mubr.bf16.gmra.mxu0 %v1458
      %v1945 = vpop.f32.mrf.mxu0
      %v1946 = vadd.f32 %v1881, %v1945
      %v1947 = vpop.f32.mrf.mxu0
      %v1948 = vpop.f32.mrf.mxu0
      %v1949 = vadd.f32 %v1884, %v1948
      %v1950 = vpop.f32.mrf.mxu0
      %1951 = vmatprep.mubr.bf16.mxu0 %v1773
      %1952 = vmatmul.mubr.bf16.gmra.mxu0 %v1464
      %v1953 = vpop.f32.mrf.mxu0
      %v1954 = vadd.f32 %v1889, %v1953
      %v1955 = vpop.f32.mrf.mxu0
      %v1956 = vpop.f32.mrf.mxu0
      %v1957 = vadd.f32 %v1892, %v1956
      %v1958 = vpop.f32.mrf.mxu0
      %1959 = vmatprep.mubr.bf16.mxu0 %v1776
      %1960 = vmatmul.mubr.bf16.gmra.mxu0 %v1470
      %v1961 = vpop.f32.mrf.mxu0
      %v1962 = vadd.f32 %v1897, %v1961
      %v1963 = vpop.f32.mrf.mxu0
      %v1964 = vpop.f32.mrf.mxu0
      %v1965 = vadd.f32 %v1900, %v1964
      %v1966 = vpop.f32.mrf.mxu0
      %1967 = vmatprep.mubr.bf16.mxu0 %v1779
      %1968 = vmatmul.mubr.bf16.gmra.mxu0 %v1476
      %v1969 = vpop.f32.mrf.mxu0
      %v1970 = vadd.f32 %v1905, %v1969
      %v1971 = vpop.f32.mrf.mxu0
      %v1972 = vpop.f32.mrf.mxu0
      %v1973 = vadd.f32 %v1908, %v1972
      %v1974 = vpop.f32.mrf.mxu0
      %1975 = vdwg.mxu0
      %v1976 = vpack.c.bf16 %v1949, %v1946
      %v1977 = vpack.c.bf16 %v1957, %v1954
      %v1978 = vpack.c.bf16 %v1965, %v1962
      %v1979 = vpack.c.bf16 %v1973, %v1970
      %v1984 = vunpack.c.l.b16 %v1976
      %v1985 = vunpack.c.h.b16 %v1976
      %v1986 = vunpack.c.l.b16 %v1977
      %v1987 = vunpack.c.h.b16 %v1977
      %v1988 = vunpack.c.l.b16 %v1978
      %v1989 = vunpack.c.h.b16 %v1978
      %v1990 = vunpack.c.l.b16 %v1979
      %v1991 = vunpack.c.h.b16 %v1979
      %v1992 = vpack.c.b16 %v1984, %v1984
      %v1993 = vpack.c.b16 %v1985, %v1985
      %v1994 = vpack.c.b16 %v1986, %v1986
      %v1995 = vpack.c.b16 %v1987, %v1987
      %v1996 = vpack.c.b16 %v1988, %v1988
      %v1997 = vpack.c.b16 %v1989, %v1989
      %v1998 = vpack.c.b16 %v1990, %v1990
      %v1999 = vpack.c.b16 %v1991, %v1991
      %2008 = vst [vmem:[%s289] sm:$0xf] %v1992
      %2009 = vst [vmem:[%s289 + $0x4] sm:$0xf] %v1993
      %2010 = vst [vmem:[%s289 + $0x8] sm:$0xf] %v1994
      %2011 = vst [vmem:[%s289 + $0xc] sm:$0xf] %v1995
      %2012 = vst [vmem:[%s289 + $0x10] sm:$0xf] %v1996
      %2013 = vst [vmem:[%s289 + $0x14] sm:$0xf] %v1997
      %2014 = vst [vmem:[%s289 + $0x18] sm:$0xf] %v1998
      %2015 = vst [vmem:[%s289 + $0x1c] sm:$0xf] %v1999
      %v2016 = vadd.f32 %v1946, %v1949
      %v2017 = vadd.f32 %v2016, %v1954
      %v2018 = vadd.f32 %v2017, %v1957
      %v2019 = vadd.f32 %v2018, %v1962
      %v2020 = vadd.f32 %v2019, %v1965
      %v2021 = vadd.f32 %v2020, %v1970
      %v2022 = vadd.f32 %v2021, %v1973
      %v2023 = vrot.slane %v2022, 4
      %v2024 = vadd.f32 %v2022, %v2023
      %v2025 = vrot.slane %v2024, 2
      %v2026 = vadd.f32 %v2024, %v2025
      %v2027 = vrot.slane %v2026, 1
      %v2028 = vadd.f32 %v2026, %v2027
      %2029 = vst [vmem:[%s296] sm:$0x1] %v2028
      %v2030 = vmul.f32 %v1946, %v1946
      %v2031 = vmul.f32 %v1949, %v1949
      %v2032 = vmul.f32 %v1954, %v1954
      %v2033 = vmul.f32 %v1957, %v1957
      %v2034 = vmul.f32 %v1962, %v1962
      %v2035 = vmul.f32 %v1965, %v1965
      %v2036 = vmul.f32 %v1970, %v1970
      %v2037 = vmul.f32 %v1973, %v1973
      %v2038 = vadd.f32 %v2030, %v2031
      %v2039 = vadd.f32 %v2038, %v2032
      %v2040 = vadd.f32 %v2039, %v2033
      %v2041 = vadd.f32 %v2040, %v2034
      %v2042 = vadd.f32 %v2041, %v2035
      %v2043 = vadd.f32 %v2042, %v2036
      %v2044 = vadd.f32 %v2043, %v2037
      %v2045 = vrot.slane %v2044, 4
      %v2046 = vadd.f32 %v2044, %v2045
      %v2047 = vrot.slane %v2046, 2
      %v2048 = vadd.f32 %v2046, %v2047
      %v2049 = vrot.slane %v2048, 1
      %v2050 = vadd.f32 %v2048, %v2049
      %2051 = vst [vmem:[%s296 + $0x1] sm:$0x1] %v2050
      %p2052 = scmp.lt.s32.totalorder %s21, 1
      %s2053 = scalar_select %p2052, %s21, 1
      %p2054 = scmp.lt.s32.totalorder %s22, 0
      %s2055 = scalar_select %p2054, %s22, 0
      %s2056 = smul.addr %s2055, 8
      %s2057 = smul.addr %s2053, 8
      %s2058 = sadd.s32 %s2056, %s2057
      %s2059 = smul.addr %s2058, 4
      %s2060 = scalar_lea.vmem %s4, %s2059
      %p2061 = scmp.lt.s32.totalorder %s21, 1
      %s2062 = scalar_select %p2061, %s21, 1
      %p2063 = scmp.lt.s32.totalorder %s22, 0
      %s2064 = scalar_select %p2063, %s22, 0
      %s2065 = sadd.s32 %s2064, %s2062
      %s2066 = smul.addr %s2065, 2
      %s2067 = scalar_lea.vmem %s5, %s2066
      // Predicated region
      $region37: #{double_conv3d.3} parent=35 // pred_check
        %p2068 = pneg %p145
      $region38: #{double_conv3d.3} parent=35 // pred_check_branch
        %2070 = sbr.rel (%p2068) target = $region40
      $region39: #{double_conv3d.3} parent=35 // pred_region
        _
      $region40: #{double_conv3d.3} parent=35 // pred_fallthru
        _
      // Predicated region
      $region41: #{double_conv3d.3} parent=35 // pred_check
        %p2071 = pneg %p173
      $region42: #{double_conv3d.3} parent=35 // pred_check_branch
        %2073 = sbr.rel (%p2071) target = $region44
      $region43: #{double_conv3d.3} parent=35 // pred_region
        _
      $region44: #{double_conv3d.3} parent=35 // pred_fallthru
        _
    $region36: #{double_conv3d.3} parent=5 // pred_fallthru
      _
    %p2074 = scmp.le.s32.totalorder 2, %s12
    // Predicated region
    $region45: #{double_conv3d.3} parent=5 // pred_check
      %p2075 = pneg %p2074
    $region46: #{double_conv3d.3} parent=5 // pred_check_branch
      %2077 = sbr.rel (%p2075) target = $region48
    $region47: #{double_conv3d.3} parent=5 // pred_region
      %s2078 = ssub.s32 %s12, 2
      // Predicated region
      $region49: #{double_conv3d.3} parent=47 // pred_check
        %p2079 = pneg %p151
      $region50: #{double_conv3d.3} parent=47 // pred_check_branch
        %2081 = sbr.rel (%p2079) target = $region52
      $region51: #{double_conv3d.3} parent=47 // pred_region
        %p2082 = scmp.lt.s32.totalorder %s23, 1
        %s2083 = scalar_select %p2082, %s23, 1
        %p2084 = scmp.lt.s32.totalorder %s24, 0
        %s2085 = scalar_select %p2084, %s24, 0
        %s2086 = smul.addr %s2085, 8
        %s2087 = smul.addr %s2083, 8
        %s2088 = sadd.s32 %s2086, %s2087
        %s2089 = smul.addr %s2088, 4
        %s2090 = scalar_lea.vmem %s4, %s2089
      $region52: #{double_conv3d.3} parent=47 // pred_fallthru
        _
      // Predicated region
      $region53: #{double_conv3d.3} parent=47 // pred_check
        %p2091 = pneg %p179
      $region54: #{double_conv3d.3} parent=47 // pred_check_branch
        %2093 = sbr.rel (%p2091) target = $region56
      $region55: #{double_conv3d.3} parent=47 // pred_region
        %p2094 = scmp.lt.s32.totalorder %s23, 1
        %s2095 = scalar_select %p2094, %s23, 1
        %p2096 = scmp.lt.s32.totalorder %s24, 0
        %s2097 = scalar_select %p2096, %s24, 0
        %s2098 = sadd.s32 %s2097, %s2095
        %s2099 = smul.addr %s2098, 2
        %s2100 = scalar_lea.vmem %s5, %s2099
      $region56: #{double_conv3d.3} parent=47 // pred_fallthru
        _
    $region48: #{double_conv3d.3} parent=5 // pred_fallthru
      _
  $region6: #{double_conv3d.3} parent=0 // loop_footer
    %s16 = sadd.s32 1, %s12
  $region7: #{double_conv3d.3} parent=0 // loop_footer_branch
    %11 = sbr.rel target = $region3
  $region8: #{double_conv3d.3} parent=0 // loop_exit
    _

// kernel: squeeze.4
$region0: #{squeeze.4}
  %s0 = inlined_call_operand.vmem [shape: f32[2,16], index: 0, kind: input, shape index: {}]
  %s1 = inlined_call_operand.vmem [shape: f32[2,8,2], index: 1, kind: output, shape index: {}]
  $region1: #{squeeze.4} parent=0
    #allocation0 [shape = 'u8[4096]{0}', space=vmem, size = 0x1000, scoped, tag = 'scoped mem for input reshape']
    %s3 = sshll.u32 1, 2
    %s4 = ssub.s32 %s3, 1
    %v5 = vld [vmem:[%s0] sm:%s4]
    %6 = vst [vmem:[#allocation0] sm:%s4] %v5
    %v7 = vld [vmem:[#allocation0] sm:$0x3]
    %vm8 = vcmask 15360
    %9 = vst.msk [vmem:[%s1] ss:$8 sm:$0x3] %vm8, %v7
    %v10 = vld [vmem:[#allocation0] sm:$0x3]
    %11 = vrot.lane.b32.xlu0 %v10, 126
    %v12 = vpop.permute.xlu0 %11
    %vm13 = vcmask 15360
    %s14 = scalar_lea.vmem %s1, 1
    %15 = vst.msk [vmem:[%s14] ss:$8 sm:$0x3] %vm13, %v12
    %v16 = vld [vmem:[#allocation0] sm:$0x3]
    %17 = vrot.lane.b32.xlu0 %v16, 124
    %v18 = vpop.permute.xlu0 %17
    %vm19 = vcmask 15360
    %s20 = scalar_lea.vmem %s1, 2
    %21 = vst.msk [vmem:[%s20] ss:$8 sm:$0x3] %vm19, %v18
    %v22 = vld [vmem:[#allocation0] sm:$0x3]
    %23 = vrot.lane.b32.xlu0 %v22, 122
    %v24 = vpop.permute.xlu0 %23
    %vm25 = vcmask 15360
    %s26 = scalar_lea.vmem %s1, 3
    %27 = vst.msk [vmem:[%s26] ss:$8 sm:$0x3] %vm25, %v24
    %v28 = vld [vmem:[#allocation0] sm:$0x3]
    %29 = vrot.lane.b32.xlu0 %v28, 120
    %v30 = vpop.permute.xlu0 %29
    %vm31 = vcmask 15360
    %s32 = scalar_lea.vmem %s1, 4
    %33 = vst.msk [vmem:[%s32] ss:$8 sm:$0x3] %vm31, %v30
    %v34 = vld [vmem:[#allocation0] sm:$0x3]
    %35 = vrot.lane.b32.xlu0 %v34, 118
    %v36 = vpop.permute.xlu0 %35
    %vm37 = vcmask 15360
    %s38 = scalar_lea.vmem %s1, 5
    %39 = vst.msk [vmem:[%s38] ss:$8 sm:$0x3] %vm37, %v36
    %v40 = vld [vmem:[#allocation0] sm:$0x3]
    %41 = vrot.lane.b32.xlu0 %v40, 116
    %v42 = vpop.permute.xlu0 %41
    %vm43 = vcmask 15360
    %s44 = scalar_lea.vmem %s1, 6
    %45 = vst.msk [vmem:[%s44] ss:$8 sm:$0x3] %vm43, %v42
    %v46 = vld [vmem:[#allocation0] sm:$0x3]
    %47 = vrot.lane.b32.xlu0 %v46, 114
    %v48 = vpop.permute.xlu0 %47
    %vm49 = vcmask 15360
    %s50 = scalar_lea.vmem %s1, 7
    %51 = vst.msk [vmem:[%s50] ss:$8 sm:$0x3] %vm49, %v48

// kernel: double_conv3d.4
$region0: #{double_conv3d.4}
  #allocation0 [shape = 'u32[]', space=smem, size = 0x4, offset = 0x4, fixed_abs, tag = 'smem constant byte address 0x4 - core index']
  #allocation1 [shape = 'u32[144,128]{1,0:T(1,128)}', space=vmem, size = 0x12000, scoped, tag = 'internal scratch']
  #allocation2 [shape = 'bf16[10,10,160]{2,1,0:T(8,128)(2,1)}', space=vmem, size = 0x14000, scoped, tag = 'scratch operand']
  #allocation3 [shape = 'bf16[64,1440]{1,0:T(8,128)(2,1)}', space=vmem, size = 0x30000, scoped, tag = 'scratch operand']
  %s0 = inlined_call_operand.vmem [shape: f32[2,2,160], index: 0, kind: input, shape index: {}]
  %s1 = inlined_call_operand.vmem [shape: bf16[2,1,10,10,160], index: 1, kind: input, shape index: {}]
  %s2 = inlined_call_operand.vmem [shape: bf16[1440,128], index: 2, kind: input, shape index: {}]
  %s3 = inlined_call_operand.vmem [shape: f32[1,128], index: 3, kind: input, shape index: {}]
  %s4 = inlined_call_operand.vmem [shape: bf16[2,1,64,128], index: 4, kind: output, shape index: {0}]
  %s5 = inlined_call_operand.vmem [shape: f32[2,1,2,128], index: 5, kind: output, shape index: {1}]
  %6 = xla_tuple %s4, %s5
  %s7 = sld [smem:[#allocation0]]
  $region57: #{double_conv3d.4} parent=0
    _
  %s9 = ssub.s32 1, %s7
  %s10 = scalar_select 0, %s9, %s7
  loop: start=0, step=1, limit=4
  $region2: #{double_conv3d.4} parent=0 // loop_pre_header
    _
  $region3: #{double_conv3d.4} parent=0 // loop_header
    %s12 = sphi 0, %s16
    %p13 = scmp.ge.s32.totalorder %s12, 4
    %s19 = sphi 0, %s31
    %s20 = sphi 0, %s27
    %s21 = sphi 0, %s19
    %s22 = sphi 0, %s20
    %s23 = sphi 0, %s21
    %s24 = sphi 0, %s22
    %s34 = sphi 0, %s36
    %s37 = sphi 0, %s34
    %s38 = sphi 0, %s37
    %s54 = sphi 0, %s38
    %s62 = sphi 0, %s64
    %s65 = sphi 0, %s62
    %s66 = sphi 0, %s65
    %s82 = sphi 0, %s66
    %s86 = sphi 0, %s86
    %s88 = sphi 0, %s86
    %s89 = sphi 0, %s88
    %s103 = sphi 0, %s89
    %s107 = sphi 0, %s107
    %s109 = sphi 0, %s107
    %s110 = sphi 0, %s109
    %s124 = sphi 0, %s110
    %s132 = sphi 0, %s134
    %s135 = sphi 0, %s132
    %s136 = sphi 0, %s135
    %s152 = sphi 0, %s136
    %s160 = sphi 0, %s162
    %s163 = sphi 0, %s160
    %s164 = sphi 0, %s163
    %s180 = sphi 0, %s164
  $region4: #{double_conv3d.4} parent=0 // loop_header_branch
    %15 = sbr.rel (%p13) target = $region8
  $region5: #{double_conv3d.4} parent=0 // loop_body
    %s17 = ssub.s32 %s12, 1
    %s18 = ssub.s32 %s12, 2
    %s25 = sadd.s32 1, %s20
    %p26 = scmp.ge.s32.totalorder %s25, 1
    %s27 = scalar_select %p26, 0, %s25
    %s28 = sadd.s32 1, %s19
    %s29 = scalar_select %p26, %s28, %s19
    %p30 = scmp.ge.s32.totalorder %s29, 2
    %s31 = scalar_select %p30, 0, %s29
    %s32 = ssub.s32 %s19, %s31
    %p33 = scmp.eq.s32.totalorder %s32, 0
    %s35 = sadd.s32 %s34, 1
    %s36 = scalar_select %p33, %s34, %s35
    %p39 = pneg %p33
    %p40 = scmp.eq.s32.totalorder %s12, 1
    %p41 = por %p39, %p40
    %p42 = scmp.ne.s32.totalorder %s34, %s37
    %p43 = scmp.eq.s32.totalorder %s12, 0
    %p44 = por %p42, %p43
    %p45 = scmp.ne.s32.totalorder %s34, %s37
    %p46 = scmp.eq.s32.totalorder %s17, 1
    %p47 = por %p45, %p46
    %p48 = scmp.ne.s32.totalorder %s37, %s38
    %p49 = scmp.eq.s32.totalorder %s17, 0
    %p50 = por %p48, %p49
    %p51 = scmp.ne.s32.totalorder %s37, %s38
    %p52 = scmp.eq.s32.totalorder %s18, 1
    %p53 = por %p51, %p52
    %p55 = scmp.ne.s32.totalorder %s38, %s54
    %p56 = scmp.eq.s32.totalorder %s18, 0
    %p57 = por %p55, %p56
    %s58 = ssub.s32 %s19, %s31
    %s59 = ssub.s32 %s20, %s27
    %s60 = sor.u32 %s58, %s59
    %p61 = scmp.eq.s32.totalorder %s60, 0
    %s63 = sadd.s32 %s62, 1
    %s64 = scalar_select %p61, %s62, %s63
    %p67 = pneg %p61
    %p68 = scmp.eq.s32.totalorder %s12, 1
    %p69 = por %p67, %p68
    %p70 = scmp.ne.s32.totalorder %s62, %s65
    %p71 = scmp.eq.s32.totalorder %s12, 0
    %p72 = por %p70, %p71
    %p73 = scmp.ne.s32.totalorder %s62, %s65
    %p74 = scmp.eq.s32.totalorder %s17, 1
    %p75 = por %p73, %p74
    %p76 = scmp.ne.s32.totalorder %s65, %s66
    %p77 = scmp.eq.s32.totalorder %s17, 0
    %p78 = por %p76, %p77
    %p79 = scmp.ne.s32.totalorder %s65, %s66
    %p80 = scmp.eq.s32.totalorder %s18, 1
    %p81 = por %p79, %p80
    %p83 = scmp.ne.s32.totalorder %s66, %s82
    %p84 = scmp.eq.s32.totalorder %s18, 0
    %p85 = por %p83, %p84
    %s87 = sadd.s32 %s86, 1
    %p90 = scmp.eq.s32.totalorder %s12, 1
    %p91 = scmp.ne.s32.totalorder %s86, %s88
    %p92 = scmp.eq.s32.totalorder %s12, 0
    %p93 = por %p91, %p92
    %p94 = scmp.ne.s32.totalorder %s86, %s88
    %p95 = scmp.eq.s32.totalorder %s17, 1
    %p96 = por %p94, %p95
    %p97 = scmp.ne.s32.totalorder %s88, %s89
    %p98 = scmp.eq.s32.totalorder %s17, 0
    %p99 = por %p97, %p98
    %p100 = scmp.ne.s32.totalorder %s88, %s89
    %p101 = scmp.eq.s32.totalorder %s18, 1
    %p102 = por %p100, %p101
    %p104 = scmp.ne.s32.totalorder %s89, %s103
    %p105 = scmp.eq.s32.totalorder %s18, 0
    %p106 = por %p104, %p105
    %s108 = sadd.s32 %s107, 1
    %p111 = scmp.eq.s32.totalorder %s12, 1
    %p112 = scmp.ne.s32.totalorder %s107, %s109
    %p113 = scmp.eq.s32.totalorder %s12, 0
    %p114 = por %p112, %p113
    %p115 = scmp.ne.s32.totalorder %s107, %s109
    %p116 = scmp.eq.s32.totalorder %s17, 1
    %p117 = por %p115, %p116
    %p118 = scmp.ne.s32.totalorder %s109, %s110
    %p119 = scmp.eq.s32.totalorder %s17, 0
    %p120 = por %p118, %p119
    %p121 = scmp.ne.s32.totalorder %s109, %s110
    %p122 = scmp.eq.s32.totalorder %s18, 1
    %p123 = por %p121, %p122
    %p125 = scmp.ne.s32.totalorder %s110, %s124
    %p126 = scmp.eq.s32.totalorder %s18, 0
    %p127 = por %p125, %p126
    %s128 = ssub.s32 %s19, %s31
    %s129 = ssub.s32 %s20, %s27
    %s130 = sor.u32 %s128, %s129
    %p131 = scmp.eq.s32.totalorder %s130, 0
    %s133 = sadd.s32 %s132, 1
    %s134 = scalar_select %p131, %s132, %s133
    %p137 = pneg %p131
    %p138 = scmp.eq.s32.totalorder %s12, 1
    %p139 = por %p137, %p138
    %p140 = scmp.ne.s32.totalorder %s132, %s135
    %p141 = scmp.eq.s32.totalorder %s12, 0
    %p142 = por %p140, %p141
    %p143 = scmp.ne.s32.totalorder %s132, %s135
    %p144 = scmp.eq.s32.totalorder %s17, 1
    %p145 = por %p143, %p144
    %p146 = scmp.ne.s32.totalorder %s135, %s136
    %p147 = scmp.eq.s32.totalorder %s17, 0
    %p148 = por %p146, %p147
    %p149 = scmp.ne.s32.totalorder %s135, %s136
    %p150 = scmp.eq.s32.totalorder %s18, 1
    %p151 = por %p149, %p150
    %p153 = scmp.ne.s32.totalorder %s136, %s152
    %p154 = scmp.eq.s32.totalorder %s18, 0
    %p155 = por %p153, %p154
    %s156 = ssub.s32 %s19, %s31
    %s157 = ssub.s32 %s20, %s27
    %s158 = sor.u32 %s156, %s157
    %p159 = scmp.eq.s32.totalorder %s158, 0
    %s161 = sadd.s32 %s160, 1
    %s162 = scalar_select %p159, %s160, %s161
    %p165 = pneg %p159
    %p166 = scmp.eq.s32.totalorder %s12, 1
    %p167 = por %p165, %p166
    %p168 = scmp.ne.s32.totalorder %s160, %s163
    %p169 = scmp.eq.s32.totalorder %s12, 0
    %p170 = por %p168, %p169
    %p171 = scmp.ne.s32.totalorder %s160, %s163
    %p172 = scmp.eq.s32.totalorder %s17, 1
    %p173 = por %p171, %p172
    %p174 = scmp.ne.s32.totalorder %s163, %s164
    %p175 = scmp.eq.s32.totalorder %s17, 0
    %p176 = por %p174, %p175
    %p177 = scmp.ne.s32.totalorder %s163, %s164
    %p178 = scmp.eq.s32.totalorder %s18, 1
    %p179 = por %p177, %p178
    %p181 = scmp.ne.s32.totalorder %s164, %s180
    %p182 = scmp.eq.s32.totalorder %s18, 0
    %p183 = por %p181, %p182
    %p184 = scmp.le.s32.totalorder 1, %s12
    %p185 = scmp.lt.s32.totalorder %s12, 3
    %p186 = pnand %p184, %p185
    %p187 = pneg %p186
    // Predicated region
    $region9: #{double_conv3d.4} parent=5 // pred_check
      _
    $region10: #{double_conv3d.4} parent=5 // pred_check_branch
      %189 = sbr.rel (%p186) target = $region12
    $region11: #{double_conv3d.4} parent=5 // pred_region
      %s190 = ssub.s32 %s12, 1
      // Predicated region
      $region13: #{double_conv3d.4} parent=11 // pred_check
        %p191 = pneg %p99
      $region14: #{double_conv3d.4} parent=11 // pred_check_branch
        %193 = sbr.rel (%p191) target = $region16
      $region15: #{double_conv3d.4} parent=11 // pred_region
        _
      $region16: #{double_conv3d.4} parent=11 // pred_fallthru
        _
      // Predicated region
      $region17: #{double_conv3d.4} parent=11 // pred_check
        %p194 = pneg %p120
      $region18: #{double_conv3d.4} parent=11 // pred_check_branch
        %196 = sbr.rel (%p194) target = $region20
      $region19: #{double_conv3d.4} parent=11 // pred_region
        _
      $region20: #{double_conv3d.4} parent=11 // pred_fallthru
        _
    $region12: #{double_conv3d.4} parent=5 // pred_fallthru
      _
    %p197 = scmp.lt.s32.totalorder %s12, 2
    // Predicated region
    $region21: #{double_conv3d.4} parent=5 // pred_check
      %p198 = pneg %p197
    $region22: #{double_conv3d.4} parent=5 // pred_check_branch
      %200 = sbr.rel (%p198) target = $region24
    $region23: #{double_conv3d.4} parent=5 // pred_region
      // Predicated region
      $region25: #{double_conv3d.4} parent=23 // pred_check
        %p201 = pneg %p44
      $region26: #{double_conv3d.4} parent=23 // pred_check_branch
        %203 = sbr.rel (%p201) target = $region28
      $region27: #{double_conv3d.4} parent=23 // pred_region
        %p204 = scmp.lt.s32.totalorder %s19, 1
        %s205 = scalar_select %p204, %s19, 1
        %s206 = smul.addr %s205, 2
        %s207 = smul.addr %s206, 2
        %s208 = scalar_lea.vmem %s0, %s207
      $region28: #{double_conv3d.4} parent=23 // pred_fallthru
        _
      // Predicated region
      $region29: #{double_conv3d.4} parent=23 // pred_check
        %p209 = pneg %p72
      $region30: #{double_conv3d.4} parent=23 // pred_check_branch
        %211 = sbr.rel (%p209) target = $region32
      $region31: #{double_conv3d.4} parent=23 // pred_region
        %p212 = scmp.lt.s32.totalorder %s19, 1
        %s213 = scalar_select %p212, %s19, 1
        %p214 = scmp.lt.s32.totalorder %s20, 0
        %s215 = scalar_select %p214, %s20, 0
        %s216 = smul.addr %s215, 40
        %s217 = smul.addr %s213, 40
        %s218 = sadd.s32 %s216, %s217
        %s219 = smul.addr %s218, 4
        %s220 = scalar_lea.vmem %s1, %s219
      $region32: #{double_conv3d.4} parent=23 // pred_fallthru
        _
    $region24: #{double_conv3d.4} parent=5 // pred_fallthru
      _
    %p221 = scmp.le.s32.totalorder 1, %s12
    %p222 = scmp.lt.s32.totalorder %s12, 3
    %p223 = pnand %p221, %p222
    %p224 = pneg %p223
    // Predicated region
    $region33: #{double_conv3d.4} parent=5 // pred_check
      _
    $region34: #{double_conv3d.4} parent=5 // pred_check_branch
      %226 = sbr.rel (%p223) target = $region36
    $region35: #{double_conv3d.4} parent=5 // pred_region
      %s227 = ssub.s32 %s12, 1
      %p228 = scmp.lt.s32.totalorder %s21, 1
      %s229 = scalar_select %p228, %s21, 1
      %s230 = smul.addr %s229, 2
      %s231 = smul.addr %s230, 2
      %s232 = scalar_lea.vmem %s0, %s231
      %p233 = pneg %p50
      %p234 = pneg %p47
      %p235 = scmp.lt.s32.totalorder %s21, 1
      %s236 = scalar_select %p235, %s21, 1
      %p237 = scmp.lt.s32.totalorder %s22, 0
      %s238 = scalar_select %p237, %s22, 0
      %s239 = smul.addr %s238, 40
      %s240 = smul.addr %s236, 40
      %s241 = sadd.s32 %s239, %s240
      %s242 = smul.addr %s241, 4
      %s243 = scalar_lea.vmem %s1, %s242
      %p244 = pneg %p78
      %p245 = pneg %p75
      %p246 = pneg %p99
      %p247 = pneg %p96
      %p248 = pneg %p120
      %p249 = pneg %p117
      %p250 = pneg %p148
      %p251 = pneg %p145
      %p252 = scmp.lt.s32.totalorder %s21, 1
      %s253 = scalar_select %p252, %s21, 1
      %p254 = scmp.lt.s32.totalorder %s22, 0
      %s255 = scalar_select %p254, %s22, 0
      %s256 = smul.addr %s255, 8
      %s257 = smul.addr %s253, 8
      %s258 = sadd.s32 %s256, %s257
      %s259 = smul.addr %s258, 4
      %s260 = scalar_lea.vmem %s4, %s259
      %p261 = pneg %p176
      %p262 = pneg %p173
      %p263 = scmp.lt.s32.totalorder %s21, 1
      %s264 = scalar_select %p263, %s21, 1
      %p265 = scmp.lt.s32.totalorder %s22, 0
      %s266 = scalar_select %p265, %s22, 0
      %s267 = sadd.s32 %s266, %s264
      %s268 = smul.addr %s267, 2
      %s269 = scalar_lea.vmem %s5, %s268
      %p270 = scmp.lt.s32.totalorder %s21, 1
      %s271 = scalar_select %p270, %s21, 1
      %s272 = smul.addr %s271, 2
      %s273 = smul.addr %s272, 2
      %s274 = scalar_lea.vmem %s0, %s273
      %p275 = scmp.lt.s32.totalorder %s21, 1
      %s276 = scalar_select %p275, %s21, 1
      %p277 = scmp.lt.s32.totalorder %s22, 0
      %s278 = scalar_select %p277, %s22, 0
      %s279 = smul.addr %s278, 40
      %s280 = smul.addr %s276, 40
      %s281 = sadd.s32 %s279, %s280
      %s282 = smul.addr %s281, 4
      %s283 = scalar_lea.vmem %s1, %s282
      %p284 = scmp.lt.s32.totalorder %s21, 1
      %s285 = scalar_select %p284, %s21, 1
      %p286 = scmp.lt.s32.totalorder %s22, 0
      %s287 = scalar_select %p286, %s22, 0
      %s288 = smul.addr %s287, 8
      %s289 = smul.addr %s285, 8
      %s290 = sadd.s32 %s288, %s289
      %s291 = smul.addr %s290, 4
      %s292 = scalar_lea.vmem %s4, %s291
      %p293 = scmp.lt.s32.totalorder %s21, 1
      %s294 = scalar_select %p293, %s21, 1
      %p295 = scmp.lt.s32.totalorder %s22, 0
      %s296 = scalar_select %p295, %s22, 0
      %s297 = sadd.s32 %s296, %s294
      %s298 = smul.addr %s297, 2
      %s299 = scalar_lea.vmem %s5, %s298
      %v301 = vld [vmem:[%s274] ss:$2 sm:$0x3]
      %s302 = scalar_lea.vmem %s274, 1
      %v303 = vld [vmem:[%s302] ss:$2 sm:$0x3]
      %v304 = vld [vmem:[%s283] sm:$0xff]
      %v305 = vld [vmem:[%s283 + $0x8] sm:$0x11]
      %v306 = vunpack.c.l.bf16 %v304
      %v307 = vunpack.c.h.bf16 %v304
      %v308 = vunpack.c.l.bf16 %v305
      %v309 = vunpack.c.h.bf16 %v305
      %v311 = vlaneseq
      %v312 = vshrl.u32 %v311, 7
      %v313 = vsub.s32 0, %v312
      %v314 = vrot.slane %v301, %v313
      %v315 = vlaneseq
      %v316 = vshrl.u32 %v315, 7
      %v317 = vsub.s32 1, %v316
      %v318 = vrot.slane %v301, %v317
      %v321 = vmul.f32 %v306, %v314
      %v322 = vmul.f32 %v307, %v318
      %v323 = vmul.f32 %v308, %v314
      %v324 = vmul.f32 %v309, %v318
      %v326 = vlaneseq
      %v327 = vshrl.u32 %v326, 7
      %v328 = vsub.s32 0, %v327
      %v329 = vrot.slane %v303, %v328
      %v330 = vlaneseq
      %v331 = vshrl.u32 %v330, 7
      %v332 = vsub.s32 1, %v331
      %v333 = vrot.slane %v303, %v332
      %v336 = vadd.f32 %v321, %v329
      %v337 = vadd.f32 %v322, %v333
      %v338 = vadd.f32 %v323, %v329
      %v339 = vadd.f32 %v324, %v333
      %vm340 = vcmp.gt.f32.partialorder %v336, 0.0
      %vm341 = vcmp.gt.f32.partialorder %v337, 0.0
      %vm342 = vcmp.gt.f32.partialorder %v338, 0.0
      %vm343 = vcmp.gt.f32.partialorder %v339, 0.0
      %v344 = vmul.f32 %v336, 0.01
      %v345 = vmul.f32 %v337, 0.01
      %v346 = vmul.f32 %v338, 0.01
      %v347 = vmul.f32 %v339, 0.01
      %v348 = vsel %vm340, %v336, %v344
      %v349 = vsel %vm341, %v337, %v345
      %v350 = vsel %vm342, %v338, %v346
      %v351 = vsel %vm343, %v339, %v347
      %v352 = vpack.c.bf16 %v350, %v348
      %v353 = vpack.c.bf16 %v351, %v349
      %v356 = vunpack.c.l.b16 %v352
      %v357 = vunpack.c.l.b16 %v353
      %v358 = vunpack.c.h.b16 %v352
      %v359 = vunpack.c.h.b16 %v353
      %v360 = vpack.c.b16 %v357, %v356
      %v361 = vpack.c.b16 %v359, %v358
      %vm364 = vcmask 1043456
      %vm365 = vcmask 261124
      %vm366 = vmor %vm365, %vm364
      %367 = vst.msk [vmem:[#allocation2] sm:$0xff] %vm366, %v360
      %vm368 = vcmask 1040384
      %vm369 = vcmask 258052
      %vm370 = vmor %vm369, %vm368
      %371 = vst.msk [vmem:[#allocation2 + $0x8] sm:$0x11] %vm370, %v361
      %s372 = scalar_lea.vmem %s283, 16
      %v373 = vld [vmem:[%s372] sm:$0xff]
      %v374 = vld [vmem:[%s372 + $0x8] sm:$0x11]
      %v375 = vunpack.c.l.bf16 %v373
      %v376 = vunpack.c.h.bf16 %v373
      %v377 = vunpack.c.l.bf16 %v374
      %v378 = vunpack.c.h.bf16 %v374
      %v379 = vmul.f32 %v375, %v314
      %v380 = vmul.f32 %v376, %v318
      %v381 = vmul.f32 %v377, %v314
      %v382 = vmul.f32 %v378, %v318
      %v383 = vadd.f32 %v379, %v329
      %v384 = vadd.f32 %v380, %v333
      %v385 = vadd.f32 %v381, %v329
      %v386 = vadd.f32 %v382, %v333
      %vm387 = vcmp.gt.f32.partialorder %v383, 0.0
      %vm388 = vcmp.gt.f32.partialorder %v384, 0.0
      %vm389 = vcmp.gt.f32.partialorder %v385, 0.0
      %vm390 = vcmp.gt.f32.partialorder %v386, 0.0
      %v391 = vmul.f32 %v383, 0.01
      %v392 = vmul.f32 %v384, 0.01
      %v393 = vmul.f32 %v385, 0.01
      %v394 = vmul.f32 %v386, 0.01
      %v395 = vsel %vm387, %v383, %v391
      %v396 = vsel %vm388, %v384, %v392
      %v397 = vsel %vm389, %v385, %v393
      %v398 = vsel %vm390, %v386, %v394
      %v399 = vpack.c.bf16 %v397, %v395
      %v400 = vpack.c.bf16 %v398, %v396
      %v403 = vunpack.c.l.b16 %v399
      %v404 = vunpack.c.l.b16 %v400
      %v405 = vunpack.c.h.b16 %v399
      %v406 = vunpack.c.h.b16 %v400
      %v407 = vpack.c.b16 %v404, %v403
      %v408 = vpack.c.b16 %v406, %v405
      %s411 = scalar_lea.vmem [#allocation2], 16
      %412 = vst.msk [vmem:[%s411] sm:$0xff] %vm366, %v407
      %413 = vst.msk [vmem:[%s411 + $0x8] sm:$0x11] %vm370, %v408
      %s414 = scalar_lea.vmem %s283, 32
      %v415 = vld [vmem:[%s414] sm:$0xff]
      %v416 = vld [vmem:[%s414 + $0x8] sm:$0x11]
      %v417 = vunpack.c.l.bf16 %v415
      %v418 = vunpack.c.h.bf16 %v415
      %v419 = vunpack.c.l.bf16 %v416
      %v420 = vunpack.c.h.bf16 %v416
      %v421 = vmul.f32 %v417, %v314
      %v422 = vmul.f32 %v418, %v318
      %v423 = vmul.f32 %v419, %v314
      %v424 = vmul.f32 %v420, %v318
      %v425 = vadd.f32 %v421, %v329
      %v426 = vadd.f32 %v422, %v333
      %v427 = vadd.f32 %v423, %v329
      %v428 = vadd.f32 %v424, %v333
      %vm429 = vcmp.gt.f32.partialorder %v425, 0.0
      %vm430 = vcmp.gt.f32.partialorder %v426, 0.0
      %vm431 = vcmp.gt.f32.partialorder %v427, 0.0
      %vm432 = vcmp.gt.f32.partialorder %v428, 0.0
      %v433 = vmul.f32 %v425, 0.01
      %v434 = vmul.f32 %v426, 0.01
      %v435 = vmul.f32 %v427, 0.01
      %v436 = vmul.f32 %v428, 0.01
      %v437 = vsel %vm429, %v425, %v433
      %v438 = vsel %vm430, %v426, %v434
      %v439 = vsel %vm431, %v427, %v435
      %v440 = vsel %vm432, %v428, %v436
      %v441 = vpack.c.bf16 %v439, %v437
      %v442 = vpack.c.bf16 %v440, %v438
      %v445 = vunpack.c.l.b16 %v441
      %v446 = vunpack.c.l.b16 %v442
      %v447 = vunpack.c.h.b16 %v441
      %v448 = vunpack.c.h.b16 %v442
      %v449 = vpack.c.b16 %v446, %v445
      %v450 = vpack.c.b16 %v448, %v447
      %s453 = scalar_lea.vmem [#allocation2], 32
      %454 = vst.msk [vmem:[%s453] sm:$0xff] %vm366, %v449
      %455 = vst.msk [vmem:[%s453 + $0x8] sm:$0x11] %vm370, %v450
      %s456 = scalar_lea.vmem %s283, 48
      %v457 = vld [vmem:[%s456] sm:$0xff]
      %v458 = vld [vmem:[%s456 + $0x8] sm:$0x11]
      %v459 = vunpack.c.l.bf16 %v457
      %v460 = vunpack.c.h.bf16 %v457
      %v461 = vunpack.c.l.bf16 %v458
      %v462 = vunpack.c.h.bf16 %v458
      %v463 = vmul.f32 %v459, %v314
      %v464 = vmul.f32 %v460, %v318
      %v465 = vmul.f32 %v461, %v314
      %v466 = vmul.f32 %v462, %v318
      %v467 = vadd.f32 %v463, %v329
      %v468 = vadd.f32 %v464, %v333
      %v469 = vadd.f32 %v465, %v329
      %v470 = vadd.f32 %v466, %v333
      %vm471 = vcmp.gt.f32.partialorder %v467, 0.0
      %vm472 = vcmp.gt.f32.partialorder %v468, 0.0
      %vm473 = vcmp.gt.f32.partialorder %v469, 0.0
      %vm474 = vcmp.gt.f32.partialorder %v470, 0.0
      %v475 = vmul.f32 %v467, 0.01
      %v476 = vmul.f32 %v468, 0.01
      %v477 = vmul.f32 %v469, 0.01
      %v478 = vmul.f32 %v470, 0.01
      %v479 = vsel %vm471, %v467, %v475
      %v480 = vsel %vm472, %v468, %v476
      %v481 = vsel %vm473, %v469, %v477
      %v482 = vsel %vm474, %v470, %v478
      %v483 = vpack.c.bf16 %v481, %v479
      %v484 = vpack.c.bf16 %v482, %v480
      %v487 = vunpack.c.l.b16 %v483
      %v488 = vunpack.c.l.b16 %v484
      %v489 = vunpack.c.h.b16 %v483
      %v490 = vunpack.c.h.b16 %v484
      %v491 = vpack.c.b16 %v488, %v487
      %v492 = vpack.c.b16 %v490, %v489
      %s495 = scalar_lea.vmem [#allocation2], 48
      %496 = vst.msk [vmem:[%s495] sm:$0xff] %vm366, %v491
      %497 = vst.msk [vmem:[%s495 + $0x8] sm:$0x11] %vm370, %v492
      %s498 = scalar_lea.vmem %s283, 64
      %v499 = vld [vmem:[%s498] sm:$0xff]
      %v500 = vld [vmem:[%s498 + $0x8] sm:$0x11]
      %v501 = vunpack.c.l.bf16 %v499
      %v502 = vunpack.c.h.bf16 %v499
      %v503 = vunpack.c.l.bf16 %v500
      %v504 = vunpack.c.h.bf16 %v500
      %v505 = vmul.f32 %v501, %v314
      %v506 = vmul.f32 %v502, %v318
      %v507 = vmul.f32 %v503, %v314
      %v508 = vmul.f32 %v504, %v318
      %v509 = vadd.f32 %v505, %v329
      %v510 = vadd.f32 %v506, %v333
      %v511 = vadd.f32 %v507, %v329
      %v512 = vadd.f32 %v508, %v333
      %vm513 = vcmp.gt.f32.partialorder %v509, 0.0
      %vm514 = vcmp.gt.f32.partialorder %v510, 0.0
      %vm515 = vcmp.gt.f32.partialorder %v511, 0.0
      %vm516 = vcmp.gt.f32.partialorder %v512, 0.0
      %v517 = vmul.f32 %v509, 0.01
      %v518 = vmul.f32 %v510, 0.01
      %v519 = vmul.f32 %v511, 0.01
      %v520 = vmul.f32 %v512, 0.01
      %v521 = vsel %vm513, %v509, %v517
      %v522 = vsel %vm514, %v510, %v518
      %v523 = vsel %vm515, %v511, %v519
      %v524 = vsel %vm516, %v512, %v520
      %v525 = vpack.c.bf16 %v523, %v521
      %v526 = vpack.c.bf16 %v524, %v522
      %v529 = vunpack.c.l.b16 %v525
      %v530 = vunpack.c.l.b16 %v526
      %v531 = vunpack.c.h.b16 %v525
      %v532 = vunpack.c.h.b16 %v526
      %v533 = vpack.c.b16 %v530, %v529
      %v534 = vpack.c.b16 %v532, %v531
      %s537 = scalar_lea.vmem [#allocation2], 64
      %538 = vst.msk [vmem:[%s537] sm:$0xff] %vm366, %v533
      %539 = vst.msk [vmem:[%s537 + $0x8] sm:$0x11] %vm370, %v534
      %s540 = scalar_lea.vmem %s283, 80
      %v541 = vld [vmem:[%s540] sm:$0xff]
      %v542 = vld [vmem:[%s540 + $0x8] sm:$0x11]
      %v543 = vunpack.c.l.bf16 %v541
      %v544 = vunpack.c.h.bf16 %v541
      %v545 = vunpack.c.l.bf16 %v542
      %v546 = vunpack.c.h.bf16 %v542
      %v547 = vmul.f32 %v543, %v314
      %v548 = vmul.f32 %v544, %v318
      %v549 = vmul.f32 %v545, %v314
      %v550 = vmul.f32 %v546, %v318
      %v551 = vadd.f32 %v547, %v329
      %v552 = vadd.f32 %v548, %v333
      %v553 = vadd.f32 %v549, %v329
      %v554 = vadd.f32 %v550, %v333
      %vm555 = vcmp.gt.f32.partialorder %v551, 0.0
      %vm556 = vcmp.gt.f32.partialorder %v552, 0.0
      %vm557 = vcmp.gt.f32.partialorder %v553, 0.0
      %vm558 = vcmp.gt.f32.partialorder %v554, 0.0
      %v559 = vmul.f32 %v551, 0.01
      %v560 = vmul.f32 %v552, 0.01
      %v561 = vmul.f32 %v553, 0.01
      %v562 = vmul.f32 %v554, 0.01
      %v563 = vsel %vm555, %v551, %v559
      %v564 = vsel %vm556, %v552, %v560
      %v565 = vsel %vm557, %v553, %v561
      %v566 = vsel %vm558, %v554, %v562
      %v567 = vpack.c.bf16 %v565, %v563
      %v568 = vpack.c.bf16 %v566, %v564
      %v571 = vunpack.c.l.b16 %v567
      %v572 = vunpack.c.l.b16 %v568
      %v573 = vunpack.c.h.b16 %v567
      %v574 = vunpack.c.h.b16 %v568
      %v575 = vpack.c.b16 %v572, %v571
      %v576 = vpack.c.b16 %v574, %v573
      %s579 = scalar_lea.vmem [#allocation2], 80
      %580 = vst.msk [vmem:[%s579] sm:$0xff] %vm366, %v575
      %581 = vst.msk [vmem:[%s579 + $0x8] sm:$0x11] %vm370, %v576
      %s582 = scalar_lea.vmem %s283, 96
      %v583 = vld [vmem:[%s582] sm:$0xff]
      %v584 = vld [vmem:[%s582 + $0x8] sm:$0x11]
      %v585 = vunpack.c.l.bf16 %v583
      %v586 = vunpack.c.h.bf16 %v583
      %v587 = vunpack.c.l.bf16 %v584
      %v588 = vunpack.c.h.bf16 %v584
      %v589 = vmul.f32 %v585, %v314
      %v590 = vmul.f32 %v586, %v318
      %v591 = vmul.f32 %v587, %v314
      %v592 = vmul.f32 %v588, %v318
      %v593 = vadd.f32 %v589, %v329
      %v594 = vadd.f32 %v590, %v333
      %v595 = vadd.f32 %v591, %v329
      %v596 = vadd.f32 %v592, %v333
      %vm597 = vcmp.gt.f32.partialorder %v593, 0.0
      %vm598 = vcmp.gt.f32.partialorder %v594, 0.0
      %vm599 = vcmp.gt.f32.partialorder %v595, 0.0
      %vm600 = vcmp.gt.f32.partialorder %v596, 0.0
      %v601 = vmul.f32 %v593, 0.01
      %v602 = vmul.f32 %v594, 0.01
      %v603 = vmul.f32 %v595, 0.01
      %v604 = vmul.f32 %v596, 0.01
      %v605 = vsel %vm597, %v593, %v601
      %v606 = vsel %vm598, %v594, %v602
      %v607 = vsel %vm599, %v595, %v603
      %v608 = vsel %vm600, %v596, %v604
      %v609 = vpack.c.bf16 %v607, %v605
      %v610 = vpack.c.bf16 %v608, %v606
      %v613 = vunpack.c.l.b16 %v609
      %v614 = vunpack.c.l.b16 %v610
      %v615 = vunpack.c.h.b16 %v609
      %v616 = vunpack.c.h.b16 %v610
      %v617 = vpack.c.b16 %v614, %v613
      %v618 = vpack.c.b16 %v616, %v615
      %s621 = scalar_lea.vmem [#allocation2], 96
      %622 = vst.msk [vmem:[%s621] sm:$0xff] %vm366, %v617
      %623 = vst.msk [vmem:[%s621 + $0x8] sm:$0x11] %vm370, %v618
      %s624 = scalar_lea.vmem %s283, 112
      %v625 = vld [vmem:[%s624] sm:$0xff]
      %v626 = vld [vmem:[%s624 + $0x8] sm:$0x11]
      %v627 = vunpack.c.l.bf16 %v625
      %v628 = vunpack.c.h.bf16 %v625
      %v629 = vunpack.c.l.bf16 %v626
      %v630 = vunpack.c.h.bf16 %v626
      %v631 = vmul.f32 %v627, %v314
      %v632 = vmul.f32 %v628, %v318
      %v633 = vmul.f32 %v629, %v314
      %v634 = vmul.f32 %v630, %v318
      %v635 = vadd.f32 %v631, %v329
      %v636 = vadd.f32 %v632, %v333
      %v637 = vadd.f32 %v633, %v329
      %v638 = vadd.f32 %v634, %v333
      %vm639 = vcmp.gt.f32.partialorder %v635, 0.0
      %vm640 = vcmp.gt.f32.partialorder %v636, 0.0
      %vm641 = vcmp.gt.f32.partialorder %v637, 0.0
      %vm642 = vcmp.gt.f32.partialorder %v638, 0.0
      %v643 = vmul.f32 %v635, 0.01
      %v644 = vmul.f32 %v636, 0.01
      %v645 = vmul.f32 %v637, 0.01
      %v646 = vmul.f32 %v638, 0.01
      %v647 = vsel %vm639, %v635, %v643
      %v648 = vsel %vm640, %v636, %v644
      %v649 = vsel %vm641, %v637, %v645
      %v650 = vsel %vm642, %v638, %v646
      %v651 = vpack.c.bf16 %v649, %v647
      %v652 = vpack.c.bf16 %v650, %v648
      %v655 = vunpack.c.l.b16 %v651
      %v656 = vunpack.c.l.b16 %v652
      %v657 = vunpack.c.h.b16 %v651
      %v658 = vunpack.c.h.b16 %v652
      %v659 = vpack.c.b16 %v656, %v655
      %v660 = vpack.c.b16 %v658, %v657
      %s663 = scalar_lea.vmem [#allocation2], 112
      %664 = vst.msk [vmem:[%s663] sm:$0xff] %vm366, %v659
      %665 = vst.msk [vmem:[%s663 + $0x8] sm:$0x11] %vm370, %v660
      %s666 = scalar_lea.vmem %s283, 128
      %v667 = vld [vmem:[%s666] sm:$0xff]
      %v668 = vld [vmem:[%s666 + $0x8] sm:$0x11]
      %v669 = vunpack.c.l.bf16 %v667
      %v670 = vunpack.c.h.bf16 %v667
      %v671 = vunpack.c.l.bf16 %v668
      %v672 = vunpack.c.h.bf16 %v668
      %v673 = vmul.f32 %v669, %v314
      %v674 = vmul.f32 %v670, %v318
      %v675 = vmul.f32 %v671, %v314
      %v676 = vmul.f32 %v672, %v318
      %v677 = vadd.f32 %v673, %v329
      %v678 = vadd.f32 %v674, %v333
      %v679 = vadd.f32 %v675, %v329
      %v680 = vadd.f32 %v676, %v333
      %vm681 = vcmp.gt.f32.partialorder %v677, 0.0
      %vm682 = vcmp.gt.f32.partialorder %v678, 0.0
      %vm683 = vcmp.gt.f32.partialorder %v679, 0.0
      %vm684 = vcmp.gt.f32.partialorder %v680, 0.0
      %v685 = vmul.f32 %v677, 0.01
      %v686 = vmul.f32 %v678, 0.01
      %v687 = vmul.f32 %v679, 0.01
      %v688 = vmul.f32 %v680, 0.01
      %v689 = vsel %vm681, %v677, %v685
      %v690 = vsel %vm682, %v678, %v686
      %v691 = vsel %vm683, %v679, %v687
      %v692 = vsel %vm684, %v680, %v688
      %v693 = vpack.c.bf16 %v691, %v689
      %v694 = vpack.c.bf16 %v692, %v690
      %v697 = vunpack.c.l.b16 %v693
      %v698 = vunpack.c.l.b16 %v694
      %v699 = vunpack.c.h.b16 %v693
      %v700 = vunpack.c.h.b16 %v694
      %v701 = vpack.c.b16 %v698, %v697
      %v702 = vpack.c.b16 %v700, %v699
      %s705 = scalar_lea.vmem [#allocation2], 128
      %706 = vst.msk [vmem:[%s705] sm:$0xff] %vm366, %v701
      %707 = vst.msk [vmem:[%s705 + $0x8] sm:$0x11] %vm370, %v702
      %s708 = scalar_lea.vmem %s283, 144
      %v709 = vld [vmem:[%s708] sm:$0xff]
      %v710 = vld [vmem:[%s708 + $0x8] sm:$0x11]
      %v711 = vunpack.c.l.bf16 %v709
      %v712 = vunpack.c.h.bf16 %v709
      %v713 = vunpack.c.l.bf16 %v710
      %v714 = vunpack.c.h.bf16 %v710
      %v715 = vmul.f32 %v711, %v314
      %v716 = vmul.f32 %v712, %v318
      %v717 = vmul.f32 %v713, %v314
      %v718 = vmul.f32 %v714, %v318
      %v719 = vadd.f32 %v715, %v329
      %v720 = vadd.f32 %v716, %v333
      %v721 = vadd.f32 %v717, %v329
      %v722 = vadd.f32 %v718, %v333
      %vm723 = vcmp.gt.f32.partialorder %v719, 0.0
      %vm724 = vcmp.gt.f32.partialorder %v720, 0.0
      %vm725 = vcmp.gt.f32.partialorder %v721, 0.0
      %vm726 = vcmp.gt.f32.partialorder %v722, 0.0
      %v727 = vmul.f32 %v719, 0.01
      %v728 = vmul.f32 %v720, 0.01
      %v729 = vmul.f32 %v721, 0.01
      %v730 = vmul.f32 %v722, 0.01
      %v731 = vsel %vm723, %v719, %v727
      %v732 = vsel %vm724, %v720, %v728
      %v733 = vsel %vm725, %v721, %v729
      %v734 = vsel %vm726, %v722, %v730
      %v735 = vpack.c.bf16 %v733, %v731
      %v736 = vpack.c.bf16 %v734, %v732
      %v739 = vunpack.c.l.b16 %v735
      %v740 = vunpack.c.l.b16 %v736
      %v741 = vunpack.c.h.b16 %v735
      %v742 = vunpack.c.h.b16 %v736
      %v743 = vpack.c.b16 %v740, %v739
      %v744 = vpack.c.b16 %v742, %v741
      %s747 = scalar_lea.vmem [#allocation2], 144
      %748 = vst.msk [vmem:[%s747] sm:$0xff] %vm366, %v743
      %749 = vst.msk [vmem:[%s747 + $0x8] sm:$0x11] %vm370, %v744
      %v750 = vld [vmem:[#allocation2] sm:$0xff]
      %751 = vst.msk [vmem:[#allocation3] sm:$0xff] %vm366, %v750
      %v752 = vld [vmem:[#allocation2] sm:$0xff]
      %v753 = vld [vmem:[#allocation2 + $0x8] sm:$0x11]
      %vm754 = vsmask.f32 3328
      %vm755 = vsmask.f32 7440
      %vm756 = vmor %vm754, %vm755
      %v758 = vshrl.u32 %v752, 16
      %v760 = vrot.slane %v758, 4
      %v761 = vshll.u32 %v752, 16
      %v763 = vrot.slane %v761, 5
      %v764 = vor.u32 %v760, %v763
      %v765 = vrot.slane %v764, 4
      %v767 = vshll.u32 %v753, 16
      %v769 = vrot.slane %v767, 5
      %v770 = vsel %vm756, %v765, %v769
      %771 = vrot.lane.b32.xlu0 %v770, 32
      %v772 = vpop.permute.xlu0 %771
      %v773 = vrot.slane %v772, 4
      %vm774 = vcmask 261120
      %v775 = vsel %vm774, %v773, %v772
      %vm777 = vcmask 1043712
      %vm778 = vcmask 523268
      %vm779 = vmor %vm778, %vm777
      %780 = vst.msk [vmem:[#allocation3 + $0x4] sm:$0xff] %vm779, %v775
      %v781 = vld [vmem:[#allocation2] sm:$0xee]
      %v782 = vld [vmem:[#allocation2 + $0x8] sm:$0x11]
      %vm785 = vcmask 1042432
      %vm786 = vcmask 1046532
      %vm787 = vmor %vm785, %vm786
      %v788 = vrot.slane %v781, 5
      %v789 = vrot.slane %v788, 4
      %v790 = vrot.slane %v782, 5
      %v791 = vsel %vm787, %v789, %v790
      %792 = vrot.lane.b32.xlu0 %v791, 64
      %v793 = vpop.permute.xlu0 %792
      %v794 = vrot.slane %v793, 4
      %vm795 = vcmask 523264
      %v796 = vsel %vm795, %v794, %v793
      %vm798 = vcmask 1043968
      %vm799 = vcmask 785412
      %vm800 = vmor %vm799, %vm798
      %801 = vst.msk [vmem:[#allocation3 + $0x8] sm:$0xff] %vm800, %v796
      %v802 = vld [vmem:[%s411] sm:$0xff]
      %804 = vrot.lane.b32.xlu0 %v802, 96
      %v805 = vpop.permute.xlu0 %804
      %v806 = vrot.slane %v805, 4
      %vm807 = vcmask 785408
      %v808 = vsel %vm807, %v806, %v805
      %vm810 = vcmask 1044224
      %vm811 = vcmask 1047556
      %vm812 = vmor %vm811, %vm810
      %813 = vst.msk [vmem:[#allocation3 + $0xc] sm:$0xff] %vm812, %v808
      %v814 = vld [vmem:[%s411] sm:$0xff]
      %v815 = vld [vmem:[%s411 + $0x8] sm:$0x11]
      %v817 = vshrl.u32 %v814, 16
      %v819 = vrot.slane %v817, 4
      %v820 = vshll.u32 %v814, 16
      %v822 = vrot.slane %v820, 5
      %v823 = vor.u32 %v819, %v822
      %v824 = vrot.slane %v823, 4
      %v826 = vshll.u32 %v815, 16
      %v828 = vrot.slane %v826, 5
      %v829 = vsel %vm756, %v824, %v828
      %831 = vst.msk [vmem:[#allocation3 + $0x14] sm:$0xff] %vm366, %v829
      %v832 = vld [vmem:[%s411] sm:$0xee]
      %v833 = vld [vmem:[%s411 + $0x8] sm:$0x11]
      %v836 = vrot.slane %v832, 5
      %v837 = vrot.slane %v836, 4
      %v838 = vrot.slane %v833, 5
      %v839 = vsel %vm787, %v837, %v838
      %840 = vrot.lane.b32.xlu0 %v839, 32
      %v841 = vpop.permute.xlu0 %840
      %v842 = vrot.slane %v841, 4
      %v843 = vsel %vm774, %v842, %v841
      %845 = vst.msk [vmem:[#allocation3 + $0x18] sm:$0xff] %vm779, %v843
      %v846 = vld [vmem:[%s453] sm:$0xff]
      %848 = vrot.lane.b32.xlu0 %v846, 64
      %v849 = vpop.permute.xlu0 %848
      %v850 = vrot.slane %v849, 4
      %v851 = vsel %vm795, %v850, %v849
      %853 = vst.msk [vmem:[#allocation3 + $0x1c] sm:$0xff] %vm800, %v851
      %v854 = vld [vmem:[%s453] sm:$0xff]
      %v855 = vld [vmem:[%s453 + $0x8] sm:$0x11]
      %v857 = vshrl.u32 %v854, 16
      %v859 = vrot.slane %v857, 4
      %v860 = vshll.u32 %v854, 16
      %v862 = vrot.slane %v860, 5
      %v863 = vor.u32 %v859, %v862
      %v864 = vrot.slane %v863, 4
      %v866 = vshll.u32 %v855, 16
      %v868 = vrot.slane %v866, 5
      %v869 = vsel %vm756, %v864, %v868
      %870 = vrot.lane.b32.xlu0 %v869, 96
      %v871 = vpop.permute.xlu0 %870
      %v872 = vrot.slane %v871, 4
      %v873 = vsel %vm807, %v872, %v871
      %875 = vst.msk [vmem:[#allocation3 + $0x20] sm:$0xff] %vm812, %v873
      %v876 = vld [vmem:[%s453] sm:$0xee]
      %v877 = vld [vmem:[%s453 + $0x8] sm:$0x11]
      %v880 = vrot.slane %v876, 5
      %v881 = vrot.slane %v880, 4
      %v882 = vrot.slane %v877, 5
      %v883 = vsel %vm787, %v881, %v882
      %885 = vst.msk [vmem:[#allocation3 + $0x28] sm:$0xff] %vm366, %v883
      %v886 = vld [vmem:[%s411] sm:$0xff]
      %887 = vst.msk [vmem:[#allocation3 + $0x30] sm:$0xff] %vm366, %v886
      %v888 = vld [vmem:[%s411] sm:$0xff]
      %v889 = vld [vmem:[%s411 + $0x8] sm:$0x11]
      %v891 = vshrl.u32 %v888, 16
      %v893 = vrot.slane %v891, 4
      %v894 = vshll.u32 %v888, 16
      %v896 = vrot.slane %v894, 5
      %v897 = vor.u32 %v893, %v896
      %v898 = vrot.slane %v897, 4
      %v900 = vshll.u32 %v889, 16
      %v902 = vrot.slane %v900, 5
      %v903 = vsel %vm756, %v898, %v902
      %904 = vrot.lane.b32.xlu0 %v903, 32
      %v905 = vpop.permute.xlu0 %904
      %v906 = vrot.slane %v905, 4
      %v907 = vsel %vm774, %v906, %v905
      %909 = vst.msk [vmem:[#allocation3 + $0x34] sm:$0xff] %vm779, %v907
      %v910 = vld [vmem:[%s411] sm:$0xee]
      %v911 = vld [vmem:[%s411 + $0x8] sm:$0x11]
      %v914 = vrot.slane %v910, 5
      %v915 = vrot.slane %v914, 4
      %v916 = vrot.slane %v911, 5
      %v917 = vsel %vm787, %v915, %v916
      %918 = vrot.lane.b32.xlu0 %v917, 64
      %v919 = vpop.permute.xlu0 %918
      %v920 = vrot.slane %v919, 4
      %v921 = vsel %vm795, %v920, %v919
      %923 = vst.msk [vmem:[#allocation3 + $0x38] sm:$0xff] %vm800, %v921
      %v924 = vld [vmem:[%s453] sm:$0xff]
      %926 = vrot.lane.b32.xlu0 %v924, 96
      %v927 = vpop.permute.xlu0 %926
      %v928 = vrot.slane %v927, 4
      %v929 = vsel %vm807, %v928, %v927
      %931 = vst.msk [vmem:[#allocation3 + $0x3c] sm:$0xff] %vm812, %v929
      %v932 = vld [vmem:[%s453] sm:$0xff]
      %v933 = vld [vmem:[%s453 + $0x8] sm:$0x11]
      %v935 = vshrl.u32 %v932, 16
      %v937 = vrot.slane %v935, 4
      %v938 = vshll.u32 %v932, 16
      %v940 = vrot.slane %v938, 5
      %v941 = vor.u32 %v937, %v940
      %v942 = vrot.slane %v941, 4
      %v944 = vshll.u32 %v933, 16
      %v946 = vrot.slane %v944, 5
      %v947 = vsel %vm756, %v942, %v946
      %949 = vst.msk [vmem:[#allocation3 + $0x44] sm:$0xff] %vm366, %v947
      %v950 = vld [vmem:[%s453] sm:$0xee]
      %v951 = vld [vmem:[%s453 + $0x8] sm:$0x11]
      %v954 = vrot.slane %v950, 5
      %v955 = vrot.slane %v954, 4
      %v956 = vrot.slane %v951, 5
      %v957 = vsel %vm787, %v955, %v956
      %958 = vrot.lane.b32.xlu0 %v957, 32
      %v959 = vpop.permute.xlu0 %958
      %v960 = vrot.slane %v959, 4
      %v961 = vsel %vm774, %v960, %v959
      %963 = vst.msk [vmem:[#allocation3 + $0x48] sm:$0xff] %vm779, %v961
      %v964 = vld [vmem:[%s495] sm:$0xff]
      %966 = vrot.lane.b32.xlu0 %v964, 64
      %v967 = vpop.permute.xlu0 %966
      %v968 = vrot.slane %v967, 4
      %v969 = vsel %vm795, %v968, %v967
      %971 = vst.msk [vmem:[#allocation3 + $0x4c] sm:$0xff] %vm800, %v969
      %v972 = vld [vmem:[%s495] sm:$0xff]
      %v973 = vld [vmem:[%s495 + $0x8] sm:$0x11]
      %v975 = vshrl.u32 %v972, 16
      %v977 = vrot.slane %v975, 4
      %v978 = vshll.u32 %v972, 16
      %v980 = vrot.slane %v978, 5
      %v981 = vor.u32 %v977, %v980
      %v982 = vrot.slane %v981, 4
      %v984 = vshll.u32 %v973, 16
      %v986 = vrot.slane %v984, 5
      %v987 = vsel %vm756, %v982, %v986
      %988 = vrot.lane.b32.xlu0 %v987, 96
      %v989 = vpop.permute.xlu0 %988
      %v990 = vrot.slane %v989, 4
      %v991 = vsel %vm807, %v990, %v989
      %993 = vst.msk [vmem:[#allocation3 + $0x50] sm:$0xff] %vm812, %v991
      %v994 = vld [vmem:[%s495] sm:$0xee]
      %v995 = vld [vmem:[%s495 + $0x8] sm:$0x11]
      %v998 = vrot.slane %v994, 5
      %v999 = vrot.slane %v998, 4
      %v1000 = vrot.slane %v995, 5
      %v1001 = vsel %vm787, %v999, %v1000
      %1003 = vst.msk [vmem:[#allocation3 + $0x58] sm:$0xff] %vm366, %v1001
      %v1004 = vld [vmem:[%s453] sm:$0xff]
      %1005 = vst.msk [vmem:[#allocation3 + $0x60] sm:$0xff] %vm366, %v1004
      %v1006 = vld [vmem:[%s453] sm:$0xff]
      %v1007 = vld [vmem:[%s453 + $0x8] sm:$0x11]
      %v1009 = vshrl.u32 %v1006, 16
      %v1011 = vrot.slane %v1009, 4
      %v1012 = vshll.u32 %v1006, 16
      %v1014 = vrot.slane %v1012, 5
      %v1015 = vor.u32 %v1011, %v1014
      %v1016 = vrot.slane %v1015, 4
      %v1018 = vshll.u32 %v1007, 16
      %v1020 = vrot.slane %v1018, 5
      %v1021 = vsel %vm756, %v1016, %v1020
      %1022 = vrot.lane.b32.xlu0 %v1021, 32
      %v1023 = vpop.permute.xlu0 %1022
      %v1024 = vrot.slane %v1023, 4
      %v1025 = vsel %vm774, %v1024, %v1023
      %1027 = vst.msk [vmem:[#allocation3 + $0x64] sm:$0xff] %vm779, %v1025
      %v1028 = vld [vmem:[%s453] sm:$0xee]
      %v1029 = vld [vmem:[%s453 + $0x8] sm:$0x11]
      %v1032 = vrot.slane %v1028, 5
      %v1033 = vrot.slane %v1032, 4
      %v1034 = vrot.slane %v1029, 5
      %v1035 = vsel %vm787, %v1033, %v1034
      %1036 = vrot.lane.b32.xlu0 %v1035, 64
      %v1037 = vpop.permute.xlu0 %1036
      %v1038 = vrot.slane %v1037, 4
      %v1039 = vsel %vm795, %v1038, %v1037
      %1041 = vst.msk [vmem:[#allocation3 + $0x68] sm:$0xff] %vm800, %v1039
      %v1042 = vld [vmem:[%s495] sm:$0xff]
      %1044 = vrot.lane.b32.xlu0 %v1042, 96
      %v1045 = vpop.permute.xlu0 %1044
      %v1046 = vrot.slane %v1045, 4
      %v1047 = vsel %vm807, %v1046, %v1045
      %1049 = vst.msk [vmem:[#allocation3 + $0x6c] sm:$0xff] %vm812, %v1047
      %v1050 = vld [vmem:[%s495] sm:$0xff]
      %v1051 = vld [vmem:[%s495 + $0x8] sm:$0x11]
      %v1053 = vshrl.u32 %v1050, 16
      %v1055 = vrot.slane %v1053, 4
      %v1056 = vshll.u32 %v1050, 16
      %v1058 = vrot.slane %v1056, 5
      %v1059 = vor.u32 %v1055, %v1058
      %v1060 = vrot.slane %v1059, 4
      %v1062 = vshll.u32 %v1051, 16
      %v1064 = vrot.slane %v1062, 5
      %v1065 = vsel %vm756, %v1060, %v1064
      %1067 = vst.msk [vmem:[#allocation3 + $0x74] sm:$0xff] %vm366, %v1065
      %v1068 = vld [vmem:[%s495] sm:$0xee]
      %v1069 = vld [vmem:[%s495 + $0x8] sm:$0x11]
      %v1072 = vrot.slane %v1068, 5
      %v1073 = vrot.slane %v1072, 4
      %v1074 = vrot.slane %v1069, 5
      %v1075 = vsel %vm787, %v1073, %v1074
      %1076 = vrot.lane.b32.xlu0 %v1075, 32
      %v1077 = vpop.permute.xlu0 %1076
      %v1078 = vrot.slane %v1077, 4
      %v1079 = vsel %vm774, %v1078, %v1077
      %1081 = vst.msk [vmem:[#allocation3 + $0x78] sm:$0xff] %vm779, %v1079
      %v1082 = vld [vmem:[%s537] sm:$0xff]
      %1084 = vrot.lane.b32.xlu0 %v1082, 64
      %v1085 = vpop.permute.xlu0 %1084
      %v1086 = vrot.slane %v1085, 4
      %v1087 = vsel %vm795, %v1086, %v1085
      %1089 = vst.msk [vmem:[#allocation3 + $0x7c] sm:$0xff] %vm800, %v1087
      %v1090 = vld [vmem:[%s537] sm:$0xff]
      %v1091 = vld [vmem:[%s537 + $0x8] sm:$0x11]
      %v1093 = vshrl.u32 %v1090, 16
      %v1095 = vrot.slane %v1093, 4
      %v1096 = vshll.u32 %v1090, 16
      %v1098 = vrot.slane %v1096, 5
      %v1099 = vor.u32 %v1095, %v1098
      %v1100 = vrot.slane %v1099, 4
      %v1102 = vshll.u32 %v1091, 16
      %v1104 = vrot.slane %v1102, 5
      %v1105 = vsel %vm756, %v1100, %v1104
      %1106 = vrot.lane.b32.xlu0 %v1105, 96
      %v1107 = vpop.permute.xlu0 %1106
      %v1108 = vrot.slane %v1107, 4
      %v1109 = vsel %vm807, %v1108, %v1107
      %1111 = vst.msk [vmem:[#allocation3 + $0x80] sm:$0xff] %vm812, %v1109
      %v1112 = vld [vmem:[%s537] sm:$0xee]
      %v1113 = vld [vmem:[%s537 + $0x8] sm:$0x11]
      %v1116 = vrot.slane %v1112, 5
      %v1117 = vrot.slane %v1116, 4
      %v1118 = vrot.slane %v1113, 5
      %v1119 = vsel %vm787, %v1117, %v1118
      %1121 = vst.msk [vmem:[#allocation3 + $0x88] sm:$0xff] %vm366, %v1119
      %v1122 = vld [vmem:[%s495] sm:$0xff]
      %1123 = vst.msk [vmem:[#allocation3 + $0x90] sm:$0xff] %vm366, %v1122
      %v1124 = vld [vmem:[%s495] sm:$0xff]
      %v1125 = vld [vmem:[%s495 + $0x8] sm:$0x11]
      %v1127 = vshrl.u32 %v1124, 16
      %v1129 = vrot.slane %v1127, 4
      %v1130 = vshll.u32 %v1124, 16
      %v1132 = vrot.slane %v1130, 5
      %v1133 = vor.u32 %v1129, %v1132
      %v1134 = vrot.slane %v1133, 4
      %v1136 = vshll.u32 %v1125, 16
      %v1138 = vrot.slane %v1136, 5
      %v1139 = vsel %vm756, %v1134, %v1138
      %1140 = vrot.lane.b32.xlu0 %v1139, 32
      %v1141 = vpop.permute.xlu0 %1140
      %v1142 = vrot.slane %v1141, 4
      %v1143 = vsel %vm774, %v1142, %v1141
      %1145 = vst.msk [vmem:[#allocation3 + $0x94] sm:$0xff] %vm779, %v1143
      %v1146 = vld [vmem:[%s495] sm:$0xee]
      %v1147 = vld [vmem:[%s495 + $0x8] sm:$0x11]
      %v1150 = vrot.slane %v1146, 5
      %v1151 = vrot.slane %v1150, 4
      %v1152 = vrot.slane %v1147, 5
      %v1153 = vsel %vm787, %v1151, %v1152
      %1154 = vrot.lane.b32.xlu0 %v1153, 64
      %v1155 = vpop.permute.xlu0 %1154
      %v1156 = vrot.slane %v1155, 4
      %v1157 = vsel %vm795, %v1156, %v1155
      %1159 = vst.msk [vmem:[#allocation3 + $0x98] sm:$0xff] %vm800, %v1157
      %v1160 = vld [vmem:[%s537] sm:$0xff]
      %1162 = vrot.lane.b32.xlu0 %v1160, 96
      %v1163 = vpop.permute.xlu0 %1162
      %v1164 = vrot.slane %v1163, 4
      %v1165 = vsel %vm807, %v1164, %v1163
      %1167 = vst.msk [vmem:[#allocation3 + $0x9c] sm:$0xff] %vm812, %v1165
      %v1168 = vld [vmem:[%s537] sm:$0xff]
      %v1169 = vld [vmem:[%s537 + $0x8] sm:$0x11]
      %v1171 = vshrl.u32 %v1168, 16
      %v1173 = vrot.slane %v1171, 4
      %v1174 = vshll.u32 %v1168, 16
      %v1176 = vrot.slane %v1174, 5
      %v1177 = vor.u32 %v1173, %v1176
      %v1178 = vrot.slane %v1177, 4
      %v1180 = vshll.u32 %v1169, 16
      %v1182 = vrot.slane %v1180, 5
      %v1183 = vsel %vm756, %v1178, %v1182
      %1185 = vst.msk [vmem:[#allocation3 + $0xa4] sm:$0xff] %vm366, %v1183
      %v1186 = vld [vmem:[%s537] sm:$0xee]
      %v1187 = vld [vmem:[%s537 + $0x8] sm:$0x11]
      %v1190 = vrot.slane %v1186, 5
      %v1191 = vrot.slane %v1190, 4
      %v1192 = vrot.slane %v1187, 5
      %v1193 = vsel %vm787, %v1191, %v1192
      %1194 = vrot.lane.b32.xlu0 %v1193, 32
      %v1195 = vpop.permute.xlu0 %1194
      %v1196 = vrot.slane %v1195, 4
      %v1197 = vsel %vm774, %v1196, %v1195
      %1199 = vst.msk [vmem:[#allocation3 + $0xa8] sm:$0xff] %vm779, %v1197
      %v1200 = vld [vmem:[%s579] sm:$0xff]
      %1202 = vrot.lane.b32.xlu0 %v1200, 64
      %v1203 = vpop.permute.xlu0 %1202
      %v1204 = vrot.slane %v1203, 4
      %v1205 = vsel %vm795, %v1204, %v1203
      %1207 = vst.msk [vmem:[#allocation3 + $0xac] sm:$0xff] %vm800, %v1205
      %v1208 = vld [vmem:[%s579] sm:$0xff]
      %v1209 = vld [vmem:[%s579 + $0x8] sm:$0x11]
      %v1211 = vshrl.u32 %v1208, 16
      %v1213 = vrot.slane %v1211, 4
      %v1214 = vshll.u32 %v1208, 16
      %v1216 = vrot.slane %v1214, 5
      %v1217 = vor.u32 %v1213, %v1216
      %v1218 = vrot.slane %v1217, 4
      %v1220 = vshll.u32 %v1209, 16
      %v1222 = vrot.slane %v1220, 5
      %v1223 = vsel %vm756, %v1218, %v1222
      %1224 = vrot.lane.b32.xlu0 %v1223, 96
      %v1225 = vpop.permute.xlu0 %1224
      %v1226 = vrot.slane %v1225, 4
      %v1227 = vsel %vm807, %v1226, %v1225
      %1229 = vst.msk [vmem:[#allocation3 + $0xb0] sm:$0xff] %vm812, %v1227
      %v1230 = vld [vmem:[%s579] sm:$0xee]
      %v1231 = vld [vmem:[%s579 + $0x8] sm:$0x11]
      %v1234 = vrot.slane %v1230, 5
      %v1235 = vrot.slane %v1234, 4
      %v1236 = vrot.slane %v1231, 5
      %v1237 = vsel %vm787, %v1235, %v1236
      %1239 = vst.msk [vmem:[#allocation3 + $0xb8] sm:$0xff] %vm366, %v1237
      %v1240 = vld [vmem:[%s537] sm:$0xff]
      %1241 = vst.msk [vmem:[#allocation3 + $0xc0] sm:$0xff] %vm366, %v1240
      %v1242 = vld [vmem:[%s537] sm:$0xff]
      %v1243 = vld [vmem:[%s537 + $0x8] sm:$0x11]
      %v1245 = vshrl.u32 %v1242, 16
      %v1247 = vrot.slane %v1245, 4
      %v1248 = vshll.u32 %v1242, 16
      %v1250 = vrot.slane %v1248, 5
      %v1251 = vor.u32 %v1247, %v1250
      %v1252 = vrot.slane %v1251, 4
      %v1254 = vshll.u32 %v1243, 16
      %v1256 = vrot.slane %v1254, 5
      %v1257 = vsel %vm756, %v1252, %v1256
      %1258 = vrot.lane.b32.xlu0 %v1257, 32
      %v1259 = vpop.permute.xlu0 %1258
      %v1260 = vrot.slane %v1259, 4
      %v1261 = vsel %vm774, %v1260, %v1259
      %1263 = vst.msk [vmem:[#allocation3 + $0xc4] sm:$0xff] %vm779, %v1261
      %v1264 = vld [vmem:[%s537] sm:$0xee]
      %v1265 = vld [vmem:[%s537 + $0x8] sm:$0x11]
      %v1268 = vrot.slane %v1264, 5
      %v1269 = vrot.slane %v1268, 4
      %v1270 = vrot.slane %v1265, 5
      %v1271 = vsel %vm787, %v1269, %v1270
      %1272 = vrot.lane.b32.xlu0 %v1271, 64
      %v1273 = vpop.permute.xlu0 %1272
      %v1274 = vrot.slane %v1273, 4
      %v1275 = vsel %vm795, %v1274, %v1273
      %1277 = vst.msk [vmem:[#allocation3 + $0xc8] sm:$0xff] %vm800, %v1275
      %v1278 = vld [vmem:[%s579] sm:$0xff]
      %1280 = vrot.lane.b32.xlu0 %v1278, 96
      %v1281 = vpop.permute.xlu0 %1280
      %v1282 = vrot.slane %v1281, 4
      %v1283 = vsel %vm807, %v1282, %v1281
      %1285 = vst.msk [vmem:[#allocation3 + $0xcc] sm:$0xff] %vm812, %v1283
      %v1286 = vld [vmem:[%s579] sm:$0xff]
      %v1287 = vld [vmem:[%s579 + $0x8] sm:$0x11]
      %v1289 = vshrl.u32 %v1286, 16
      %v1291 = vrot.slane %v1289, 4
      %v1292 = vshll.u32 %v1286, 16
      %v1294 = vrot.slane %v1292, 5
      %v1295 = vor.u32 %v1291, %v1294
      %v1296 = vrot.slane %v1295, 4
      %v1298 = vshll.u32 %v1287, 16
      %v1300 = vrot.slane %v1298, 5
      %v1301 = vsel %vm756, %v1296, %v1300
      %1303 = vst.msk [vmem:[#allocation3 + $0xd4] sm:$0xff] %vm366, %v1301
      %v1304 = vld [vmem:[%s579] sm:$0xee]
      %v1305 = vld [vmem:[%s579 + $0x8] sm:$0x11]
      %v1308 = vrot.slane %v1304, 5
      %v1309 = vrot.slane %v1308, 4
      %v1310 = vrot.slane %v1305, 5
      %v1311 = vsel %vm787, %v1309, %v1310
      %1312 = vrot.lane.b32.xlu0 %v1311, 32
      %v1313 = vpop.permute.xlu0 %1312
      %v1314 = vrot.slane %v1313, 4
      %v1315 = vsel %vm774, %v1314, %v1313
      %1317 = vst.msk [vmem:[#allocation3 + $0xd8] sm:$0xff] %vm779, %v1315
      %v1318 = vld [vmem:[%s621] sm:$0xff]
      %1320 = vrot.lane.b32.xlu0 %v1318, 64
      %v1321 = vpop.permute.xlu0 %1320
      %v1322 = vrot.slane %v1321, 4
      %v1323 = vsel %vm795, %v1322, %v1321
      %1325 = vst.msk [vmem:[#allocation3 + $0xdc] sm:$0xff] %vm800, %v1323
      %v1326 = vld [vmem:[%s621] sm:$0xff]
      %v1327 = vld [vmem:[%s621 + $0x8] sm:$0x11]
      %v1329 = vshrl.u32 %v1326, 16
      %v1331 = vrot.slane %v1329, 4
      %v1332 = vshll.u32 %v1326, 16
      %v1334 = vrot.slane %v1332, 5
      %v1335 = vor.u32 %v1331, %v1334
      %v1336 = vrot.slane %v1335, 4
      %v1338 = vshll.u32 %v1327, 16
      %v1340 = vrot.slane %v1338, 5
      %v1341 = vsel %vm756, %v1336, %v1340
      %1342 = vrot.lane.b32.xlu0 %v1341, 96
      %v1343 = vpop.permute.xlu0 %1342
      %v1344 = vrot.slane %v1343, 4
      %v1345 = vsel %vm807, %v1344, %v1343
      %1347 = vst.msk [vmem:[#allocation3 + $0xe0] sm:$0xff] %vm812, %v1345
      %v1348 = vld [vmem:[%s621] sm:$0xee]
      %v1349 = vld [vmem:[%s621 + $0x8] sm:$0x11]
      %v1352 = vrot.slane %v1348, 5
      %v1353 = vrot.slane %v1352, 4
      %v1354 = vrot.slane %v1349, 5
      %v1355 = vsel %vm787, %v1353, %v1354
      %1357 = vst.msk [vmem:[#allocation3 + $0xe8] sm:$0xff] %vm366, %v1355
      %v1358 = vld [vmem:[%s579] sm:$0xff]
      %1359 = vst.msk [vmem:[#allocation3 + $0xf0] sm:$0xff] %vm366, %v1358
      %v1360 = vld [vmem:[%s579] sm:$0xff]
      %v1361 = vld [vmem:[%s579 + $0x8] sm:$0x11]
      %v1363 = vshrl.u32 %v1360, 16
      %v1365 = vrot.slane %v1363, 4
      %v1366 = vshll.u32 %v1360, 16
      %v1368 = vrot.slane %v1366, 5
      %v1369 = vor.u32 %v1365, %v1368
      %v1370 = vrot.slane %v1369, 4
      %v1372 = vshll.u32 %v1361, 16
      %v1374 = vrot.slane %v1372, 5
      %v1375 = vsel %vm756, %v1370, %v1374
      %1376 = vrot.lane.b32.xlu0 %v1375, 32
      %v1377 = vpop.permute.xlu0 %1376
      %v1378 = vrot.slane %v1377, 4
      %v1379 = vsel %vm774, %v1378, %v1377
      %1381 = vst.msk [vmem:[#allocation3 + $0xf4] sm:$0xff] %vm779, %v1379
      %v1382 = vld [vmem:[%s579] sm:$0xee]
      %v1383 = vld [vmem:[%s579 + $0x8] sm:$0x11]
      %v1386 = vrot.slane %v1382, 5
      %v1387 = vrot.slane %v1386, 4
      %v1388 = vrot.slane %v1383, 5
      %v1389 = vsel %vm787, %v1387, %v1388
      %1390 = vrot.lane.b32.xlu0 %v1389, 64
      %v1391 = vpop.permute.xlu0 %1390
      %v1392 = vrot.slane %v1391, 4
      %v1393 = vsel %vm795, %v1392, %v1391
      %1395 = vst.msk [vmem:[#allocation3 + $0xf8] sm:$0xff] %vm800, %v1393
      %v1396 = vld [vmem:[%s621] sm:$0xff]
      %1398 = vrot.lane.b32.xlu0 %v1396, 96
      %v1399 = vpop.permute.xlu0 %1398
      %v1400 = vrot.slane %v1399, 4
      %v1401 = vsel %vm807, %v1400, %v1399
      %1403 = vst.msk [vmem:[#allocation3 + $0xfc] sm:$0xff] %vm812, %v1401
      %v1404 = vld [vmem:[%s621] sm:$0xff]
      %v1405 = vld [vmem:[%s621 + $0x8] sm:$0x11]
      %v1407 = vshrl.u32 %v1404, 16
      %v1409 = vrot.slane %v1407, 4
      %v1410 = vshll.u32 %v1404, 16
      %v1412 = vrot.slane %v1410, 5
      %v1413 = vor.u32 %v1409, %v1412
      %v1414 = vrot.slane %v1413, 4
      %v1416 = vshll.u32 %v1405, 16
      %v1418 = vrot.slane %v1416, 5
      %v1419 = vsel %vm756, %v1414, %v1418
      %1421 = vst.msk [vmem:[#allocation3 + $0x104] sm:$0xff] %vm366, %v1419
      %v1422 = vld [vmem:[%s621] sm:$0xee]
      %v1423 = vld [vmem:[%s621 + $0x8] sm:$0x11]
      %v1426 = vrot.slane %v1422, 5
      %v1427 = vrot.slane %v1426, 4
      %v1428 = vrot.slane %v1423, 5
      %v1429 = vsel %vm787, %v1427, %v1428
      %1430 = vrot.lane.b32.xlu0 %v1429, 32
      %v1431 = vpop.permute.xlu0 %1430
      %v1432 = vrot.slane %v1431, 4
      %v1433 = vsel %vm774, %v1432, %v1431
      %1435 = vst.msk [vmem:[#allocation3 + $0x108] sm:$0xff] %vm779, %v1433
      %v1436 = vld [vmem:[%s663] sm:$0xff]
      %1438 = vrot.lane.b32.xlu0 %v1436, 64
      %v1439 = vpop.permute.xlu0 %1438
      %v1440 = vrot.slane %v1439, 4
      %v1441 = vsel %vm795, %v1440, %v1439
      %1443 = vst.msk [vmem:[#allocation3 + $0x10c] sm:$0xff] %vm800, %v1441
      %v1444 = vld [vmem:[%s663] sm:$0xff]
      %v1445 = vld [vmem:[%s663 + $0x8] sm:$0x11]
      %v1447 = vshrl.u32 %v1444, 16
      %v1449 = vrot.slane %v1447, 4
      %v1450 = vshll.u32 %v1444, 16
      %v1452 = vrot.slane %v1450, 5
      %v1453 = vor.u32 %v1449, %v1452
      %v1454 = vrot.slane %v1453, 4
      %v1456 = vshll.u32 %v1445, 16
      %v1458 = vrot.slane %v1456, 5
      %v1459 = vsel %vm756, %v1454, %v1458
      %1460 = vrot.lane.b32.xlu0 %v1459, 96
      %v1461 = vpop.permute.xlu0 %1460
      %v1462 = vrot.slane %v1461, 4
      %v1463 = vsel %vm807, %v1462, %v1461
      %1465 = vst.msk [vmem:[#allocation3 + $0x110] sm:$0xff] %vm812, %v1463
      %v1466 = vld [vmem:[%s663] sm:$0xee]
      %v1467 = vld [vmem:[%s663 + $0x8] sm:$0x11]
      %v1470 = vrot.slane %v1466, 5
      %v1471 = vrot.slane %v1470, 4
      %v1472 = vrot.slane %v1467, 5
      %v1473 = vsel %vm787, %v1471, %v1472
      %1475 = vst.msk [vmem:[#allocation3 + $0x118] sm:$0xff] %vm366, %v1473
      %v1476 = vld [vmem:[%s621] sm:$0xff]
      %1477 = vst.msk [vmem:[#allocation3 + $0x120] sm:$0xff] %vm366, %v1476
      %v1478 = vld [vmem:[%s621] sm:$0xff]
      %v1479 = vld [vmem:[%s621 + $0x8] sm:$0x11]
      %v1481 = vshrl.u32 %v1478, 16
      %v1483 = vrot.slane %v1481, 4
      %v1484 = vshll.u32 %v1478, 16
      %v1486 = vrot.slane %v1484, 5
      %v1487 = vor.u32 %v1483, %v1486
      %v1488 = vrot.slane %v1487, 4
      %v1490 = vshll.u32 %v1479, 16
      %v1492 = vrot.slane %v1490, 5
      %v1493 = vsel %vm756, %v1488, %v1492
      %1494 = vrot.lane.b32.xlu0 %v1493, 32
      %v1495 = vpop.permute.xlu0 %1494
      %v1496 = vrot.slane %v1495, 4
      %v1497 = vsel %vm774, %v1496, %v1495
      %1499 = vst.msk [vmem:[#allocation3 + $0x124] sm:$0xff] %vm779, %v1497
      %v1500 = vld [vmem:[%s621] sm:$0xee]
      %v1501 = vld [vmem:[%s621 + $0x8] sm:$0x11]
      %v1504 = vrot.slane %v1500, 5
      %v1505 = vrot.slane %v1504, 4
      %v1506 = vrot.slane %v1501, 5
      %v1507 = vsel %vm787, %v1505, %v1506
      %1508 = vrot.lane.b32.xlu0 %v1507, 64
      %v1509 = vpop.permute.xlu0 %1508
      %v1510 = vrot.slane %v1509, 4
      %v1511 = vsel %vm795, %v1510, %v1509
      %1513 = vst.msk [vmem:[#allocation3 + $0x128] sm:$0xff] %vm800, %v1511
      %v1514 = vld [vmem:[%s663] sm:$0xff]
      %1516 = vrot.lane.b32.xlu0 %v1514, 96
      %v1517 = vpop.permute.xlu0 %1516
      %v1518 = vrot.slane %v1517, 4
      %v1519 = vsel %vm807, %v1518, %v1517
      %1521 = vst.msk [vmem:[#allocation3 + $0x12c] sm:$0xff] %vm812, %v1519
      %v1522 = vld [vmem:[%s663] sm:$0xff]
      %v1523 = vld [vmem:[%s663 + $0x8] sm:$0x11]
      %v1525 = vshrl.u32 %v1522, 16
      %v1527 = vrot.slane %v1525, 4
      %v1528 = vshll.u32 %v1522, 16
      %v1530 = vrot.slane %v1528, 5
      %v1531 = vor.u32 %v1527, %v1530
      %v1532 = vrot.slane %v1531, 4
      %v1534 = vshll.u32 %v1523, 16
      %v1536 = vrot.slane %v1534, 5
      %v1537 = vsel %vm756, %v1532, %v1536
      %1539 = vst.msk [vmem:[#allocation3 + $0x134] sm:$0xff] %vm366, %v1537
      %v1540 = vld [vmem:[%s663] sm:$0xee]
      %v1541 = vld [vmem:[%s663 + $0x8] sm:$0x11]
      %v1544 = vrot.slane %v1540, 5
      %v1545 = vrot.slane %v1544, 4
      %v1546 = vrot.slane %v1541, 5
      %v1547 = vsel %vm787, %v1545, %v1546
      %1548 = vrot.lane.b32.xlu0 %v1547, 32
      %v1549 = vpop.permute.xlu0 %1548
      %v1550 = vrot.slane %v1549, 4
      %v1551 = vsel %vm774, %v1550, %v1549
      %1553 = vst.msk [vmem:[#allocation3 + $0x138] sm:$0xff] %vm779, %v1551
      %v1554 = vld [vmem:[%s705] sm:$0xff]
      %1556 = vrot.lane.b32.xlu0 %v1554, 64
      %v1557 = vpop.permute.xlu0 %1556
      %v1558 = vrot.slane %v1557, 4
      %v1559 = vsel %vm795, %v1558, %v1557
      %1561 = vst.msk [vmem:[#allocation3 + $0x13c] sm:$0xff] %vm800, %v1559
      %v1562 = vld [vmem:[%s705] sm:$0xff]
      %v1563 = vld [vmem:[%s705 + $0x8] sm:$0x11]
      %v1565 = vshrl.u32 %v1562, 16
      %v1567 = vrot.slane %v1565, 4
      %v1568 = vshll.u32 %v1562, 16
      %v1570 = vrot.slane %v1568, 5
      %v1571 = vor.u32 %v1567, %v1570
      %v1572 = vrot.slane %v1571, 4
      %v1574 = vshll.u32 %v1563, 16
      %v1576 = vrot.slane %v1574, 5
      %v1577 = vsel %vm756, %v1572, %v1576
      %1578 = vrot.lane.b32.xlu0 %v1577, 96
      %v1579 = vpop.permute.xlu0 %1578
      %v1580 = vrot.slane %v1579, 4
      %v1581 = vsel %vm807, %v1580, %v1579
      %1583 = vst.msk [vmem:[#allocation3 + $0x140] sm:$0xff] %vm812, %v1581
      %v1584 = vld [vmem:[%s705] sm:$0xee]
      %v1585 = vld [vmem:[%s705 + $0x8] sm:$0x11]
      %v1588 = vrot.slane %v1584, 5
      %v1589 = vrot.slane %v1588, 4
      %v1590 = vrot.slane %v1585, 5
      %v1591 = vsel %vm787, %v1589, %v1590
      %1593 = vst.msk [vmem:[#allocation3 + $0x148] sm:$0xff] %vm366, %v1591
      %v1594 = vld [vmem:[%s663] sm:$0xff]
      %1595 = vst.msk [vmem:[#allocation3 + $0x150] sm:$0xff] %vm366, %v1594
      %v1596 = vld [vmem:[%s663] sm:$0xff]
      %v1597 = vld [vmem:[%s663 + $0x8] sm:$0x11]
      %v1599 = vshrl.u32 %v1596, 16
      %v1601 = vrot.slane %v1599, 4
      %v1602 = vshll.u32 %v1596, 16
      %v1604 = vrot.slane %v1602, 5
      %v1605 = vor.u32 %v1601, %v1604
      %v1606 = vrot.slane %v1605, 4
      %v1608 = vshll.u32 %v1597, 16
      %v1610 = vrot.slane %v1608, 5
      %v1611 = vsel %vm756, %v1606, %v1610
      %1612 = vrot.lane.b32.xlu0 %v1611, 32
      %v1613 = vpop.permute.xlu0 %1612
      %v1614 = vrot.slane %v1613, 4
      %v1615 = vsel %vm774, %v1614, %v1613
      %1617 = vst.msk [vmem:[#allocation3 + $0x154] sm:$0xff] %vm779, %v1615
      %v1618 = vld [vmem:[%s663] sm:$0xee]
      %v1619 = vld [vmem:[%s663 + $0x8] sm:$0x11]
      %v1622 = vrot.slane %v1618, 5
      %v1623 = vrot.slane %v1622, 4
      %v1624 = vrot.slane %v1619, 5
      %v1625 = vsel %vm787, %v1623, %v1624
      %1626 = vrot.lane.b32.xlu0 %v1625, 64
      %v1627 = vpop.permute.xlu0 %1626
      %v1628 = vrot.slane %v1627, 4
      %v1629 = vsel %vm795, %v1628, %v1627
      %1631 = vst.msk [vmem:[#allocation3 + $0x158] sm:$0xff] %vm800, %v1629
      %v1632 = vld [vmem:[%s705] sm:$0xff]
      %1634 = vrot.lane.b32.xlu0 %v1632, 96
      %v1635 = vpop.permute.xlu0 %1634
      %v1636 = vrot.slane %v1635, 4
      %v1637 = vsel %vm807, %v1636, %v1635
      %1639 = vst.msk [vmem:[#allocation3 + $0x15c] sm:$0xff] %vm812, %v1637
      %v1640 = vld [vmem:[%s705] sm:$0xff]
      %v1641 = vld [vmem:[%s705 + $0x8] sm:$0x11]
      %v1643 = vshrl.u32 %v1640, 16
      %v1645 = vrot.slane %v1643, 4
      %v1646 = vshll.u32 %v1640, 16
      %v1648 = vrot.slane %v1646, 5
      %v1649 = vor.u32 %v1645, %v1648
      %v1650 = vrot.slane %v1649, 4
      %v1652 = vshll.u32 %v1641, 16
      %v1654 = vrot.slane %v1652, 5
      %v1655 = vsel %vm756, %v1650, %v1654
      %1657 = vst.msk [vmem:[#allocation3 + $0x164] sm:$0xff] %vm366, %v1655
      %v1658 = vld [vmem:[%s705] sm:$0xee]
      %v1659 = vld [vmem:[%s705 + $0x8] sm:$0x11]
      %v1662 = vrot.slane %v1658, 5
      %v1663 = vrot.slane %v1662, 4
      %v1664 = vrot.slane %v1659, 5
      %v1665 = vsel %vm787, %v1663, %v1664
      %1666 = vrot.lane.b32.xlu0 %v1665, 32
      %v1667 = vpop.permute.xlu0 %1666
      %v1668 = vrot.slane %v1667, 4
      %v1669 = vsel %vm774, %v1668, %v1667
      %1671 = vst.msk [vmem:[#allocation3 + $0x168] sm:$0xff] %vm779, %v1669
      %v1672 = vld [vmem:[%s747] sm:$0xff]
      %1674 = vrot.lane.b32.xlu0 %v1672, 64
      %v1675 = vpop.permute.xlu0 %1674
      %v1676 = vrot.slane %v1675, 4
      %v1677 = vsel %vm795, %v1676, %v1675
      %1679 = vst.msk [vmem:[#allocation3 + $0x16c] sm:$0xff] %vm800, %v1677
      %v1680 = vld [vmem:[%s747] sm:$0xff]
      %v1681 = vld [vmem:[%s747 + $0x8] sm:$0x11]
      %v1683 = vshrl.u32 %v1680, 16
      %v1685 = vrot.slane %v1683, 4
      %v1686 = vshll.u32 %v1680, 16
      %v1688 = vrot.slane %v1686, 5
      %v1689 = vor.u32 %v1685, %v1688
      %v1690 = vrot.slane %v1689, 4
      %v1692 = vshll.u32 %v1681, 16
      %v1694 = vrot.slane %v1692, 5
      %v1695 = vsel %vm756, %v1690, %v1694
      %1696 = vrot.lane.b32.xlu0 %v1695, 96
      %v1697 = vpop.permute.xlu0 %1696
      %v1698 = vrot.slane %v1697, 4
      %v1699 = vsel %vm807, %v1698, %v1697
      %1701 = vst.msk [vmem:[#allocation3 + $0x170] sm:$0xff] %vm812, %v1699
      %v1702 = vld [vmem:[%s747] sm:$0xee]
      %v1703 = vld [vmem:[%s747 + $0x8] sm:$0x11]
      %v1706 = vrot.slane %v1702, 5
      %v1707 = vrot.slane %v1706, 4
      %v1708 = vrot.slane %v1703, 5
      %v1709 = vsel %vm787, %v1707, %v1708
      %1711 = vst.msk [vmem:[#allocation3 + $0x178] sm:$0xff] %vm366, %v1709
      %v1712 = vld [vmem:[#allocation3] sm:$0xff]
      %v1713 = vld [vmem:[#allocation3 + $0x8] sm:$0xff]
      %v1714 = vld [vmem:[#allocation3 + $0x10] sm:$0xff]
      %v1715 = vld [vmem:[#allocation3 + $0x18] sm:$0xff]
      %v1716 = vld [vmem:[#allocation3 + $0x20] sm:$0xff]
      %v1717 = vld [vmem:[#allocation3 + $0x28] sm:$0xff]
      %v1718 = vld [vmem:[#allocation3 + $0x30] sm:$0xff]
      %v1719 = vld [vmem:[#allocation3 + $0x38] sm:$0xff]
      %v1720 = vld [vmem:[#allocation3 + $0x40] sm:$0xff]
      %v1721 = vld [vmem:[#allocation3 + $0x48] sm:$0xff]
      %v1722 = vld [vmem:[#allocation3 + $0x50] sm:$0xff]
      %v1723 = vld [vmem:[#allocation3 + $0x58] sm:$0xff]
      %v1724 = vld [vmem:[#allocation3 + $0x60] sm:$0xff]
      %v1725 = vld [vmem:[#allocation3 + $0x68] sm:$0xff]
      %v1726 = vld [vmem:[#allocation3 + $0x70] sm:$0xff]
      %v1727 = vld [vmem:[#allocation3 + $0x78] sm:$0xff]
      %v1728 = vld [vmem:[#allocation3 + $0x80] sm:$0xff]
      %v1729 = vld [vmem:[#allocation3 + $0x88] sm:$0xff]
      %v1730 = vld [vmem:[#allocation3 + $0x90] sm:$0xff]
      %v1731 = vld [vmem:[#allocation3 + $0x98] sm:$0xff]
      %v1732 = vld [vmem:[#allocation3 + $0xa0] sm:$0xff]
      %v1733 = vld [vmem:[#allocation3 + $0xa8] sm:$0xff]
      %v1734 = vld [vmem:[#allocation3 + $0xb0] sm:$0xff]
      %v1735 = vld [vmem:[#allocation3 + $0xb8] sm:$0xff]
      %v1736 = vld [vmem:[#allocation3 + $0xc0] sm:$0xff]
      %v1737 = vld [vmem:[#allocation3 + $0xc8] sm:$0xff]
      %v1738 = vld [vmem:[#allocation3 + $0xd0] sm:$0xff]
      %v1739 = vld [vmem:[#allocation3 + $0xd8] sm:$0xff]
      %v1740 = vld [vmem:[#allocation3 + $0xe0] sm:$0xff]
      %v1741 = vld [vmem:[#allocation3 + $0xe8] sm:$0xff]
      %v1742 = vld [vmem:[#allocation3 + $0xf0] sm:$0xff]
      %v1743 = vld [vmem:[#allocation3 + $0xf8] sm:$0xff]
      %v1744 = vld [vmem:[#allocation3 + $0x100] sm:$0xff]
      %v1745 = vld [vmem:[#allocation3 + $0x108] sm:$0xff]
      %v1746 = vld [vmem:[#allocation3 + $0x110] sm:$0xff]
      %v1747 = vld [vmem:[#allocation3 + $0x118] sm:$0xff]
      %v1748 = vld [vmem:[#allocation3 + $0x120] sm:$0xff]
      %v1749 = vld [vmem:[#allocation3 + $0x128] sm:$0xff]
      %v1750 = vld [vmem:[#allocation3 + $0x130] sm:$0xff]
      %v1751 = vld [vmem:[#allocation3 + $0x138] sm:$0xff]
      %v1752 = vld [vmem:[#allocation3 + $0x140] sm:$0xff]
      %v1753 = vld [vmem:[#allocation3 + $0x148] sm:$0xff]
      %v1754 = vld [vmem:[#allocation3 + $0x150] sm:$0xff]
      %v1755 = vld [vmem:[#allocation3 + $0x158] sm:$0xff]
      %v1756 = vld [vmem:[#allocation3 + $0x160] sm:$0xff]
      %v1757 = vld [vmem:[#allocation3 + $0x168] sm:$0xff]
      %v1758 = vld [vmem:[#allocation3 + $0x170] sm:$0xff]
      %v1759 = vld [vmem:[#allocation3 + $0x178] sm:$0xff]
      %v1760 = vld [vmem:[%s2] sm:$0xf]
      %v1761 = vld [vmem:[%s2 + $0x4] sm:$0xf]
      %v1762 = vld [vmem:[%s2 + $0x8] sm:$0xf]
      %v1763 = vld [vmem:[%s2 + $0xc] sm:$0xf]
      %v1764 = vld [vmem:[%s2 + $0x10] sm:$0xf]
      %v1765 = vld [vmem:[%s2 + $0x14] sm:$0xf]
      %v1766 = vld [vmem:[%s2 + $0x18] sm:$0xf]
      %v1767 = vld [vmem:[%s2 + $0x1c] sm:$0xf]
      %v1768 = vld [vmem:[%s2 + $0x20] sm:$0xf]
      %v1769 = vld [vmem:[%s2 + $0x24] sm:$0xf]
      %v1770 = vld [vmem:[%s2 + $0x28] sm:$0xf]
      %v1771 = vld [vmem:[%s2 + $0x2c] sm:$0xf]
      %v1772 = vld [vmem:[%s2 + $0x30] sm:$0xf]
      %v1773 = vld [vmem:[%s2 + $0x34] sm:$0xf]
      %v1774 = vld [vmem:[%s2 + $0x38] sm:$0xf]
      %v1775 = vld [vmem:[%s2 + $0x3c] sm:$0xf]
      %v1776 = vld [vmem:[%s2 + $0x40] sm:$0xf]
      %v1777 = vld [vmem:[%s2 + $0x44] sm:$0xf]
      %v1778 = vld [vmem:[%s2 + $0x48] sm:$0xf]
      %v1779 = vld [vmem:[%s2 + $0x4c] sm:$0xf]
      %v1780 = vld [vmem:[%s2 + $0x50] sm:$0xf]
      %v1781 = vld [vmem:[%s2 + $0x54] sm:$0xf]
      %v1782 = vld [vmem:[%s2 + $0x58] sm:$0xf]
      %v1783 = vld [vmem:[%s2 + $0x5c] sm:$0xf]
      %v1784 = vld [vmem:[%s2 + $0x60] sm:$0xf]
      %v1785 = vld [vmem:[%s2 + $0x64] sm:$0xf]
      %v1786 = vld [vmem:[%s2 + $0x68] sm:$0xf]
      %v1787 = vld [vmem:[%s2 + $0x6c] sm:$0xf]
      %v1788 = vld [vmem:[%s2 + $0x70] sm:$0xf]
      %v1789 = vld [vmem:[%s2 + $0x74] sm:$0xf]
      %v1790 = vld [vmem:[%s2 + $0x78] sm:$0xf]
      %v1791 = vld [vmem:[%s2 + $0x7c] sm:$0xf]
      %v1792 = vld [vmem:[%s2 + $0x80] sm:$0xf]
      %v1793 = vld [vmem:[%s2 + $0x84] sm:$0xf]
      %v1794 = vld [vmem:[%s2 + $0x88] sm:$0xf]
      %v1795 = vld [vmem:[%s2 + $0x8c] sm:$0xf]
      %v1796 = vld [vmem:[%s2 + $0x90] sm:$0xf]
      %v1797 = vld [vmem:[%s2 + $0x94] sm:$0xf]
      %v1798 = vld [vmem:[%s2 + $0x98] sm:$0xf]
      %v1799 = vld [vmem:[%s2 + $0x9c] sm:$0xf]
      %v1800 = vld [vmem:[%s2 + $0xa0] sm:$0xf]
      %v1801 = vld [vmem:[%s2 + $0xa4] sm:$0xf]
      %v1802 = vld [vmem:[%s2 + $0xa8] sm:$0xf]
      %v1803 = vld [vmem:[%s2 + $0xac] sm:$0xf]
      %v1804 = vld [vmem:[%s2 + $0xb0] sm:$0xf]
      %v1805 = vld [vmem:[%s2 + $0xb4] sm:$0xf]
      %v1806 = vld [vmem:[%s2 + $0xb8] sm:$0xf]
      %v1807 = vld [vmem:[%s2 + $0xbc] sm:$0xf]
      %v1808 = vld [vmem:[%s2 + $0xc0] sm:$0xf]
      %v1809 = vld [vmem:[%s2 + $0xc4] sm:$0xf]
      %v1810 = vld [vmem:[%s2 + $0xc8] sm:$0xf]
      %v1811 = vld [vmem:[%s2 + $0xcc] sm:$0xf]
      %v1812 = vld [vmem:[%s2 + $0xd0] sm:$0xf]
      %v1813 = vld [vmem:[%s2 + $0xd4] sm:$0xf]
      %v1814 = vld [vmem:[%s2 + $0xd8] sm:$0xf]
      %v1815 = vld [vmem:[%s2 + $0xdc] sm:$0xf]
      %v1816 = vld [vmem:[%s2 + $0xe0] sm:$0xf]
      %v1817 = vld [vmem:[%s2 + $0xe4] sm:$0xf]
      %v1818 = vld [vmem:[%s2 + $0xe8] sm:$0xf]
      %v1819 = vld [vmem:[%s2 + $0xec] sm:$0xf]
      %v1820 = vld [vmem:[%s2 + $0xf0] sm:$0xf]
      %v1821 = vld [vmem:[%s2 + $0xf4] sm:$0xf]
      %v1822 = vld [vmem:[%s2 + $0xf8] sm:$0xf]
      %v1823 = vld [vmem:[%s2 + $0xfc] sm:$0xf]
      %v1824 = vld [vmem:[%s2 + $0x100] sm:$0xf]
      %v1825 = vld [vmem:[%s2 + $0x104] sm:$0xf]
      %v1826 = vld [vmem:[%s2 + $0x108] sm:$0xf]
      %v1827 = vld [vmem:[%s2 + $0x10c] sm:$0xf]
      %v1828 = vld [vmem:[%s2 + $0x110] sm:$0xf]
      %v1829 = vld [vmem:[%s2 + $0x114] sm:$0xf]
      %v1830 = vld [vmem:[%s2 + $0x118] sm:$0xf]
      %v1831 = vld [vmem:[%s2 + $0x11c] sm:$0xf]
      %v1832 = vld [vmem:[%s2 + $0x120] sm:$0xf]
      %v1833 = vld [vmem:[%s2 + $0x124] sm:$0xf]
      %v1834 = vld [vmem:[%s2 + $0x128] sm:$0xf]
      %v1835 = vld [vmem:[%s2 + $0x12c] sm:$0xf]
      %v1836 = vld [vmem:[%s2 + $0x130] sm:$0xf]
      %v1837 = vld [vmem:[%s2 + $0x134] sm:$0xf]
      %v1838 = vld [vmem:[%s2 + $0x138] sm:$0xf]
      %v1839 = vld [vmem:[%s2 + $0x13c] sm:$0xf]
      %v1840 = vld [vmem:[%s2 + $0x140] sm:$0xf]
      %v1841 = vld [vmem:[%s2 + $0x144] sm:$0xf]
      %v1842 = vld [vmem:[%s2 + $0x148] sm:$0xf]
      %v1843 = vld [vmem:[%s2 + $0x14c] sm:$0xf]
      %v1844 = vld [vmem:[%s2 + $0x150] sm:$0xf]
      %v1845 = vld [vmem:[%s2 + $0x154] sm:$0xf]
      %v1846 = vld [vmem:[%s2 + $0x158] sm:$0xf]
      %v1847 = vld [vmem:[%s2 + $0x15c] sm:$0xf]
      %v1848 = vld [vmem:[%s2 + $0x160] sm:$0xf]
      %v1849 = vld [vmem:[%s2 + $0x164] sm:$0xf]
      %v1850 = vld [vmem:[%s2 + $0x168] sm:$0xf]
      %v1851 = vld [vmem:[%s2 + $0x16c] sm:$0xf]
      %v1852 = vld [vmem:[%s2 + $0x170] sm:$0xf]
      %v1853 = vld [vmem:[%s2 + $0x174] sm:$0xf]
      %v1854 = vld [vmem:[%s2 + $0x178] sm:$0xf]
      %v1855 = vld [vmem:[%s2 + $0x17c] sm:$0xf]
      %v1856 = vld [vmem:[%s2 + $0x180] sm:$0xf]
      %v1857 = vld [vmem:[%s2 + $0x184] sm:$0xf]
      %v1858 = vld [vmem:[%s2 + $0x188] sm:$0xf]
      %v1859 = vld [vmem:[%s2 + $0x18c] sm:$0xf]
      %v1860 = vld [vmem:[%s2 + $0x190] sm:$0xf]
      %v1861 = vld [vmem:[%s2 + $0x194] sm:$0xf]
      %v1862 = vld [vmem:[%s2 + $0x198] sm:$0xf]
      %v1863 = vld [vmem:[%s2 + $0x19c] sm:$0xf]
      %v1864 = vld [vmem:[%s2 + $0x1a0] sm:$0xf]
      %v1865 = vld [vmem:[%s2 + $0x1a4] sm:$0xf]
      %v1866 = vld [vmem:[%s2 + $0x1a8] sm:$0xf]
      %v1867 = vld [vmem:[%s2 + $0x1ac] sm:$0xf]
      %v1868 = vld [vmem:[%s2 + $0x1b0] sm:$0xf]
      %v1869 = vld [vmem:[%s2 + $0x1b4] sm:$0xf]
      %v1870 = vld [vmem:[%s2 + $0x1b8] sm:$0xf]
      %v1871 = vld [vmem:[%s2 + $0x1bc] sm:$0xf]
      %v1872 = vld [vmem:[%s2 + $0x1c0] sm:$0xf]
      %v1873 = vld [vmem:[%s2 + $0x1c4] sm:$0xf]
      %v1874 = vld [vmem:[%s2 + $0x1c8] sm:$0xf]
      %v1875 = vld [vmem:[%s2 + $0x1cc] sm:$0xf]
      %v1876 = vld [vmem:[%s2 + $0x1d0] sm:$0xf]
      %v1877 = vld [vmem:[%s2 + $0x1d4] sm:$0xf]
      %v1878 = vld [vmem:[%s2 + $0x1d8] sm:$0xf]
      %v1879 = vld [vmem:[%s2 + $0x1dc] sm:$0xf]
      %v1880 = vld [vmem:[%s2 + $0x1e0] sm:$0xf]
      %v1881 = vld [vmem:[%s2 + $0x1e4] sm:$0xf]
      %v1882 = vld [vmem:[%s2 + $0x1e8] sm:$0xf]
      %v1883 = vld [vmem:[%s2 + $0x1ec] sm:$0xf]
      %v1884 = vld [vmem:[%s2 + $0x1f0] sm:$0xf]
      %v1885 = vld [vmem:[%s2 + $0x1f4] sm:$0xf]
      %v1886 = vld [vmem:[%s2 + $0x1f8] sm:$0xf]
      %v1887 = vld [vmem:[%s2 + $0x1fc] sm:$0xf]
      %v1888 = vld [vmem:[%s2 + $0x200] sm:$0xf]
      %v1889 = vld [vmem:[%s2 + $0x204] sm:$0xf]
      %v1890 = vld [vmem:[%s2 + $0x208] sm:$0xf]
      %v1891 = vld [vmem:[%s2 + $0x20c] sm:$0xf]
      %v1892 = vld [vmem:[%s2 + $0x210] sm:$0xf]
      %v1893 = vld [vmem:[%s2 + $0x214] sm:$0xf]
      %v1894 = vld [vmem:[%s2 + $0x218] sm:$0xf]
      %v1895 = vld [vmem:[%s2 + $0x21c] sm:$0xf]
      %v1896 = vld [vmem:[%s2 + $0x220] sm:$0xf]
      %v1897 = vld [vmem:[%s2 + $0x224] sm:$0xf]
      %v1898 = vld [vmem:[%s2 + $0x228] sm:$0xf]
      %v1899 = vld [vmem:[%s2 + $0x22c] sm:$0xf]
      %v1900 = vld [vmem:[%s2 + $0x230] sm:$0xf]
      %v1901 = vld [vmem:[%s2 + $0x234] sm:$0xf]
      %v1902 = vld [vmem:[%s2 + $0x238] sm:$0xf]
      %v1903 = vld [vmem:[%s2 + $0x23c] sm:$0xf]
      %v1904 = vld [vmem:[%s2 + $0x240] sm:$0xf]
      %v1905 = vld [vmem:[%s2 + $0x244] sm:$0xf]
      %v1906 = vld [vmem:[%s2 + $0x248] sm:$0xf]
      %v1907 = vld [vmem:[%s2 + $0x24c] sm:$0xf]
      %v1908 = vld [vmem:[%s2 + $0x250] sm:$0xf]
      %v1909 = vld [vmem:[%s2 + $0x254] sm:$0xf]
      %v1910 = vld [vmem:[%s2 + $0x258] sm:$0xf]
      %v1911 = vld [vmem:[%s2 + $0x25c] sm:$0xf]
      %v1912 = vld [vmem:[%s2 + $0x260] sm:$0xf]
      %v1913 = vld [vmem:[%s2 + $0x264] sm:$0xf]
      %v1914 = vld [vmem:[%s2 + $0x268] sm:$0xf]
      %v1915 = vld [vmem:[%s2 + $0x26c] sm:$0xf]
      %v1916 = vld [vmem:[%s2 + $0x270] sm:$0xf]
      %v1917 = vld [vmem:[%s2 + $0x274] sm:$0xf]
      %v1918 = vld [vmem:[%s2 + $0x278] sm:$0xf]
      %v1919 = vld [vmem:[%s2 + $0x27c] sm:$0xf]
      %v1920 = vld [vmem:[%s2 + $0x280] sm:$0xf]
      %v1921 = vld [vmem:[%s2 + $0x284] sm:$0xf]
      %v1922 = vld [vmem:[%s2 + $0x288] sm:$0xf]
      %v1923 = vld [vmem:[%s2 + $0x28c] sm:$0xf]
      %v1924 = vld [vmem:[%s2 + $0x290] sm:$0xf]
      %v1925 = vld [vmem:[%s2 + $0x294] sm:$0xf]
      %v1926 = vld [vmem:[%s2 + $0x298] sm:$0xf]
      %v1927 = vld [vmem:[%s2 + $0x29c] sm:$0xf]
      %v1928 = vld [vmem:[%s2 + $0x2a0] sm:$0xf]
      %v1929 = vld [vmem:[%s2 + $0x2a4] sm:$0xf]
      %v1930 = vld [vmem:[%s2 + $0x2a8] sm:$0xf]
      %v1931 = vld [vmem:[%s2 + $0x2ac] sm:$0xf]
      %v1932 = vld [vmem:[%s2 + $0x2b0] sm:$0xf]
      %v1933 = vld [vmem:[%s2 + $0x2b4] sm:$0xf]
      %v1934 = vld [vmem:[%s2 + $0x2b8] sm:$0xf]
      %v1935 = vld [vmem:[%s2 + $0x2bc] sm:$0xf]
      %v1936 = vld [vmem:[%s2 + $0x2c0] sm:$0xf]
      %v1937 = vld [vmem:[%s2 + $0x2c4] sm:$0xf]
      %v1938 = vld [vmem:[%s2 + $0x2c8] sm:$0xf]
      %v1939 = vld [vmem:[%s2 + $0x2cc] sm:$0xf]
      %v1940 = vld [vmem:[%s3] sm:$0x1]
      %v1942 = vlaneseq
      %v1943 = vshrl.u32 %v1942, 7
      %v1944 = vsub.s32 0, %v1943
      %v1945 = vrot.slane %v1940, %v1944
      %v1995 = vunpack.c.l.b16 %v1712
      %v1996 = vunpack.c.h.b16 %v1712
      %v1997 = vunpack.c.l.b16 %v1713
      %v1998 = vunpack.c.h.b16 %v1713
      %v1999 = vunpack.c.l.b16 %v1714
      %v2000 = vunpack.c.h.b16 %v1714
      %v2001 = vunpack.c.l.b16 %v1715
      %v2002 = vunpack.c.h.b16 %v1715
      %v2003 = vunpack.c.l.b16 %v1716
      %v2004 = vunpack.c.h.b16 %v1716
      %v2005 = vunpack.c.l.b16 %v1717
      %v2006 = vunpack.c.h.b16 %v1717
      %v2007 = vunpack.c.l.b16 %v1718
      %v2008 = vunpack.c.h.b16 %v1718
      %v2009 = vunpack.c.l.b16 %v1719
      %v2010 = vunpack.c.h.b16 %v1719
      %v2011 = vunpack.c.l.b16 %v1720
      %v2012 = vunpack.c.h.b16 %v1720
      %v2013 = vunpack.c.l.b16 %v1721
      %v2014 = vunpack.c.h.b16 %v1721
      %v2015 = vunpack.c.l.b16 %v1722
      %v2016 = vunpack.c.h.b16 %v1722
      %v2017 = vunpack.c.l.b16 %v1723
      %v2018 = vunpack.c.h.b16 %v1723
      %v2019 = vunpack.c.l.b16 %v1724
      %v2020 = vunpack.c.h.b16 %v1724
      %v2021 = vunpack.c.l.b16 %v1725
      %v2022 = vunpack.c.h.b16 %v1725
      %v2023 = vunpack.c.l.b16 %v1726
      %v2024 = vunpack.c.h.b16 %v1726
      %v2025 = vunpack.c.l.b16 %v1727
      %v2026 = vunpack.c.h.b16 %v1727
      %v2027 = vunpack.c.l.b16 %v1728
      %v2028 = vunpack.c.h.b16 %v1728
      %v2029 = vunpack.c.l.b16 %v1729
      %v2030 = vunpack.c.h.b16 %v1729
      %v2031 = vunpack.c.l.b16 %v1730
      %v2032 = vunpack.c.h.b16 %v1730
      %v2033 = vunpack.c.l.b16 %v1731
      %v2034 = vunpack.c.h.b16 %v1731
      %v2035 = vunpack.c.l.b16 %v1732
      %v2036 = vunpack.c.h.b16 %v1732
      %v2037 = vunpack.c.l.b16 %v1733
      %v2038 = vunpack.c.h.b16 %v1733
      %v2039 = vunpack.c.l.b16 %v1734
      %v2040 = vunpack.c.h.b16 %v1734
      %v2041 = vunpack.c.l.b16 %v1735
      %v2042 = vunpack.c.h.b16 %v1735
      %v2043 = vunpack.c.l.b16 %v1736
      %v2044 = vunpack.c.h.b16 %v1736
      %v2045 = vunpack.c.l.b16 %v1737
      %v2046 = vunpack.c.h.b16 %v1737
      %v2047 = vunpack.c.l.b16 %v1738
      %v2048 = vunpack.c.h.b16 %v1738
      %v2049 = vunpack.c.l.b16 %v1739
      %v2050 = vunpack.c.h.b16 %v1739
      %v2051 = vunpack.c.l.b16 %v1740
      %v2052 = vunpack.c.h.b16 %v1740
      %v2053 = vunpack.c.l.b16 %v1741
      %v2054 = vunpack.c.h.b16 %v1741
      %v2055 = vunpack.c.l.b16 %v1742
      %v2056 = vunpack.c.h.b16 %v1742
      %v2057 = vunpack.c.l.b16 %v1743
      %v2058 = vunpack.c.h.b16 %v1743
      %v2059 = vunpack.c.l.b16 %v1744
      %v2060 = vunpack.c.h.b16 %v1744
      %v2061 = vunpack.c.l.b16 %v1745
      %v2062 = vunpack.c.h.b16 %v1745
      %v2063 = vunpack.c.l.b16 %v1746
      %v2064 = vunpack.c.h.b16 %v1746
      %v2065 = vunpack.c.l.b16 %v1747
      %v2066 = vunpack.c.h.b16 %v1747
      %v2067 = vunpack.c.l.b16 %v1748
      %v2068 = vunpack.c.h.b16 %v1748
      %v2069 = vunpack.c.l.b16 %v1749
      %v2070 = vunpack.c.h.b16 %v1749
      %v2071 = vunpack.c.l.b16 %v1750
      %v2072 = vunpack.c.h.b16 %v1750
      %v2073 = vunpack.c.l.b16 %v1751
      %v2074 = vunpack.c.h.b16 %v1751
      %v2075 = vunpack.c.l.b16 %v1752
      %v2076 = vunpack.c.h.b16 %v1752
      %v2077 = vunpack.c.l.b16 %v1753
      %v2078 = vunpack.c.h.b16 %v1753
      %v2079 = vunpack.c.l.b16 %v1754
      %v2080 = vunpack.c.h.b16 %v1754
      %v2081 = vunpack.c.l.b16 %v1755
      %v2082 = vunpack.c.h.b16 %v1755
      %v2083 = vunpack.c.l.b16 %v1756
      %v2084 = vunpack.c.h.b16 %v1756
      %v2085 = vunpack.c.l.b16 %v1757
      %v2086 = vunpack.c.h.b16 %v1757
      %v2087 = vunpack.c.l.b16 %v1758
      %v2088 = vunpack.c.h.b16 %v1758
      %v2089 = vunpack.c.l.b16 %v1759
      %v2090 = vunpack.c.h.b16 %v1759
      %v2091 = vpack.c.b16 %v2007, %v1995
      %v2092 = vpack.c.b16 %v2008, %v1996
      %v2093 = vpack.c.b16 %v2009, %v1997
      %v2094 = vpack.c.b16 %v2010, %v1998
      %v2095 = vpack.c.b16 %v2011, %v1999
      %v2096 = vpack.c.b16 %v2012, %v2000
      %v2097 = vpack.c.b16 %v2013, %v2001
      %v2098 = vpack.c.b16 %v2014, %v2002
      %v2099 = vpack.c.b16 %v2015, %v2003
      %v2100 = vpack.c.b16 %v2016, %v2004
      %v2101 = vpack.c.b16 %v2017, %v2005
      %v2102 = vpack.c.b16 %v2018, %v2006
      %v2103 = vpack.c.b16 %v2031, %v2019
      %v2104 = vpack.c.b16 %v2032, %v2020
      %v2105 = vpack.c.b16 %v2033, %v2021
      %v2106 = vpack.c.b16 %v2034, %v2022
      %v2107 = vpack.c.b16 %v2035, %v2023
      %v2108 = vpack.c.b16 %v2036, %v2024
      %v2109 = vpack.c.b16 %v2037, %v2025
      %v2110 = vpack.c.b16 %v2038, %v2026
      %v2111 = vpack.c.b16 %v2039, %v2027
      %v2112 = vpack.c.b16 %v2040, %v2028
      %v2113 = vpack.c.b16 %v2041, %v2029
      %v2114 = vpack.c.b16 %v2042, %v2030
      %v2115 = vpack.c.b16 %v2055, %v2043
      %v2116 = vpack.c.b16 %v2056, %v2044
      %v2117 = vpack.c.b16 %v2057, %v2045
      %v2118 = vpack.c.b16 %v2058, %v2046
      %v2119 = vpack.c.b16 %v2059, %v2047
      %v2120 = vpack.c.b16 %v2060, %v2048
      %v2121 = vpack.c.b16 %v2061, %v2049
      %v2122 = vpack.c.b16 %v2062, %v2050
      %v2123 = vpack.c.b16 %v2063, %v2051
      %v2124 = vpack.c.b16 %v2064, %v2052
      %v2125 = vpack.c.b16 %v2065, %v2053
      %v2126 = vpack.c.b16 %v2066, %v2054
      %v2127 = vpack.c.b16 %v2079, %v2067
      %v2128 = vpack.c.b16 %v2080, %v2068
      %v2129 = vpack.c.b16 %v2081, %v2069
      %v2130 = vpack.c.b16 %v2082, %v2070
      %v2131 = vpack.c.b16 %v2083, %v2071
      %v2132 = vpack.c.b16 %v2084, %v2072
      %v2133 = vpack.c.b16 %v2085, %v2073
      %v2134 = vpack.c.b16 %v2086, %v2074
      %v2135 = vpack.c.b16 %v2087, %v2075
      %v2136 = vpack.c.b16 %v2088, %v2076
      %v2137 = vpack.c.b16 %v2089, %v2077
      %v2138 = vpack.c.b16 %v2090, %v2078
      %v2363 = vunpack.c.l.b16 %v1760
      %v2364 = vunpack.c.l.b16 %v1761
      %v2365 = vunpack.c.l.b16 %v1762
      %v2366 = vunpack.c.l.b16 %v1763
      %v2367 = vunpack.c.l.b16 %v1764
      %v2368 = vunpack.c.l.b16 %v1765
      %v2369 = vunpack.c.l.b16 %v1766
      %v2370 = vunpack.c.l.b16 %v1767
      %v2371 = vunpack.c.l.b16 %v1768
      %v2372 = vunpack.c.l.b16 %v1769
      %v2373 = vunpack.c.l.b16 %v1770
      %v2374 = vunpack.c.l.b16 %v1771
      %v2375 = vunpack.c.l.b16 %v1772
      %v2376 = vunpack.c.l.b16 %v1773
      %v2377 = vunpack.c.l.b16 %v1774
      %v2378 = vunpack.c.l.b16 %v1775
      %v2379 = vunpack.c.l.b16 %v1776
      %v2380 = vunpack.c.l.b16 %v1777
      %v2381 = vunpack.c.l.b16 %v1778
      %v2382 = vunpack.c.l.b16 %v1779
      %v2383 = vunpack.c.l.b16 %v1780
      %v2384 = vunpack.c.l.b16 %v1781
      %v2385 = vunpack.c.l.b16 %v1782
      %v2386 = vunpack.c.l.b16 %v1783
      %v2387 = vunpack.c.l.b16 %v1784
      %v2388 = vunpack.c.l.b16 %v1785
      %v2389 = vunpack.c.l.b16 %v1786
      %v2390 = vunpack.c.l.b16 %v1787
      %v2391 = vunpack.c.l.b16 %v1788
      %v2392 = vunpack.c.l.b16 %v1789
      %v2393 = vunpack.c.l.b16 %v1790
      %v2394 = vunpack.c.l.b16 %v1791
      %v2395 = vunpack.c.l.b16 %v1792
      %v2396 = vunpack.c.l.b16 %v1793
      %v2397 = vunpack.c.l.b16 %v1794
      %v2398 = vunpack.c.l.b16 %v1795
      %v2399 = vunpack.c.l.b16 %v1796
      %v2400 = vunpack.c.l.b16 %v1797
      %v2401 = vunpack.c.l.b16 %v1798
      %v2402 = vunpack.c.l.b16 %v1799
      %v2403 = vunpack.c.l.b16 %v1800
      %v2404 = vunpack.c.l.b16 %v1801
      %v2405 = vunpack.c.l.b16 %v1802
      %v2406 = vunpack.c.l.b16 %v1803
      %v2407 = vunpack.c.l.b16 %v1804
      %v2408 = vunpack.c.l.b16 %v1805
      %v2409 = vunpack.c.l.b16 %v1806
      %v2410 = vunpack.c.l.b16 %v1807
      %v2411 = vunpack.c.l.b16 %v1808
      %v2412 = vunpack.c.l.b16 %v1809
      %v2413 = vunpack.c.l.b16 %v1810
      %v2414 = vunpack.c.l.b16 %v1811
      %v2415 = vunpack.c.l.b16 %v1812
      %v2416 = vunpack.c.l.b16 %v1813
      %v2417 = vunpack.c.l.b16 %v1814
      %v2418 = vunpack.c.l.b16 %v1815
      %v2419 = vunpack.c.l.b16 %v1816
      %v2420 = vunpack.c.l.b16 %v1817
      %v2421 = vunpack.c.l.b16 %v1818
      %v2422 = vunpack.c.l.b16 %v1819
      %v2423 = vunpack.c.l.b16 %v1820
      %v2424 = vunpack.c.l.b16 %v1821
      %v2425 = vunpack.c.l.b16 %v1822
      %v2426 = vunpack.c.l.b16 %v1823
      %v2427 = vunpack.c.l.b16 %v1824
      %v2428 = vunpack.c.l.b16 %v1825
      %v2429 = vunpack.c.l.b16 %v1826
      %v2430 = vunpack.c.l.b16 %v1827
      %v2431 = vunpack.c.l.b16 %v1828
      %v2432 = vunpack.c.l.b16 %v1829
      %v2433 = vunpack.c.l.b16 %v1830
      %v2434 = vunpack.c.l.b16 %v1831
      %v2435 = vunpack.c.l.b16 %v1832
      %v2436 = vunpack.c.l.b16 %v1833
      %v2437 = vunpack.c.l.b16 %v1834
      %v2438 = vunpack.c.l.b16 %v1835
      %v2439 = vunpack.c.l.b16 %v1836
      %v2440 = vunpack.c.l.b16 %v1837
      %v2441 = vunpack.c.l.b16 %v1838
      %v2442 = vunpack.c.l.b16 %v1839
      %v2443 = vunpack.c.l.b16 %v1840
      %v2444 = vunpack.c.l.b16 %v1841
      %v2445 = vunpack.c.l.b16 %v1842
      %v2446 = vunpack.c.l.b16 %v1843
      %v2447 = vunpack.c.l.b16 %v1844
      %v2448 = vunpack.c.l.b16 %v1845
      %v2449 = vunpack.c.l.b16 %v1846
      %v2450 = vunpack.c.l.b16 %v1847
      %v2451 = vunpack.c.l.b16 %v1848
      %v2452 = vunpack.c.l.b16 %v1849
      %v2453 = vunpack.c.l.b16 %v1850
      %v2454 = vunpack.c.l.b16 %v1851
      %v2455 = vunpack.c.l.b16 %v1852
      %v2456 = vunpack.c.l.b16 %v1853
      %v2457 = vunpack.c.l.b16 %v1854
      %v2458 = vunpack.c.l.b16 %v1855
      %v2459 = vunpack.c.l.b16 %v1856
      %v2460 = vunpack.c.l.b16 %v1857
      %v2461 = vunpack.c.l.b16 %v1858
      %v2462 = vunpack.c.l.b16 %v1859
      %v2463 = vunpack.c.l.b16 %v1860
      %v2464 = vunpack.c.l.b16 %v1861
      %v2465 = vunpack.c.l.b16 %v1862
      %v2466 = vunpack.c.l.b16 %v1863
      %v2467 = vunpack.c.l.b16 %v1864
      %v2468 = vunpack.c.l.b16 %v1865
      %v2469 = vunpack.c.l.b16 %v1866
      %v2470 = vunpack.c.l.b16 %v1867
      %v2471 = vunpack.c.l.b16 %v1868
      %v2472 = vunpack.c.l.b16 %v1869
      %v2473 = vunpack.c.l.b16 %v1870
      %v2474 = vunpack.c.l.b16 %v1871
      %v2475 = vunpack.c.l.b16 %v1872
      %v2476 = vunpack.c.l.b16 %v1873
      %v2477 = vunpack.c.l.b16 %v1874
      %v2478 = vunpack.c.l.b16 %v1875
      %v2479 = vunpack.c.l.b16 %v1876
      %v2480 = vunpack.c.l.b16 %v1877
      %v2481 = vunpack.c.l.b16 %v1878
      %v2482 = vunpack.c.l.b16 %v1879
      %v2483 = vunpack.c.l.b16 %v1880
      %v2484 = vunpack.c.l.b16 %v1881
      %v2485 = vunpack.c.l.b16 %v1882
      %v2486 = vunpack.c.l.b16 %v1883
      %v2487 = vunpack.c.l.b16 %v1884
      %v2488 = vunpack.c.l.b16 %v1885
      %v2489 = vunpack.c.l.b16 %v1886
      %v2490 = vunpack.c.l.b16 %v1887
      %v2491 = vunpack.c.l.b16 %v1888
      %v2492 = vunpack.c.l.b16 %v1889
      %v2493 = vunpack.c.l.b16 %v1890
      %v2494 = vunpack.c.l.b16 %v1891
      %v2495 = vunpack.c.l.b16 %v1892
      %v2496 = vunpack.c.l.b16 %v1893
      %v2497 = vunpack.c.l.b16 %v1894
      %v2498 = vunpack.c.l.b16 %v1895
      %v2499 = vunpack.c.l.b16 %v1896
      %v2500 = vunpack.c.l.b16 %v1897
      %v2501 = vunpack.c.l.b16 %v1898
      %v2502 = vunpack.c.l.b16 %v1899
      %v2503 = vunpack.c.l.b16 %v1900
      %v2504 = vunpack.c.l.b16 %v1901
      %v2505 = vunpack.c.l.b16 %v1902
      %v2506 = vunpack.c.l.b16 %v1903
      %v2507 = vunpack.c.l.b16 %v1904
      %v2508 = vunpack.c.l.b16 %v1905
      %v2509 = vunpack.c.l.b16 %v1906
      %v2510 = vunpack.c.l.b16 %v1907
      %v2511 = vunpack.c.l.b16 %v1908
      %v2512 = vunpack.c.l.b16 %v1909
      %v2513 = vunpack.c.l.b16 %v1910
      %v2514 = vunpack.c.l.b16 %v1911
      %v2515 = vunpack.c.l.b16 %v1912
      %v2516 = vunpack.c.l.b16 %v1913
      %v2517 = vunpack.c.l.b16 %v1914
      %v2518 = vunpack.c.l.b16 %v1915
      %v2519 = vunpack.c.l.b16 %v1916
      %v2520 = vunpack.c.l.b16 %v1917
      %v2521 = vunpack.c.l.b16 %v1918
      %v2522 = vunpack.c.l.b16 %v1919
      %v2523 = vunpack.c.l.b16 %v1920
      %v2524 = vunpack.c.l.b16 %v1921
      %v2525 = vunpack.c.l.b16 %v1922
      %v2526 = vunpack.c.l.b16 %v1923
      %v2527 = vunpack.c.l.b16 %v1924
      %v2528 = vunpack.c.l.b16 %v1925
      %v2529 = vunpack.c.l.b16 %v1926
      %v2530 = vunpack.c.l.b16 %v1927
      %v2531 = vunpack.c.l.b16 %v1928
      %v2532 = vunpack.c.l.b16 %v1929
      %v2533 = vunpack.c.l.b16 %v1930
      %v2534 = vunpack.c.l.b16 %v1931
      %v2535 = vunpack.c.l.b16 %v1932
      %v2536 = vunpack.c.l.b16 %v1933
      %v2537 = vunpack.c.l.b16 %v1934
      %v2538 = vunpack.c.l.b16 %v1935
      %v2539 = vunpack.c.l.b16 %v1936
      %v2540 = vunpack.c.l.b16 %v1937
      %v2541 = vunpack.c.l.b16 %v1938
      %v2542 = vunpack.c.l.b16 %v1939
      %v2543 = vpack.c.b16 %v2364, %v2363
      %v2544 = vpack.c.b16 %v2366, %v2365
      %v2545 = vpack.c.b16 %v2368, %v2367
      %v2546 = vpack.c.b16 %v2370, %v2369
      %v2547 = vpack.c.b16 %v2372, %v2371
      %v2548 = vpack.c.b16 %v2374, %v2373
      %v2549 = vpack.c.b16 %v2376, %v2375
      %v2550 = vpack.c.b16 %v2378, %v2377
      %v2551 = vpack.c.b16 %v2380, %v2379
      %v2552 = vpack.c.b16 %v2382, %v2381
      %v2553 = vpack.c.b16 %v2384, %v2383
      %v2554 = vpack.c.b16 %v2386, %v2385
      %v2555 = vpack.c.b16 %v2388, %v2387
      %v2556 = vpack.c.b16 %v2390, %v2389
      %v2557 = vpack.c.b16 %v2392, %v2391
      %v2558 = vpack.c.b16 %v2394, %v2393
      %v2559 = vpack.c.b16 %v2396, %v2395
      %v2560 = vpack.c.b16 %v2398, %v2397
      %v2561 = vpack.c.b16 %v2400, %v2399
      %v2562 = vpack.c.b16 %v2402, %v2401
      %v2563 = vpack.c.b16 %v2404, %v2403
      %v2564 = vpack.c.b16 %v2406, %v2405
      %v2565 = vpack.c.b16 %v2408, %v2407
      %v2566 = vpack.c.b16 %v2410, %v2409
      %v2567 = vpack.c.b16 %v2412, %v2411
      %v2568 = vpack.c.b16 %v2414, %v2413
      %v2569 = vpack.c.b16 %v2416, %v2415
      %v2570 = vpack.c.b16 %v2418, %v2417
      %v2571 = vpack.c.b16 %v2420, %v2419
      %v2572 = vpack.c.b16 %v2422, %v2421
      %v2573 = vpack.c.b16 %v2424, %v2423
      %v2574 = vpack.c.b16 %v2426, %v2425
      %v2575 = vpack.c.b16 %v2428, %v2427
      %v2576 = vpack.c.b16 %v2430, %v2429
      %v2577 = vpack.c.b16 %v2432, %v2431
      %v2578 = vpack.c.b16 %v2434, %v2433
      %v2579 = vpack.c.b16 %v2436, %v2435
      %v2580 = vpack.c.b16 %v2438, %v2437
      %v2581 = vpack.c.b16 %v2440, %v2439
      %v2582 = vpack.c.b16 %v2442, %v2441
      %v2583 = vpack.c.b16 %v2444, %v2443
      %v2584 = vpack.c.b16 %v2446, %v2445
      %v2585 = vpack.c.b16 %v2448, %v2447
      %v2586 = vpack.c.b16 %v2450, %v2449
      %v2587 = vpack.c.b16 %v2452, %v2451
      %v2588 = vpack.c.b16 %v2454, %v2453
      %v2589 = vpack.c.b16 %v2456, %v2455
      %v2590 = vpack.c.b16 %v2458, %v2457
      %v2591 = vpack.c.b16 %v2460, %v2459
      %v2592 = vpack.c.b16 %v2462, %v2461
      %v2593 = vpack.c.b16 %v2464, %v2463
      %v2594 = vpack.c.b16 %v2466, %v2465
      %v2595 = vpack.c.b16 %v2468, %v2467
      %v2596 = vpack.c.b16 %v2470, %v2469
      %v2597 = vpack.c.b16 %v2472, %v2471
      %v2598 = vpack.c.b16 %v2474, %v2473
      %v2599 = vpack.c.b16 %v2476, %v2475
      %v2600 = vpack.c.b16 %v2478, %v2477
      %v2601 = vpack.c.b16 %v2480, %v2479
      %v2602 = vpack.c.b16 %v2482, %v2481
      %v2603 = vpack.c.b16 %v2484, %v2483
      %v2604 = vpack.c.b16 %v2486, %v2485
      %v2605 = vpack.c.b16 %v2488, %v2487
      %v2606 = vpack.c.b16 %v2490, %v2489
      %v2607 = vpack.c.b16 %v2492, %v2491
      %v2608 = vpack.c.b16 %v2494, %v2493
      %v2609 = vpack.c.b16 %v2496, %v2495
      %v2610 = vpack.c.b16 %v2498, %v2497
      %v2611 = vpack.c.b16 %v2500, %v2499
      %v2612 = vpack.c.b16 %v2502, %v2501
      %v2613 = vpack.c.b16 %v2504, %v2503
      %v2614 = vpack.c.b16 %v2506, %v2505
      %v2615 = vpack.c.b16 %v2508, %v2507
      %v2616 = vpack.c.b16 %v2510, %v2509
      %v2617 = vpack.c.b16 %v2512, %v2511
      %v2618 = vpack.c.b16 %v2514, %v2513
      %v2619 = vpack.c.b16 %v2516, %v2515
      %v2620 = vpack.c.b16 %v2518, %v2517
      %v2621 = vpack.c.b16 %v2520, %v2519
      %v2622 = vpack.c.b16 %v2522, %v2521
      %v2623 = vpack.c.b16 %v2524, %v2523
      %v2624 = vpack.c.b16 %v2526, %v2525
      %v2625 = vpack.c.b16 %v2528, %v2527
      %v2626 = vpack.c.b16 %v2530, %v2529
      %v2627 = vpack.c.b16 %v2532, %v2531
      %v2628 = vpack.c.b16 %v2534, %v2533
      %v2629 = vpack.c.b16 %v2536, %v2535
      %v2630 = vpack.c.b16 %v2538, %v2537
      %v2631 = vpack.c.b16 %v2540, %v2539
      %v2632 = vpack.c.b16 %v2542, %v2541
      %vm2723 = vcmask 261120
      %v2725 = vsel %vm2723, %v2102, 0
      %v2728 = vsel %vm2723, %v2114, 0
      %v2731 = vsel %vm2723, %v2126, 0
      %v2734 = vsel %vm2723, %v2138, 0
      %2736 = vmatprep.subr.bf16.mxu0 0
      %2737 = vmatpush1.bf16.msra.mxu0 %v2550
      %2738 = vmatprep.subr.bf16.mxu0 0
      %2739 = vmatpush1.bf16.msra.mxu0 %v2549
      %2740 = vmatprep.subr.bf16.mxu0 0
      %2741 = vmatpush1.bf16.msra.mxu0 %v2548
      %2742 = vmatprep.subr.bf16.mxu0 0
      %2743 = vmatpush1.bf16.msra.mxu0 %v2547
      %2744 = vmatprep.subr.bf16.mxu0 0
      %2745 = vmatpush1.bf16.msra.mxu0 %v2546
      %2746 = vmatprep.subr.bf16.mxu0 0
      %2747 = vmatpush1.bf16.msra.mxu0 %v2545
      %2748 = vmatprep.subr.bf16.mxu0 0
      %2749 = vmatpush1.bf16.msra.mxu0 %v2544
      %2750 = vmatprep.subr.bf16.mxu0 0
      %2751 = vmatpush1.bf16.msra.mxu0 %v2543
      %2752 = vmatprep.subr.bf16.mxu0 0
      %2753 = vmatpush2.bf16.msra.mxu0 %v2558
      %2754 = vmatprep.subr.bf16.mxu0 0
      %2755 = vmatpush2.bf16.msra.mxu0 %v2557
      %2756 = vmatprep.subr.bf16.mxu0 0
      %2757 = vmatpush2.bf16.msra.mxu0 %v2556
      %2758 = vmatprep.subr.bf16.mxu0 0
      %2759 = vmatpush2.bf16.msra.mxu0 %v2555
      %2760 = vmatprep.subr.bf16.mxu0 0
      %2761 = vmatpush2.bf16.msra.mxu0 %v2554
      %2762 = vmatprep.subr.bf16.mxu0 0
      %2763 = vmatpush2.bf16.msra.mxu0 %v2553
      %2764 = vmatprep.subr.bf16.mxu0 0
      %2765 = vmatpush2.bf16.msra.mxu0 %v2552
      %2766 = vmatprep.subr.bf16.mxu0 0
      %2767 = vmatpush2.bf16.msra.mxu0 %v2551
      %2768 = vmatprep.mubr.bf16.mxu0 %v2092
      %2769 = vmatmul.mubr.bf16.gmra.mxu0 %v2091
      %v2770 = vpop.f32.mrf.mxu0
      %v2771 = vadd.f32 %v1945, %v2770
      %v2772 = vpop.f32.mrf.mxu0
      %v2773 = vpop.f32.mrf.mxu0
      %v2774 = vadd.f32 %v1945, %v2773
      %v2775 = vpop.f32.mrf.mxu0
      %2776 = vmatprep.mubr.bf16.mxu0 %v2104
      %2777 = vmatmul.mubr.bf16.gmra.mxu0 %v2103
      %v2778 = vpop.f32.mrf.mxu0
      %v2779 = vadd.f32 %v1945, %v2778
      %v2780 = vpop.f32.mrf.mxu0
      %v2781 = vpop.f32.mrf.mxu0
      %v2782 = vadd.f32 %v1945, %v2781
      %v2783 = vpop.f32.mrf.mxu0
      %2784 = vmatprep.mubr.bf16.mxu0 %v2116
      %2785 = vmatmul.mubr.bf16.gmra.mxu0 %v2115
      %v2786 = vpop.f32.mrf.mxu0
      %v2787 = vadd.f32 %v1945, %v2786
      %v2788 = vpop.f32.mrf.mxu0
      %v2789 = vpop.f32.mrf.mxu0
      %v2790 = vadd.f32 %v1945, %v2789
      %v2791 = vpop.f32.mrf.mxu0
      %2792 = vmatprep.mubr.bf16.mxu0 %v2128
      %2793 = vmatmul.mubr.bf16.gmra.mxu0 %v2127
      %v2794 = vpop.f32.mrf.mxu0
      %v2795 = vadd.f32 %v1945, %v2794
      %v2796 = vpop.f32.mrf.mxu0
      %v2797 = vpop.f32.mrf.mxu0
      %v2798 = vadd.f32 %v1945, %v2797
      %v2799 = vpop.f32.mrf.mxu0
      %2800 = vdwg.mxu0
      %2801 = vmatprep.subr.bf16.mxu0 0
      %2802 = vmatpush1.bf16.msra.mxu0 %v2566
      %2803 = vmatprep.subr.bf16.mxu0 0
      %2804 = vmatpush1.bf16.msra.mxu0 %v2565
      %2805 = vmatprep.subr.bf16.mxu0 0
      %2806 = vmatpush1.bf16.msra.mxu0 %v2564
      %2807 = vmatprep.subr.bf16.mxu0 0
      %2808 = vmatpush1.bf16.msra.mxu0 %v2563
      %2809 = vmatprep.subr.bf16.mxu0 0
      %2810 = vmatpush1.bf16.msra.mxu0 %v2562
      %2811 = vmatprep.subr.bf16.mxu0 0
      %2812 = vmatpush1.bf16.msra.mxu0 %v2561
      %2813 = vmatprep.subr.bf16.mxu0 0
      %2814 = vmatpush1.bf16.msra.mxu0 %v2560
      %2815 = vmatprep.subr.bf16.mxu0 0
      %2816 = vmatpush1.bf16.msra.mxu0 %v2559
      %2817 = vmatprep.subr.bf16.mxu0 0
      %2818 = vmatpush2.bf16.msra.mxu0 %v2574
      %2819 = vmatprep.subr.bf16.mxu0 0
      %2820 = vmatpush2.bf16.msra.mxu0 %v2573
      %2821 = vmatprep.subr.bf16.mxu0 0
      %2822 = vmatpush2.bf16.msra.mxu0 %v2572
      %2823 = vmatprep.subr.bf16.mxu0 0
      %2824 = vmatpush2.bf16.msra.mxu0 %v2571
      %2825 = vmatprep.subr.bf16.mxu0 0
      %2826 = vmatpush2.bf16.msra.mxu0 %v2570
      %2827 = vmatprep.subr.bf16.mxu0 0
      %2828 = vmatpush2.bf16.msra.mxu0 %v2569
      %2829 = vmatprep.subr.bf16.mxu0 0
      %2830 = vmatpush2.bf16.msra.mxu0 %v2568
      %2831 = vmatprep.subr.bf16.mxu0 0
      %2832 = vmatpush2.bf16.msra.mxu0 %v2567
      %2833 = vmatprep.mubr.bf16.mxu0 %v2094
      %2834 = vmatmul.mubr.bf16.gmra.mxu0 %v2093
      %v2835 = vpop.f32.mrf.mxu0
      %v2836 = vadd.f32 %v2771, %v2835
      %v2837 = vpop.f32.mrf.mxu0
      %v2838 = vpop.f32.mrf.mxu0
      %v2839 = vadd.f32 %v2774, %v2838
      %v2840 = vpop.f32.mrf.mxu0
      %2841 = vmatprep.mubr.bf16.mxu0 %v2106
      %2842 = vmatmul.mubr.bf16.gmra.mxu0 %v2105
      %v2843 = vpop.f32.mrf.mxu0
      %v2844 = vadd.f32 %v2779, %v2843
      %v2845 = vpop.f32.mrf.mxu0
      %v2846 = vpop.f32.mrf.mxu0
      %v2847 = vadd.f32 %v2782, %v2846
      %v2848 = vpop.f32.mrf.mxu0
      %2849 = vmatprep.mubr.bf16.mxu0 %v2118
      %2850 = vmatmul.mubr.bf16.gmra.mxu0 %v2117
      %v2851 = vpop.f32.mrf.mxu0
      %v2852 = vadd.f32 %v2787, %v2851
      %v2853 = vpop.f32.mrf.mxu0
      %v2854 = vpop.f32.mrf.mxu0
      %v2855 = vadd.f32 %v2790, %v2854
      %v2856 = vpop.f32.mrf.mxu0
      %2857 = vmatprep.mubr.bf16.mxu0 %v2130
      %2858 = vmatmul.mubr.bf16.gmra.mxu0 %v2129
      %v2859 = vpop.f32.mrf.mxu0
      %v2860 = vadd.f32 %v2795, %v2859
      %v2861 = vpop.f32.mrf.mxu0
      %v2862 = vpop.f32.mrf.mxu0
      %v2863 = vadd.f32 %v2798, %v2862
      %v2864 = vpop.f32.mrf.mxu0
      %2865 = vdwg.mxu0
      %2866 = vmatprep.subr.bf16.mxu0 0
      %2867 = vmatpush1.bf16.msra.mxu0 %v2582
      %2868 = vmatprep.subr.bf16.mxu0 0
      %2869 = vmatpush1.bf16.msra.mxu0 %v2581
      %2870 = vmatprep.subr.bf16.mxu0 0
      %2871 = vmatpush1.bf16.msra.mxu0 %v2580
      %2872 = vmatprep.subr.bf16.mxu0 0
      %2873 = vmatpush1.bf16.msra.mxu0 %v2579
      %2874 = vmatprep.subr.bf16.mxu0 0
      %2875 = vmatpush1.bf16.msra.mxu0 %v2578
      %2876 = vmatprep.subr.bf16.mxu0 0
      %2877 = vmatpush1.bf16.msra.mxu0 %v2577
      %2878 = vmatprep.subr.bf16.mxu0 0
      %2879 = vmatpush1.bf16.msra.mxu0 %v2576
      %2880 = vmatprep.subr.bf16.mxu0 0
      %2881 = vmatpush1.bf16.msra.mxu0 %v2575
      %2882 = vmatprep.subr.bf16.mxu0 0
      %2883 = vmatpush2.bf16.msra.mxu0 %v2590
      %2884 = vmatprep.subr.bf16.mxu0 0
      %2885 = vmatpush2.bf16.msra.mxu0 %v2589
      %2886 = vmatprep.subr.bf16.mxu0 0
      %2887 = vmatpush2.bf16.msra.mxu0 %v2588
      %2888 = vmatprep.subr.bf16.mxu0 0
      %2889 = vmatpush2.bf16.msra.mxu0 %v2587
      %2890 = vmatprep.subr.bf16.mxu0 0
      %2891 = vmatpush2.bf16.msra.mxu0 %v2586
      %2892 = vmatprep.subr.bf16.mxu0 0
      %2893 = vmatpush2.bf16.msra.mxu0 %v2585
      %2894 = vmatprep.subr.bf16.mxu0 0
      %2895 = vmatpush2.bf16.msra.mxu0 %v2584
      %2896 = vmatprep.subr.bf16.mxu0 0
      %2897 = vmatpush2.bf16.msra.mxu0 %v2583
      %2898 = vmatprep.mubr.bf16.mxu0 %v2096
      %2899 = vmatmul.mubr.bf16.gmra.mxu0 %v2095
      %v2900 = vpop.f32.mrf.mxu0
      %v2901 = vadd.f32 %v2836, %v2900
      %v2902 = vpop.f32.mrf.mxu0
      %v2903 = vpop.f32.mrf.mxu0
      %v2904 = vadd.f32 %v2839, %v2903
      %v2905 = vpop.f32.mrf.mxu0
      %2906 = vmatprep.mubr.bf16.mxu0 %v2108
      %2907 = vmatmul.mubr.bf16.gmra.mxu0 %v2107
      %v2908 = vpop.f32.mrf.mxu0
      %v2909 = vadd.f32 %v2844, %v2908
      %v2910 = vpop.f32.mrf.mxu0
      %v2911 = vpop.f32.mrf.mxu0
      %v2912 = vadd.f32 %v2847, %v2911
      %v2913 = vpop.f32.mrf.mxu0
      %2914 = vmatprep.mubr.bf16.mxu0 %v2120
      %2915 = vmatmul.mubr.bf16.gmra.mxu0 %v2119
      %v2916 = vpop.f32.mrf.mxu0
      %v2917 = vadd.f32 %v2852, %v2916
      %v2918 = vpop.f32.mrf.mxu0
      %v2919 = vpop.f32.mrf.mxu0
      %v2920 = vadd.f32 %v2855, %v2919
      %v2921 = vpop.f32.mrf.mxu0
      %2922 = vmatprep.mubr.bf16.mxu0 %v2132
      %2923 = vmatmul.mubr.bf16.gmra.mxu0 %v2131
      %v2924 = vpop.f32.mrf.mxu0
      %v2925 = vadd.f32 %v2860, %v2924
      %v2926 = vpop.f32.mrf.mxu0
      %v2927 = vpop.f32.mrf.mxu0
      %v2928 = vadd.f32 %v2863, %v2927
      %v2929 = vpop.f32.mrf.mxu0
      %2930 = vdwg.mxu0
      %2931 = vmatprep.subr.bf16.mxu0 0
      %2932 = vmatpush1.bf16.msra.mxu0 %v2598
      %2933 = vmatprep.subr.bf16.mxu0 0
      %2934 = vmatpush1.bf16.msra.mxu0 %v2597
      %2935 = vmatprep.subr.bf16.mxu0 0
      %2936 = vmatpush1.bf16.msra.mxu0 %v2596
      %2937 = vmatprep.subr.bf16.mxu0 0
      %2938 = vmatpush1.bf16.msra.mxu0 %v2595
      %2939 = vmatprep.subr.bf16.mxu0 0
      %2940 = vmatpush1.bf16.msra.mxu0 %v2594
      %2941 = vmatprep.subr.bf16.mxu0 0
      %2942 = vmatpush1.bf16.msra.mxu0 %v2593
      %2943 = vmatprep.subr.bf16.mxu0 0
      %2944 = vmatpush1.bf16.msra.mxu0 %v2592
      %2945 = vmatprep.subr.bf16.mxu0 0
      %2946 = vmatpush1.bf16.msra.mxu0 %v2591
      %2947 = vmatprep.subr.bf16.mxu0 0
      %2948 = vmatpush2.bf16.msra.mxu0 %v2606
      %2949 = vmatprep.subr.bf16.mxu0 0
      %2950 = vmatpush2.bf16.msra.mxu0 %v2605
      %2951 = vmatprep.subr.bf16.mxu0 0
      %2952 = vmatpush2.bf16.msra.mxu0 %v2604
      %2953 = vmatprep.subr.bf16.mxu0 0
      %2954 = vmatpush2.bf16.msra.mxu0 %v2603
      %2955 = vmatprep.subr.bf16.mxu0 0
      %2956 = vmatpush2.bf16.msra.mxu0 %v2602
      %2957 = vmatprep.subr.bf16.mxu0 0
      %2958 = vmatpush2.bf16.msra.mxu0 %v2601
      %2959 = vmatprep.subr.bf16.mxu0 0
      %2960 = vmatpush2.bf16.msra.mxu0 %v2600
      %2961 = vmatprep.subr.bf16.mxu0 0
      %2962 = vmatpush2.bf16.msra.mxu0 %v2599
      %2963 = vmatprep.mubr.bf16.mxu0 %v2098
      %2964 = vmatmul.mubr.bf16.gmra.mxu0 %v2097
      %v2965 = vpop.f32.mrf.mxu0
      %v2966 = vadd.f32 %v2901, %v2965
      %v2967 = vpop.f32.mrf.mxu0
      %v2968 = vpop.f32.mrf.mxu0
      %v2969 = vadd.f32 %v2904, %v2968
      %v2970 = vpop.f32.mrf.mxu0
      %2971 = vmatprep.mubr.bf16.mxu0 %v2110
      %2972 = vmatmul.mubr.bf16.gmra.mxu0 %v2109
      %v2973 = vpop.f32.mrf.mxu0
      %v2974 = vadd.f32 %v2909, %v2973
      %v2975 = vpop.f32.mrf.mxu0
      %v2976 = vpop.f32.mrf.mxu0
      %v2977 = vadd.f32 %v2912, %v2976
      %v2978 = vpop.f32.mrf.mxu0
      %2979 = vmatprep.mubr.bf16.mxu0 %v2122
      %2980 = vmatmul.mubr.bf16.gmra.mxu0 %v2121
      %v2981 = vpop.f32.mrf.mxu0
      %v2982 = vadd.f32 %v2917, %v2981
      %v2983 = vpop.f32.mrf.mxu0
      %v2984 = vpop.f32.mrf.mxu0
      %v2985 = vadd.f32 %v2920, %v2984
      %v2986 = vpop.f32.mrf.mxu0
      %2987 = vmatprep.mubr.bf16.mxu0 %v2134
      %2988 = vmatmul.mubr.bf16.gmra.mxu0 %v2133
      %v2989 = vpop.f32.mrf.mxu0
      %v2990 = vadd.f32 %v2925, %v2989
      %v2991 = vpop.f32.mrf.mxu0
      %v2992 = vpop.f32.mrf.mxu0
      %v2993 = vadd.f32 %v2928, %v2992
      %v2994 = vpop.f32.mrf.mxu0
      %2995 = vdwg.mxu0
      %2996 = vmatprep.subr.bf16.mxu0 0
      %2997 = vmatpush1.bf16.msra.mxu0 %v2614
      %2998 = vmatprep.subr.bf16.mxu0 0
      %2999 = vmatpush1.bf16.msra.mxu0 %v2613
      %3000 = vmatprep.subr.bf16.mxu0 0
      %3001 = vmatpush1.bf16.msra.mxu0 %v2612
      %3002 = vmatprep.subr.bf16.mxu0 0
      %3003 = vmatpush1.bf16.msra.mxu0 %v2611
      %3004 = vmatprep.subr.bf16.mxu0 0
      %3005 = vmatpush1.bf16.msra.mxu0 %v2610
      %3006 = vmatprep.subr.bf16.mxu0 0
      %3007 = vmatpush1.bf16.msra.mxu0 %v2609
      %3008 = vmatprep.subr.bf16.mxu0 0
      %3009 = vmatpush1.bf16.msra.mxu0 %v2608
      %3010 = vmatprep.subr.bf16.mxu0 0
      %3011 = vmatpush1.bf16.msra.mxu0 %v2607
      %3012 = vmatprep.subr.bf16.mxu0 0
      %3013 = vmatpush2.bf16.msra.mxu0 %v2622
      %3014 = vmatprep.subr.bf16.mxu0 0
      %3015 = vmatpush2.bf16.msra.mxu0 %v2621
      %3016 = vmatprep.subr.bf16.mxu0 0
      %3017 = vmatpush2.bf16.msra.mxu0 %v2620
      %3018 = vmatprep.subr.bf16.mxu0 0
      %3019 = vmatpush2.bf16.msra.mxu0 %v2619
      %3020 = vmatprep.subr.bf16.mxu0 0
      %3021 = vmatpush2.bf16.msra.mxu0 %v2618
      %3022 = vmatprep.subr.bf16.mxu0 0
      %3023 = vmatpush2.bf16.msra.mxu0 %v2617
      %3024 = vmatprep.subr.bf16.mxu0 0
      %3025 = vmatpush2.bf16.msra.mxu0 %v2616
      %3026 = vmatprep.subr.bf16.mxu0 0
      %3027 = vmatpush2.bf16.msra.mxu0 %v2615
      %3028 = vmatprep.mubr.bf16.mxu0 %v2100
      %3029 = vmatmul.mubr.bf16.gmra.mxu0 %v2099
      %v3030 = vpop.f32.mrf.mxu0
      %v3031 = vadd.f32 %v2966, %v3030
      %v3032 = vpop.f32.mrf.mxu0
      %v3033 = vpop.f32.mrf.mxu0
      %v3034 = vadd.f32 %v2969, %v3033
      %v3035 = vpop.f32.mrf.mxu0
      %3036 = vmatprep.mubr.bf16.mxu0 %v2112
      %3037 = vmatmul.mubr.bf16.gmra.mxu0 %v2111
      %v3038 = vpop.f32.mrf.mxu0
      %v3039 = vadd.f32 %v2974, %v3038
      %v3040 = vpop.f32.mrf.mxu0
      %v3041 = vpop.f32.mrf.mxu0
      %v3042 = vadd.f32 %v2977, %v3041
      %v3043 = vpop.f32.mrf.mxu0
      %3044 = vmatprep.mubr.bf16.mxu0 %v2124
      %3045 = vmatmul.mubr.bf16.gmra.mxu0 %v2123
      %v3046 = vpop.f32.mrf.mxu0
      %v3047 = vadd.f32 %v2982, %v3046
      %v3048 = vpop.f32.mrf.mxu0
      %v3049 = vpop.f32.mrf.mxu0
      %v3050 = vadd.f32 %v2985, %v3049
      %v3051 = vpop.f32.mrf.mxu0
      %3052 = vmatprep.mubr.bf16.mxu0 %v2136
      %3053 = vmatmul.mubr.bf16.gmra.mxu0 %v2135
      %v3054 = vpop.f32.mrf.mxu0
      %v3055 = vadd.f32 %v2990, %v3054
      %v3056 = vpop.f32.mrf.mxu0
      %v3057 = vpop.f32.mrf.mxu0
      %v3058 = vadd.f32 %v2993, %v3057
      %v3059 = vpop.f32.mrf.mxu0
      %3060 = vdwg.mxu0
      %3061 = vmatprep.subr.bf16.mxu0 0
      %3062 = vmatpush1.bf16.msra.mxu0 %v2630
      %3063 = vmatprep.subr.bf16.mxu0 0
      %3064 = vmatpush1.bf16.msra.mxu0 %v2629
      %3065 = vmatprep.subr.bf16.mxu0 0
      %3066 = vmatpush1.bf16.msra.mxu0 %v2628
      %3067 = vmatprep.subr.bf16.mxu0 0
      %3068 = vmatpush1.bf16.msra.mxu0 %v2627
      %3069 = vmatprep.subr.bf16.mxu0 0
      %3070 = vmatpush1.bf16.msra.mxu0 %v2626
      %3071 = vmatprep.subr.bf16.mxu0 0
      %3072 = vmatpush1.bf16.msra.mxu0 %v2625
      %3073 = vmatprep.subr.bf16.mxu0 0
      %3074 = vmatpush1.bf16.msra.mxu0 %v2624
      %3075 = vmatprep.subr.bf16.mxu0 0
      %3076 = vmatpush1.bf16.msra.mxu0 %v2623
      %3077 = vmatprep.subr.bf16.mxu0 0
      %3078 = vmatpush2.bf16.msra.mxu0 0
      %3079 = vmatprep.subr.bf16.mxu0 0
      %3080 = vmatpush2.bf16.msra.mxu0 0
      %3081 = vmatprep.subr.bf16.mxu0 0
      %3082 = vmatpush2.bf16.msra.mxu0 0
      %3083 = vmatprep.subr.bf16.mxu0 0
      %3084 = vmatpush2.bf16.msra.mxu0 0
      %3085 = vmatprep.subr.bf16.mxu0 0
      %3086 = vmatpush2.bf16.msra.mxu0 0
      %3087 = vmatprep.subr.bf16.mxu0 0
      %3088 = vmatpush2.bf16.msra.mxu0 0
      %3089 = vmatprep.subr.bf16.mxu0 0
      %3090 = vmatpush2.bf16.msra.mxu0 %v2632
      %3091 = vmatprep.subr.bf16.mxu0 0
      %3092 = vmatpush2.bf16.msra.mxu0 %v2631
      %3093 = vmatprep.mubr.bf16.mxu0 %v2725
      %3094 = vmatmul.mubr.bf16.gmra.mxu0 %v2101
      %v3095 = vpop.f32.mrf.mxu0
      %v3096 = vadd.f32 %v3031, %v3095
      %v3097 = vpop.f32.mrf.mxu0
      %v3098 = vpop.f32.mrf.mxu0
      %v3099 = vadd.f32 %v3034, %v3098
      %v3100 = vpop.f32.mrf.mxu0
      %3101 = vmatprep.mubr.bf16.mxu0 %v2728
      %3102 = vmatmul.mubr.bf16.gmra.mxu0 %v2113
      %v3103 = vpop.f32.mrf.mxu0
      %v3104 = vadd.f32 %v3039, %v3103
      %v3105 = vpop.f32.mrf.mxu0
      %v3106 = vpop.f32.mrf.mxu0
      %v3107 = vadd.f32 %v3042, %v3106
      %v3108 = vpop.f32.mrf.mxu0
      %3109 = vmatprep.mubr.bf16.mxu0 %v2731
      %3110 = vmatmul.mubr.bf16.gmra.mxu0 %v2125
      %v3111 = vpop.f32.mrf.mxu0
      %v3112 = vadd.f32 %v3047, %v3111
      %v3113 = vpop.f32.mrf.mxu0
      %v3114 = vpop.f32.mrf.mxu0
      %v3115 = vadd.f32 %v3050, %v3114
      %v3116 = vpop.f32.mrf.mxu0
      %3117 = vmatprep.mubr.bf16.mxu0 %v2734
      %3118 = vmatmul.mubr.bf16.gmra.mxu0 %v2137
      %v3119 = vpop.f32.mrf.mxu0
      %v3120 = vadd.f32 %v3055, %v3119
      %v3121 = vpop.f32.mrf.mxu0
      %v3122 = vpop.f32.mrf.mxu0
      %v3123 = vadd.f32 %v3058, %v3122
      %v3124 = vpop.f32.mrf.mxu0
      %3125 = vdwg.mxu0
      %v3126 = vpack.c.bf16 %v3099, %v3096
      %v3127 = vpack.c.bf16 %v3107, %v3104
      %v3128 = vpack.c.bf16 %v3115, %v3112
      %v3129 = vpack.c.bf16 %v3123, %v3120
      %v3134 = vunpack.c.l.b16 %v3126
      %v3135 = vunpack.c.h.b16 %v3126
      %v3136 = vunpack.c.l.b16 %v3127
      %v3137 = vunpack.c.h.b16 %v3127
      %v3138 = vunpack.c.l.b16 %v3128
      %v3139 = vunpack.c.h.b16 %v3128
      %v3140 = vunpack.c.l.b16 %v3129
      %v3141 = vunpack.c.h.b16 %v3129
      %v3142 = vpack.c.b16 %v3134, %v3134
      %v3143 = vpack.c.b16 %v3135, %v3135
      %v3144 = vpack.c.b16 %v3136, %v3136
      %v3145 = vpack.c.b16 %v3137, %v3137
      %v3146 = vpack.c.b16 %v3138, %v3138
      %v3147 = vpack.c.b16 %v3139, %v3139
      %v3148 = vpack.c.b16 %v3140, %v3140
      %v3149 = vpack.c.b16 %v3141, %v3141
      %3158 = vst [vmem:[%s292] sm:$0xf] %v3142
      %3159 = vst [vmem:[%s292 + $0x4] sm:$0xf] %v3143
      %3160 = vst [vmem:[%s292 + $0x8] sm:$0xf] %v3144
      %3161 = vst [vmem:[%s292 + $0xc] sm:$0xf] %v3145
      %3162 = vst [vmem:[%s292 + $0x10] sm:$0xf] %v3146
      %3163 = vst [vmem:[%s292 + $0x14] sm:$0xf] %v3147
      %3164 = vst [vmem:[%s292 + $0x18] sm:$0xf] %v3148
      %3165 = vst [vmem:[%s292 + $0x1c] sm:$0xf] %v3149
      %v3166 = vadd.f32 %v3096, %v3099
      %v3167 = vadd.f32 %v3166, %v3104
      %v3168 = vadd.f32 %v3167, %v3107
      %v3169 = vadd.f32 %v3168, %v3112
      %v3170 = vadd.f32 %v3169, %v3115
      %v3171 = vadd.f32 %v3170, %v3120
      %v3172 = vadd.f32 %v3171, %v3123
      %v3173 = vrot.slane %v3172, 4
      %v3174 = vadd.f32 %v3172, %v3173
      %v3175 = vrot.slane %v3174, 2
      %v3176 = vadd.f32 %v3174, %v3175
      %v3177 = vrot.slane %v3176, 1
      %v3178 = vadd.f32 %v3176, %v3177
      %3179 = vst [vmem:[%s299] sm:$0x1] %v3178
      %v3180 = vmul.f32 %v3096, %v3096
      %v3181 = vmul.f32 %v3099, %v3099
      %v3182 = vmul.f32 %v3104, %v3104
      %v3183 = vmul.f32 %v3107, %v3107
      %v3184 = vmul.f32 %v3112, %v3112
      %v3185 = vmul.f32 %v3115, %v3115
      %v3186 = vmul.f32 %v3120, %v3120
      %v3187 = vmul.f32 %v3123, %v3123
      %v3188 = vadd.f32 %v3180, %v3181
      %v3189 = vadd.f32 %v3188, %v3182
      %v3190 = vadd.f32 %v3189, %v3183
      %v3191 = vadd.f32 %v3190, %v3184
      %v3192 = vadd.f32 %v3191, %v3185
      %v3193 = vadd.f32 %v3192, %v3186
      %v3194 = vadd.f32 %v3193, %v3187
      %v3195 = vrot.slane %v3194, 4
      %v3196 = vadd.f32 %v3194, %v3195
      %v3197 = vrot.slane %v3196, 2
      %v3198 = vadd.f32 %v3196, %v3197
      %v3199 = vrot.slane %v3198, 1
      %v3200 = vadd.f32 %v3198, %v3199
      %3201 = vst [vmem:[%s299 + $0x1] sm:$0x1] %v3200
      %p3202 = scmp.lt.s32.totalorder %s21, 1
      %s3203 = scalar_select %p3202, %s21, 1
      %p3204 = scmp.lt.s32.totalorder %s22, 0
      %s3205 = scalar_select %p3204, %s22, 0
      %s3206 = smul.addr %s3205, 8
      %s3207 = smul.addr %s3203, 8
      %s3208 = sadd.s32 %s3206, %s3207
      %s3209 = smul.addr %s3208, 4
      %s3210 = scalar_lea.vmem %s4, %s3209
      %p3211 = scmp.lt.s32.totalorder %s21, 1
      %s3212 = scalar_select %p3211, %s21, 1
      %p3213 = scmp.lt.s32.totalorder %s22, 0
      %s3214 = scalar_select %p3213, %s22, 0
      %s3215 = sadd.s32 %s3214, %s3212
      %s3216 = smul.addr %s3215, 2
      %s3217 = scalar_lea.vmem %s5, %s3216
      // Predicated region
      $region37: #{double_conv3d.4} parent=35 // pred_check
        %p3218 = pneg %p145
      $region38: #{double_conv3d.4} parent=35 // pred_check_branch
        %3220 = sbr.rel (%p3218) target = $region40
      $region39: #{double_conv3d.4} parent=35 // pred_region
        _
      $region40: #{double_conv3d.4} parent=35 // pred_fallthru
        _
      // Predicated region
      $region41: #{double_conv3d.4} parent=35 // pred_check
        %p3221 = pneg %p173
      $region42: #{double_conv3d.4} parent=35 // pred_check_branch
        %3223 = sbr.rel (%p3221) target = $region44
      $region43: #{double_conv3d.4} parent=35 // pred_region
        _
      $region44: #{double_conv3d.4} parent=35 // pred_fallthru
        _
    $region36: #{double_conv3d.4} parent=5 // pred_fallthru
      _
    %p3224 = scmp.le.s32.totalorder 2, %s12
    // Predicated region
    $region45: #{double_conv3d.4} parent=5 // pred_check
      %p3225 = pneg %p3224
    $region46: #{double_conv3d.4} parent=5 // pred_check_branch
      %3227 = sbr.rel (%p3225) target = $region48
    $region47: #{double_conv3d.4} parent=5 // pred_region
      %s3228 = ssub.s32 %s12, 2
      // Predicated region
      $region49: #{double_conv3d.4} parent=47 // pred_check
        %p3229 = pneg %p151
      $region50: #{double_conv3d.4} parent=47 // pred_check_branch
        %3231 = sbr.rel (%p3229) target = $region52
      $region51: #{double_conv3d.4} parent=47 // pred_region
        %p3232 = scmp.lt.s32.totalorder %s23, 1
        %s3233 = scalar_select %p3232, %s23, 1
        %p3234 = scmp.lt.s32.totalorder %s24, 0
        %s3235 = scalar_select %p3234, %s24, 0
        %s3236 = smul.addr %s3235, 8
        %s3237 = smul.addr %s3233, 8
        %s3238 = sadd.s32 %s3236, %s3237
        %s3239 = smul.addr %s3238, 4
        %s3240 = scalar_lea.vmem %s4, %s3239
      $region52: #{double_conv3d.4} parent=47 // pred_fallthru
        _
      // Predicated region
      $region53: #{double_conv3d.4} parent=47 // pred_check
        %p3241 = pneg %p179
      $region54: #{double_conv3d.4} parent=47 // pred_check_branch
        %3243 = sbr.rel (%p3241) target = $region56
      $region55: #{double_conv3d.4} parent=47 // pred_region
        %p3244 = scmp.lt.s32.totalorder %s23, 1
        %s3245 = scalar_select %p3244, %s23, 1
        %p3246 = scmp.lt.s32.totalorder %s24, 0
        %s3247 = scalar_select %p3246, %s24, 0
        %s3248 = sadd.s32 %s3247, %s3245
        %s3249 = smul.addr %s3248, 2
        %s3250 = scalar_lea.vmem %s5, %s3249
      $region56: #{double_conv3d.4} parent=47 // pred_fallthru
        _
    $region48: #{double_conv3d.4} parent=5 // pred_fallthru
      _
  $region6: #{double_conv3d.4} parent=0 // loop_footer
    %s16 = sadd.s32 1, %s12
  $region7: #{double_conv3d.4} parent=0 // loop_footer_branch
    %11 = sbr.rel target = $region3
  $region8: #{double_conv3d.4} parent=0 // loop_exit
    _

// kernel: double_conv3d.5
$region0: #{double_conv3d.5}
  #allocation0 [shape = 'u32[]', space=smem, size = 0x4, offset = 0x4, fixed_abs, tag = 'smem constant byte address 0x4 - core index']
  #allocation1 [shape = 'u32[144,128]{1,0:T(1,128)}', space=vmem, size = 0x12000, scoped, tag = 'internal scratch']
  %s0 = inlined_call_operand.vmem [shape: bf16[2,16,512], index: 0, kind: input, shape index: {}]
  %s1 = inlined_call_operand.vmem [shape: f32[2,1,512], index: 1, kind: input, shape index: {}]
  %s2 = inlined_call_operand.vmem [shape: f32[2,1,512], index: 2, kind: input, shape index: {}]
  %s3 = inlined_call_operand.vmem [shape: f32[2,16,512], index: 3, kind: output, shape index: {}]
  %s4 = sld [smem:[#allocation0]]
  $region45: #{double_conv3d.5} parent=0
    _
  %s6 = ssub.s32 1, %s4
  %s7 = scalar_select 0, %s6, %s4
  loop: start=0, step=1, limit=4
  $region2: #{double_conv3d.5} parent=0 // loop_pre_header
    _
  $region3: #{double_conv3d.5} parent=0 // loop_header
    %s9 = sphi 0, %s13
    %p10 = scmp.ge.s32.totalorder %s9, 4
    %s16 = sphi 0, %s28
    %s17 = sphi 0, %s24
    %s18 = sphi 0, %s16
    %s19 = sphi 0, %s17
    %s20 = sphi 0, %s18
    %s21 = sphi 0, %s19
    %s33 = sphi 0, %s35
    %s36 = sphi 0, %s33
    %s37 = sphi 0, %s36
    %s53 = sphi 0, %s37
    %s59 = sphi 0, %s61
    %s62 = sphi 0, %s59
    %s63 = sphi 0, %s62
    %s79 = sphi 0, %s63
    %s85 = sphi 0, %s87
    %s88 = sphi 0, %s85
    %s89 = sphi 0, %s88
    %s105 = sphi 0, %s89
    %s113 = sphi 0, %s115
    %s116 = sphi 0, %s113
    %s117 = sphi 0, %s116
    %s133 = sphi 0, %s117
  $region4: #{double_conv3d.5} parent=0 // loop_header_branch
    %12 = sbr.rel (%p10) target = $region8
  $region5: #{double_conv3d.5} parent=0 // loop_body
    %s14 = ssub.s32 %s9, 1
    %s15 = ssub.s32 %s9, 2
    %s22 = sadd.s32 1, %s17
    %p23 = scmp.ge.s32.totalorder %s22, 1
    %s24 = scalar_select %p23, 0, %s22
    %s25 = sadd.s32 1, %s16
    %s26 = scalar_select %p23, %s25, %s16
    %p27 = scmp.ge.s32.totalorder %s26, 2
    %s28 = scalar_select %p27, 0, %s26
    %s29 = ssub.s32 %s16, %s28
    %s30 = ssub.s32 %s17, %s24
    %s31 = sor.u32 %s29, %s30
    %p32 = scmp.eq.s32.totalorder %s31, 0
    %s34 = sadd.s32 %s33, 1
    %s35 = scalar_select %p32, %s33, %s34
    %p38 = pneg %p32
    %p39 = scmp.eq.s32.totalorder %s9, 1
    %p40 = por %p38, %p39
    %p41 = scmp.ne.s32.totalorder %s33, %s36
    %p42 = scmp.eq.s32.totalorder %s9, 0
    %p43 = por %p41, %p42
    %p44 = scmp.ne.s32.totalorder %s33, %s36
    %p45 = scmp.eq.s32.totalorder %s14, 1
    %p46 = por %p44, %p45
    %p47 = scmp.ne.s32.totalorder %s36, %s37
    %p48 = scmp.eq.s32.totalorder %s14, 0
    %p49 = por %p47, %p48
    %p50 = scmp.ne.s32.totalorder %s36, %s37
    %p51 = scmp.eq.s32.totalorder %s15, 1
    %p52 = por %p50, %p51
    %p54 = scmp.ne.s32.totalorder %s37, %s53
    %p55 = scmp.eq.s32.totalorder %s15, 0
    %p56 = por %p54, %p55
    %s57 = ssub.s32 %s16, %s28
    %p58 = scmp.eq.s32.totalorder %s57, 0
    %s60 = sadd.s32 %s59, 1
    %s61 = scalar_select %p58, %s59, %s60
    %p64 = pneg %p58
    %p65 = scmp.eq.s32.totalorder %s9, 1
    %p66 = por %p64, %p65
    %p67 = scmp.ne.s32.totalorder %s59, %s62
    %p68 = scmp.eq.s32.totalorder %s9, 0
    %p69 = por %p67, %p68
    %p70 = scmp.ne.s32.totalorder %s59, %s62
    %p71 = scmp.eq.s32.totalorder %s14, 1
    %p72 = por %p70, %p71
    %p73 = scmp.ne.s32.totalorder %s62, %s63
    %p74 = scmp.eq.s32.totalorder %s14, 0
    %p75 = por %p73, %p74
    %p76 = scmp.ne.s32.totalorder %s62, %s63
    %p77 = scmp.eq.s32.totalorder %s15, 1
    %p78 = por %p76, %p77
    %p80 = scmp.ne.s32.totalorder %s63, %s79
    %p81 = scmp.eq.s32.totalorder %s15, 0
    %p82 = por %p80, %p81
    %s83 = ssub.s32 %s16, %s28
    %p84 = scmp.eq.s32.totalorder %s83, 0
    %s86 = sadd.s32 %s85, 1
    %s87 = scalar_select %p84, %s85, %s86
    %p90 = pneg %p84
    %p91 = scmp.eq.s32.totalorder %s9, 1
    %p92 = por %p90, %p91
    %p93 = scmp.ne.s32.totalorder %s85, %s88
    %p94 = scmp.eq.s32.totalorder %s9, 0
    %p95 = por %p93, %p94
    %p96 = scmp.ne.s32.totalorder %s85, %s88
    %p97 = scmp.eq.s32.totalorder %s14, 1
    %p98 = por %p96, %p97
    %p99 = scmp.ne.s32.totalorder %s88, %s89
    %p100 = scmp.eq.s32.totalorder %s14, 0
    %p101 = por %p99, %p100
    %p102 = scmp.ne.s32.totalorder %s88, %s89
    %p103 = scmp.eq.s32.totalorder %s15, 1
    %p104 = por %p102, %p103
    %p106 = scmp.ne.s32.totalorder %s89, %s105
    %p107 = scmp.eq.s32.totalorder %s15, 0
    %p108 = por %p106, %p107
    %s109 = ssub.s32 %s16, %s28
    %s110 = ssub.s32 %s17, %s24
    %s111 = sor.u32 %s109, %s110
    %p112 = scmp.eq.s32.totalorder %s111, 0
    %s114 = sadd.s32 %s113, 1
    %s115 = scalar_select %p112, %s113, %s114
    %p118 = pneg %p112
    %p119 = scmp.eq.s32.totalorder %s9, 1
    %p120 = por %p118, %p119
    %p121 = scmp.ne.s32.totalorder %s113, %s116
    %p122 = scmp.eq.s32.totalorder %s9, 0
    %p123 = por %p121, %p122
    %p124 = scmp.ne.s32.totalorder %s113, %s116
    %p125 = scmp.eq.s32.totalorder %s14, 1
    %p126 = por %p124, %p125
    %p127 = scmp.ne.s32.totalorder %s116, %s117
    %p128 = scmp.eq.s32.totalorder %s14, 0
    %p129 = por %p127, %p128
    %p130 = scmp.ne.s32.totalorder %s116, %s117
    %p131 = scmp.eq.s32.totalorder %s15, 1
    %p132 = por %p130, %p131
    %p134 = scmp.ne.s32.totalorder %s117, %s133
    %p135 = scmp.eq.s32.totalorder %s15, 0
    %p136 = por %p134, %p135
    %p137 = scmp.le.s32.totalorder 1, %s9
    %p138 = scmp.lt.s32.totalorder %s9, 3
    %p139 = pnand %p137, %p138
    %p140 = pneg %p139
    // Predicated region
    $region9: #{double_conv3d.5} parent=5 // pred_check
      _
    $region10: #{double_conv3d.5} parent=5 // pred_check_branch
      %142 = sbr.rel (%p139) target = $region12
    $region11: #{double_conv3d.5} parent=5 // pred_region
      %s143 = ssub.s32 %s9, 1
    $region12: #{double_conv3d.5} parent=5 // pred_fallthru
      _
    %p144 = scmp.lt.s32.totalorder %s9, 2
    // Predicated region
    $region13: #{double_conv3d.5} parent=5 // pred_check
      %p145 = pneg %p144
    $region14: #{double_conv3d.5} parent=5 // pred_check_branch
      %147 = sbr.rel (%p145) target = $region16
    $region15: #{double_conv3d.5} parent=5 // pred_region
      // Predicated region
      $region17: #{double_conv3d.5} parent=15 // pred_check
        %p148 = pneg %p43
      $region18: #{double_conv3d.5} parent=15 // pred_check_branch
        %150 = sbr.rel (%p148) target = $region20
      $region19: #{double_conv3d.5} parent=15 // pred_region
        %s151 = smul.u32 2, %s17
        %p152 = scmp.lt.s32.totalorder %s16, 1
        %s153 = scalar_select %p152, %s16, 1
        %p154 = scmp.lt.s32.totalorder %s151, 1
        %s155 = scalar_select %p154, %s151, 1
        %s156 = smul.addr %s155, 4
        %s157 = smul.addr %s153, 8
        %s158 = sadd.s32 %s156, %s157
        %s159 = smul.addr %s158, 4
        %s160 = scalar_lea.vmem %s0, %s159
        %s161 = smul.u32 2, %s17
      $region20: #{double_conv3d.5} parent=15 // pred_fallthru
        _
      // Predicated region
      $region21: #{double_conv3d.5} parent=15 // pred_check
        %p162 = pneg %p69
      $region22: #{double_conv3d.5} parent=15 // pred_check_branch
        %164 = sbr.rel (%p162) target = $region24
      $region23: #{double_conv3d.5} parent=15 // pred_region
        %p165 = scmp.lt.s32.totalorder %s16, 1
        %s166 = scalar_select %p165, %s16, 1
        %s167 = smul.addr %s166, 4
        %s168 = scalar_lea.vmem %s1, %s167
      $region24: #{double_conv3d.5} parent=15 // pred_fallthru
        _
      // Predicated region
      $region25: #{double_conv3d.5} parent=15 // pred_check
        %p169 = pneg %p95
      $region26: #{double_conv3d.5} parent=15 // pred_check_branch
        %171 = sbr.rel (%p169) target = $region28
      $region27: #{double_conv3d.5} parent=15 // pred_region
        %p172 = scmp.lt.s32.totalorder %s16, 1
        %s173 = scalar_select %p172, %s16, 1
        %s174 = smul.addr %s173, 4
        %s175 = scalar_lea.vmem %s2, %s174
      $region28: #{double_conv3d.5} parent=15 // pred_fallthru
        _
    $region16: #{double_conv3d.5} parent=5 // pred_fallthru
      _
    %p176 = scmp.le.s32.totalorder 1, %s9
    %p177 = scmp.lt.s32.totalorder %s9, 3
    %p178 = pnand %p176, %p177
    %p179 = pneg %p178
    // Predicated region
    $region29: #{double_conv3d.5} parent=5 // pred_check
      _
    $region30: #{double_conv3d.5} parent=5 // pred_check_branch
      %181 = sbr.rel (%p178) target = $region32
    $region31: #{double_conv3d.5} parent=5 // pred_region
      %s182 = ssub.s32 %s9, 1
      %s183 = smul.u32 2, %s19
      %p184 = scmp.lt.s32.totalorder %s18, 1
      %s185 = scalar_select %p184, %s18, 1
      %p186 = scmp.lt.s32.totalorder %s183, 1
      %s187 = scalar_select %p186, %s183, 1
      %s188 = smul.addr %s187, 4
      %s189 = smul.addr %s185, 8
      %s190 = sadd.s32 %s188, %s189
      %s191 = smul.addr %s190, 4
      %s192 = scalar_lea.vmem %s0, %s191
      %p193 = pneg %p49
      %p194 = pneg %p46
      %p195 = scmp.lt.s32.totalorder %s18, 1
      %s196 = scalar_select %p195, %s18, 1
      %s197 = smul.addr %s196, 4
      %s198 = scalar_lea.vmem %s1, %s197
      %p199 = pneg %p75
      %p200 = pneg %p72
      %p201 = scmp.lt.s32.totalorder %s18, 1
      %s202 = scalar_select %p201, %s18, 1
      %s203 = smul.addr %s202, 4
      %s204 = scalar_lea.vmem %s2, %s203
      %p205 = pneg %p101
      %p206 = pneg %p98
      %p207 = pneg %p129
      %p208 = pneg %p126
      %s209 = smul.u32 2, %s19
      %p210 = scmp.lt.s32.totalorder %s18, 1
      %s211 = scalar_select %p210, %s18, 1
      %p212 = scmp.lt.s32.totalorder %s209, 1
      %s213 = scalar_select %p212, %s209, 1
      %s214 = smul.addr %s213, 4
      %s215 = smul.addr %s211, 8
      %s216 = sadd.s32 %s214, %s215
      %s217 = smul.addr %s216, 8
      %s218 = scalar_lea.vmem %s3, %s217
      %s219 = smul.u32 2, %s19
      %p220 = scmp.lt.s32.totalorder %s18, 1
      %s221 = scalar_select %p220, %s18, 1
      %p222 = scmp.lt.s32.totalorder %s219, 1
      %s223 = scalar_select %p222, %s219, 1
      %s224 = smul.addr %s223, 4
      %s225 = smul.addr %s221, 8
      %s226 = sadd.s32 %s224, %s225
      %s227 = smul.addr %s226, 4
      %s228 = scalar_lea.vmem %s0, %s227
      %s229 = smul.u32 2, %s19
      %p230 = scmp.lt.s32.totalorder %s18, 1
      %s231 = scalar_select %p230, %s18, 1
      %s232 = smul.addr %s231, 4
      %s233 = scalar_lea.vmem %s1, %s232
      %p234 = scmp.lt.s32.totalorder %s18, 1
      %s235 = scalar_select %p234, %s18, 1
      %s236 = smul.addr %s235, 4
      %s237 = scalar_lea.vmem %s2, %s236
      %s238 = smul.u32 2, %s19
      %p239 = scmp.lt.s32.totalorder %s18, 1
      %s240 = scalar_select %p239, %s18, 1
      %p241 = scmp.lt.s32.totalorder %s238, 1
      %s242 = scalar_select %p241, %s238, 1
      %s243 = smul.addr %s242, 4
      %s244 = smul.addr %s240, 8
      %s245 = sadd.s32 %s243, %s244
      %s246 = smul.addr %s245, 8
      %s247 = scalar_lea.vmem %s3, %s246
      %s248 = smul.u32 2, %s19
      %v249 = vld [vmem:[%s228] sm:$0xff]
      %v250 = vld [vmem:[%s228 + $0x8] sm:$0xff]
      %v251 = vld [vmem:[%s228 + $0x10] sm:$0xff]
      %v252 = vld [vmem:[%s228 + $0x18] sm:$0xff]
      %v253 = vunpack.c.l.bf16 %v249
      %v254 = vunpack.c.h.bf16 %v249
      %v255 = vunpack.c.l.bf16 %v250
      %v256 = vunpack.c.h.bf16 %v250
      %v257 = vunpack.c.l.bf16 %v251
      %v258 = vunpack.c.h.bf16 %v251
      %v259 = vunpack.c.l.bf16 %v252
      %v260 = vunpack.c.h.bf16 %v252
      %v261 = vld [vmem:[%s233] sm:$0xf]
      %v263 = vlaneseq
      %v264 = vshrl.u32 %v263, 7
      %v265 = vsub.s32 0, %v264
      %v266 = vrot.slane %v261, %v265
      %v267 = vlaneseq
      %v268 = vshrl.u32 %v267, 7
      %v269 = vsub.s32 1, %v268
      %v270 = vrot.slane %v261, %v269
      %v271 = vlaneseq
      %v272 = vshrl.u32 %v271, 7
      %v273 = vsub.s32 2, %v272
      %v274 = vrot.slane %v261, %v273
      %v275 = vlaneseq
      %v276 = vshrl.u32 %v275, 7
      %v277 = vsub.s32 3, %v276
      %v278 = vrot.slane %v261, %v277
      %v283 = vmul.f32 %v253, %v266
      %v284 = vmul.f32 %v254, %v270
      %v285 = vmul.f32 %v255, %v274
      %v286 = vmul.f32 %v256, %v278
      %v287 = vmul.f32 %v257, %v266
      %v288 = vmul.f32 %v258, %v270
      %v289 = vmul.f32 %v259, %v274
      %v290 = vmul.f32 %v260, %v278
      %v291 = vld [vmem:[%s237] sm:$0xf]
      %v293 = vlaneseq
      %v294 = vshrl.u32 %v293, 7
      %v295 = vsub.s32 0, %v294
      %v296 = vrot.slane %v291, %v295
      %v297 = vlaneseq
      %v298 = vshrl.u32 %v297, 7
      %v299 = vsub.s32 1, %v298
      %v300 = vrot.slane %v291, %v299
      %v301 = vlaneseq
      %v302 = vshrl.u32 %v301, 7
      %v303 = vsub.s32 2, %v302
      %v304 = vrot.slane %v291, %v303
      %v305 = vlaneseq
      %v306 = vshrl.u32 %v305, 7
      %v307 = vsub.s32 3, %v306
      %v308 = vrot.slane %v291, %v307
      %v313 = vadd.f32 %v283, %v296
      %v314 = vadd.f32 %v284, %v300
      %v315 = vadd.f32 %v285, %v304
      %v316 = vadd.f32 %v286, %v308
      %v317 = vadd.f32 %v287, %v296
      %v318 = vadd.f32 %v288, %v300
      %v319 = vadd.f32 %v289, %v304
      %v320 = vadd.f32 %v290, %v308
      %vm321 = vcmp.gt.f32.partialorder %v313, 0.0
      %vm322 = vcmp.gt.f32.partialorder %v314, 0.0
      %vm323 = vcmp.gt.f32.partialorder %v315, 0.0
      %vm324 = vcmp.gt.f32.partialorder %v316, 0.0
      %vm325 = vcmp.gt.f32.partialorder %v317, 0.0
      %vm326 = vcmp.gt.f32.partialorder %v318, 0.0
      %vm327 = vcmp.gt.f32.partialorder %v319, 0.0
      %vm328 = vcmp.gt.f32.partialorder %v320, 0.0
      %v329 = vmul.f32 %v313, 0.01
      %v330 = vmul.f32 %v314, 0.01
      %v331 = vmul.f32 %v315, 0.01
      %v332 = vmul.f32 %v316, 0.01
      %v333 = vmul.f32 %v317, 0.01
      %v334 = vmul.f32 %v318, 0.01
      %v335 = vmul.f32 %v319, 0.01
      %v336 = vmul.f32 %v320, 0.01
      %v337 = vsel %vm321, %v313, %v329
      %v338 = vsel %vm322, %v314, %v330
      %v339 = vsel %vm323, %v315, %v331
      %v340 = vsel %vm324, %v316, %v332
      %v341 = vsel %vm325, %v317, %v333
      %v342 = vsel %vm326, %v318, %v334
      %v343 = vsel %vm327, %v319, %v335
      %v344 = vsel %vm328, %v320, %v336
      %345 = vst [vmem:[%s247] sm:$0xff] %v337
      %346 = vst [vmem:[%s247 + $0x8] sm:$0xff] %v338
      %347 = vst [vmem:[%s247 + $0x10] sm:$0xff] %v339
      %348 = vst [vmem:[%s247 + $0x18] sm:$0xff] %v340
      %349 = vst [vmem:[%s247 + $0x20] sm:$0xff] %v341
      %350 = vst [vmem:[%s247 + $0x28] sm:$0xff] %v342
      %351 = vst [vmem:[%s247 + $0x30] sm:$0xff] %v343
      %352 = vst [vmem:[%s247 + $0x38] sm:$0xff] %v344
      %s353 = smul.u32 2, %s19
      %p354 = scmp.lt.s32.totalorder %s18, 1
      %s355 = scalar_select %p354, %s18, 1
      %p356 = scmp.lt.s32.totalorder %s353, 1
      %s357 = scalar_select %p356, %s353, 1
      %s358 = smul.addr %s357, 4
      %s359 = smul.addr %s355, 8
      %s360 = sadd.s32 %s358, %s359
      %s361 = smul.addr %s360, 8
      %s362 = scalar_lea.vmem %s3, %s361
      // Predicated region
      $region33: #{double_conv3d.5} parent=31 // pred_check
        %p363 = pneg %p126
      $region34: #{double_conv3d.5} parent=31 // pred_check_branch
        %365 = sbr.rel (%p363) target = $region36
      $region35: #{double_conv3d.5} parent=31 // pred_region
        %s366 = smul.u32 2, %s19
      $region36: #{double_conv3d.5} parent=31 // pred_fallthru
        _
    $region32: #{double_conv3d.5} parent=5 // pred_fallthru
      _
    %p367 = scmp.le.s32.totalorder 2, %s9
    // Predicated region
    $region37: #{double_conv3d.5} parent=5 // pred_check
      %p368 = pneg %p367
    $region38: #{double_conv3d.5} parent=5 // pred_check_branch
      %370 = sbr.rel (%p368) target = $region40
    $region39: #{double_conv3d.5} parent=5 // pred_region
      %s371 = ssub.s32 %s9, 2
      // Predicated region
      $region41: #{double_conv3d.5} parent=39 // pred_check
        %p372 = pneg %p132
      $region42: #{double_conv3d.5} parent=39 // pred_check_branch
        %374 = sbr.rel (%p372) target = $region44
      $region43: #{double_conv3d.5} parent=39 // pred_region
        %s375 = smul.u32 2, %s21
        %p376 = scmp.lt.s32.totalorder %s20, 1
        %s377 = scalar_select %p376, %s20, 1
        %p378 = scmp.lt.s32.totalorder %s375, 1
        %s379 = scalar_select %p378, %s375, 1
        %s380 = smul.addr %s379, 4
        %s381 = smul.addr %s377, 8
        %s382 = sadd.s32 %s380, %s381
        %s383 = smul.addr %s382, 8
        %s384 = scalar_lea.vmem %s3, %s383
      $region44: #{double_conv3d.5} parent=39 // pred_fallthru
        _
    $region40: #{double_conv3d.5} parent=5 // pred_fallthru
      _
  $region6: #{double_conv3d.5} parent=0 // loop_footer
    %s13 = sadd.s32 1, %s9
  $region7: #{double_conv3d.5} parent=0 // loop_footer_branch
    %8 = sbr.rel target = $region3
  $region8: #{double_conv3d.5} parent=0 // loop_exit
    _

</llo_original>
